<compile_context>
chip_gen: v7x
topology: tpu7x:2x2x1
jax: 0.10.0
libtpu: 0.0.40
codegen_flags: <defaults>
</compile_context>

<pallas_src>
import functools

import numpy as np

import jax
import jax.numpy as jnp
from jax import lax
from jax.experimental import pallas as pl
from jax.experimental.pallas import tpu as pltpu


# --------------------------------------------------------------------------
# Static geometry (input pinned to 1x28x28 by fc1 = 32*5*5, like MNIST).
#   conv1: pad 1, k5  : 28 -> 26   (padded 30x30, flattened to 900 (+4) lanes)
#   maxpool 2x2       : 26 -> 13
#   conv2: pad 1, k5  : 13 -> 11   (padded 15x15 = 225 lanes)
#   avgpool 2x2       : 11 -> 5
#   fc: 800 -> 64 -> 10
# Flat-spatial trick: conv outputs are computed at every flattened position of
# the *padded* row width (garbage columns at the row ends are never selected
# by the pooling/selection matrices).
# --------------------------------------------------------------------------
_W1P, _NP1 = 30, 26 * 30          # conv1 padded width, #flat conv1 positions (780)
_HM1 = _NP1 - 30 - 1              # width of 2x2-max map (749)
_W2P, _XP2 = 15, 232              # conv2 padded width, conv2 input lanes (225 -> 232)
_NP2 = 11 * 15                    # #flat conv2 positions (165)
_HS2 = _NP2 - 15 - 1              # width of 2x2-sum map (149)


def _pool_selection_matrices():
    """Constant 0/1 (and 0.25) gather matrices used to compact pooled pixels.

    s2: (749, 232)  max-pooled conv1 pixel at flat pos p -> padded conv2 input
                    position (ph+1)*15 + (pw+1); all other columns are the
                    zero padding for conv2.
    s3: (149, 25)   avg-pool (sum/4) conv2 pixel -> 5x5 row-major position.
    """
    s2 = np.zeros((_HM1, _XP2), dtype=np.float32)
    for ph in range(13):
        for pw in range(13):
            s2[2 * ph * _W1P + 2 * pw, (ph + 1) * _W2P + (pw + 1)] = 1.0
    s3 = np.zeros((_HS2, 25), dtype=np.float32)
    for ph in range(5):
        for pw in range(5):
            s3[2 * ph * _W2P + 2 * pw, ph * 5 + pw] = 0.25
    return s2, s3


_S2_NP, _S3_NP = _pool_selection_matrices()


# ------------------------------ fused kernel -------------------------------

def _fused_cnn_kernel(x_ref, w1_ref, b1_ref, s2_ref, w2_ref, b2_ref, s3_ref,
                      fw1_ref, fb1_ref, fw2_ref, fb2_ref, o_ref,
                      p1_ref, a1_ref, xp2_ref, p2_ref, a2_ref, pool2_ref,
                      flat_ref):
    blk = x_ref.shape[0]
    for b in range(blk):  # static unroll over the images of this grid step
        # ---- conv1 (1->16, k5, pad1): im2col in VMEM + one MXU matmul -------
        # p1[t, p] = xflat[p + (kh*30 + kw)]  for tap t = kh*5 + kw
        for t in range(25):
            off = (t // 5) * _W1P + (t % 5)
            p1_ref[t:t + 1, :] = x_ref[b, :, off:off + _NP1]
        a1 = jnp.dot(w1_ref[...], p1_ref[...],
                     preferred_element_type=jnp.float32)          # (16, 780)
        a1_ref[...] = jnp.maximum(a1 + b1_ref[...], 0.0)

        # ---- maxpool 2x2 (floor), fused: shifted VMEM loads + max -----------
        hmax = jnp.maximum(
            jnp.maximum(a1_ref[:, 0:_HM1], a1_ref[:, 1:_HM1 + 1]),
            jnp.maximum(a1_ref[:, _W1P:_W1P + _HM1],
                        a1_ref[:, _W1P + 1:_W1P + 1 + _HM1]))      # (16, 749)
        # compact pooled pixels into the zero-padded conv2 input layout
        xp2_ref[...] = jnp.dot(hmax, s2_ref[...],
                               preferred_element_type=jnp.float32)  # (16, 232)

        # ---- conv2 (16->32, k5, pad1): im2col in VMEM + one MXU matmul ------
        for t in range(25):
            off = (t // 5) * _W2P + (t % 5)
            p2_ref[16 * t:16 * (t + 1), :] = xp2_ref[:, off:off + _NP2]
        a2 = jnp.dot(w2_ref[...], p2_ref[...],
                     preferred_element_type=jnp.float32)           # (32, 165)
        a2_ref[...] = jnp.maximum(a2 + b2_ref[...], 0.0)

        # ---- avgpool 2x2, fused: shifted loads + sum, then 0.25 selection ---
        hsum = (a2_ref[:, 0:_HS2] + a2_ref[:, 1:_HS2 + 1]
                + a2_ref[:, _W2P:_W2P + _HS2]
                + a2_ref[:, _W2P + 1:_W2P + 1 + _HS2])             # (32, 149)
        pool2_ref[...] = jnp.dot(hsum, s3_ref[...],
                                 preferred_element_type=jnp.float32)  # (32, 25)

        # ---- flatten in PyTorch NCHW order onto the lane axis ---------------
        for c in range(32):
            flat_ref[:, 25 * c:25 * (c + 1)] = pool2_ref[c:c + 1, :]

        # ---- fc1 + relu + fc2 ------------------------------------------------
        h = jnp.dot(flat_ref[...], fw1_ref[...],
                    preferred_element_type=jnp.float32)            # (1, 64)
        h = jnp.maximum(h + fb1_ref[...], 0.0)
        logits = jnp.dot(h, fw2_ref[...],
                         preferred_element_type=jnp.float32) + fb2_ref[...]
        o_ref[b, :, :] = logits                                    # (1, 10)


# ------------------------------ host wrapper --------------------------------

@functools.partial(jax.jit, static_argnames=("block_n",))
def forward_pallas(x_nchw, params, block_n=2):
    N = x_nchw.shape[0]
    x = x_nchw.astype(jnp.float32).reshape(N, 28, 28)
    # zero-pad (conv padding=1) and row-flatten so every conv tap is a
    # contiguous lane slice of the image; +4 lanes so the last tap stays in
    # bounds (max offset 124 + 780 = 904).
    xpad = jnp.pad(x, ((0, 0), (1, 1), (1, 1)))                    # (N, 30, 30)
    xflat = jnp.pad(xpad.reshape(N, 1, 900), ((0, 0), (0, 0), (0, 4)))

    blk = max(1, min(block_n, N))
    n_extra = (-N) % blk
    if n_extra:
        xflat = jnp.pad(xflat, ((0, n_extra), (0, 0), (0, 0)))
    n_tot = N + n_extra

    # ---- weight prep (trace-time layout plumbing only) ----------------------
    w1m = params["w1"].astype(jnp.float32).reshape(16, 25)         # (Cout, kh*kw)
    b1c = params["b1"].astype(jnp.float32).reshape(16, 1)
    w2m = jnp.transpose(params["w2"].astype(jnp.float32),
                        (0, 2, 3, 1)).reshape(32, 400)             # (Cout, t*16+ci)
    b2c = params["b2"].astype(jnp.float32).reshape(32, 1)
    fw1 = params["fc1_w"].astype(jnp.float32).T                    # (800, 64)
    fb1 = params["fc1_b"].astype(jnp.float32).reshape(1, 64)
    fw2 = params["fc2_w"].astype(jnp.float32).T                    # (64, 10)
    fb2 = params["fc2_b"].astype(jnp.float32).reshape(1, 10)
    s2 = jnp.asarray(_S2_NP)
    s3 = jnp.asarray(_S3_NP)

    flops_per_img = 2 * (16 * 25 * _NP1 + 16 * _HM1 * _XP2 + 32 * 400 * _NP2
                         + 32 * _HS2 * 25 + 800 * 64 + 64 * 10)
    weight_bytes = 4 * (16 * 25 + 16 + _HM1 * _XP2 + 32 * 400 + 32
                        + _HS2 * 25 + 800 * 64 + 64 + 64 * 10 + 10)
    cost = pl.CostEstimate(
        flops=flops_per_img * n_tot,
        transcendentals=0,
        bytes_accessed=n_tot * 904 * 4 + weight_bytes + n_tot * 10 * 4,
    )

    const = lambda n: (0, 0)
    out = pl.pallas_call(
        _fused_cnn_kernel,
        out_shape=jax.ShapeDtypeStruct((n_tot, 1, 10), jnp.float32),
        grid=(n_tot // blk,),
        in_specs=[
            pl.BlockSpec((blk, 1, 904), lambda n: (n, 0, 0)),   # images
            pl.BlockSpec((16, 25), const),                      # conv1 W
            pl.BlockSpec((16, 1), const),                       # conv1 b
            pl.BlockSpec((_HM1, _XP2), const),                  # maxpool select
            pl.BlockSpec((32, 400), const),                     # conv2 W
            pl.BlockSpec((32, 1), const),                       # conv2 b
            pl.BlockSpec((_HS2, 25), const),                    # avgpool select
            pl.BlockSpec((800, 64), const),                     # fc1 W^T
            pl.BlockSpec((1, 64), const),                       # fc1 b
            pl.BlockSpec((64, 10), const),                      # fc2 W^T
            pl.BlockSpec((1, 10), const),                       # fc2 b
        ],
        out_specs=pl.BlockSpec((blk, 1, 10), lambda n: (n, 0, 0)),
        scratch_shapes=[
            pltpu.VMEM((25, _NP1), jnp.float32),     # conv1 im2col
            pltpu.VMEM((16, _NP1), jnp.float32),     # conv1 activations
            pltpu.VMEM((16, _XP2), jnp.float32),     # padded conv2 input
            pltpu.VMEM((400, _NP2), jnp.float32),    # conv2 im2col
            pltpu.VMEM((32, _NP2), jnp.float32),     # conv2 activations
            pltpu.VMEM((32, 25), jnp.float32),       # avg-pooled map
            pltpu.VMEM((1, 800), jnp.float32),       # NCHW flatten
        ],
        compiler_params=pltpu.CompilerParams(
            dimension_semantics=("parallel",),
            vmem_limit_bytes=32 * 1024 * 1024,
        ),
        cost_estimate=cost,
    )(xflat, w1m, b1c, s2, w2m, b2c, s3, fw1, fb1, fw2, fb2)

    return out[:N, 0, :]


# ------------------------------ params / reference --------------------------

def init_params(key):
    ks = jax.random.split(key, 8)
    scale = 0.1
    return {
        "w1": (scale * jax.random.normal(ks[0], (16, 1, 5, 5))).astype(jnp.float32),
        "b1": (scale * jax.random.normal(ks[1], (16,))).astype(jnp.float32),
        "w2": (scale * jax.random.normal(ks[2], (32, 16, 5, 5))).astype(jnp.float32),
        "b2": (scale * jax.random.normal(ks[3], (32,))).astype(jnp.float32),
        "fc1_w": (scale * jax.random.normal(ks[4], (64, 32 * 5 * 5))).astype(jnp.float32),
        "fc1_b": (scale * jax.random.normal(ks[5], (64,))).astype(jnp.float32),
        "fc2_w": (scale * jax.random.normal(ks[6], (10, 64))).astype(jnp.float32),
        "fc2_b": (scale * jax.random.normal(ks[7], (10,))).astype(jnp.float32),
    }


def forward_reference(x_nchw, params):
    """Pure-JAX reference mirroring the PyTorch forward."""
    y = lax.conv_general_dilated(
        x_nchw, params["w1"], (1, 1), [(1, 1), (1, 1)],
        dimension_numbers=("NCHW", "OIHW", "NCHW"),
    ) + params["b1"][None, :, None, None]
    y = jnp.maximum(y, 0.0)
    N, C, H, W = y.shape
    y = y[:, :, : H // 2 * 2, : W // 2 * 2].reshape(N, C, H // 2, 2, W // 2, 2)
    y = y.max(axis=(3, 5))

    y = lax.conv_general_dilated(
        y, params["w2"], (1, 1), [(1, 1), (1, 1)],
        dimension_numbers=("NCHW", "OIHW", "NCHW"),
    ) + params["b2"][None, :, None, None]
    y = jnp.maximum(y, 0.0)
    N, C, H, W = y.shape
    y = y[:, :, : H // 2 * 2, : W // 2 * 2].reshape(N, C, H // 2, 2, W // 2, 2)
    y = y.mean(axis=(3, 5))

    flat = y.reshape(N, -1)
    h = jnp.maximum(flat @ params["fc1_w"].T + params["fc1_b"], 0.0)
    return h @ params["fc2_w"].T + params["fc2_b"]


if __name__ == "__main__":
    key = jax.random.PRNGKey(0)
    k_x, k_p = jax.random.split(key)
    # fc1 expects 32*5*5, which pins the input to 28x28 (MNIST-like), 1 channel.
    x = jax.random.normal(k_x, (2, 1, 28, 28), dtype=jnp.float32)
    params = init_params(k_p)

    out = jax.block_until_ready(forward_pallas(x, params))
    ref = jax.block_until_ready(forward_reference(x, params))

    assert out.shape == (2, 10), out.shape
    assert jnp.allclose(out, ref, rtol=2e-4, atol=2e-4), (
        "Pallas output mismatch vs JAX reference"
    )
    print("KERNEL_OK")
</pallas_src>

<mosaic_0001>
module attributes {stable_mosaic.version = 11 : i64} {
  func.func @_fused_cnn_kernel(%arg0: i32, %arg1: memref<2x1x904xf32, #tpu.memory_space<vmem>>, %arg2: memref<16x25xf32, #tpu.memory_space<vmem>>, %arg3: memref<16x1xf32, #tpu.memory_space<vmem>>, %arg4: memref<749x232xf32, #tpu.memory_space<vmem>>, %arg5: memref<32x400xf32, #tpu.memory_space<vmem>>, %arg6: memref<32x1xf32, #tpu.memory_space<vmem>>, %arg7: memref<149x25xf32, #tpu.memory_space<vmem>>, %arg8: memref<800x64xf32, #tpu.memory_space<vmem>>, %arg9: memref<1x64xf32, #tpu.memory_space<vmem>>, %arg10: memref<64x10xf32, #tpu.memory_space<vmem>>, %arg11: memref<1x10xf32, #tpu.memory_space<vmem>>, %arg12: memref<2x1x10xf32, #tpu.memory_space<vmem>>, %arg13: memref<25x780xf32, #tpu.memory_space<vmem>>, %arg14: memref<16x780xf32, #tpu.memory_space<vmem>>, %arg15: memref<16x232xf32, #tpu.memory_space<vmem>>, %arg16: memref<400x165xf32, #tpu.memory_space<vmem>>, %arg17: memref<32x165xf32, #tpu.memory_space<vmem>>, %arg18: memref<32x25xf32, #tpu.memory_space<vmem>>, %arg19: memref<1x800xf32, #tpu.memory_space<vmem>>) attributes {dimension_semantics = [#tpu.dimension_semantics<parallel>], iteration_bounds = array<i64: 1>, scalar_prefetch = 0 : i64, scratch_operands = 7 : i64, tpu.core_type = #tpu.core_type<tc>, window_params = [{transform_indices = @transform_0, window_bounds = array<i64: 2, 1, 904>}, {pipeline_mode = #tpu.pipeline_mode<synchronous>, transform_indices = @transform_1, window_bounds = array<i64: 16, 25>}, {pipeline_mode = #tpu.pipeline_mode<synchronous>, transform_indices = @transform_2, window_bounds = array<i64: 16, 1>}, {pipeline_mode = #tpu.pipeline_mode<synchronous>, transform_indices = @transform_3, window_bounds = array<i64: 749, 232>}, {pipeline_mode = #tpu.pipeline_mode<synchronous>, transform_indices = @transform_4, window_bounds = array<i64: 32, 400>}, {pipeline_mode = #tpu.pipeline_mode<synchronous>, transform_indices = @transform_5, window_bounds = array<i64: 32, 1>}, {pipeline_mode = #tpu.pipeline_mode<synchronous>, transform_indices = @transform_6, window_bounds = array<i64: 149, 25>}, {pipeline_mode = #tpu.pipeline_mode<synchronous>, transform_indices = @transform_7, window_bounds = array<i64: 800, 64>}, {pipeline_mode = #tpu.pipeline_mode<synchronous>, transform_indices = @transform_8, window_bounds = array<i64: 1, 64>}, {pipeline_mode = #tpu.pipeline_mode<synchronous>, transform_indices = @transform_9, window_bounds = array<i64: 64, 10>}, {pipeline_mode = #tpu.pipeline_mode<synchronous>, transform_indices = @transform_10, window_bounds = array<i64: 1, 10>}, {transform_indices = @transform_11, window_bounds = array<i64: 2, 1, 10>}]} {
    %c0 = arith.constant 0 : index
    %c0_0 = arith.constant 0 : index
    %c0_1 = arith.constant 0 : index
    %0 = vector.load %arg1[%c0, %c0_0, %c0_1] : memref<2x1x904xf32, #tpu.memory_space<vmem>>, vector<1x1x780xf32>
    %1 = vector.shape_cast %0 : vector<1x1x780xf32> to vector<1x780xf32>
    %c0_2 = arith.constant 0 : index
    %c0_3 = arith.constant 0 : index
    %2 = vector.load %arg13[%c0_2, %c0_3] : memref<25x780xf32, #tpu.memory_space<vmem>>, vector<1x780xf32>
    tpu.vector_store %arg13[%c0_2, %c0_3], %1 {strides = array<i32>} : memref<25x780xf32, #tpu.memory_space<vmem>>, vector<1x780xf32>,
    %c0_4 = arith.constant 0 : index
    %c0_5 = arith.constant 0 : index
    %c1 = arith.constant 1 : index
    %3 = vector.load %arg1[%c0_4, %c0_5, %c1] : memref<2x1x904xf32, #tpu.memory_space<vmem>>, vector<1x1x780xf32>
    %4 = vector.shape_cast %3 : vector<1x1x780xf32> to vector<1x780xf32>
    %c1_6 = arith.constant 1 : index
    %c0_7 = arith.constant 0 : index
    %5 = vector.load %arg13[%c1_6, %c0_7] : memref<25x780xf32, #tpu.memory_space<vmem>>, vector<1x780xf32>
    tpu.vector_store %arg13[%c1_6, %c0_7], %4 {strides = array<i32>} : memref<25x780xf32, #tpu.memory_space<vmem>>, vector<1x780xf32>,
    %c0_8 = arith.constant 0 : index
    %c0_9 = arith.constant 0 : index
    %c2 = arith.constant 2 : index
    %6 = vector.load %arg1[%c0_8, %c0_9, %c2] : memref<2x1x904xf32, #tpu.memory_space<vmem>>, vector<1x1x780xf32>
    %7 = vector.shape_cast %6 : vector<1x1x780xf32> to vector<1x780xf32>
    %c2_10 = arith.constant 2 : index
    %c0_11 = arith.constant 0 : index
    %8 = vector.load %arg13[%c2_10, %c0_11] : memref<25x780xf32, #tpu.memory_space<vmem>>, vector<1x780xf32>
    tpu.vector_store %arg13[%c2_10, %c0_11], %7 {strides = array<i32>} : memref<25x780xf32, #tpu.memory_space<vmem>>, vector<1x780xf32>,
    %c0_12 = arith.constant 0 : index
    %c0_13 = arith.constant 0 : index
    %c3 = arith.constant 3 : index
    %9 = vector.load %arg1[%c0_12, %c0_13, %c3] : memref<2x1x904xf32, #tpu.memory_space<vmem>>, vector<1x1x780xf32>
    %10 = vector.shape_cast %9 : vector<1x1x780xf32> to vector<1x780xf32>
    %c3_14 = arith.constant 3 : index
    %c0_15 = arith.constant 0 : index
    %11 = vector.load %arg13[%c3_14, %c0_15] : memref<25x780xf32, #tpu.memory_space<vmem>>, vector<1x780xf32>
    tpu.vector_store %arg13[%c3_14, %c0_15], %10 {strides = array<i32>} : memref<25x780xf32, #tpu.memory_space<vmem>>, vector<1x780xf32>,
    %c0_16 = arith.constant 0 : index
    %c0_17 = arith.constant 0 : index
    %c4 = arith.constant 4 : index
    %12 = vector.load %arg1[%c0_16, %c0_17, %c4] : memref<2x1x904xf32, #tpu.memory_space<vmem>>, vector<1x1x780xf32>
    %13 = vector.shape_cast %12 : vector<1x1x780xf32> to vector<1x780xf32>
    %c4_18 = arith.constant 4 : index
    %c0_19 = arith.constant 0 : index
    %14 = vector.load %arg13[%c4_18, %c0_19] : memref<25x780xf32, #tpu.memory_space<vmem>>, vector<1x780xf32>
    tpu.vector_store %arg13[%c4_18, %c0_19], %13 {strides = array<i32>} : memref<25x780xf32, #tpu.memory_space<vmem>>, vector<1x780xf32>,
    %c0_20 = arith.constant 0 : index
    %c0_21 = arith.constant 0 : index
    %c30 = arith.constant 30 : index
    %15 = vector.load %arg1[%c0_20, %c0_21, %c30] : memref<2x1x904xf32, #tpu.memory_space<vmem>>, vector<1x1x780xf32>
    %16 = vector.shape_cast %15 : vector<1x1x780xf32> to vector<1x780xf32>
    %c5 = arith.constant 5 : index
    %c0_22 = arith.constant 0 : index
    %17 = vector.load %arg13[%c5, %c0_22] : memref<25x780xf32, #tpu.memory_space<vmem>>, vector<1x780xf32>
    tpu.vector_store %arg13[%c5, %c0_22], %16 {strides = array<i32>} : memref<25x780xf32, #tpu.memory_space<vmem>>, vector<1x780xf32>,
    %c0_23 = arith.constant 0 : index
    %c0_24 = arith.constant 0 : index
    %c31 = arith.constant 31 : index
    %18 = vector.load %arg1[%c0_23, %c0_24, %c31] : memref<2x1x904xf32, #tpu.memory_space<vmem>>, vector<1x1x780xf32>
    %19 = vector.shape_cast %18 : vector<1x1x780xf32> to vector<1x780xf32>
    %c6 = arith.constant 6 : index
    %c0_25 = arith.constant 0 : index
    %20 = vector.load %arg13[%c6, %c0_25] : memref<25x780xf32, #tpu.memory_space<vmem>>, vector<1x780xf32>
    tpu.vector_store %arg13[%c6, %c0_25], %19 {strides = array<i32>} : memref<25x780xf32, #tpu.memory_space<vmem>>, vector<1x780xf32>,
    %c0_26 = arith.constant 0 : index
    %c0_27 = arith.constant 0 : index
    %c32 = arith.constant 32 : index
    %21 = vector.load %arg1[%c0_26, %c0_27, %c32] : memref<2x1x904xf32, #tpu.memory_space<vmem>>, vector<1x1x780xf32>
    %22 = vector.shape_cast %21 : vector<1x1x780xf32> to vector<1x780xf32>
    %c7 = arith.constant 7 : index
    %c0_28 = arith.constant 0 : index
    %23 = vector.load %arg13[%c7, %c0_28] : memref<25x780xf32, #tpu.memory_space<vmem>>, vector<1x780xf32>
    tpu.vector_store %arg13[%c7, %c0_28], %22 {strides = array<i32>} : memref<25x780xf32, #tpu.memory_space<vmem>>, vector<1x780xf32>,
    %c0_29 = arith.constant 0 : index
    %c0_30 = arith.constant 0 : index
    %c33 = arith.constant 33 : index
    %24 = vector.load %arg1[%c0_29, %c0_30, %c33] : memref<2x1x904xf32, #tpu.memory_space<vmem>>, vector<1x1x780xf32>
    %25 = vector.shape_cast %24 : vector<1x1x780xf32> to vector<1x780xf32>
    %c8 = arith.constant 8 : index
    %c0_31 = arith.constant 0 : index
    %26 = vector.load %arg13[%c8, %c0_31] : memref<25x780xf32, #tpu.memory_space<vmem>>, vector<1x780xf32>
    tpu.vector_store %arg13[%c8, %c0_31], %25 {strides = array<i32>} : memref<25x780xf32, #tpu.memory_space<vmem>>, vector<1x780xf32>,
    %c0_32 = arith.constant 0 : index
    %c0_33 = arith.constant 0 : index
    %c34 = arith.constant 34 : index
    %27 = vector.load %arg1[%c0_32, %c0_33, %c34] : memref<2x1x904xf32, #tpu.memory_space<vmem>>, vector<1x1x780xf32>
    %28 = vector.shape_cast %27 : vector<1x1x780xf32> to vector<1x780xf32>
    %c9 = arith.constant 9 : index
    %c0_34 = arith.constant 0 : index
    %29 = vector.load %arg13[%c9, %c0_34] : memref<25x780xf32, #tpu.memory_space<vmem>>, vector<1x780xf32>
    tpu.vector_store %arg13[%c9, %c0_34], %28 {strides = array<i32>} : memref<25x780xf32, #tpu.memory_space<vmem>>, vector<1x780xf32>,
    %c0_35 = arith.constant 0 : index
    %c0_36 = arith.constant 0 : index
    %c60 = arith.constant 60 : index
    %30 = vector.load %arg1[%c0_35, %c0_36, %c60] : memref<2x1x904xf32, #tpu.memory_space<vmem>>, vector<1x1x780xf32>
    %31 = vector.shape_cast %30 : vector<1x1x780xf32> to vector<1x780xf32>
    %c10 = arith.constant 10 : index
    %c0_37 = arith.constant 0 : index
    %32 = vector.load %arg13[%c10, %c0_37] : memref<25x780xf32, #tpu.memory_space<vmem>>, vector<1x780xf32>
    tpu.vector_store %arg13[%c10, %c0_37], %31 {strides = array<i32>} : memref<25x780xf32, #tpu.memory_space<vmem>>, vector<1x780xf32>,
    %c0_38 = arith.constant 0 : index
    %c0_39 = arith.constant 0 : index
    %c61 = arith.constant 61 : index
    %33 = vector.load %arg1[%c0_38, %c0_39, %c61] : memref<2x1x904xf32, #tpu.memory_space<vmem>>, vector<1x1x780xf32>
    %34 = vector.shape_cast %33 : vector<1x1x780xf32> to vector<1x780xf32>
    %c11 = arith.constant 11 : index
    %c0_40 = arith.constant 0 : index
    %35 = vector.load %arg13[%c11, %c0_40] : memref<25x780xf32, #tpu.memory_space<vmem>>, vector<1x780xf32>
    tpu.vector_store %arg13[%c11, %c0_40], %34 {strides = array<i32>} : memref<25x780xf32, #tpu.memory_space<vmem>>, vector<1x780xf32>,
    %c0_41 = arith.constant 0 : index
    %c0_42 = arith.constant 0 : index
    %c62 = arith.constant 62 : index
    %36 = vector.load %arg1[%c0_41, %c0_42, %c62] : memref<2x1x904xf32, #tpu.memory_space<vmem>>, vector<1x1x780xf32>
    %37 = vector.shape_cast %36 : vector<1x1x780xf32> to vector<1x780xf32>
    %c12 = arith.constant 12 : index
    %c0_43 = arith.constant 0 : index
    %38 = vector.load %arg13[%c12, %c0_43] : memref<25x780xf32, #tpu.memory_space<vmem>>, vector<1x780xf32>
    tpu.vector_store %arg13[%c12, %c0_43], %37 {strides = array<i32>} : memref<25x780xf32, #tpu.memory_space<vmem>>, vector<1x780xf32>,
    %c0_44 = arith.constant 0 : index
    %c0_45 = arith.constant 0 : index
    %c63 = arith.constant 63 : index
    %39 = vector.load %arg1[%c0_44, %c0_45, %c63] : memref<2x1x904xf32, #tpu.memory_space<vmem>>, vector<1x1x780xf32>
    %40 = vector.shape_cast %39 : vector<1x1x780xf32> to vector<1x780xf32>
    %c13 = arith.constant 13 : index
    %c0_46 = arith.constant 0 : index
    %41 = vector.load %arg13[%c13, %c0_46] : memref<25x780xf32, #tpu.memory_space<vmem>>, vector<1x780xf32>
    tpu.vector_store %arg13[%c13, %c0_46], %40 {strides = array<i32>} : memref<25x780xf32, #tpu.memory_space<vmem>>, vector<1x780xf32>,
    %c0_47 = arith.constant 0 : index
    %c0_48 = arith.constant 0 : index
    %c64 = arith.constant 64 : index
    %42 = vector.load %arg1[%c0_47, %c0_48, %c64] : memref<2x1x904xf32, #tpu.memory_space<vmem>>, vector<1x1x780xf32>
    %43 = vector.shape_cast %42 : vector<1x1x780xf32> to vector<1x780xf32>
    %c14 = arith.constant 14 : index
    %c0_49 = arith.constant 0 : index
    %44 = vector.load %arg13[%c14, %c0_49] : memref<25x780xf32, #tpu.memory_space<vmem>>, vector<1x780xf32>
    tpu.vector_store %arg13[%c14, %c0_49], %43 {strides = array<i32>} : memref<25x780xf32, #tpu.memory_space<vmem>>, vector<1x780xf32>,
    %c0_50 = arith.constant 0 : index
    %c0_51 = arith.constant 0 : index
    %c90 = arith.constant 90 : index
    %45 = vector.load %arg1[%c0_50, %c0_51, %c90] : memref<2x1x904xf32, #tpu.memory_space<vmem>>, vector<1x1x780xf32>
    %46 = vector.shape_cast %45 : vector<1x1x780xf32> to vector<1x780xf32>
    %c15 = arith.constant 15 : index
    %c0_52 = arith.constant 0 : index
    %47 = vector.load %arg13[%c15, %c0_52] : memref<25x780xf32, #tpu.memory_space<vmem>>, vector<1x780xf32>
    tpu.vector_store %arg13[%c15, %c0_52], %46 {strides = array<i32>} : memref<25x780xf32, #tpu.memory_space<vmem>>, vector<1x780xf32>,
    %c0_53 = arith.constant 0 : index
    %c0_54 = arith.constant 0 : index
    %c91 = arith.constant 91 : index
    %48 = vector.load %arg1[%c0_53, %c0_54, %c91] : memref<2x1x904xf32, #tpu.memory_space<vmem>>, vector<1x1x780xf32>
    %49 = vector.shape_cast %48 : vector<1x1x780xf32> to vector<1x780xf32>
    %c16 = arith.constant 16 : index
    %c0_55 = arith.constant 0 : index
    %50 = vector.load %arg13[%c16, %c0_55] : memref<25x780xf32, #tpu.memory_space<vmem>>, vector<1x780xf32>
    tpu.vector_store %arg13[%c16, %c0_55], %49 {strides = array<i32>} : memref<25x780xf32, #tpu.memory_space<vmem>>, vector<1x780xf32>,
    %c0_56 = arith.constant 0 : index
    %c0_57 = arith.constant 0 : index
    %c92 = arith.constant 92 : index
    %51 = vector.load %arg1[%c0_56, %c0_57, %c92] : memref<2x1x904xf32, #tpu.memory_space<vmem>>, vector<1x1x780xf32>
    %52 = vector.shape_cast %51 : vector<1x1x780xf32> to vector<1x780xf32>
    %c17 = arith.constant 17 : index
    %c0_58 = arith.constant 0 : index
    %53 = vector.load %arg13[%c17, %c0_58] : memref<25x780xf32, #tpu.memory_space<vmem>>, vector<1x780xf32>
    tpu.vector_store %arg13[%c17, %c0_58], %52 {strides = array<i32>} : memref<25x780xf32, #tpu.memory_space<vmem>>, vector<1x780xf32>,
    %c0_59 = arith.constant 0 : index
    %c0_60 = arith.constant 0 : index
    %c93 = arith.constant 93 : index
    %54 = vector.load %arg1[%c0_59, %c0_60, %c93] : memref<2x1x904xf32, #tpu.memory_space<vmem>>, vector<1x1x780xf32>
    %55 = vector.shape_cast %54 : vector<1x1x780xf32> to vector<1x780xf32>
    %c18 = arith.constant 18 : index
    %c0_61 = arith.constant 0 : index
    %56 = vector.load %arg13[%c18, %c0_61] : memref<25x780xf32, #tpu.memory_space<vmem>>, vector<1x780xf32>
    tpu.vector_store %arg13[%c18, %c0_61], %55 {strides = array<i32>} : memref<25x780xf32, #tpu.memory_space<vmem>>, vector<1x780xf32>,
    %c0_62 = arith.constant 0 : index
    %c0_63 = arith.constant 0 : index
    %c94 = arith.constant 94 : index
    %57 = vector.load %arg1[%c0_62, %c0_63, %c94] : memref<2x1x904xf32, #tpu.memory_space<vmem>>, vector<1x1x780xf32>
    %58 = vector.shape_cast %57 : vector<1x1x780xf32> to vector<1x780xf32>
    %c19 = arith.constant 19 : index
    %c0_64 = arith.constant 0 : index
    %59 = vector.load %arg13[%c19, %c0_64] : memref<25x780xf32, #tpu.memory_space<vmem>>, vector<1x780xf32>
    tpu.vector_store %arg13[%c19, %c0_64], %58 {strides = array<i32>} : memref<25x780xf32, #tpu.memory_space<vmem>>, vector<1x780xf32>,
    %c0_65 = arith.constant 0 : index
    %c0_66 = arith.constant 0 : index
    %c120 = arith.constant 120 : index
    %60 = vector.load %arg1[%c0_65, %c0_66, %c120] : memref<2x1x904xf32, #tpu.memory_space<vmem>>, vector<1x1x780xf32>
    %61 = vector.shape_cast %60 : vector<1x1x780xf32> to vector<1x780xf32>
    %c20 = arith.constant 20 : index
    %c0_67 = arith.constant 0 : index
    %62 = vector.load %arg13[%c20, %c0_67] : memref<25x780xf32, #tpu.memory_space<vmem>>, vector<1x780xf32>
    tpu.vector_store %arg13[%c20, %c0_67], %61 {strides = array<i32>} : memref<25x780xf32, #tpu.memory_space<vmem>>, vector<1x780xf32>,
    %c0_68 = arith.constant 0 : index
    %c0_69 = arith.constant 0 : index
    %c121 = arith.constant 121 : index
    %63 = vector.load %arg1[%c0_68, %c0_69, %c121] : memref<2x1x904xf32, #tpu.memory_space<vmem>>, vector<1x1x780xf32>
    %64 = vector.shape_cast %63 : vector<1x1x780xf32> to vector<1x780xf32>
    %c21 = arith.constant 21 : index
    %c0_70 = arith.constant 0 : index
    %65 = vector.load %arg13[%c21, %c0_70] : memref<25x780xf32, #tpu.memory_space<vmem>>, vector<1x780xf32>
    tpu.vector_store %arg13[%c21, %c0_70], %64 {strides = array<i32>} : memref<25x780xf32, #tpu.memory_space<vmem>>, vector<1x780xf32>,
    %c0_71 = arith.constant 0 : index
    %c0_72 = arith.constant 0 : index
    %c122 = arith.constant 122 : index
    %66 = vector.load %arg1[%c0_71, %c0_72, %c122] : memref<2x1x904xf32, #tpu.memory_space<vmem>>, vector<1x1x780xf32>
    %67 = vector.shape_cast %66 : vector<1x1x780xf32> to vector<1x780xf32>
    %c22 = arith.constant 22 : index
    %c0_73 = arith.constant 0 : index
    %68 = vector.load %arg13[%c22, %c0_73] : memref<25x780xf32, #tpu.memory_space<vmem>>, vector<1x780xf32>
    tpu.vector_store %arg13[%c22, %c0_73], %67 {strides = array<i32>} : memref<25x780xf32, #tpu.memory_space<vmem>>, vector<1x780xf32>,
    %c0_74 = arith.constant 0 : index
    %c0_75 = arith.constant 0 : index
    %c123 = arith.constant 123 : index
    %69 = vector.load %arg1[%c0_74, %c0_75, %c123] : memref<2x1x904xf32, #tpu.memory_space<vmem>>, vector<1x1x780xf32>
    %70 = vector.shape_cast %69 : vector<1x1x780xf32> to vector<1x780xf32>
    %c23 = arith.constant 23 : index
    %c0_76 = arith.constant 0 : index
    %71 = vector.load %arg13[%c23, %c0_76] : memref<25x780xf32, #tpu.memory_space<vmem>>, vector<1x780xf32>
    tpu.vector_store %arg13[%c23, %c0_76], %70 {strides = array<i32>} : memref<25x780xf32, #tpu.memory_space<vmem>>, vector<1x780xf32>,
    %c0_77 = arith.constant 0 : index
    %c0_78 = arith.constant 0 : index
    %c124 = arith.constant 124 : index
    %72 = vector.load %arg1[%c0_77, %c0_78, %c124] : memref<2x1x904xf32, #tpu.memory_space<vmem>>, vector<1x1x780xf32>
    %73 = vector.shape_cast %72 : vector<1x1x780xf32> to vector<1x780xf32>
    %c24 = arith.constant 24 : index
    %c0_79 = arith.constant 0 : index
    %74 = vector.load %arg13[%c24, %c0_79] : memref<25x780xf32, #tpu.memory_space<vmem>>, vector<1x780xf32>
    tpu.vector_store %arg13[%c24, %c0_79], %73 {strides = array<i32>} : memref<25x780xf32, #tpu.memory_space<vmem>>, vector<1x780xf32>,
    %c0_80 = arith.constant 0 : index
    %c0_81 = arith.constant 0 : index
    %75 = vector.load %arg2[%c0_80, %c0_81] : memref<16x25xf32, #tpu.memory_space<vmem>>, vector<16x25xf32>
    %c0_82 = arith.constant 0 : index
    %c0_83 = arith.constant 0 : index
    %76 = vector.load %arg13[%c0_82, %c0_83] : memref<25x780xf32, #tpu.memory_space<vmem>>, vector<25x780xf32>
    %cst = arith.constant dense<0.000000e+00> : vector<16x780xf32>
    %77 = tpu.matmul %75, %76, %cst {dimension_numbers = #tpu.dot_dimension_numbers<[1], [0], [0], [1], [0, 0, 1, 1], [], []>} : vector<16x25xf32>, vector<25x780xf32>, vector<16x780xf32> -> vector<16x780xf32>
    %c0_84 = arith.constant 0 : index
    %c0_85 = arith.constant 0 : index
    %78 = vector.load %arg3[%c0_84, %c0_85] : memref<16x1xf32, #tpu.memory_space<vmem>>, vector<16x1xf32>
    %79 = vector.broadcast %78 : vector<16x1xf32> to vector<16x780xf32>
    %80 = arith.addf %77, %79 : vector<16x780xf32>
    %cst_86 = arith.constant 0.000000e+00 : f32
    %81 = vector.broadcast %cst_86 : f32 to vector<16x780xf32>
    %82 = arith.maximumf %80, %81 : vector<16x780xf32>
    %c0_87 = arith.constant 0 : index
    %c0_88 = arith.constant 0 : index
    %83 = vector.load %arg14[%c0_87, %c0_88] : memref<16x780xf32, #tpu.memory_space<vmem>>, vector<16x780xf32>
    tpu.vector_store %arg14[%c0_87, %c0_88], %82 {strides = array<i32>} : memref<16x780xf32, #tpu.memory_space<vmem>>, vector<16x780xf32>,
    %c0_89 = arith.constant 0 : index
    %c0_90 = arith.constant 0 : index
    %84 = vector.load %arg14[%c0_89, %c0_90] : memref<16x780xf32, #tpu.memory_space<vmem>>, vector<16x749xf32>
    %c0_91 = arith.constant 0 : index
    %c1_92 = arith.constant 1 : index
    %85 = vector.load %arg14[%c0_91, %c1_92] : memref<16x780xf32, #tpu.memory_space<vmem>>, vector<16x749xf32>
    %86 = arith.maximumf %84, %85 : vector<16x749xf32>
    %c0_93 = arith.constant 0 : index
    %c30_94 = arith.constant 30 : index
    %87 = vector.load %arg14[%c0_93, %c30_94] : memref<16x780xf32, #tpu.memory_space<vmem>>, vector<16x749xf32>
    %c0_95 = arith.constant 0 : index
    %c31_96 = arith.constant 31 : index
    %88 = vector.load %arg14[%c0_95, %c31_96] : memref<16x780xf32, #tpu.memory_space<vmem>>, vector<16x749xf32>
    %89 = arith.maximumf %87, %88 : vector<16x749xf32>
    %90 = arith.maximumf %86, %89 : vector<16x749xf32>
    %c0_97 = arith.constant 0 : index
    %c0_98 = arith.constant 0 : index
    %91 = vector.load %arg4[%c0_97, %c0_98] : memref<749x232xf32, #tpu.memory_space<vmem>>, vector<749x232xf32>
    %cst_99 = arith.constant dense<0.000000e+00> : vector<16x232xf32>
    %92 = tpu.matmul %90, %91, %cst_99 {dimension_numbers = #tpu.dot_dimension_numbers<[1], [0], [0], [1], [0, 0, 1, 1], [], []>} : vector<16x749xf32>, vector<749x232xf32>, vector<16x232xf32> -> vector<16x232xf32>
    %c0_100 = arith.constant 0 : index
    %c0_101 = arith.constant 0 : index
    %93 = vector.load %arg15[%c0_100, %c0_101] : memref<16x232xf32, #tpu.memory_space<vmem>>, vector<16x232xf32>
    tpu.vector_store %arg15[%c0_100, %c0_101], %92 {strides = array<i32>} : memref<16x232xf32, #tpu.memory_space<vmem>>, vector<16x232xf32>,
    %c0_102 = arith.constant 0 : index
    %c0_103 = arith.constant 0 : index
    %94 = vector.load %arg15[%c0_102, %c0_103] : memref<16x232xf32, #tpu.memory_space<vmem>>, vector<16x165xf32>
    %c0_104 = arith.constant 0 : index
    %c0_105 = arith.constant 0 : index
    %95 = vector.load %arg16[%c0_104, %c0_105] : memref<400x165xf32, #tpu.memory_space<vmem>>, vector<16x165xf32>
    tpu.vector_store %arg16[%c0_104, %c0_105], %94 {strides = array<i32>} : memref<400x165xf32, #tpu.memory_space<vmem>>, vector<16x165xf32>,
    %c0_106 = arith.constant 0 : index
    %c1_107 = arith.constant 1 : index
    %96 = vector.load %arg15[%c0_106, %c1_107] : memref<16x232xf32, #tpu.memory_space<vmem>>, vector<16x165xf32>
    %c16_108 = arith.constant 16 : index
    %c0_109 = arith.constant 0 : index
    %97 = vector.load %arg16[%c16_108, %c0_109] : memref<400x165xf32, #tpu.memory_space<vmem>>, vector<16x165xf32>
    tpu.vector_store %arg16[%c16_108, %c0_109], %96 {strides = array<i32>} : memref<400x165xf32, #tpu.memory_space<vmem>>, vector<16x165xf32>,
    %c0_110 = arith.constant 0 : index
    %c2_111 = arith.constant 2 : index
    %98 = vector.load %arg15[%c0_110, %c2_111] : memref<16x232xf32, #tpu.memory_space<vmem>>, vector<16x165xf32>
    %c32_112 = arith.constant 32 : index
    %c0_113 = arith.constant 0 : index
    %99 = vector.load %arg16[%c32_112, %c0_113] : memref<400x165xf32, #tpu.memory_space<vmem>>, vector<16x165xf32>
    tpu.vector_store %arg16[%c32_112, %c0_113], %98 {strides = array<i32>} : memref<400x165xf32, #tpu.memory_space<vmem>>, vector<16x165xf32>,
    %c0_114 = arith.constant 0 : index
    %c3_115 = arith.constant 3 : index
    %100 = vector.load %arg15[%c0_114, %c3_115] : memref<16x232xf32, #tpu.memory_space<vmem>>, vector<16x165xf32>
    %c48 = arith.constant 48 : index
    %c0_116 = arith.constant 0 : index
    %101 = vector.load %arg16[%c48, %c0_116] : memref<400x165xf32, #tpu.memory_space<vmem>>, vector<16x165xf32>
    tpu.vector_store %arg16[%c48, %c0_116], %100 {strides = array<i32>} : memref<400x165xf32, #tpu.memory_space<vmem>>, vector<16x165xf32>,
    %c0_117 = arith.constant 0 : index
    %c4_118 = arith.constant 4 : index
    %102 = vector.load %arg15[%c0_117, %c4_118] : memref<16x232xf32, #tpu.memory_space<vmem>>, vector<16x165xf32>
    %c64_119 = arith.constant 64 : index
    %c0_120 = arith.constant 0 : index
    %103 = vector.load %arg16[%c64_119, %c0_120] : memref<400x165xf32, #tpu.memory_space<vmem>>, vector<16x165xf32>
    tpu.vector_store %arg16[%c64_119, %c0_120], %102 {strides = array<i32>} : memref<400x165xf32, #tpu.memory_space<vmem>>, vector<16x165xf32>,
    %c0_121 = arith.constant 0 : index
    %c15_122 = arith.constant 15 : index
    %104 = vector.load %arg15[%c0_121, %c15_122] : memref<16x232xf32, #tpu.memory_space<vmem>>, vector<16x165xf32>
    %c80 = arith.constant 80 : index
    %c0_123 = arith.constant 0 : index
    %105 = vector.load %arg16[%c80, %c0_123] : memref<400x165xf32, #tpu.memory_space<vmem>>, vector<16x165xf32>
    tpu.vector_store %arg16[%c80, %c0_123], %104 {strides = array<i32>} : memref<400x165xf32, #tpu.memory_space<vmem>>, vector<16x165xf32>,
    %c0_124 = arith.constant 0 : index
    %c16_125 = arith.constant 16 : index
    %106 = vector.load %arg15[%c0_124, %c16_125] : memref<16x232xf32, #tpu.memory_space<vmem>>, vector<16x165xf32>
    %c96 = arith.constant 96 : index
    %c0_126 = arith.constant 0 : index
    %107 = vector.load %arg16[%c96, %c0_126] : memref<400x165xf32, #tpu.memory_space<vmem>>, vector<16x165xf32>
    tpu.vector_store %arg16[%c96, %c0_126], %106 {strides = array<i32>} : memref<400x165xf32, #tpu.memory_space<vmem>>, vector<16x165xf32>,
    %c0_127 = arith.constant 0 : index
    %c17_128 = arith.constant 17 : index
    %108 = vector.load %arg15[%c0_127, %c17_128] : memref<16x232xf32, #tpu.memory_space<vmem>>, vector<16x165xf32>
    %c112 = arith.constant 112 : index
    %c0_129 = arith.constant 0 : index
    %109 = vector.load %arg16[%c112, %c0_129] : memref<400x165xf32, #tpu.memory_space<vmem>>, vector<16x165xf32>
    tpu.vector_store %arg16[%c112, %c0_129], %108 {strides = array<i32>} : memref<400x165xf32, #tpu.memory_space<vmem>>, vector<16x165xf32>,
    %c0_130 = arith.constant 0 : index
    %c18_131 = arith.constant 18 : index
    %110 = vector.load %arg15[%c0_130, %c18_131] : memref<16x232xf32, #tpu.memory_space<vmem>>, vector<16x165xf32>
    %c128 = arith.constant 128 : index
    %c0_132 = arith.constant 0 : index
    %111 = vector.load %arg16[%c128, %c0_132] : memref<400x165xf32, #tpu.memory_space<vmem>>, vector<16x165xf32>
    tpu.vector_store %arg16[%c128, %c0_132], %110 {strides = array<i32>} : memref<400x165xf32, #tpu.memory_space<vmem>>, vector<16x165xf32>,
    %c0_133 = arith.constant 0 : index
    %c19_134 = arith.constant 19 : index
    %112 = vector.load %arg15[%c0_133, %c19_134] : memref<16x232xf32, #tpu.memory_space<vmem>>, vector<16x165xf32>
    %c144 = arith.constant 144 : index
    %c0_135 = arith.constant 0 : index
    %113 = vector.load %arg16[%c144, %c0_135] : memref<400x165xf32, #tpu.memory_space<vmem>>, vector<16x165xf32>
    tpu.vector_store %arg16[%c144, %c0_135], %112 {strides = array<i32>} : memref<400x165xf32, #tpu.memory_space<vmem>>, vector<16x165xf32>,
    %c0_136 = arith.constant 0 : index
    %c30_137 = arith.constant 30 : index
    %114 = vector.load %arg15[%c0_136, %c30_137] : memref<16x232xf32, #tpu.memory_space<vmem>>, vector<16x165xf32>
    %c160 = arith.constant 160 : index
    %c0_138 = arith.constant 0 : index
    %115 = vector.load %arg16[%c160, %c0_138] : memref<400x165xf32, #tpu.memory_space<vmem>>, vector<16x165xf32>
    tpu.vector_store %arg16[%c160, %c0_138], %114 {strides = array<i32>} : memref<400x165xf32, #tpu.memory_space<vmem>>, vector<16x165xf32>,
    %c0_139 = arith.constant 0 : index
    %c31_140 = arith.constant 31 : index
    %116 = vector.load %arg15[%c0_139, %c31_140] : memref<16x232xf32, #tpu.memory_space<vmem>>, vector<16x165xf32>
    %c176 = arith.constant 176 : index
    %c0_141 = arith.constant 0 : index
    %117 = vector.load %arg16[%c176, %c0_141] : memref<400x165xf32, #tpu.memory_space<vmem>>, vector<16x165xf32>
    tpu.vector_store %arg16[%c176, %c0_141], %116 {strides = array<i32>} : memref<400x165xf32, #tpu.memory_space<vmem>>, vector<16x165xf32>,
    %c0_142 = arith.constant 0 : index
    %c32_143 = arith.constant 32 : index
    %118 = vector.load %arg15[%c0_142, %c32_143] : memref<16x232xf32, #tpu.memory_space<vmem>>, vector<16x165xf32>
    %c192 = arith.constant 192 : index
    %c0_144 = arith.constant 0 : index
    %119 = vector.load %arg16[%c192, %c0_144] : memref<400x165xf32, #tpu.memory_space<vmem>>, vector<16x165xf32>
    tpu.vector_store %arg16[%c192, %c0_144], %118 {strides = array<i32>} : memref<400x165xf32, #tpu.memory_space<vmem>>, vector<16x165xf32>,
    %c0_145 = arith.constant 0 : index
    %c33_146 = arith.constant 33 : index
    %120 = vector.load %arg15[%c0_145, %c33_146] : memref<16x232xf32, #tpu.memory_space<vmem>>, vector<16x165xf32>
    %c208 = arith.constant 208 : index
    %c0_147 = arith.constant 0 : index
    %121 = vector.load %arg16[%c208, %c0_147] : memref<400x165xf32, #tpu.memory_space<vmem>>, vector<16x165xf32>
    tpu.vector_store %arg16[%c208, %c0_147], %120 {strides = array<i32>} : memref<400x165xf32, #tpu.memory_space<vmem>>, vector<16x165xf32>,
    %c0_148 = arith.constant 0 : index
    %c34_149 = arith.constant 34 : index
    %122 = vector.load %arg15[%c0_148, %c34_149] : memref<16x232xf32, #tpu.memory_space<vmem>>, vector<16x165xf32>
    %c224 = arith.constant 224 : index
    %c0_150 = arith.constant 0 : index
    %123 = vector.load %arg16[%c224, %c0_150] : memref<400x165xf32, #tpu.memory_space<vmem>>, vector<16x165xf32>
    tpu.vector_store %arg16[%c224, %c0_150], %122 {strides = array<i32>} : memref<400x165xf32, #tpu.memory_space<vmem>>, vector<16x165xf32>,
    %c0_151 = arith.constant 0 : index
    %c45 = arith.constant 45 : index
    %124 = vector.load %arg15[%c0_151, %c45] : memref<16x232xf32, #tpu.memory_space<vmem>>, vector<16x165xf32>
    %c240 = arith.constant 240 : index
    %c0_152 = arith.constant 0 : index
    %125 = vector.load %arg16[%c240, %c0_152] : memref<400x165xf32, #tpu.memory_space<vmem>>, vector<16x165xf32>
    tpu.vector_store %arg16[%c240, %c0_152], %124 {strides = array<i32>} : memref<400x165xf32, #tpu.memory_space<vmem>>, vector<16x165xf32>,
    %c0_153 = arith.constant 0 : index
    %c46 = arith.constant 46 : index
    %126 = vector.load %arg15[%c0_153, %c46] : memref<16x232xf32, #tpu.memory_space<vmem>>, vector<16x165xf32>
    %c256 = arith.constant 256 : index
    %c0_154 = arith.constant 0 : index
    %127 = vector.load %arg16[%c256, %c0_154] : memref<400x165xf32, #tpu.memory_space<vmem>>, vector<16x165xf32>
    tpu.vector_store %arg16[%c256, %c0_154], %126 {strides = array<i32>} : memref<400x165xf32, #tpu.memory_space<vmem>>, vector<16x165xf32>,
    %c0_155 = arith.constant 0 : index
    %c47 = arith.constant 47 : index
    %128 = vector.load %arg15[%c0_155, %c47] : memref<16x232xf32, #tpu.memory_space<vmem>>, vector<16x165xf32>
    %c272 = arith.constant 272 : index
    %c0_156 = arith.constant 0 : index
    %129 = vector.load %arg16[%c272, %c0_156] : memref<400x165xf32, #tpu.memory_space<vmem>>, vector<16x165xf32>
    tpu.vector_store %arg16[%c272, %c0_156], %128 {strides = array<i32>} : memref<400x165xf32, #tpu.memory_space<vmem>>, vector<16x165xf32>,
    %c0_157 = arith.constant 0 : index
    %c48_158 = arith.constant 48 : index
    %130 = vector.load %arg15[%c0_157, %c48_158] : memref<16x232xf32, #tpu.memory_space<vmem>>, vector<16x165xf32>
    %c288 = arith.constant 288 : index
    %c0_159 = arith.constant 0 : index
    %131 = vector.load %arg16[%c288, %c0_159] : memref<400x165xf32, #tpu.memory_space<vmem>>, vector<16x165xf32>
    tpu.vector_store %arg16[%c288, %c0_159], %130 {strides = array<i32>} : memref<400x165xf32, #tpu.memory_space<vmem>>, vector<16x165xf32>,
    %c0_160 = arith.constant 0 : index
    %c49 = arith.constant 49 : index
    %132 = vector.load %arg15[%c0_160, %c49] : memref<16x232xf32, #tpu.memory_space<vmem>>, vector<16x165xf32>
    %c304 = arith.constant 304 : index
    %c0_161 = arith.constant 0 : index
    %133 = vector.load %arg16[%c304, %c0_161] : memref<400x165xf32, #tpu.memory_space<vmem>>, vector<16x165xf32>
    tpu.vector_store %arg16[%c304, %c0_161], %132 {strides = array<i32>} : memref<400x165xf32, #tpu.memory_space<vmem>>, vector<16x165xf32>,
    %c0_162 = arith.constant 0 : index
    %c60_163 = arith.constant 60 : index
    %134 = vector.load %arg15[%c0_162, %c60_163] : memref<16x232xf32, #tpu.memory_space<vmem>>, vector<16x165xf32>
    %c320 = arith.constant 320 : index
    %c0_164 = arith.constant 0 : index
    %135 = vector.load %arg16[%c320, %c0_164] : memref<400x165xf32, #tpu.memory_space<vmem>>, vector<16x165xf32>
    tpu.vector_store %arg16[%c320, %c0_164], %134 {strides = array<i32>} : memref<400x165xf32, #tpu.memory_space<vmem>>, vector<16x165xf32>,
    %c0_165 = arith.constant 0 : index
    %c61_166 = arith.constant 61 : index
    %136 = vector.load %arg15[%c0_165, %c61_166] : memref<16x232xf32, #tpu.memory_space<vmem>>, vector<16x165xf32>
    %c336 = arith.constant 336 : index
    %c0_167 = arith.constant 0 : index
    %137 = vector.load %arg16[%c336, %c0_167] : memref<400x165xf32, #tpu.memory_space<vmem>>, vector<16x165xf32>
    tpu.vector_store %arg16[%c336, %c0_167], %136 {strides = array<i32>} : memref<400x165xf32, #tpu.memory_space<vmem>>, vector<16x165xf32>,
    %c0_168 = arith.constant 0 : index
    %c62_169 = arith.constant 62 : index
    %138 = vector.load %arg15[%c0_168, %c62_169] : memref<16x232xf32, #tpu.memory_space<vmem>>, vector<16x165xf32>
    %c352 = arith.constant 352 : index
    %c0_170 = arith.constant 0 : index
    %139 = vector.load %arg16[%c352, %c0_170] : memref<400x165xf32, #tpu.memory_space<vmem>>, vector<16x165xf32>
    tpu.vector_store %arg16[%c352, %c0_170], %138 {strides = array<i32>} : memref<400x165xf32, #tpu.memory_space<vmem>>, vector<16x165xf32>,
    %c0_171 = arith.constant 0 : index
    %c63_172 = arith.constant 63 : index
    %140 = vector.load %arg15[%c0_171, %c63_172] : memref<16x232xf32, #tpu.memory_space<vmem>>, vector<16x165xf32>
    %c368 = arith.constant 368 : index
    %c0_173 = arith.constant 0 : index
    %141 = vector.load %arg16[%c368, %c0_173] : memref<400x165xf32, #tpu.memory_space<vmem>>, vector<16x165xf32>
    tpu.vector_store %arg16[%c368, %c0_173], %140 {strides = array<i32>} : memref<400x165xf32, #tpu.memory_space<vmem>>, vector<16x165xf32>,
    %c0_174 = arith.constant 0 : index
    %c64_175 = arith.constant 64 : index
    %142 = vector.load %arg15[%c0_174, %c64_175] : memref<16x232xf32, #tpu.memory_space<vmem>>, vector<16x165xf32>
    %c384 = arith.constant 384 : index
    %c0_176 = arith.constant 0 : index
    %143 = vector.load %arg16[%c384, %c0_176] : memref<400x165xf32, #tpu.memory_space<vmem>>, vector<16x165xf32>
    tpu.vector_store %arg16[%c384, %c0_176], %142 {strides = array<i32>} : memref<400x165xf32, #tpu.memory_space<vmem>>, vector<16x165xf32>,
    %c0_177 = arith.constant 0 : index
    %c0_178 = arith.constant 0 : index
    %144 = vector.load %arg5[%c0_177, %c0_178] : memref<32x400xf32, #tpu.memory_space<vmem>>, vector<32x400xf32>
    %c0_179 = arith.constant 0 : index
    %c0_180 = arith.constant 0 : index
    %145 = vector.load %arg16[%c0_179, %c0_180] : memref<400x165xf32, #tpu.memory_space<vmem>>, vector<400x165xf32>
    %cst_181 = arith.constant dense<0.000000e+00> : vector<32x165xf32>
    %146 = tpu.matmul %144, %145, %cst_181 {dimension_numbers = #tpu.dot_dimension_numbers<[1], [0], [0], [1], [0, 0, 1, 1], [], []>} : vector<32x400xf32>, vector<400x165xf32>, vector<32x165xf32> -> vector<32x165xf32>
    %c0_182 = arith.constant 0 : index
    %c0_183 = arith.constant 0 : index
    %147 = vector.load %arg6[%c0_182, %c0_183] : memref<32x1xf32, #tpu.memory_space<vmem>>, vector<32x1xf32>
    %148 = vector.broadcast %147 : vector<32x1xf32> to vector<32x165xf32>
    %149 = arith.addf %146, %148 : vector<32x165xf32>
    %cst_184 = arith.constant 0.000000e+00 : f32
    %150 = vector.broadcast %cst_184 : f32 to vector<32x165xf32>
    %151 = arith.maximumf %149, %150 : vector<32x165xf32>
    %c0_185 = arith.constant 0 : index
    %c0_186 = arith.constant 0 : index
    %152 = vector.load %arg17[%c0_185, %c0_186] : memref<32x165xf32, #tpu.memory_space<vmem>>, vector<32x165xf32>
    tpu.vector_store %arg17[%c0_185, %c0_186], %151 {strides = array<i32>} : memref<32x165xf32, #tpu.memory_space<vmem>>, vector<32x165xf32>,
    %c0_187 = arith.constant 0 : index
    %c0_188 = arith.constant 0 : index
    %153 = vector.load %arg17[%c0_187, %c0_188] : memref<32x165xf32, #tpu.memory_space<vmem>>, vector<32x149xf32>
    %c0_189 = arith.constant 0 : index
    %c1_190 = arith.constant 1 : index
    %154 = vector.load %arg17[%c0_189, %c1_190] : memref<32x165xf32, #tpu.memory_space<vmem>>, vector<32x149xf32>
    %155 = arith.addf %153, %154 : vector<32x149xf32>
    %c0_191 = arith.constant 0 : index
    %c15_192 = arith.constant 15 : index
    %156 = vector.load %arg17[%c0_191, %c15_192] : memref<32x165xf32, #tpu.memory_space<vmem>>, vector<32x149xf32>
    %157 = arith.addf %155, %156 : vector<32x149xf32>
    %c0_193 = arith.constant 0 : index
    %c16_194 = arith.constant 16 : index
    %158 = vector.load %arg17[%c0_193, %c16_194] : memref<32x165xf32, #tpu.memory_space<vmem>>, vector<32x149xf32>
    %159 = arith.addf %157, %158 : vector<32x149xf32>
    %c0_195 = arith.constant 0 : index
    %c0_196 = arith.constant 0 : index
    %160 = vector.load %arg7[%c0_195, %c0_196] : memref<149x25xf32, #tpu.memory_space<vmem>>, vector<149x25xf32>
    %cst_197 = arith.constant dense<0.000000e+00> : vector<32x25xf32>
    %161 = tpu.matmul %159, %160, %cst_197 {dimension_numbers = #tpu.dot_dimension_numbers<[1], [0], [0], [1], [0, 0, 1, 1], [], []>} : vector<32x149xf32>, vector<149x25xf32>, vector<32x25xf32> -> vector<32x25xf32>
    %c0_198 = arith.constant 0 : index
    %c0_199 = arith.constant 0 : index
    %162 = vector.load %arg18[%c0_198, %c0_199] : memref<32x25xf32, #tpu.memory_space<vmem>>, vector<32x25xf32>
    tpu.vector_store %arg18[%c0_198, %c0_199], %161 {strides = array<i32>} : memref<32x25xf32, #tpu.memory_space<vmem>>, vector<32x25xf32>,
    %c0_200 = arith.constant 0 : index
    %c0_201 = arith.constant 0 : index
    %163 = vector.load %arg18[%c0_200, %c0_201] : memref<32x25xf32, #tpu.memory_space<vmem>>, vector<1x25xf32>
    %c0_202 = arith.constant 0 : index
    %c0_203 = arith.constant 0 : index
    %164 = vector.load %arg19[%c0_202, %c0_203] : memref<1x800xf32, #tpu.memory_space<vmem>>, vector<1x25xf32>
    tpu.vector_store %arg19[%c0_202, %c0_203], %163 {strides = array<i32>} : memref<1x800xf32, #tpu.memory_space<vmem>>, vector<1x25xf32>,
    %c1_204 = arith.constant 1 : index
    %c0_205 = arith.constant 0 : index
    %165 = vector.load %arg18[%c1_204, %c0_205] : memref<32x25xf32, #tpu.memory_space<vmem>>, vector<1x25xf32>
    %c0_206 = arith.constant 0 : index
    %c25 = arith.constant 25 : index
    %166 = vector.load %arg19[%c0_206, %c25] : memref<1x800xf32, #tpu.memory_space<vmem>>, vector<1x25xf32>
    tpu.vector_store %arg19[%c0_206, %c25], %165 {strides = array<i32>} : memref<1x800xf32, #tpu.memory_space<vmem>>, vector<1x25xf32>,
    %c2_207 = arith.constant 2 : index
    %c0_208 = arith.constant 0 : index
    %167 = vector.load %arg18[%c2_207, %c0_208] : memref<32x25xf32, #tpu.memory_space<vmem>>, vector<1x25xf32>
    %c0_209 = arith.constant 0 : index
    %c50 = arith.constant 50 : index
    %168 = vector.load %arg19[%c0_209, %c50] : memref<1x800xf32, #tpu.memory_space<vmem>>, vector<1x25xf32>
    tpu.vector_store %arg19[%c0_209, %c50], %167 {strides = array<i32>} : memref<1x800xf32, #tpu.memory_space<vmem>>, vector<1x25xf32>,
    %c3_210 = arith.constant 3 : index
    %c0_211 = arith.constant 0 : index
    %169 = vector.load %arg18[%c3_210, %c0_211] : memref<32x25xf32, #tpu.memory_space<vmem>>, vector<1x25xf32>
    %c0_212 = arith.constant 0 : index
    %c75 = arith.constant 75 : index
    %170 = vector.load %arg19[%c0_212, %c75] : memref<1x800xf32, #tpu.memory_space<vmem>>, vector<1x25xf32>
    tpu.vector_store %arg19[%c0_212, %c75], %169 {strides = array<i32>} : memref<1x800xf32, #tpu.memory_space<vmem>>, vector<1x25xf32>,
    %c4_213 = arith.constant 4 : index
    %c0_214 = arith.constant 0 : index
    %171 = vector.load %arg18[%c4_213, %c0_214] : memref<32x25xf32, #tpu.memory_space<vmem>>, vector<1x25xf32>
    %c0_215 = arith.constant 0 : index
    %c100 = arith.constant 100 : index
    %172 = vector.load %arg19[%c0_215, %c100] : memref<1x800xf32, #tpu.memory_space<vmem>>, vector<1x25xf32>
    tpu.vector_store %arg19[%c0_215, %c100], %171 {strides = array<i32>} : memref<1x800xf32, #tpu.memory_space<vmem>>, vector<1x25xf32>,
    %c5_216 = arith.constant 5 : index
    %c0_217 = arith.constant 0 : index
    %173 = vector.load %arg18[%c5_216, %c0_217] : memref<32x25xf32, #tpu.memory_space<vmem>>, vector<1x25xf32>
    %c0_218 = arith.constant 0 : index
    %c125 = arith.constant 125 : index
    %174 = vector.load %arg19[%c0_218, %c125] : memref<1x800xf32, #tpu.memory_space<vmem>>, vector<1x25xf32>
    tpu.vector_store %arg19[%c0_218, %c125], %173 {strides = array<i32>} : memref<1x800xf32, #tpu.memory_space<vmem>>, vector<1x25xf32>,
    %c6_219 = arith.constant 6 : index
    %c0_220 = arith.constant 0 : index
    %175 = vector.load %arg18[%c6_219, %c0_220] : memref<32x25xf32, #tpu.memory_space<vmem>>, vector<1x25xf32>
    %c0_221 = arith.constant 0 : index
    %c150 = arith.constant 150 : index
    %176 = vector.load %arg19[%c0_221, %c150] : memref<1x800xf32, #tpu.memory_space<vmem>>, vector<1x25xf32>
    tpu.vector_store %arg19[%c0_221, %c150], %175 {strides = array<i32>} : memref<1x800xf32, #tpu.memory_space<vmem>>, vector<1x25xf32>,
    %c7_222 = arith.constant 7 : index
    %c0_223 = arith.constant 0 : index
    %177 = vector.load %arg18[%c7_222, %c0_223] : memref<32x25xf32, #tpu.memory_space<vmem>>, vector<1x25xf32>
    %c0_224 = arith.constant 0 : index
    %c175 = arith.constant 175 : index
    %178 = vector.load %arg19[%c0_224, %c175] : memref<1x800xf32, #tpu.memory_space<vmem>>, vector<1x25xf32>
    tpu.vector_store %arg19[%c0_224, %c175], %177 {strides = array<i32>} : memref<1x800xf32, #tpu.memory_space<vmem>>, vector<1x25xf32>,
    %c8_225 = arith.constant 8 : index
    %c0_226 = arith.constant 0 : index
    %179 = vector.load %arg18[%c8_225, %c0_226] : memref<32x25xf32, #tpu.memory_space<vmem>>, vector<1x25xf32>
    %c0_227 = arith.constant 0 : index
    %c200 = arith.constant 200 : index
    %180 = vector.load %arg19[%c0_227, %c200] : memref<1x800xf32, #tpu.memory_space<vmem>>, vector<1x25xf32>
    tpu.vector_store %arg19[%c0_227, %c200], %179 {strides = array<i32>} : memref<1x800xf32, #tpu.memory_space<vmem>>, vector<1x25xf32>,
    %c9_228 = arith.constant 9 : index
    %c0_229 = arith.constant 0 : index
    %181 = vector.load %arg18[%c9_228, %c0_229] : memref<32x25xf32, #tpu.memory_space<vmem>>, vector<1x25xf32>
    %c0_230 = arith.constant 0 : index
    %c225 = arith.constant 225 : index
    %182 = vector.load %arg19[%c0_230, %c225] : memref<1x800xf32, #tpu.memory_space<vmem>>, vector<1x25xf32>
    tpu.vector_store %arg19[%c0_230, %c225], %181 {strides = array<i32>} : memref<1x800xf32, #tpu.memory_space<vmem>>, vector<1x25xf32>,
    %c10_231 = arith.constant 10 : index
    %c0_232 = arith.constant 0 : index
    %183 = vector.load %arg18[%c10_231, %c0_232] : memref<32x25xf32, #tpu.memory_space<vmem>>, vector<1x25xf32>
    %c0_233 = arith.constant 0 : index
    %c250 = arith.constant 250 : index
    %184 = vector.load %arg19[%c0_233, %c250] : memref<1x800xf32, #tpu.memory_space<vmem>>, vector<1x25xf32>
    tpu.vector_store %arg19[%c0_233, %c250], %183 {strides = array<i32>} : memref<1x800xf32, #tpu.memory_space<vmem>>, vector<1x25xf32>,
    %c11_234 = arith.constant 11 : index
    %c0_235 = arith.constant 0 : index
    %185 = vector.load %arg18[%c11_234, %c0_235] : memref<32x25xf32, #tpu.memory_space<vmem>>, vector<1x25xf32>
    %c0_236 = arith.constant 0 : index
    %c275 = arith.constant 275 : index
    %186 = vector.load %arg19[%c0_236, %c275] : memref<1x800xf32, #tpu.memory_space<vmem>>, vector<1x25xf32>
    tpu.vector_store %arg19[%c0_236, %c275], %185 {strides = array<i32>} : memref<1x800xf32, #tpu.memory_space<vmem>>, vector<1x25xf32>,
    %c12_237 = arith.constant 12 : index
    %c0_238 = arith.constant 0 : index
    %187 = vector.load %arg18[%c12_237, %c0_238] : memref<32x25xf32, #tpu.memory_space<vmem>>, vector<1x25xf32>
    %c0_239 = arith.constant 0 : index
    %c300 = arith.constant 300 : index
    %188 = vector.load %arg19[%c0_239, %c300] : memref<1x800xf32, #tpu.memory_space<vmem>>, vector<1x25xf32>
    tpu.vector_store %arg19[%c0_239, %c300], %187 {strides = array<i32>} : memref<1x800xf32, #tpu.memory_space<vmem>>, vector<1x25xf32>,
    %c13_240 = arith.constant 13 : index
    %c0_241 = arith.constant 0 : index
    %189 = vector.load %arg18[%c13_240, %c0_241] : memref<32x25xf32, #tpu.memory_space<vmem>>, vector<1x25xf32>
    %c0_242 = arith.constant 0 : index
    %c325 = arith.constant 325 : index
    %190 = vector.load %arg19[%c0_242, %c325] : memref<1x800xf32, #tpu.memory_space<vmem>>, vector<1x25xf32>
    tpu.vector_store %arg19[%c0_242, %c325], %189 {strides = array<i32>} : memref<1x800xf32, #tpu.memory_space<vmem>>, vector<1x25xf32>,
    %c14_243 = arith.constant 14 : index
    %c0_244 = arith.constant 0 : index
    %191 = vector.load %arg18[%c14_243, %c0_244] : memref<32x25xf32, #tpu.memory_space<vmem>>, vector<1x25xf32>
    %c0_245 = arith.constant 0 : index
    %c350 = arith.constant 350 : index
    %192 = vector.load %arg19[%c0_245, %c350] : memref<1x800xf32, #tpu.memory_space<vmem>>, vector<1x25xf32>
    tpu.vector_store %arg19[%c0_245, %c350], %191 {strides = array<i32>} : memref<1x800xf32, #tpu.memory_space<vmem>>, vector<1x25xf32>,
    %c15_246 = arith.constant 15 : index
    %c0_247 = arith.constant 0 : index
    %193 = vector.load %arg18[%c15_246, %c0_247] : memref<32x25xf32, #tpu.memory_space<vmem>>, vector<1x25xf32>
    %c0_248 = arith.constant 0 : index
    %c375 = arith.constant 375 : index
    %194 = vector.load %arg19[%c0_248, %c375] : memref<1x800xf32, #tpu.memory_space<vmem>>, vector<1x25xf32>
    tpu.vector_store %arg19[%c0_248, %c375], %193 {strides = array<i32>} : memref<1x800xf32, #tpu.memory_space<vmem>>, vector<1x25xf32>,
    %c16_249 = arith.constant 16 : index
    %c0_250 = arith.constant 0 : index
    %195 = vector.load %arg18[%c16_249, %c0_250] : memref<32x25xf32, #tpu.memory_space<vmem>>, vector<1x25xf32>
    %c0_251 = arith.constant 0 : index
    %c400 = arith.constant 400 : index
    %196 = vector.load %arg19[%c0_251, %c400] : memref<1x800xf32, #tpu.memory_space<vmem>>, vector<1x25xf32>
    tpu.vector_store %arg19[%c0_251, %c400], %195 {strides = array<i32>} : memref<1x800xf32, #tpu.memory_space<vmem>>, vector<1x25xf32>,
    %c17_252 = arith.constant 17 : index
    %c0_253 = arith.constant 0 : index
    %197 = vector.load %arg18[%c17_252, %c0_253] : memref<32x25xf32, #tpu.memory_space<vmem>>, vector<1x25xf32>
    %c0_254 = arith.constant 0 : index
    %c425 = arith.constant 425 : index
    %198 = vector.load %arg19[%c0_254, %c425] : memref<1x800xf32, #tpu.memory_space<vmem>>, vector<1x25xf32>
    tpu.vector_store %arg19[%c0_254, %c425], %197 {strides = array<i32>} : memref<1x800xf32, #tpu.memory_space<vmem>>, vector<1x25xf32>,
    %c18_255 = arith.constant 18 : index
    %c0_256 = arith.constant 0 : index
    %199 = vector.load %arg18[%c18_255, %c0_256] : memref<32x25xf32, #tpu.memory_space<vmem>>, vector<1x25xf32>
    %c0_257 = arith.constant 0 : index
    %c450 = arith.constant 450 : index
    %200 = vector.load %arg19[%c0_257, %c450] : memref<1x800xf32, #tpu.memory_space<vmem>>, vector<1x25xf32>
    tpu.vector_store %arg19[%c0_257, %c450], %199 {strides = array<i32>} : memref<1x800xf32, #tpu.memory_space<vmem>>, vector<1x25xf32>,
    %c19_258 = arith.constant 19 : index
    %c0_259 = arith.constant 0 : index
    %201 = vector.load %arg18[%c19_258, %c0_259] : memref<32x25xf32, #tpu.memory_space<vmem>>, vector<1x25xf32>
    %c0_260 = arith.constant 0 : index
    %c475 = arith.constant 475 : index
    %202 = vector.load %arg19[%c0_260, %c475] : memref<1x800xf32, #tpu.memory_space<vmem>>, vector<1x25xf32>
    tpu.vector_store %arg19[%c0_260, %c475], %201 {strides = array<i32>} : memref<1x800xf32, #tpu.memory_space<vmem>>, vector<1x25xf32>,
    %c20_261 = arith.constant 20 : index
    %c0_262 = arith.constant 0 : index
    %203 = vector.load %arg18[%c20_261, %c0_262] : memref<32x25xf32, #tpu.memory_space<vmem>>, vector<1x25xf32>
    %c0_263 = arith.constant 0 : index
    %c500 = arith.constant 500 : index
    %204 = vector.load %arg19[%c0_263, %c500] : memref<1x800xf32, #tpu.memory_space<vmem>>, vector<1x25xf32>
    tpu.vector_store %arg19[%c0_263, %c500], %203 {strides = array<i32>} : memref<1x800xf32, #tpu.memory_space<vmem>>, vector<1x25xf32>,
    %c21_264 = arith.constant 21 : index
    %c0_265 = arith.constant 0 : index
    %205 = vector.load %arg18[%c21_264, %c0_265] : memref<32x25xf32, #tpu.memory_space<vmem>>, vector<1x25xf32>
    %c0_266 = arith.constant 0 : index
    %c525 = arith.constant 525 : index
    %206 = vector.load %arg19[%c0_266, %c525] : memref<1x800xf32, #tpu.memory_space<vmem>>, vector<1x25xf32>
    tpu.vector_store %arg19[%c0_266, %c525], %205 {strides = array<i32>} : memref<1x800xf32, #tpu.memory_space<vmem>>, vector<1x25xf32>,
    %c22_267 = arith.constant 22 : index
    %c0_268 = arith.constant 0 : index
    %207 = vector.load %arg18[%c22_267, %c0_268] : memref<32x25xf32, #tpu.memory_space<vmem>>, vector<1x25xf32>
    %c0_269 = arith.constant 0 : index
    %c550 = arith.constant 550 : index
    %208 = vector.load %arg19[%c0_269, %c550] : memref<1x800xf32, #tpu.memory_space<vmem>>, vector<1x25xf32>
    tpu.vector_store %arg19[%c0_269, %c550], %207 {strides = array<i32>} : memref<1x800xf32, #tpu.memory_space<vmem>>, vector<1x25xf32>,
    %c23_270 = arith.constant 23 : index
    %c0_271 = arith.constant 0 : index
    %209 = vector.load %arg18[%c23_270, %c0_271] : memref<32x25xf32, #tpu.memory_space<vmem>>, vector<1x25xf32>
    %c0_272 = arith.constant 0 : index
    %c575 = arith.constant 575 : index
    %210 = vector.load %arg19[%c0_272, %c575] : memref<1x800xf32, #tpu.memory_space<vmem>>, vector<1x25xf32>
    tpu.vector_store %arg19[%c0_272, %c575], %209 {strides = array<i32>} : memref<1x800xf32, #tpu.memory_space<vmem>>, vector<1x25xf32>,
    %c24_273 = arith.constant 24 : index
    %c0_274 = arith.constant 0 : index
    %211 = vector.load %arg18[%c24_273, %c0_274] : memref<32x25xf32, #tpu.memory_space<vmem>>, vector<1x25xf32>
    %c0_275 = arith.constant 0 : index
    %c600 = arith.constant 600 : index
    %212 = vector.load %arg19[%c0_275, %c600] : memref<1x800xf32, #tpu.memory_space<vmem>>, vector<1x25xf32>
    tpu.vector_store %arg19[%c0_275, %c600], %211 {strides = array<i32>} : memref<1x800xf32, #tpu.memory_space<vmem>>, vector<1x25xf32>,
    %c25_276 = arith.constant 25 : index
    %c0_277 = arith.constant 0 : index
    %213 = vector.load %arg18[%c25_276, %c0_277] : memref<32x25xf32, #tpu.memory_space<vmem>>, vector<1x25xf32>
    %c0_278 = arith.constant 0 : index
    %c625 = arith.constant 625 : index
    %214 = vector.load %arg19[%c0_278, %c625] : memref<1x800xf32, #tpu.memory_space<vmem>>, vector<1x25xf32>
    tpu.vector_store %arg19[%c0_278, %c625], %213 {strides = array<i32>} : memref<1x800xf32, #tpu.memory_space<vmem>>, vector<1x25xf32>,
    %c26 = arith.constant 26 : index
    %c0_279 = arith.constant 0 : index
    %215 = vector.load %arg18[%c26, %c0_279] : memref<32x25xf32, #tpu.memory_space<vmem>>, vector<1x25xf32>
    %c0_280 = arith.constant 0 : index
    %c650 = arith.constant 650 : index
    %216 = vector.load %arg19[%c0_280, %c650] : memref<1x800xf32, #tpu.memory_space<vmem>>, vector<1x25xf32>
    tpu.vector_store %arg19[%c0_280, %c650], %215 {strides = array<i32>} : memref<1x800xf32, #tpu.memory_space<vmem>>, vector<1x25xf32>,
    %c27 = arith.constant 27 : index
    %c0_281 = arith.constant 0 : index
    %217 = vector.load %arg18[%c27, %c0_281] : memref<32x25xf32, #tpu.memory_space<vmem>>, vector<1x25xf32>
    %c0_282 = arith.constant 0 : index
    %c675 = arith.constant 675 : index
    %218 = vector.load %arg19[%c0_282, %c675] : memref<1x800xf32, #tpu.memory_space<vmem>>, vector<1x25xf32>
    tpu.vector_store %arg19[%c0_282, %c675], %217 {strides = array<i32>} : memref<1x800xf32, #tpu.memory_space<vmem>>, vector<1x25xf32>,
    %c28 = arith.constant 28 : index
    %c0_283 = arith.constant 0 : index
    %219 = vector.load %arg18[%c28, %c0_283] : memref<32x25xf32, #tpu.memory_space<vmem>>, vector<1x25xf32>
    %c0_284 = arith.constant 0 : index
    %c700 = arith.constant 700 : index
    %220 = vector.load %arg19[%c0_284, %c700] : memref<1x800xf32, #tpu.memory_space<vmem>>, vector<1x25xf32>
    tpu.vector_store %arg19[%c0_284, %c700], %219 {strides = array<i32>} : memref<1x800xf32, #tpu.memory_space<vmem>>, vector<1x25xf32>,
    %c29 = arith.constant 29 : index
    %c0_285 = arith.constant 0 : index
    %221 = vector.load %arg18[%c29, %c0_285] : memref<32x25xf32, #tpu.memory_space<vmem>>, vector<1x25xf32>
    %c0_286 = arith.constant 0 : index
    %c725 = arith.constant 725 : index
    %222 = vector.load %arg19[%c0_286, %c725] : memref<1x800xf32, #tpu.memory_space<vmem>>, vector<1x25xf32>
    tpu.vector_store %arg19[%c0_286, %c725], %221 {strides = array<i32>} : memref<1x800xf32, #tpu.memory_space<vmem>>, vector<1x25xf32>,
    %c30_287 = arith.constant 30 : index
    %c0_288 = arith.constant 0 : index
    %223 = vector.load %arg18[%c30_287, %c0_288] : memref<32x25xf32, #tpu.memory_space<vmem>>, vector<1x25xf32>
    %c0_289 = arith.constant 0 : index
    %c750 = arith.constant 750 : index
    %224 = vector.load %arg19[%c0_289, %c750] : memref<1x800xf32, #tpu.memory_space<vmem>>, vector<1x25xf32>
    tpu.vector_store %arg19[%c0_289, %c750], %223 {strides = array<i32>} : memref<1x800xf32, #tpu.memory_space<vmem>>, vector<1x25xf32>,
    %c31_290 = arith.constant 31 : index
    %c0_291 = arith.constant 0 : index
    %225 = vector.load %arg18[%c31_290, %c0_291] : memref<32x25xf32, #tpu.memory_space<vmem>>, vector<1x25xf32>
    %c0_292 = arith.constant 0 : index
    %c775 = arith.constant 775 : index
    %226 = vector.load %arg19[%c0_292, %c775] : memref<1x800xf32, #tpu.memory_space<vmem>>, vector<1x25xf32>
    tpu.vector_store %arg19[%c0_292, %c775], %225 {strides = array<i32>} : memref<1x800xf32, #tpu.memory_space<vmem>>, vector<1x25xf32>,
    %c0_293 = arith.constant 0 : index
    %c0_294 = arith.constant 0 : index
    %227 = vector.load %arg19[%c0_293, %c0_294] : memref<1x800xf32, #tpu.memory_space<vmem>>, vector<1x800xf32>
    %c0_295 = arith.constant 0 : index
    %c0_296 = arith.constant 0 : index
    %228 = vector.load %arg8[%c0_295, %c0_296] : memref<800x64xf32, #tpu.memory_space<vmem>>, vector<800x64xf32>
    %cst_297 = arith.constant dense<0.000000e+00> : vector<1x64xf32>
    %229 = tpu.matmul %227, %228, %cst_297 {dimension_numbers = #tpu.dot_dimension_numbers<[1], [0], [0], [1], [0, 0, 1, 1], [], []>} : vector<1x800xf32>, vector<800x64xf32>, vector<1x64xf32> -> vector<1x64xf32>
    %c0_298 = arith.constant 0 : index
    %c0_299 = arith.constant 0 : index
    %230 = vector.load %arg9[%c0_298, %c0_299] : memref<1x64xf32, #tpu.memory_space<vmem>>, vector<1x64xf32>
    %231 = arith.addf %229, %230 : vector<1x64xf32>
    %cst_300 = arith.constant 0.000000e+00 : f32
    %232 = vector.broadcast %cst_300 : f32 to vector<1x64xf32>
    %233 = arith.maximumf %231, %232 : vector<1x64xf32>
    %c0_301 = arith.constant 0 : index
    %c0_302 = arith.constant 0 : index
    %234 = vector.load %arg10[%c0_301, %c0_302] : memref<64x10xf32, #tpu.memory_space<vmem>>, vector<64x10xf32>
    %cst_303 = arith.constant dense<0.000000e+00> : vector<1x10xf32>
    %235 = tpu.matmul %233, %234, %cst_303 {dimension_numbers = #tpu.dot_dimension_numbers<[1], [0], [0], [1], [0, 0, 1, 1], [], []>} : vector<1x64xf32>, vector<64x10xf32>, vector<1x10xf32> -> vector<1x10xf32>
    %c0_304 = arith.constant 0 : index
    %c0_305 = arith.constant 0 : index
    %236 = vector.load %arg11[%c0_304, %c0_305] : memref<1x10xf32, #tpu.memory_space<vmem>>, vector<1x10xf32>
    %237 = arith.addf %235, %236 : vector<1x10xf32>
    %c0_306 = arith.constant 0 : index
    %c0_307 = arith.constant 0 : index
    %c0_308 = arith.constant 0 : index
    %238 = vector.load %arg12[%c0_306, %c0_307, %c0_308] : memref<2x1x10xf32, #tpu.memory_space<vmem>>, vector<1x1x10xf32>
    %239 = vector.shape_cast %238 : vector<1x1x10xf32> to vector<1x10xf32>
    %240 = vector.shape_cast %237 : vector<1x10xf32> to vector<1x1x10xf32>
    tpu.vector_store %arg12[%c0_306, %c0_307, %c0_308], %240 {strides = array<i32>} : memref<2x1x10xf32, #tpu.memory_space<vmem>>, vector<1x1x10xf32>,
    %c1_309 = arith.constant 1 : index
    %c0_310 = arith.constant 0 : index
    %c0_311 = arith.constant 0 : index
    %241 = vector.load %arg1[%c1_309, %c0_310, %c0_311] : memref<2x1x904xf32, #tpu.memory_space<vmem>>, vector<1x1x780xf32>
    %242 = vector.shape_cast %241 : vector<1x1x780xf32> to vector<1x780xf32>
    %c0_312 = arith.constant 0 : index
    %c0_313 = arith.constant 0 : index
    %243 = vector.load %arg13[%c0_312, %c0_313] : memref<25x780xf32, #tpu.memory_space<vmem>>, vector<1x780xf32>
    tpu.vector_store %arg13[%c0_312, %c0_313], %242 {strides = array<i32>} : memref<25x780xf32, #tpu.memory_space<vmem>>, vector<1x780xf32>,
    %c1_314 = arith.constant 1 : index
    %c0_315 = arith.constant 0 : index
    %c1_316 = arith.constant 1 : index
    %244 = vector.load %arg1[%c1_314, %c0_315, %c1_316] : memref<2x1x904xf32, #tpu.memory_space<vmem>>, vector<1x1x780xf32>
    %245 = vector.shape_cast %244 : vector<1x1x780xf32> to vector<1x780xf32>
    %c1_317 = arith.constant 1 : index
    %c0_318 = arith.constant 0 : index
    %246 = vector.load %arg13[%c1_317, %c0_318] : memref<25x780xf32, #tpu.memory_space<vmem>>, vector<1x780xf32>
    tpu.vector_store %arg13[%c1_317, %c0_318], %245 {strides = array<i32>} : memref<25x780xf32, #tpu.memory_space<vmem>>, vector<1x780xf32>,
    %c1_319 = arith.constant 1 : index
    %c0_320 = arith.constant 0 : index
    %c2_321 = arith.constant 2 : index
    %247 = vector.load %arg1[%c1_319, %c0_320, %c2_321] : memref<2x1x904xf32, #tpu.memory_space<vmem>>, vector<1x1x780xf32>
    %248 = vector.shape_cast %247 : vector<1x1x780xf32> to vector<1x780xf32>
    %c2_322 = arith.constant 2 : index
    %c0_323 = arith.constant 0 : index
    %249 = vector.load %arg13[%c2_322, %c0_323] : memref<25x780xf32, #tpu.memory_space<vmem>>, vector<1x780xf32>
    tpu.vector_store %arg13[%c2_322, %c0_323], %248 {strides = array<i32>} : memref<25x780xf32, #tpu.memory_space<vmem>>, vector<1x780xf32>,
    %c1_324 = arith.constant 1 : index
    %c0_325 = arith.constant 0 : index
    %c3_326 = arith.constant 3 : index
    %250 = vector.load %arg1[%c1_324, %c0_325, %c3_326] : memref<2x1x904xf32, #tpu.memory_space<vmem>>, vector<1x1x780xf32>
    %251 = vector.shape_cast %250 : vector<1x1x780xf32> to vector<1x780xf32>
    %c3_327 = arith.constant 3 : index
    %c0_328 = arith.constant 0 : index
    %252 = vector.load %arg13[%c3_327, %c0_328] : memref<25x780xf32, #tpu.memory_space<vmem>>, vector<1x780xf32>
    tpu.vector_store %arg13[%c3_327, %c0_328], %251 {strides = array<i32>} : memref<25x780xf32, #tpu.memory_space<vmem>>, vector<1x780xf32>,
    %c1_329 = arith.constant 1 : index
    %c0_330 = arith.constant 0 : index
    %c4_331 = arith.constant 4 : index
    %253 = vector.load %arg1[%c1_329, %c0_330, %c4_331] : memref<2x1x904xf32, #tpu.memory_space<vmem>>, vector<1x1x780xf32>
    %254 = vector.shape_cast %253 : vector<1x1x780xf32> to vector<1x780xf32>
    %c4_332 = arith.constant 4 : index
    %c0_333 = arith.constant 0 : index
    %255 = vector.load %arg13[%c4_332, %c0_333] : memref<25x780xf32, #tpu.memory_space<vmem>>, vector<1x780xf32>
    tpu.vector_store %arg13[%c4_332, %c0_333], %254 {strides = array<i32>} : memref<25x780xf32, #tpu.memory_space<vmem>>, vector<1x780xf32>,
    %c1_334 = arith.constant 1 : index
    %c0_335 = arith.constant 0 : index
    %c30_336 = arith.constant 30 : index
    %256 = vector.load %arg1[%c1_334, %c0_335, %c30_336] : memref<2x1x904xf32, #tpu.memory_space<vmem>>, vector<1x1x780xf32>
    %257 = vector.shape_cast %256 : vector<1x1x780xf32> to vector<1x780xf32>
    %c5_337 = arith.constant 5 : index
    %c0_338 = arith.constant 0 : index
    %258 = vector.load %arg13[%c5_337, %c0_338] : memref<25x780xf32, #tpu.memory_space<vmem>>, vector<1x780xf32>
    tpu.vector_store %arg13[%c5_337, %c0_338], %257 {strides = array<i32>} : memref<25x780xf32, #tpu.memory_space<vmem>>, vector<1x780xf32>,
    %c1_339 = arith.constant 1 : index
    %c0_340 = arith.constant 0 : index
    %c31_341 = arith.constant 31 : index
    %259 = vector.load %arg1[%c1_339, %c0_340, %c31_341] : memref<2x1x904xf32, #tpu.memory_space<vmem>>, vector<1x1x780xf32>
    %260 = vector.shape_cast %259 : vector<1x1x780xf32> to vector<1x780xf32>
    %c6_342 = arith.constant 6 : index
    %c0_343 = arith.constant 0 : index
    %261 = vector.load %arg13[%c6_342, %c0_343] : memref<25x780xf32, #tpu.memory_space<vmem>>, vector<1x780xf32>
    tpu.vector_store %arg13[%c6_342, %c0_343], %260 {strides = array<i32>} : memref<25x780xf32, #tpu.memory_space<vmem>>, vector<1x780xf32>,
    %c1_344 = arith.constant 1 : index
    %c0_345 = arith.constant 0 : index
    %c32_346 = arith.constant 32 : index
    %262 = vector.load %arg1[%c1_344, %c0_345, %c32_346] : memref<2x1x904xf32, #tpu.memory_space<vmem>>, vector<1x1x780xf32>
    %263 = vector.shape_cast %262 : vector<1x1x780xf32> to vector<1x780xf32>
    %c7_347 = arith.constant 7 : index
    %c0_348 = arith.constant 0 : index
    %264 = vector.load %arg13[%c7_347, %c0_348] : memref<25x780xf32, #tpu.memory_space<vmem>>, vector<1x780xf32>
    tpu.vector_store %arg13[%c7_347, %c0_348], %263 {strides = array<i32>} : memref<25x780xf32, #tpu.memory_space<vmem>>, vector<1x780xf32>,
    %c1_349 = arith.constant 1 : index
    %c0_350 = arith.constant 0 : index
    %c33_351 = arith.constant 33 : index
    %265 = vector.load %arg1[%c1_349, %c0_350, %c33_351] : memref<2x1x904xf32, #tpu.memory_space<vmem>>, vector<1x1x780xf32>
    %266 = vector.shape_cast %265 : vector<1x1x780xf32> to vector<1x780xf32>
    %c8_352 = arith.constant 8 : index
    %c0_353 = arith.constant 0 : index
    %267 = vector.load %arg13[%c8_352, %c0_353] : memref<25x780xf32, #tpu.memory_space<vmem>>, vector<1x780xf32>
    tpu.vector_store %arg13[%c8_352, %c0_353], %266 {strides = array<i32>} : memref<25x780xf32, #tpu.memory_space<vmem>>, vector<1x780xf32>,
    %c1_354 = arith.constant 1 : index
    %c0_355 = arith.constant 0 : index
    %c34_356 = arith.constant 34 : index
    %268 = vector.load %arg1[%c1_354, %c0_355, %c34_356] : memref<2x1x904xf32, #tpu.memory_space<vmem>>, vector<1x1x780xf32>
    %269 = vector.shape_cast %268 : vector<1x1x780xf32> to vector<1x780xf32>
    %c9_357 = arith.constant 9 : index
    %c0_358 = arith.constant 0 : index
    %270 = vector.load %arg13[%c9_357, %c0_358] : memref<25x780xf32, #tpu.memory_space<vmem>>, vector<1x780xf32>
    tpu.vector_store %arg13[%c9_357, %c0_358], %269 {strides = array<i32>} : memref<25x780xf32, #tpu.memory_space<vmem>>, vector<1x780xf32>,
    %c1_359 = arith.constant 1 : index
    %c0_360 = arith.constant 0 : index
    %c60_361 = arith.constant 60 : index
    %271 = vector.load %arg1[%c1_359, %c0_360, %c60_361] : memref<2x1x904xf32, #tpu.memory_space<vmem>>, vector<1x1x780xf32>
    %272 = vector.shape_cast %271 : vector<1x1x780xf32> to vector<1x780xf32>
    %c10_362 = arith.constant 10 : index
    %c0_363 = arith.constant 0 : index
    %273 = vector.load %arg13[%c10_362, %c0_363] : memref<25x780xf32, #tpu.memory_space<vmem>>, vector<1x780xf32>
    tpu.vector_store %arg13[%c10_362, %c0_363], %272 {strides = array<i32>} : memref<25x780xf32, #tpu.memory_space<vmem>>, vector<1x780xf32>,
    %c1_364 = arith.constant 1 : index
    %c0_365 = arith.constant 0 : index
    %c61_366 = arith.constant 61 : index
    %274 = vector.load %arg1[%c1_364, %c0_365, %c61_366] : memref<2x1x904xf32, #tpu.memory_space<vmem>>, vector<1x1x780xf32>
    %275 = vector.shape_cast %274 : vector<1x1x780xf32> to vector<1x780xf32>
    %c11_367 = arith.constant 11 : index
    %c0_368 = arith.constant 0 : index
    %276 = vector.load %arg13[%c11_367, %c0_368] : memref<25x780xf32, #tpu.memory_space<vmem>>, vector<1x780xf32>
    tpu.vector_store %arg13[%c11_367, %c0_368], %275 {strides = array<i32>} : memref<25x780xf32, #tpu.memory_space<vmem>>, vector<1x780xf32>,
    %c1_369 = arith.constant 1 : index
    %c0_370 = arith.constant 0 : index
    %c62_371 = arith.constant 62 : index
    %277 = vector.load %arg1[%c1_369, %c0_370, %c62_371] : memref<2x1x904xf32, #tpu.memory_space<vmem>>, vector<1x1x780xf32>
    %278 = vector.shape_cast %277 : vector<1x1x780xf32> to vector<1x780xf32>
    %c12_372 = arith.constant 12 : index
    %c0_373 = arith.constant 0 : index
    %279 = vector.load %arg13[%c12_372, %c0_373] : memref<25x780xf32, #tpu.memory_space<vmem>>, vector<1x780xf32>
    tpu.vector_store %arg13[%c12_372, %c0_373], %278 {strides = array<i32>} : memref<25x780xf32, #tpu.memory_space<vmem>>, vector<1x780xf32>,
    %c1_374 = arith.constant 1 : index
    %c0_375 = arith.constant 0 : index
    %c63_376 = arith.constant 63 : index
    %280 = vector.load %arg1[%c1_374, %c0_375, %c63_376] : memref<2x1x904xf32, #tpu.memory_space<vmem>>, vector<1x1x780xf32>
    %281 = vector.shape_cast %280 : vector<1x1x780xf32> to vector<1x780xf32>
    %c13_377 = arith.constant 13 : index
    %c0_378 = arith.constant 0 : index
    %282 = vector.load %arg13[%c13_377, %c0_378] : memref<25x780xf32, #tpu.memory_space<vmem>>, vector<1x780xf32>
    tpu.vector_store %arg13[%c13_377, %c0_378], %281 {strides = array<i32>} : memref<25x780xf32, #tpu.memory_space<vmem>>, vector<1x780xf32>,
    %c1_379 = arith.constant 1 : index
    %c0_380 = arith.constant 0 : index
    %c64_381 = arith.constant 64 : index
    %283 = vector.load %arg1[%c1_379, %c0_380, %c64_381] : memref<2x1x904xf32, #tpu.memory_space<vmem>>, vector<1x1x780xf32>
    %284 = vector.shape_cast %283 : vector<1x1x780xf32> to vector<1x780xf32>
    %c14_382 = arith.constant 14 : index
    %c0_383 = arith.constant 0 : index
    %285 = vector.load %arg13[%c14_382, %c0_383] : memref<25x780xf32, #tpu.memory_space<vmem>>, vector<1x780xf32>
    tpu.vector_store %arg13[%c14_382, %c0_383], %284 {strides = array<i32>} : memref<25x780xf32, #tpu.memory_space<vmem>>, vector<1x780xf32>,
    %c1_384 = arith.constant 1 : index
    %c0_385 = arith.constant 0 : index
    %c90_386 = arith.constant 90 : index
    %286 = vector.load %arg1[%c1_384, %c0_385, %c90_386] : memref<2x1x904xf32, #tpu.memory_space<vmem>>, vector<1x1x780xf32>
    %287 = vector.shape_cast %286 : vector<1x1x780xf32> to vector<1x780xf32>
    %c15_387 = arith.constant 15 : index
    %c0_388 = arith.constant 0 : index
    %288 = vector.load %arg13[%c15_387, %c0_388] : memref<25x780xf32, #tpu.memory_space<vmem>>, vector<1x780xf32>
    tpu.vector_store %arg13[%c15_387, %c0_388], %287 {strides = array<i32>} : memref<25x780xf32, #tpu.memory_space<vmem>>, vector<1x780xf32>,
    %c1_389 = arith.constant 1 : index
    %c0_390 = arith.constant 0 : index
    %c91_391 = arith.constant 91 : index
    %289 = vector.load %arg1[%c1_389, %c0_390, %c91_391] : memref<2x1x904xf32, #tpu.memory_space<vmem>>, vector<1x1x780xf32>
    %290 = vector.shape_cast %289 : vector<1x1x780xf32> to vector<1x780xf32>
    %c16_392 = arith.constant 16 : index
    %c0_393 = arith.constant 0 : index
    %291 = vector.load %arg13[%c16_392, %c0_393] : memref<25x780xf32, #tpu.memory_space<vmem>>, vector<1x780xf32>
    tpu.vector_store %arg13[%c16_392, %c0_393], %290 {strides = array<i32>} : memref<25x780xf32, #tpu.memory_space<vmem>>, vector<1x780xf32>,
    %c1_394 = arith.constant 1 : index
    %c0_395 = arith.constant 0 : index
    %c92_396 = arith.constant 92 : index
    %292 = vector.load %arg1[%c1_394, %c0_395, %c92_396] : memref<2x1x904xf32, #tpu.memory_space<vmem>>, vector<1x1x780xf32>
    %293 = vector.shape_cast %292 : vector<1x1x780xf32> to vector<1x780xf32>
    %c17_397 = arith.constant 17 : index
    %c0_398 = arith.constant 0 : index
    %294 = vector.load %arg13[%c17_397, %c0_398] : memref<25x780xf32, #tpu.memory_space<vmem>>, vector<1x780xf32>
    tpu.vector_store %arg13[%c17_397, %c0_398], %293 {strides = array<i32>} : memref<25x780xf32, #tpu.memory_space<vmem>>, vector<1x780xf32>,
    %c1_399 = arith.constant 1 : index
    %c0_400 = arith.constant 0 : index
    %c93_401 = arith.constant 93 : index
    %295 = vector.load %arg1[%c1_399, %c0_400, %c93_401] : memref<2x1x904xf32, #tpu.memory_space<vmem>>, vector<1x1x780xf32>
    %296 = vector.shape_cast %295 : vector<1x1x780xf32> to vector<1x780xf32>
    %c18_402 = arith.constant 18 : index
    %c0_403 = arith.constant 0 : index
    %297 = vector.load %arg13[%c18_402, %c0_403] : memref<25x780xf32, #tpu.memory_space<vmem>>, vector<1x780xf32>
    tpu.vector_store %arg13[%c18_402, %c0_403], %296 {strides = array<i32>} : memref<25x780xf32, #tpu.memory_space<vmem>>, vector<1x780xf32>,
    %c1_404 = arith.constant 1 : index
    %c0_405 = arith.constant 0 : index
    %c94_406 = arith.constant 94 : index
    %298 = vector.load %arg1[%c1_404, %c0_405, %c94_406] : memref<2x1x904xf32, #tpu.memory_space<vmem>>, vector<1x1x780xf32>
    %299 = vector.shape_cast %298 : vector<1x1x780xf32> to vector<1x780xf32>
    %c19_407 = arith.constant 19 : index
    %c0_408 = arith.constant 0 : index
    %300 = vector.load %arg13[%c19_407, %c0_408] : memref<25x780xf32, #tpu.memory_space<vmem>>, vector<1x780xf32>
    tpu.vector_store %arg13[%c19_407, %c0_408], %299 {strides = array<i32>} : memref<25x780xf32, #tpu.memory_space<vmem>>, vector<1x780xf32>,
    %c1_409 = arith.constant 1 : index
    %c0_410 = arith.constant 0 : index
    %c120_411 = arith.constant 120 : index
    %301 = vector.load %arg1[%c1_409, %c0_410, %c120_411] : memref<2x1x904xf32, #tpu.memory_space<vmem>>, vector<1x1x780xf32>
    %302 = vector.shape_cast %301 : vector<1x1x780xf32> to vector<1x780xf32>
    %c20_412 = arith.constant 20 : index
    %c0_413 = arith.constant 0 : index
    %303 = vector.load %arg13[%c20_412, %c0_413] : memref<25x780xf32, #tpu.memory_space<vmem>>, vector<1x780xf32>
    tpu.vector_store %arg13[%c20_412, %c0_413], %302 {strides = array<i32>} : memref<25x780xf32, #tpu.memory_space<vmem>>, vector<1x780xf32>,
    %c1_414 = arith.constant 1 : index
    %c0_415 = arith.constant 0 : index
    %c121_416 = arith.constant 121 : index
    %304 = vector.load %arg1[%c1_414, %c0_415, %c121_416] : memref<2x1x904xf32, #tpu.memory_space<vmem>>, vector<1x1x780xf32>
    %305 = vector.shape_cast %304 : vector<1x1x780xf32> to vector<1x780xf32>
    %c21_417 = arith.constant 21 : index
    %c0_418 = arith.constant 0 : index
    %306 = vector.load %arg13[%c21_417, %c0_418] : memref<25x780xf32, #tpu.memory_space<vmem>>, vector<1x780xf32>
    tpu.vector_store %arg13[%c21_417, %c0_418], %305 {strides = array<i32>} : memref<25x780xf32, #tpu.memory_space<vmem>>, vector<1x780xf32>,
    %c1_419 = arith.constant 1 : index
    %c0_420 = arith.constant 0 : index
    %c122_421 = arith.constant 122 : index
    %307 = vector.load %arg1[%c1_419, %c0_420, %c122_421] : memref<2x1x904xf32, #tpu.memory_space<vmem>>, vector<1x1x780xf32>
    %308 = vector.shape_cast %307 : vector<1x1x780xf32> to vector<1x780xf32>
    %c22_422 = arith.constant 22 : index
    %c0_423 = arith.constant 0 : index
    %309 = vector.load %arg13[%c22_422, %c0_423] : memref<25x780xf32, #tpu.memory_space<vmem>>, vector<1x780xf32>
    tpu.vector_store %arg13[%c22_422, %c0_423], %308 {strides = array<i32>} : memref<25x780xf32, #tpu.memory_space<vmem>>, vector<1x780xf32>,
    %c1_424 = arith.constant 1 : index
    %c0_425 = arith.constant 0 : index
    %c123_426 = arith.constant 123 : index
    %310 = vector.load %arg1[%c1_424, %c0_425, %c123_426] : memref<2x1x904xf32, #tpu.memory_space<vmem>>, vector<1x1x780xf32>
    %311 = vector.shape_cast %310 : vector<1x1x780xf32> to vector<1x780xf32>
    %c23_427 = arith.constant 23 : index
    %c0_428 = arith.constant 0 : index
    %312 = vector.load %arg13[%c23_427, %c0_428] : memref<25x780xf32, #tpu.memory_space<vmem>>, vector<1x780xf32>
    tpu.vector_store %arg13[%c23_427, %c0_428], %311 {strides = array<i32>} : memref<25x780xf32, #tpu.memory_space<vmem>>, vector<1x780xf32>,
    %c1_429 = arith.constant 1 : index
    %c0_430 = arith.constant 0 : index
    %c124_431 = arith.constant 124 : index
    %313 = vector.load %arg1[%c1_429, %c0_430, %c124_431] : memref<2x1x904xf32, #tpu.memory_space<vmem>>, vector<1x1x780xf32>
    %314 = vector.shape_cast %313 : vector<1x1x780xf32> to vector<1x780xf32>
    %c24_432 = arith.constant 24 : index
    %c0_433 = arith.constant 0 : index
    %315 = vector.load %arg13[%c24_432, %c0_433] : memref<25x780xf32, #tpu.memory_space<vmem>>, vector<1x780xf32>
    tpu.vector_store %arg13[%c24_432, %c0_433], %314 {strides = array<i32>} : memref<25x780xf32, #tpu.memory_space<vmem>>, vector<1x780xf32>,
    %c0_434 = arith.constant 0 : index
    %c0_435 = arith.constant 0 : index
    %316 = vector.load %arg2[%c0_434, %c0_435] : memref<16x25xf32, #tpu.memory_space<vmem>>, vector<16x25xf32>
    %c0_436 = arith.constant 0 : index
    %c0_437 = arith.constant 0 : index
    %317 = vector.load %arg13[%c0_436, %c0_437] : memref<25x780xf32, #tpu.memory_space<vmem>>, vector<25x780xf32>
    %cst_438 = arith.constant dense<0.000000e+00> : vector<16x780xf32>
    %318 = tpu.matmul %316, %317, %cst_438 {dimension_numbers = #tpu.dot_dimension_numbers<[1], [0], [0], [1], [0, 0, 1, 1], [], []>} : vector<16x25xf32>, vector<25x780xf32>, vector<16x780xf32> -> vector<16x780xf32>
    %c0_439 = arith.constant 0 : index
    %c0_440 = arith.constant 0 : index
    %319 = vector.load %arg3[%c0_439, %c0_440] : memref<16x1xf32, #tpu.memory_space<vmem>>, vector<16x1xf32>
    %320 = vector.broadcast %319 : vector<16x1xf32> to vector<16x780xf32>
    %321 = arith.addf %318, %320 : vector<16x780xf32>
    %cst_441 = arith.constant 0.000000e+00 : f32
    %322 = vector.broadcast %cst_441 : f32 to vector<16x780xf32>
    %323 = arith.maximumf %321, %322 : vector<16x780xf32>
    %c0_442 = arith.constant 0 : index
    %c0_443 = arith.constant 0 : index
    %324 = vector.load %arg14[%c0_442, %c0_443] : memref<16x780xf32, #tpu.memory_space<vmem>>, vector<16x780xf32>
    tpu.vector_store %arg14[%c0_442, %c0_443], %323 {strides = array<i32>} : memref<16x780xf32, #tpu.memory_space<vmem>>, vector<16x780xf32>,
    %c0_444 = arith.constant 0 : index
    %c0_445 = arith.constant 0 : index
    %325 = vector.load %arg14[%c0_444, %c0_445] : memref<16x780xf32, #tpu.memory_space<vmem>>, vector<16x749xf32>
    %c0_446 = arith.constant 0 : index
    %c1_447 = arith.constant 1 : index
    %326 = vector.load %arg14[%c0_446, %c1_447] : memref<16x780xf32, #tpu.memory_space<vmem>>, vector<16x749xf32>
    %327 = arith.maximumf %325, %326 : vector<16x749xf32>
    %c0_448 = arith.constant 0 : index
    %c30_449 = arith.constant 30 : index
    %328 = vector.load %arg14[%c0_448, %c30_449] : memref<16x780xf32, #tpu.memory_space<vmem>>, vector<16x749xf32>
    %c0_450 = arith.constant 0 : index
    %c31_451 = arith.constant 31 : index
    %329 = vector.load %arg14[%c0_450, %c31_451] : memref<16x780xf32, #tpu.memory_space<vmem>>, vector<16x749xf32>
    %330 = arith.maximumf %328, %329 : vector<16x749xf32>
    %331 = arith.maximumf %327, %330 : vector<16x749xf32>
    %c0_452 = arith.constant 0 : index
    %c0_453 = arith.constant 0 : index
    %332 = vector.load %arg4[%c0_452, %c0_453] : memref<749x232xf32, #tpu.memory_space<vmem>>, vector<749x232xf32>
    %cst_454 = arith.constant dense<0.000000e+00> : vector<16x232xf32>
    %333 = tpu.matmul %331, %332, %cst_454 {dimension_numbers = #tpu.dot_dimension_numbers<[1], [0], [0], [1], [0, 0, 1, 1], [], []>} : vector<16x749xf32>, vector<749x232xf32>, vector<16x232xf32> -> vector<16x232xf32>
    %c0_455 = arith.constant 0 : index
    %c0_456 = arith.constant 0 : index
    %334 = vector.load %arg15[%c0_455, %c0_456] : memref<16x232xf32, #tpu.memory_space<vmem>>, vector<16x232xf32>
    tpu.vector_store %arg15[%c0_455, %c0_456], %333 {strides = array<i32>} : memref<16x232xf32, #tpu.memory_space<vmem>>, vector<16x232xf32>,
    %c0_457 = arith.constant 0 : index
    %c0_458 = arith.constant 0 : index
    %335 = vector.load %arg15[%c0_457, %c0_458] : memref<16x232xf32, #tpu.memory_space<vmem>>, vector<16x165xf32>
    %c0_459 = arith.constant 0 : index
    %c0_460 = arith.constant 0 : index
    %336 = vector.load %arg16[%c0_459, %c0_460] : memref<400x165xf32, #tpu.memory_space<vmem>>, vector<16x165xf32>
    tpu.vector_store %arg16[%c0_459, %c0_460], %335 {strides = array<i32>} : memref<400x165xf32, #tpu.memory_space<vmem>>, vector<16x165xf32>,
    %c0_461 = arith.constant 0 : index
    %c1_462 = arith.constant 1 : index
    %337 = vector.load %arg15[%c0_461, %c1_462] : memref<16x232xf32, #tpu.memory_space<vmem>>, vector<16x165xf32>
    %c16_463 = arith.constant 16 : index
    %c0_464 = arith.constant 0 : index
    %338 = vector.load %arg16[%c16_463, %c0_464] : memref<400x165xf32, #tpu.memory_space<vmem>>, vector<16x165xf32>
    tpu.vector_store %arg16[%c16_463, %c0_464], %337 {strides = array<i32>} : memref<400x165xf32, #tpu.memory_space<vmem>>, vector<16x165xf32>,
    %c0_465 = arith.constant 0 : index
    %c2_466 = arith.constant 2 : index
    %339 = vector.load %arg15[%c0_465, %c2_466] : memref<16x232xf32, #tpu.memory_space<vmem>>, vector<16x165xf32>
    %c32_467 = arith.constant 32 : index
    %c0_468 = arith.constant 0 : index
    %340 = vector.load %arg16[%c32_467, %c0_468] : memref<400x165xf32, #tpu.memory_space<vmem>>, vector<16x165xf32>
    tpu.vector_store %arg16[%c32_467, %c0_468], %339 {strides = array<i32>} : memref<400x165xf32, #tpu.memory_space<vmem>>, vector<16x165xf32>,
    %c0_469 = arith.constant 0 : index
    %c3_470 = arith.constant 3 : index
    %341 = vector.load %arg15[%c0_469, %c3_470] : memref<16x232xf32, #tpu.memory_space<vmem>>, vector<16x165xf32>
    %c48_471 = arith.constant 48 : index
    %c0_472 = arith.constant 0 : index
    %342 = vector.load %arg16[%c48_471, %c0_472] : memref<400x165xf32, #tpu.memory_space<vmem>>, vector<16x165xf32>
    tpu.vector_store %arg16[%c48_471, %c0_472], %341 {strides = array<i32>} : memref<400x165xf32, #tpu.memory_space<vmem>>, vector<16x165xf32>,
    %c0_473 = arith.constant 0 : index
    %c4_474 = arith.constant 4 : index
    %343 = vector.load %arg15[%c0_473, %c4_474] : memref<16x232xf32, #tpu.memory_space<vmem>>, vector<16x165xf32>
    %c64_475 = arith.constant 64 : index
    %c0_476 = arith.constant 0 : index
    %344 = vector.load %arg16[%c64_475, %c0_476] : memref<400x165xf32, #tpu.memory_space<vmem>>, vector<16x165xf32>
    tpu.vector_store %arg16[%c64_475, %c0_476], %343 {strides = array<i32>} : memref<400x165xf32, #tpu.memory_space<vmem>>, vector<16x165xf32>,
    %c0_477 = arith.constant 0 : index
    %c15_478 = arith.constant 15 : index
    %345 = vector.load %arg15[%c0_477, %c15_478] : memref<16x232xf32, #tpu.memory_space<vmem>>, vector<16x165xf32>
    %c80_479 = arith.constant 80 : index
    %c0_480 = arith.constant 0 : index
    %346 = vector.load %arg16[%c80_479, %c0_480] : memref<400x165xf32, #tpu.memory_space<vmem>>, vector<16x165xf32>
    tpu.vector_store %arg16[%c80_479, %c0_480], %345 {strides = array<i32>} : memref<400x165xf32, #tpu.memory_space<vmem>>, vector<16x165xf32>,
    %c0_481 = arith.constant 0 : index
    %c16_482 = arith.constant 16 : index
    %347 = vector.load %arg15[%c0_481, %c16_482] : memref<16x232xf32, #tpu.memory_space<vmem>>, vector<16x165xf32>
    %c96_483 = arith.constant 96 : index
    %c0_484 = arith.constant 0 : index
    %348 = vector.load %arg16[%c96_483, %c0_484] : memref<400x165xf32, #tpu.memory_space<vmem>>, vector<16x165xf32>
    tpu.vector_store %arg16[%c96_483, %c0_484], %347 {strides = array<i32>} : memref<400x165xf32, #tpu.memory_space<vmem>>, vector<16x165xf32>,
    %c0_485 = arith.constant 0 : index
    %c17_486 = arith.constant 17 : index
    %349 = vector.load %arg15[%c0_485, %c17_486] : memref<16x232xf32, #tpu.memory_space<vmem>>, vector<16x165xf32>
    %c112_487 = arith.constant 112 : index
    %c0_488 = arith.constant 0 : index
    %350 = vector.load %arg16[%c112_487, %c0_488] : memref<400x165xf32, #tpu.memory_space<vmem>>, vector<16x165xf32>
    tpu.vector_store %arg16[%c112_487, %c0_488], %349 {strides = array<i32>} : memref<400x165xf32, #tpu.memory_space<vmem>>, vector<16x165xf32>,
    %c0_489 = arith.constant 0 : index
    %c18_490 = arith.constant 18 : index
    %351 = vector.load %arg15[%c0_489, %c18_490] : memref<16x232xf32, #tpu.memory_space<vmem>>, vector<16x165xf32>
    %c128_491 = arith.constant 128 : index
    %c0_492 = arith.constant 0 : index
    %352 = vector.load %arg16[%c128_491, %c0_492] : memref<400x165xf32, #tpu.memory_space<vmem>>, vector<16x165xf32>
    tpu.vector_store %arg16[%c128_491, %c0_492], %351 {strides = array<i32>} : memref<400x165xf32, #tpu.memory_space<vmem>>, vector<16x165xf32>,
    %c0_493 = arith.constant 0 : index
    %c19_494 = arith.constant 19 : index
    %353 = vector.load %arg15[%c0_493, %c19_494] : memref<16x232xf32, #tpu.memory_space<vmem>>, vector<16x165xf32>
    %c144_495 = arith.constant 144 : index
    %c0_496 = arith.constant 0 : index
    %354 = vector.load %arg16[%c144_495, %c0_496] : memref<400x165xf32, #tpu.memory_space<vmem>>, vector<16x165xf32>
    tpu.vector_store %arg16[%c144_495, %c0_496], %353 {strides = array<i32>} : memref<400x165xf32, #tpu.memory_space<vmem>>, vector<16x165xf32>,
    %c0_497 = arith.constant 0 : index
    %c30_498 = arith.constant 30 : index
    %355 = vector.load %arg15[%c0_497, %c30_498] : memref<16x232xf32, #tpu.memory_space<vmem>>, vector<16x165xf32>
    %c160_499 = arith.constant 160 : index
    %c0_500 = arith.constant 0 : index
    %356 = vector.load %arg16[%c160_499, %c0_500] : memref<400x165xf32, #tpu.memory_space<vmem>>, vector<16x165xf32>
    tpu.vector_store %arg16[%c160_499, %c0_500], %355 {strides = array<i32>} : memref<400x165xf32, #tpu.memory_space<vmem>>, vector<16x165xf32>,
    %c0_501 = arith.constant 0 : index
    %c31_502 = arith.constant 31 : index
    %357 = vector.load %arg15[%c0_501, %c31_502] : memref<16x232xf32, #tpu.memory_space<vmem>>, vector<16x165xf32>
    %c176_503 = arith.constant 176 : index
    %c0_504 = arith.constant 0 : index
    %358 = vector.load %arg16[%c176_503, %c0_504] : memref<400x165xf32, #tpu.memory_space<vmem>>, vector<16x165xf32>
    tpu.vector_store %arg16[%c176_503, %c0_504], %357 {strides = array<i32>} : memref<400x165xf32, #tpu.memory_space<vmem>>, vector<16x165xf32>,
    %c0_505 = arith.constant 0 : index
    %c32_506 = arith.constant 32 : index
    %359 = vector.load %arg15[%c0_505, %c32_506] : memref<16x232xf32, #tpu.memory_space<vmem>>, vector<16x165xf32>
    %c192_507 = arith.constant 192 : index
    %c0_508 = arith.constant 0 : index
    %360 = vector.load %arg16[%c192_507, %c0_508] : memref<400x165xf32, #tpu.memory_space<vmem>>, vector<16x165xf32>
    tpu.vector_store %arg16[%c192_507, %c0_508], %359 {strides = array<i32>} : memref<400x165xf32, #tpu.memory_space<vmem>>, vector<16x165xf32>,
    %c0_509 = arith.constant 0 : index
    %c33_510 = arith.constant 33 : index
    %361 = vector.load %arg15[%c0_509, %c33_510] : memref<16x232xf32, #tpu.memory_space<vmem>>, vector<16x165xf32>
    %c208_511 = arith.constant 208 : index
    %c0_512 = arith.constant 0 : index
    %362 = vector.load %arg16[%c208_511, %c0_512] : memref<400x165xf32, #tpu.memory_space<vmem>>, vector<16x165xf32>
    tpu.vector_store %arg16[%c208_511, %c0_512], %361 {strides = array<i32>} : memref<400x165xf32, #tpu.memory_space<vmem>>, vector<16x165xf32>,
    %c0_513 = arith.constant 0 : index
    %c34_514 = arith.constant 34 : index
    %363 = vector.load %arg15[%c0_513, %c34_514] : memref<16x232xf32, #tpu.memory_space<vmem>>, vector<16x165xf32>
    %c224_515 = arith.constant 224 : index
    %c0_516 = arith.constant 0 : index
    %364 = vector.load %arg16[%c224_515, %c0_516] : memref<400x165xf32, #tpu.memory_space<vmem>>, vector<16x165xf32>
    tpu.vector_store %arg16[%c224_515, %c0_516], %363 {strides = array<i32>} : memref<400x165xf32, #tpu.memory_space<vmem>>, vector<16x165xf32>,
    %c0_517 = arith.constant 0 : index
    %c45_518 = arith.constant 45 : index
    %365 = vector.load %arg15[%c0_517, %c45_518] : memref<16x232xf32, #tpu.memory_space<vmem>>, vector<16x165xf32>
    %c240_519 = arith.constant 240 : index
    %c0_520 = arith.constant 0 : index
    %366 = vector.load %arg16[%c240_519, %c0_520] : memref<400x165xf32, #tpu.memory_space<vmem>>, vector<16x165xf32>
    tpu.vector_store %arg16[%c240_519, %c0_520], %365 {strides = array<i32>} : memref<400x165xf32, #tpu.memory_space<vmem>>, vector<16x165xf32>,
    %c0_521 = arith.constant 0 : index
    %c46_522 = arith.constant 46 : index
    %367 = vector.load %arg15[%c0_521, %c46_522] : memref<16x232xf32, #tpu.memory_space<vmem>>, vector<16x165xf32>
    %c256_523 = arith.constant 256 : index
    %c0_524 = arith.constant 0 : index
    %368 = vector.load %arg16[%c256_523, %c0_524] : memref<400x165xf32, #tpu.memory_space<vmem>>, vector<16x165xf32>
    tpu.vector_store %arg16[%c256_523, %c0_524], %367 {strides = array<i32>} : memref<400x165xf32, #tpu.memory_space<vmem>>, vector<16x165xf32>,
    %c0_525 = arith.constant 0 : index
    %c47_526 = arith.constant 47 : index
    %369 = vector.load %arg15[%c0_525, %c47_526] : memref<16x232xf32, #tpu.memory_space<vmem>>, vector<16x165xf32>
    %c272_527 = arith.constant 272 : index
    %c0_528 = arith.constant 0 : index
    %370 = vector.load %arg16[%c272_527, %c0_528] : memref<400x165xf32, #tpu.memory_space<vmem>>, vector<16x165xf32>
    tpu.vector_store %arg16[%c272_527, %c0_528], %369 {strides = array<i32>} : memref<400x165xf32, #tpu.memory_space<vmem>>, vector<16x165xf32>,
    %c0_529 = arith.constant 0 : index
    %c48_530 = arith.constant 48 : index
    %371 = vector.load %arg15[%c0_529, %c48_530] : memref<16x232xf32, #tpu.memory_space<vmem>>, vector<16x165xf32>
    %c288_531 = arith.constant 288 : index
    %c0_532 = arith.constant 0 : index
    %372 = vector.load %arg16[%c288_531, %c0_532] : memref<400x165xf32, #tpu.memory_space<vmem>>, vector<16x165xf32>
    tpu.vector_store %arg16[%c288_531, %c0_532], %371 {strides = array<i32>} : memref<400x165xf32, #tpu.memory_space<vmem>>, vector<16x165xf32>,
    %c0_533 = arith.constant 0 : index
    %c49_534 = arith.constant 49 : index
    %373 = vector.load %arg15[%c0_533, %c49_534] : memref<16x232xf32, #tpu.memory_space<vmem>>, vector<16x165xf32>
    %c304_535 = arith.constant 304 : index
    %c0_536 = arith.constant 0 : index
    %374 = vector.load %arg16[%c304_535, %c0_536] : memref<400x165xf32, #tpu.memory_space<vmem>>, vector<16x165xf32>
    tpu.vector_store %arg16[%c304_535, %c0_536], %373 {strides = array<i32>} : memref<400x165xf32, #tpu.memory_space<vmem>>, vector<16x165xf32>,
    %c0_537 = arith.constant 0 : index
    %c60_538 = arith.constant 60 : index
    %375 = vector.load %arg15[%c0_537, %c60_538] : memref<16x232xf32, #tpu.memory_space<vmem>>, vector<16x165xf32>
    %c320_539 = arith.constant 320 : index
    %c0_540 = arith.constant 0 : index
    %376 = vector.load %arg16[%c320_539, %c0_540] : memref<400x165xf32, #tpu.memory_space<vmem>>, vector<16x165xf32>
    tpu.vector_store %arg16[%c320_539, %c0_540], %375 {strides = array<i32>} : memref<400x165xf32, #tpu.memory_space<vmem>>, vector<16x165xf32>,
    %c0_541 = arith.constant 0 : index
    %c61_542 = arith.constant 61 : index
    %377 = vector.load %arg15[%c0_541, %c61_542] : memref<16x232xf32, #tpu.memory_space<vmem>>, vector<16x165xf32>
    %c336_543 = arith.constant 336 : index
    %c0_544 = arith.constant 0 : index
    %378 = vector.load %arg16[%c336_543, %c0_544] : memref<400x165xf32, #tpu.memory_space<vmem>>, vector<16x165xf32>
    tpu.vector_store %arg16[%c336_543, %c0_544], %377 {strides = array<i32>} : memref<400x165xf32, #tpu.memory_space<vmem>>, vector<16x165xf32>,
    %c0_545 = arith.constant 0 : index
    %c62_546 = arith.constant 62 : index
    %379 = vector.load %arg15[%c0_545, %c62_546] : memref<16x232xf32, #tpu.memory_space<vmem>>, vector<16x165xf32>
    %c352_547 = arith.constant 352 : index
    %c0_548 = arith.constant 0 : index
    %380 = vector.load %arg16[%c352_547, %c0_548] : memref<400x165xf32, #tpu.memory_space<vmem>>, vector<16x165xf32>
    tpu.vector_store %arg16[%c352_547, %c0_548], %379 {strides = array<i32>} : memref<400x165xf32, #tpu.memory_space<vmem>>, vector<16x165xf32>,
    %c0_549 = arith.constant 0 : index
    %c63_550 = arith.constant 63 : index
    %381 = vector.load %arg15[%c0_549, %c63_550] : memref<16x232xf32, #tpu.memory_space<vmem>>, vector<16x165xf32>
    %c368_551 = arith.constant 368 : index
    %c0_552 = arith.constant 0 : index
    %382 = vector.load %arg16[%c368_551, %c0_552] : memref<400x165xf32, #tpu.memory_space<vmem>>, vector<16x165xf32>
    tpu.vector_store %arg16[%c368_551, %c0_552], %381 {strides = array<i32>} : memref<400x165xf32, #tpu.memory_space<vmem>>, vector<16x165xf32>,
    %c0_553 = arith.constant 0 : index
    %c64_554 = arith.constant 64 : index
    %383 = vector.load %arg15[%c0_553, %c64_554] : memref<16x232xf32, #tpu.memory_space<vmem>>, vector<16x165xf32>
    %c384_555 = arith.constant 384 : index
    %c0_556 = arith.constant 0 : index
    %384 = vector.load %arg16[%c384_555, %c0_556] : memref<400x165xf32, #tpu.memory_space<vmem>>, vector<16x165xf32>
    tpu.vector_store %arg16[%c384_555, %c0_556], %383 {strides = array<i32>} : memref<400x165xf32, #tpu.memory_space<vmem>>, vector<16x165xf32>,
    %c0_557 = arith.constant 0 : index
    %c0_558 = arith.constant 0 : index
    %385 = vector.load %arg5[%c0_557, %c0_558] : memref<32x400xf32, #tpu.memory_space<vmem>>, vector<32x400xf32>
    %c0_559 = arith.constant 0 : index
    %c0_560 = arith.constant 0 : index
    %386 = vector.load %arg16[%c0_559, %c0_560] : memref<400x165xf32, #tpu.memory_space<vmem>>, vector<400x165xf32>
    %cst_561 = arith.constant dense<0.000000e+00> : vector<32x165xf32>
    %387 = tpu.matmul %385, %386, %cst_561 {dimension_numbers = #tpu.dot_dimension_numbers<[1], [0], [0], [1], [0, 0, 1, 1], [], []>} : vector<32x400xf32>, vector<400x165xf32>, vector<32x165xf32> -> vector<32x165xf32>
    %c0_562 = arith.constant 0 : index
    %c0_563 = arith.constant 0 : index
    %388 = vector.load %arg6[%c0_562, %c0_563] : memref<32x1xf32, #tpu.memory_space<vmem>>, vector<32x1xf32>
    %389 = vector.broadcast %388 : vector<32x1xf32> to vector<32x165xf32>
    %390 = arith.addf %387, %389 : vector<32x165xf32>
    %cst_564 = arith.constant 0.000000e+00 : f32
    %391 = vector.broadcast %cst_564 : f32 to vector<32x165xf32>
    %392 = arith.maximumf %390, %391 : vector<32x165xf32>
    %c0_565 = arith.constant 0 : index
    %c0_566 = arith.constant 0 : index
    %393 = vector.load %arg17[%c0_565, %c0_566] : memref<32x165xf32, #tpu.memory_space<vmem>>, vector<32x165xf32>
    tpu.vector_store %arg17[%c0_565, %c0_566], %392 {strides = array<i32>} : memref<32x165xf32, #tpu.memory_space<vmem>>, vector<32x165xf32>,
    %c0_567 = arith.constant 0 : index
    %c0_568 = arith.constant 0 : index
    %394 = vector.load %arg17[%c0_567, %c0_568] : memref<32x165xf32, #tpu.memory_space<vmem>>, vector<32x149xf32>
    %c0_569 = arith.constant 0 : index
    %c1_570 = arith.constant 1 : index
    %395 = vector.load %arg17[%c0_569, %c1_570] : memref<32x165xf32, #tpu.memory_space<vmem>>, vector<32x149xf32>
    %396 = arith.addf %394, %395 : vector<32x149xf32>
    %c0_571 = arith.constant 0 : index
    %c15_572 = arith.constant 15 : index
    %397 = vector.load %arg17[%c0_571, %c15_572] : memref<32x165xf32, #tpu.memory_space<vmem>>, vector<32x149xf32>
    %398 = arith.addf %396, %397 : vector<32x149xf32>
    %c0_573 = arith.constant 0 : index
    %c16_574 = arith.constant 16 : index
    %399 = vector.load %arg17[%c0_573, %c16_574] : memref<32x165xf32, #tpu.memory_space<vmem>>, vector<32x149xf32>
    %400 = arith.addf %398, %399 : vector<32x149xf32>
    %c0_575 = arith.constant 0 : index
    %c0_576 = arith.constant 0 : index
    %401 = vector.load %arg7[%c0_575, %c0_576] : memref<149x25xf32, #tpu.memory_space<vmem>>, vector<149x25xf32>
    %cst_577 = arith.constant dense<0.000000e+00> : vector<32x25xf32>
    %402 = tpu.matmul %400, %401, %cst_577 {dimension_numbers = #tpu.dot_dimension_numbers<[1], [0], [0], [1], [0, 0, 1, 1], [], []>} : vector<32x149xf32>, vector<149x25xf32>, vector<32x25xf32> -> vector<32x25xf32>
    %c0_578 = arith.constant 0 : index
    %c0_579 = arith.constant 0 : index
    %403 = vector.load %arg18[%c0_578, %c0_579] : memref<32x25xf32, #tpu.memory_space<vmem>>, vector<32x25xf32>
    tpu.vector_store %arg18[%c0_578, %c0_579], %402 {strides = array<i32>} : memref<32x25xf32, #tpu.memory_space<vmem>>, vector<32x25xf32>,
    %c0_580 = arith.constant 0 : index
    %c0_581 = arith.constant 0 : index
    %404 = vector.load %arg18[%c0_580, %c0_581] : memref<32x25xf32, #tpu.memory_space<vmem>>, vector<1x25xf32>
    %c0_582 = arith.constant 0 : index
    %c0_583 = arith.constant 0 : index
    %405 = vector.load %arg19[%c0_582, %c0_583] : memref<1x800xf32, #tpu.memory_space<vmem>>, vector<1x25xf32>
    tpu.vector_store %arg19[%c0_582, %c0_583], %404 {strides = array<i32>} : memref<1x800xf32, #tpu.memory_space<vmem>>, vector<1x25xf32>,
    %c1_584 = arith.constant 1 : index
    %c0_585 = arith.constant 0 : index
    %406 = vector.load %arg18[%c1_584, %c0_585] : memref<32x25xf32, #tpu.memory_space<vmem>>, vector<1x25xf32>
    %c0_586 = arith.constant 0 : index
    %c25_587 = arith.constant 25 : index
    %407 = vector.load %arg19[%c0_586, %c25_587] : memref<1x800xf32, #tpu.memory_space<vmem>>, vector<1x25xf32>
    tpu.vector_store %arg19[%c0_586, %c25_587], %406 {strides = array<i32>} : memref<1x800xf32, #tpu.memory_space<vmem>>, vector<1x25xf32>,
    %c2_588 = arith.constant 2 : index
    %c0_589 = arith.constant 0 : index
    %408 = vector.load %arg18[%c2_588, %c0_589] : memref<32x25xf32, #tpu.memory_space<vmem>>, vector<1x25xf32>
    %c0_590 = arith.constant 0 : index
    %c50_591 = arith.constant 50 : index
    %409 = vector.load %arg19[%c0_590, %c50_591] : memref<1x800xf32, #tpu.memory_space<vmem>>, vector<1x25xf32>
    tpu.vector_store %arg19[%c0_590, %c50_591], %408 {strides = array<i32>} : memref<1x800xf32, #tpu.memory_space<vmem>>, vector<1x25xf32>,
    %c3_592 = arith.constant 3 : index
    %c0_593 = arith.constant 0 : index
    %410 = vector.load %arg18[%c3_592, %c0_593] : memref<32x25xf32, #tpu.memory_space<vmem>>, vector<1x25xf32>
    %c0_594 = arith.constant 0 : index
    %c75_595 = arith.constant 75 : index
    %411 = vector.load %arg19[%c0_594, %c75_595] : memref<1x800xf32, #tpu.memory_space<vmem>>, vector<1x25xf32>
    tpu.vector_store %arg19[%c0_594, %c75_595], %410 {strides = array<i32>} : memref<1x800xf32, #tpu.memory_space<vmem>>, vector<1x25xf32>,
    %c4_596 = arith.constant 4 : index
    %c0_597 = arith.constant 0 : index
    %412 = vector.load %arg18[%c4_596, %c0_597] : memref<32x25xf32, #tpu.memory_space<vmem>>, vector<1x25xf32>
    %c0_598 = arith.constant 0 : index
    %c100_599 = arith.constant 100 : index
    %413 = vector.load %arg19[%c0_598, %c100_599] : memref<1x800xf32, #tpu.memory_space<vmem>>, vector<1x25xf32>
    tpu.vector_store %arg19[%c0_598, %c100_599], %412 {strides = array<i32>} : memref<1x800xf32, #tpu.memory_space<vmem>>, vector<1x25xf32>,
    %c5_600 = arith.constant 5 : index
    %c0_601 = arith.constant 0 : index
    %414 = vector.load %arg18[%c5_600, %c0_601] : memref<32x25xf32, #tpu.memory_space<vmem>>, vector<1x25xf32>
    %c0_602 = arith.constant 0 : index
    %c125_603 = arith.constant 125 : index
    %415 = vector.load %arg19[%c0_602, %c125_603] : memref<1x800xf32, #tpu.memory_space<vmem>>, vector<1x25xf32>
    tpu.vector_store %arg19[%c0_602, %c125_603], %414 {strides = array<i32>} : memref<1x800xf32, #tpu.memory_space<vmem>>, vector<1x25xf32>,
    %c6_604 = arith.constant 6 : index
    %c0_605 = arith.constant 0 : index
    %416 = vector.load %arg18[%c6_604, %c0_605] : memref<32x25xf32, #tpu.memory_space<vmem>>, vector<1x25xf32>
    %c0_606 = arith.constant 0 : index
    %c150_607 = arith.constant 150 : index
    %417 = vector.load %arg19[%c0_606, %c150_607] : memref<1x800xf32, #tpu.memory_space<vmem>>, vector<1x25xf32>
    tpu.vector_store %arg19[%c0_606, %c150_607], %416 {strides = array<i32>} : memref<1x800xf32, #tpu.memory_space<vmem>>, vector<1x25xf32>,
    %c7_608 = arith.constant 7 : index
    %c0_609 = arith.constant 0 : index
    %418 = vector.load %arg18[%c7_608, %c0_609] : memref<32x25xf32, #tpu.memory_space<vmem>>, vector<1x25xf32>
    %c0_610 = arith.constant 0 : index
    %c175_611 = arith.constant 175 : index
    %419 = vector.load %arg19[%c0_610, %c175_611] : memref<1x800xf32, #tpu.memory_space<vmem>>, vector<1x25xf32>
    tpu.vector_store %arg19[%c0_610, %c175_611], %418 {strides = array<i32>} : memref<1x800xf32, #tpu.memory_space<vmem>>, vector<1x25xf32>,
    %c8_612 = arith.constant 8 : index
    %c0_613 = arith.constant 0 : index
    %420 = vector.load %arg18[%c8_612, %c0_613] : memref<32x25xf32, #tpu.memory_space<vmem>>, vector<1x25xf32>
    %c0_614 = arith.constant 0 : index
    %c200_615 = arith.constant 200 : index
    %421 = vector.load %arg19[%c0_614, %c200_615] : memref<1x800xf32, #tpu.memory_space<vmem>>, vector<1x25xf32>
    tpu.vector_store %arg19[%c0_614, %c200_615], %420 {strides = array<i32>} : memref<1x800xf32, #tpu.memory_space<vmem>>, vector<1x25xf32>,
    %c9_616 = arith.constant 9 : index
    %c0_617 = arith.constant 0 : index
    %422 = vector.load %arg18[%c9_616, %c0_617] : memref<32x25xf32, #tpu.memory_space<vmem>>, vector<1x25xf32>
    %c0_618 = arith.constant 0 : index
    %c225_619 = arith.constant 225 : index
    %423 = vector.load %arg19[%c0_618, %c225_619] : memref<1x800xf32, #tpu.memory_space<vmem>>, vector<1x25xf32>
    tpu.vector_store %arg19[%c0_618, %c225_619], %422 {strides = array<i32>} : memref<1x800xf32, #tpu.memory_space<vmem>>, vector<1x25xf32>,
    %c10_620 = arith.constant 10 : index
    %c0_621 = arith.constant 0 : index
    %424 = vector.load %arg18[%c10_620, %c0_621] : memref<32x25xf32, #tpu.memory_space<vmem>>, vector<1x25xf32>
    %c0_622 = arith.constant 0 : index
    %c250_623 = arith.constant 250 : index
    %425 = vector.load %arg19[%c0_622, %c250_623] : memref<1x800xf32, #tpu.memory_space<vmem>>, vector<1x25xf32>
    tpu.vector_store %arg19[%c0_622, %c250_623], %424 {strides = array<i32>} : memref<1x800xf32, #tpu.memory_space<vmem>>, vector<1x25xf32>,
    %c11_624 = arith.constant 11 : index
    %c0_625 = arith.constant 0 : index
    %426 = vector.load %arg18[%c11_624, %c0_625] : memref<32x25xf32, #tpu.memory_space<vmem>>, vector<1x25xf32>
    %c0_626 = arith.constant 0 : index
    %c275_627 = arith.constant 275 : index
    %427 = vector.load %arg19[%c0_626, %c275_627] : memref<1x800xf32, #tpu.memory_space<vmem>>, vector<1x25xf32>
    tpu.vector_store %arg19[%c0_626, %c275_627], %426 {strides = array<i32>} : memref<1x800xf32, #tpu.memory_space<vmem>>, vector<1x25xf32>,
    %c12_628 = arith.constant 12 : index
    %c0_629 = arith.constant 0 : index
    %428 = vector.load %arg18[%c12_628, %c0_629] : memref<32x25xf32, #tpu.memory_space<vmem>>, vector<1x25xf32>
    %c0_630 = arith.constant 0 : index
    %c300_631 = arith.constant 300 : index
    %429 = vector.load %arg19[%c0_630, %c300_631] : memref<1x800xf32, #tpu.memory_space<vmem>>, vector<1x25xf32>
    tpu.vector_store %arg19[%c0_630, %c300_631], %428 {strides = array<i32>} : memref<1x800xf32, #tpu.memory_space<vmem>>, vector<1x25xf32>,
    %c13_632 = arith.constant 13 : index
    %c0_633 = arith.constant 0 : index
    %430 = vector.load %arg18[%c13_632, %c0_633] : memref<32x25xf32, #tpu.memory_space<vmem>>, vector<1x25xf32>
    %c0_634 = arith.constant 0 : index
    %c325_635 = arith.constant 325 : index
    %431 = vector.load %arg19[%c0_634, %c325_635] : memref<1x800xf32, #tpu.memory_space<vmem>>, vector<1x25xf32>
    tpu.vector_store %arg19[%c0_634, %c325_635], %430 {strides = array<i32>} : memref<1x800xf32, #tpu.memory_space<vmem>>, vector<1x25xf32>,
    %c14_636 = arith.constant 14 : index
    %c0_637 = arith.constant 0 : index
    %432 = vector.load %arg18[%c14_636, %c0_637] : memref<32x25xf32, #tpu.memory_space<vmem>>, vector<1x25xf32>
    %c0_638 = arith.constant 0 : index
    %c350_639 = arith.constant 350 : index
    %433 = vector.load %arg19[%c0_638, %c350_639] : memref<1x800xf32, #tpu.memory_space<vmem>>, vector<1x25xf32>
    tpu.vector_store %arg19[%c0_638, %c350_639], %432 {strides = array<i32>} : memref<1x800xf32, #tpu.memory_space<vmem>>, vector<1x25xf32>,
    %c15_640 = arith.constant 15 : index
    %c0_641 = arith.constant 0 : index
    %434 = vector.load %arg18[%c15_640, %c0_641] : memref<32x25xf32, #tpu.memory_space<vmem>>, vector<1x25xf32>
    %c0_642 = arith.constant 0 : index
    %c375_643 = arith.constant 375 : index
    %435 = vector.load %arg19[%c0_642, %c375_643] : memref<1x800xf32, #tpu.memory_space<vmem>>, vector<1x25xf32>
    tpu.vector_store %arg19[%c0_642, %c375_643], %434 {strides = array<i32>} : memref<1x800xf32, #tpu.memory_space<vmem>>, vector<1x25xf32>,
    %c16_644 = arith.constant 16 : index
    %c0_645 = arith.constant 0 : index
    %436 = vector.load %arg18[%c16_644, %c0_645] : memref<32x25xf32, #tpu.memory_space<vmem>>, vector<1x25xf32>
    %c0_646 = arith.constant 0 : index
    %c400_647 = arith.constant 400 : index
    %437 = vector.load %arg19[%c0_646, %c400_647] : memref<1x800xf32, #tpu.memory_space<vmem>>, vector<1x25xf32>
    tpu.vector_store %arg19[%c0_646, %c400_647], %436 {strides = array<i32>} : memref<1x800xf32, #tpu.memory_space<vmem>>, vector<1x25xf32>,
    %c17_648 = arith.constant 17 : index
    %c0_649 = arith.constant 0 : index
    %438 = vector.load %arg18[%c17_648, %c0_649] : memref<32x25xf32, #tpu.memory_space<vmem>>, vector<1x25xf32>
    %c0_650 = arith.constant 0 : index
    %c425_651 = arith.constant 425 : index
    %439 = vector.load %arg19[%c0_650, %c425_651] : memref<1x800xf32, #tpu.memory_space<vmem>>, vector<1x25xf32>
    tpu.vector_store %arg19[%c0_650, %c425_651], %438 {strides = array<i32>} : memref<1x800xf32, #tpu.memory_space<vmem>>, vector<1x25xf32>,
    %c18_652 = arith.constant 18 : index
    %c0_653 = arith.constant 0 : index
    %440 = vector.load %arg18[%c18_652, %c0_653] : memref<32x25xf32, #tpu.memory_space<vmem>>, vector<1x25xf32>
    %c0_654 = arith.constant 0 : index
    %c450_655 = arith.constant 450 : index
    %441 = vector.load %arg19[%c0_654, %c450_655] : memref<1x800xf32, #tpu.memory_space<vmem>>, vector<1x25xf32>
    tpu.vector_store %arg19[%c0_654, %c450_655], %440 {strides = array<i32>} : memref<1x800xf32, #tpu.memory_space<vmem>>, vector<1x25xf32>,
    %c19_656 = arith.constant 19 : index
    %c0_657 = arith.constant 0 : index
    %442 = vector.load %arg18[%c19_656, %c0_657] : memref<32x25xf32, #tpu.memory_space<vmem>>, vector<1x25xf32>
    %c0_658 = arith.constant 0 : index
    %c475_659 = arith.constant 475 : index
    %443 = vector.load %arg19[%c0_658, %c475_659] : memref<1x800xf32, #tpu.memory_space<vmem>>, vector<1x25xf32>
    tpu.vector_store %arg19[%c0_658, %c475_659], %442 {strides = array<i32>} : memref<1x800xf32, #tpu.memory_space<vmem>>, vector<1x25xf32>,
    %c20_660 = arith.constant 20 : index
    %c0_661 = arith.constant 0 : index
    %444 = vector.load %arg18[%c20_660, %c0_661] : memref<32x25xf32, #tpu.memory_space<vmem>>, vector<1x25xf32>
    %c0_662 = arith.constant 0 : index
    %c500_663 = arith.constant 500 : index
    %445 = vector.load %arg19[%c0_662, %c500_663] : memref<1x800xf32, #tpu.memory_space<vmem>>, vector<1x25xf32>
    tpu.vector_store %arg19[%c0_662, %c500_663], %444 {strides = array<i32>} : memref<1x800xf32, #tpu.memory_space<vmem>>, vector<1x25xf32>,
    %c21_664 = arith.constant 21 : index
    %c0_665 = arith.constant 0 : index
    %446 = vector.load %arg18[%c21_664, %c0_665] : memref<32x25xf32, #tpu.memory_space<vmem>>, vector<1x25xf32>
    %c0_666 = arith.constant 0 : index
    %c525_667 = arith.constant 525 : index
    %447 = vector.load %arg19[%c0_666, %c525_667] : memref<1x800xf32, #tpu.memory_space<vmem>>, vector<1x25xf32>
    tpu.vector_store %arg19[%c0_666, %c525_667], %446 {strides = array<i32>} : memref<1x800xf32, #tpu.memory_space<vmem>>, vector<1x25xf32>,
    %c22_668 = arith.constant 22 : index
    %c0_669 = arith.constant 0 : index
    %448 = vector.load %arg18[%c22_668, %c0_669] : memref<32x25xf32, #tpu.memory_space<vmem>>, vector<1x25xf32>
    %c0_670 = arith.constant 0 : index
    %c550_671 = arith.constant 550 : index
    %449 = vector.load %arg19[%c0_670, %c550_671] : memref<1x800xf32, #tpu.memory_space<vmem>>, vector<1x25xf32>
    tpu.vector_store %arg19[%c0_670, %c550_671], %448 {strides = array<i32>} : memref<1x800xf32, #tpu.memory_space<vmem>>, vector<1x25xf32>,
    %c23_672 = arith.constant 23 : index
    %c0_673 = arith.constant 0 : index
    %450 = vector.load %arg18[%c23_672, %c0_673] : memref<32x25xf32, #tpu.memory_space<vmem>>, vector<1x25xf32>
    %c0_674 = arith.constant 0 : index
    %c575_675 = arith.constant 575 : index
    %451 = vector.load %arg19[%c0_674, %c575_675] : memref<1x800xf32, #tpu.memory_space<vmem>>, vector<1x25xf32>
    tpu.vector_store %arg19[%c0_674, %c575_675], %450 {strides = array<i32>} : memref<1x800xf32, #tpu.memory_space<vmem>>, vector<1x25xf32>,
    %c24_676 = arith.constant 24 : index
    %c0_677 = arith.constant 0 : index
    %452 = vector.load %arg18[%c24_676, %c0_677] : memref<32x25xf32, #tpu.memory_space<vmem>>, vector<1x25xf32>
    %c0_678 = arith.constant 0 : index
    %c600_679 = arith.constant 600 : index
    %453 = vector.load %arg19[%c0_678, %c600_679] : memref<1x800xf32, #tpu.memory_space<vmem>>, vector<1x25xf32>
    tpu.vector_store %arg19[%c0_678, %c600_679], %452 {strides = array<i32>} : memref<1x800xf32, #tpu.memory_space<vmem>>, vector<1x25xf32>,
    %c25_680 = arith.constant 25 : index
    %c0_681 = arith.constant 0 : index
    %454 = vector.load %arg18[%c25_680, %c0_681] : memref<32x25xf32, #tpu.memory_space<vmem>>, vector<1x25xf32>
    %c0_682 = arith.constant 0 : index
    %c625_683 = arith.constant 625 : index
    %455 = vector.load %arg19[%c0_682, %c625_683] : memref<1x800xf32, #tpu.memory_space<vmem>>, vector<1x25xf32>
    tpu.vector_store %arg19[%c0_682, %c625_683], %454 {strides = array<i32>} : memref<1x800xf32, #tpu.memory_space<vmem>>, vector<1x25xf32>,
    %c26_684 = arith.constant 26 : index
    %c0_685 = arith.constant 0 : index
    %456 = vector.load %arg18[%c26_684, %c0_685] : memref<32x25xf32, #tpu.memory_space<vmem>>, vector<1x25xf32>
    %c0_686 = arith.constant 0 : index
    %c650_687 = arith.constant 650 : index
    %457 = vector.load %arg19[%c0_686, %c650_687] : memref<1x800xf32, #tpu.memory_space<vmem>>, vector<1x25xf32>
    tpu.vector_store %arg19[%c0_686, %c650_687], %456 {strides = array<i32>} : memref<1x800xf32, #tpu.memory_space<vmem>>, vector<1x25xf32>,
    %c27_688 = arith.constant 27 : index
    %c0_689 = arith.constant 0 : index
    %458 = vector.load %arg18[%c27_688, %c0_689] : memref<32x25xf32, #tpu.memory_space<vmem>>, vector<1x25xf32>
    %c0_690 = arith.constant 0 : index
    %c675_691 = arith.constant 675 : index
    %459 = vector.load %arg19[%c0_690, %c675_691] : memref<1x800xf32, #tpu.memory_space<vmem>>, vector<1x25xf32>
    tpu.vector_store %arg19[%c0_690, %c675_691], %458 {strides = array<i32>} : memref<1x800xf32, #tpu.memory_space<vmem>>, vector<1x25xf32>,
    %c28_692 = arith.constant 28 : index
    %c0_693 = arith.constant 0 : index
    %460 = vector.load %arg18[%c28_692, %c0_693] : memref<32x25xf32, #tpu.memory_space<vmem>>, vector<1x25xf32>
    %c0_694 = arith.constant 0 : index
    %c700_695 = arith.constant 700 : index
    %461 = vector.load %arg19[%c0_694, %c700_695] : memref<1x800xf32, #tpu.memory_space<vmem>>, vector<1x25xf32>
    tpu.vector_store %arg19[%c0_694, %c700_695], %460 {strides = array<i32>} : memref<1x800xf32, #tpu.memory_space<vmem>>, vector<1x25xf32>,
    %c29_696 = arith.constant 29 : index
    %c0_697 = arith.constant 0 : index
    %462 = vector.load %arg18[%c29_696, %c0_697] : memref<32x25xf32, #tpu.memory_space<vmem>>, vector<1x25xf32>
    %c0_698 = arith.constant 0 : index
    %c725_699 = arith.constant 725 : index
    %463 = vector.load %arg19[%c0_698, %c725_699] : memref<1x800xf32, #tpu.memory_space<vmem>>, vector<1x25xf32>
    tpu.vector_store %arg19[%c0_698, %c725_699], %462 {strides = array<i32>} : memref<1x800xf32, #tpu.memory_space<vmem>>, vector<1x25xf32>,
    %c30_700 = arith.constant 30 : index
    %c0_701 = arith.constant 0 : index
    %464 = vector.load %arg18[%c30_700, %c0_701] : memref<32x25xf32, #tpu.memory_space<vmem>>, vector<1x25xf32>
    %c0_702 = arith.constant 0 : index
    %c750_703 = arith.constant 750 : index
    %465 = vector.load %arg19[%c0_702, %c750_703] : memref<1x800xf32, #tpu.memory_space<vmem>>, vector<1x25xf32>
    tpu.vector_store %arg19[%c0_702, %c750_703], %464 {strides = array<i32>} : memref<1x800xf32, #tpu.memory_space<vmem>>, vector<1x25xf32>,
    %c31_704 = arith.constant 31 : index
    %c0_705 = arith.constant 0 : index
    %466 = vector.load %arg18[%c31_704, %c0_705] : memref<32x25xf32, #tpu.memory_space<vmem>>, vector<1x25xf32>
    %c0_706 = arith.constant 0 : index
    %c775_707 = arith.constant 775 : index
    %467 = vector.load %arg19[%c0_706, %c775_707] : memref<1x800xf32, #tpu.memory_space<vmem>>, vector<1x25xf32>
    tpu.vector_store %arg19[%c0_706, %c775_707], %466 {strides = array<i32>} : memref<1x800xf32, #tpu.memory_space<vmem>>, vector<1x25xf32>,
    %c0_708 = arith.constant 0 : index
    %c0_709 = arith.constant 0 : index
    %468 = vector.load %arg19[%c0_708, %c0_709] : memref<1x800xf32, #tpu.memory_space<vmem>>, vector<1x800xf32>
    %c0_710 = arith.constant 0 : index
    %c0_711 = arith.constant 0 : index
    %469 = vector.load %arg8[%c0_710, %c0_711] : memref<800x64xf32, #tpu.memory_space<vmem>>, vector<800x64xf32>
    %cst_712 = arith.constant dense<0.000000e+00> : vector<1x64xf32>
    %470 = tpu.matmul %468, %469, %cst_712 {dimension_numbers = #tpu.dot_dimension_numbers<[1], [0], [0], [1], [0, 0, 1, 1], [], []>} : vector<1x800xf32>, vector<800x64xf32>, vector<1x64xf32> -> vector<1x64xf32>
    %c0_713 = arith.constant 0 : index
    %c0_714 = arith.constant 0 : index
    %471 = vector.load %arg9[%c0_713, %c0_714] : memref<1x64xf32, #tpu.memory_space<vmem>>, vector<1x64xf32>
    %472 = arith.addf %470, %471 : vector<1x64xf32>
    %cst_715 = arith.constant 0.000000e+00 : f32
    %473 = vector.broadcast %cst_715 : f32 to vector<1x64xf32>
    %474 = arith.maximumf %472, %473 : vector<1x64xf32>
    %c0_716 = arith.constant 0 : index
    %c0_717 = arith.constant 0 : index
    %475 = vector.load %arg10[%c0_716, %c0_717] : memref<64x10xf32, #tpu.memory_space<vmem>>, vector<64x10xf32>
    %cst_718 = arith.constant dense<0.000000e+00> : vector<1x10xf32>
    %476 = tpu.matmul %474, %475, %cst_718 {dimension_numbers = #tpu.dot_dimension_numbers<[1], [0], [0], [1], [0, 0, 1, 1], [], []>} : vector<1x64xf32>, vector<64x10xf32>, vector<1x10xf32> -> vector<1x10xf32>
    %c0_719 = arith.constant 0 : index
    %c0_720 = arith.constant 0 : index
    %477 = vector.load %arg11[%c0_719, %c0_720] : memref<1x10xf32, #tpu.memory_space<vmem>>, vector<1x10xf32>
    %478 = arith.addf %476, %477 : vector<1x10xf32>
    %c1_721 = arith.constant 1 : index
    %c0_722 = arith.constant 0 : index
    %c0_723 = arith.constant 0 : index
    %479 = vector.load %arg12[%c1_721, %c0_722, %c0_723] : memref<2x1x10xf32, #tpu.memory_space<vmem>>, vector<1x1x10xf32>
    %480 = vector.shape_cast %479 : vector<1x1x10xf32> to vector<1x10xf32>
    %481 = vector.shape_cast %478 : vector<1x10xf32> to vector<1x1x10xf32>
    tpu.vector_store %arg12[%c1_721, %c0_722, %c0_723], %481 {strides = array<i32>} : memref<2x1x10xf32, #tpu.memory_space<vmem>>, vector<1x1x10xf32>,
    return
  }
  func.func @transform_0(%arg0: i32) -> (i32, i32, i32) {
    %c0_i32 = arith.constant 0 : i32
    %c0_i32_0 = arith.constant 0 : i32
    %c0_i32_1 = arith.constant 0 : i32
    return %arg0, %c0_i32, %c0_i32_0 : i32, i32, i32
  }
  func.func @transform_1(%arg0: i32) -> (i32, i32) {
    %c0_i32 = arith.constant 0 : i32
    %c0_i32_0 = arith.constant 0 : i32
    %c0_i32_1 = arith.constant 0 : i32
    return %c0_i32, %c0_i32_0 : i32, i32
  }
  func.func @transform_2(%arg0: i32) -> (i32, i32) {
    %c0_i32 = arith.constant 0 : i32
    %c0_i32_0 = arith.constant 0 : i32
    %c0_i32_1 = arith.constant 0 : i32
    return %c0_i32, %c0_i32_0 : i32, i32
  }
  func.func @transform_3(%arg0: i32) -> (i32, i32) {
    %c0_i32 = arith.constant 0 : i32
    %c0_i32_0 = arith.constant 0 : i32
    %c0_i32_1 = arith.constant 0 : i32
    return %c0_i32, %c0_i32_0 : i32, i32
  }
  func.func @transform_4(%arg0: i32) -> (i32, i32) {
    %c0_i32 = arith.constant 0 : i32
    %c0_i32_0 = arith.constant 0 : i32
    %c0_i32_1 = arith.constant 0 : i32
    return %c0_i32, %c0_i32_0 : i32, i32
  }
  func.func @transform_5(%arg0: i32) -> (i32, i32) {
    %c0_i32 = arith.constant 0 : i32
    %c0_i32_0 = arith.constant 0 : i32
    %c0_i32_1 = arith.constant 0 : i32
    return %c0_i32, %c0_i32_0 : i32, i32
  }
  func.func @transform_6(%arg0: i32) -> (i32, i32) {
    %c0_i32 = arith.constant 0 : i32
    %c0_i32_0 = arith.constant 0 : i32
    %c0_i32_1 = arith.constant 0 : i32
    return %c0_i32, %c0_i32_0 : i32, i32
  }
  func.func @transform_7(%arg0: i32) -> (i32, i32) {
    %c0_i32 = arith.constant 0 : i32
    %c0_i32_0 = arith.constant 0 : i32
    %c0_i32_1 = arith.constant 0 : i32
    return %c0_i32, %c0_i32_0 : i32, i32
  }
  func.func @transform_8(%arg0: i32) -> (i32, i32) {
    %c0_i32 = arith.constant 0 : i32
    %c0_i32_0 = arith.constant 0 : i32
    %c0_i32_1 = arith.constant 0 : i32
    return %c0_i32, %c0_i32_0 : i32, i32
  }
  func.func @transform_9(%arg0: i32) -> (i32, i32) {
    %c0_i32 = arith.constant 0 : i32
    %c0_i32_0 = arith.constant 0 : i32
    %c0_i32_1 = arith.constant 0 : i32
    return %c0_i32, %c0_i32_0 : i32, i32
  }
  func.func @transform_10(%arg0: i32) -> (i32, i32) {
    %c0_i32 = arith.constant 0 : i32
    %c0_i32_0 = arith.constant 0 : i32
    %c0_i32_1 = arith.constant 0 : i32
    return %c0_i32, %c0_i32_0 : i32, i32
  }
  func.func @transform_11(%arg0: i32) -> (i32, i32, i32) {
    %c0_i32 = arith.constant 0 : i32
    %c0_i32_0 = arith.constant 0 : i32
    %c0_i32_1 = arith.constant 0 : i32
    return %arg0, %c0_i32, %c0_i32_0 : i32, i32, i32
  }
}

</mosaic_0001>

<llo_original>
// kernel: forward_pallas.1
$region0: #{forward_pallas.1}
  #allocation0 [shape = 'u32[]', space=smem, size = 0x4, offset = 0x4, fixed_abs, tag = 'smem constant byte address 0x4 - core index']
  #allocation1 [shape = 'u32[144,128]{1,0:T(1,128)}', space=vmem, size = 0x12000, scoped, tag = 'internal scratch']
  #allocation2 [shape = 'f32[25,780]{1,0:T(8,128)}', space=vmem, size = 0x1c000, scoped, tag = 'scratch operand']
  #allocation3 [shape = 'f32[16,780]{1,0:T(8,128)}', space=vmem, size = 0xe000, scoped, tag = 'scratch operand']
  #allocation4 [shape = 'f32[16,232]{1,0:T(8,128)}', space=vmem, size = 0x4000, scoped, tag = 'scratch operand']
  #allocation5 [shape = 'f32[400,165]{1,0:T(8,128)}', space=vmem, size = 0x64000, scoped, tag = 'scratch operand']
  #allocation6 [shape = 'f32[32,165]{1,0:T(8,128)}', space=vmem, size = 0x8000, scoped, tag = 'scratch operand']
  #allocation7 [shape = 'f32[32,25]{1,0:T(8,128)}', space=vmem, size = 0x4000, scoped, tag = 'scratch operand']
  #allocation8 [shape = 'f32[1,800]{1,0:T(1,128)}', space=vmem, size = 0xe00, scoped, tag = 'scratch operand']
  %s0 = inlined_call_operand.vmem [shape: f32[2,1,904], index: 0, kind: input, shape index: {}]
  %s1 = inlined_call_operand.vmem [shape: f32[16,25], index: 1, kind: input, shape index: {}]
  %s2 = inlined_call_operand.vmem [shape: f32[16,1], index: 2, kind: input, shape index: {}]
  %s3 = inlined_call_operand.vmem [shape: f32[749,232], index: 3, kind: input, shape index: {}]
  %s4 = inlined_call_operand.vmem [shape: f32[32,400], index: 4, kind: input, shape index: {}]
  %s5 = inlined_call_operand.vmem [shape: f32[32,1], index: 5, kind: input, shape index: {}]
  %s6 = inlined_call_operand.vmem [shape: f32[149,25], index: 6, kind: input, shape index: {}]
  %s7 = inlined_call_operand.vmem [shape: f32[800,64], index: 7, kind: input, shape index: {}]
  %s8 = inlined_call_operand.vmem [shape: f32[1,64], index: 8, kind: input, shape index: {}]
  %s9 = inlined_call_operand.vmem [shape: f32[64,10], index: 9, kind: input, shape index: {}]
  %s10 = inlined_call_operand.vmem [shape: f32[1,10], index: 10, kind: input, shape index: {}]
  %s11 = inlined_call_operand.hbm [shape: f32[2,1,10], index: 11, kind: output, shape index: {}]
  %s12 = sld [smem:[#allocation0]]
  $region54: #{forward_pallas.1} parent=0
    _
  %s14 = ssub.s32 1, %s12
  %s15 = scalar_select 0, %s14, %s12
  $region1: #{forward_pallas.1} parent=0
    #allocation9 [shape = 'u8[1024]{0}', space=vmem, size = 0x400, scoped, tag = 'output window, operand 0, single buffered']
    #allocation10 [shape = 's32[1]{0}', space=sflag, size = 0x4, scoped, tag = 'scoped memory for forward_pallas.1']
    %16 = vsyncpa [#allocation10], 0
    // Predicated region
    $region2: #{forward_pallas.1} parent=1 // pred_check
      _
    $region3: #{forward_pallas.1} parent=1 // pred_check_branch
      %18 = sbr.rel (0) target = $region5
    $region4: #{forward_pallas.1} parent=1 // pred_region
      _
    $region5: #{forward_pallas.1} parent=1 // pred_fallthru
      _
    // Predicated region
    $region6: #{forward_pallas.1} parent=1 // pred_check
      _
    $region7: #{forward_pallas.1} parent=1 // pred_check_branch
      %20 = sbr.rel (0) target = $region9
    $region8: #{forward_pallas.1} parent=1 // pred_region
      _
    $region9: #{forward_pallas.1} parent=1 // pred_fallthru
      _
    // Predicated region
    $region10: #{forward_pallas.1} parent=1 // pred_check
      _
    $region11: #{forward_pallas.1} parent=1 // pred_check_branch
      %22 = sbr.rel (0) target = $region13
    $region12: #{forward_pallas.1} parent=1 // pred_region
      _
    $region13: #{forward_pallas.1} parent=1 // pred_fallthru
      _
    // Predicated region
    $region14: #{forward_pallas.1} parent=1 // pred_check
      _
    $region15: #{forward_pallas.1} parent=1 // pred_check_branch
      %24 = sbr.rel (0) target = $region17
    $region16: #{forward_pallas.1} parent=1 // pred_region
      _
    $region17: #{forward_pallas.1} parent=1 // pred_fallthru
      _
    // Predicated region
    $region18: #{forward_pallas.1} parent=1 // pred_check
      _
    $region19: #{forward_pallas.1} parent=1 // pred_check_branch
      %26 = sbr.rel (0) target = $region21
    $region20: #{forward_pallas.1} parent=1 // pred_region
      _
    $region21: #{forward_pallas.1} parent=1 // pred_fallthru
      _
    // Predicated region
    $region22: #{forward_pallas.1} parent=1 // pred_check
      _
    $region23: #{forward_pallas.1} parent=1 // pred_check_branch
      %28 = sbr.rel (0) target = $region25
    $region24: #{forward_pallas.1} parent=1 // pred_region
      _
    $region25: #{forward_pallas.1} parent=1 // pred_fallthru
      _
    // Predicated region
    $region26: #{forward_pallas.1} parent=1 // pred_check
      _
    $region27: #{forward_pallas.1} parent=1 // pred_check_branch
      %30 = sbr.rel (0) target = $region29
    $region28: #{forward_pallas.1} parent=1 // pred_region
      _
    $region29: #{forward_pallas.1} parent=1 // pred_fallthru
      _
    // Predicated region
    $region30: #{forward_pallas.1} parent=1 // pred_check
      _
    $region31: #{forward_pallas.1} parent=1 // pred_check_branch
      %32 = sbr.rel (0) target = $region33
    $region32: #{forward_pallas.1} parent=1 // pred_region
      _
    $region33: #{forward_pallas.1} parent=1 // pred_fallthru
      _
    // Predicated region
    $region34: #{forward_pallas.1} parent=1 // pred_check
      _
    $region35: #{forward_pallas.1} parent=1 // pred_check_branch
      %34 = sbr.rel (0) target = $region37
    $region36: #{forward_pallas.1} parent=1 // pred_region
      _
    $region37: #{forward_pallas.1} parent=1 // pred_fallthru
      _
    // Predicated region
    $region38: #{forward_pallas.1} parent=1 // pred_check
      _
    $region39: #{forward_pallas.1} parent=1 // pred_check_branch
      %36 = sbr.rel (0) target = $region41
    $region40: #{forward_pallas.1} parent=1 // pred_region
      _
    $region41: #{forward_pallas.1} parent=1 // pred_fallthru
      _
    // Predicated region
    $region42: #{forward_pallas.1} parent=1 // pred_check
      _
    $region43: #{forward_pallas.1} parent=1 // pred_check_branch
      %38 = sbr.rel (0) target = $region45
    $region44: #{forward_pallas.1} parent=1 // pred_region
      _
    $region45: #{forward_pallas.1} parent=1 // pred_fallthru
      _
    %v39 = vld [vmem:[%s0] sm:$0x7f]
    %v40 = vlaneseq
    %vm41 = vcmp.ge.s32.totalorder %v40, 0
    %vm42 = vcmp.lt.s32.totalorder %v40, 780
    %vm43 = vmand %vm41, %vm42
    %44 = vst.msk [vmem:[#allocation2] ss:$8 sm:$0xf] %vm43, %v39
    %45 = vst.msk [vmem:[#allocation2] ss:$8 sm:$0x70] %vm43, %v39
    %v46 = vld [vmem:[%s0] sm:$0x7f]
    %48 = vrot.lane.b32.xlu0 %v46, 127
    %v49 = vpop.permute.xlu0 %48
    %v50 = vrot.slane %v49, 1
    %vm51 = vcmask 1039360
    %v52 = vsel %vm51, %v49, %v50
    %s54 = scalar_lea.vmem [#allocation2], 1
    %55 = vst.msk [vmem:[%s54] ss:$8 sm:$0xf] %vm43, %v52
    %56 = vst.msk [vmem:[%s54] ss:$8 sm:$0x70] %vm43, %v52
    %v57 = vld [vmem:[%s0] sm:$0x7f]
    %59 = vrot.lane.b32.xlu0 %v57, 126
    %v60 = vpop.permute.xlu0 %59
    %v61 = vrot.slane %v60, 1
    %vm62 = vcmask 1031168
    %v63 = vsel %vm62, %v60, %v61
    %s65 = scalar_lea.vmem [#allocation2], 2
    %66 = vst.msk [vmem:[%s65] ss:$8 sm:$0xf] %vm43, %v63
    %67 = vst.msk [vmem:[%s65] ss:$8 sm:$0x70] %vm43, %v63
    %v68 = vld [vmem:[%s0] sm:$0x7f]
    %70 = vrot.lane.b32.xlu0 %v68, 125
    %v71 = vpop.permute.xlu0 %70
    %v72 = vrot.slane %v71, 1
    %vm73 = vcmask 1022976
    %v74 = vsel %vm73, %v71, %v72
    %s76 = scalar_lea.vmem [#allocation2], 3
    %77 = vst.msk [vmem:[%s76] ss:$8 sm:$0xf] %vm43, %v74
    %78 = vst.msk [vmem:[%s76] ss:$8 sm:$0x70] %vm43, %v74
    %v79 = vld [vmem:[%s0] sm:$0x7f]
    %81 = vrot.lane.b32.xlu0 %v79, 124
    %v82 = vpop.permute.xlu0 %81
    %v83 = vrot.slane %v82, 1
    %vm84 = vcmask 1014784
    %v85 = vsel %vm84, %v82, %v83
    %s87 = scalar_lea.vmem [#allocation2], 4
    %88 = vst.msk [vmem:[%s87] ss:$8 sm:$0xf] %vm43, %v85
    %89 = vst.msk [vmem:[%s87] ss:$8 sm:$0x70] %vm43, %v85
    %v90 = vld [vmem:[%s0] sm:$0x7f]
    %92 = vrot.lane.b32.xlu0 %v90, 98
    %v93 = vpop.permute.xlu0 %92
    %v94 = vrot.slane %v93, 1
    %vm95 = vcmask 801792
    %v96 = vsel %vm95, %v93, %v94
    %s98 = scalar_lea.vmem [#allocation2], 5
    %99 = vst.msk [vmem:[%s98] ss:$8 sm:$0xf] %vm43, %v96
    %100 = vst.msk [vmem:[%s98] ss:$8 sm:$0x70] %vm43, %v96
    %v101 = vld [vmem:[%s0] sm:$0x7f]
    %103 = vrot.lane.b32.xlu0 %v101, 97
    %v104 = vpop.permute.xlu0 %103
    %v105 = vrot.slane %v104, 1
    %vm106 = vcmask 793600
    %v107 = vsel %vm106, %v104, %v105
    %s109 = scalar_lea.vmem [#allocation2], 6
    %110 = vst.msk [vmem:[%s109] ss:$8 sm:$0xf] %vm43, %v107
    %111 = vst.msk [vmem:[%s109] ss:$8 sm:$0x70] %vm43, %v107
    %v112 = vld [vmem:[%s0] sm:$0x7f]
    %114 = vrot.lane.b32.xlu0 %v112, 96
    %v115 = vpop.permute.xlu0 %114
    %v116 = vrot.slane %v115, 1
    %vm117 = vcmask 785408
    %v118 = vsel %vm117, %v115, %v116
    %s120 = scalar_lea.vmem [#allocation2], 7
    %121 = vst.msk [vmem:[%s120] ss:$8 sm:$0xf] %vm43, %v118
    %122 = vst.msk [vmem:[%s120] ss:$8 sm:$0x70] %vm43, %v118
    %v123 = vld [vmem:[%s0] sm:$0x7f]
    %125 = vrot.lane.b32.xlu0 %v123, 95
    %v126 = vpop.permute.xlu0 %125
    %v127 = vrot.slane %v126, 1
    %vm128 = vcmask 777216
    %v129 = vsel %vm128, %v126, %v127
    %s131 = scalar_lea.vmem [#allocation2], 56
    %132 = vst.msk [vmem:[%s131] ss:$8 sm:$0xf] %vm43, %v129
    %133 = vst.msk [vmem:[%s131] ss:$8 sm:$0x70] %vm43, %v129
    %v134 = vld [vmem:[%s0] sm:$0x7f]
    %136 = vrot.lane.b32.xlu0 %v134, 94
    %v137 = vpop.permute.xlu0 %136
    %v138 = vrot.slane %v137, 1
    %vm139 = vcmask 769024
    %v140 = vsel %vm139, %v137, %v138
    %s142 = scalar_lea.vmem [#allocation2], 57
    %143 = vst.msk [vmem:[%s142] ss:$8 sm:$0xf] %vm43, %v140
    %144 = vst.msk [vmem:[%s142] ss:$8 sm:$0x70] %vm43, %v140
    %v145 = vld [vmem:[%s0] sm:$0x7f]
    %147 = vrot.lane.b32.xlu0 %v145, 68
    %v148 = vpop.permute.xlu0 %147
    %v149 = vrot.slane %v148, 1
    %vm150 = vcmask 556032
    %v151 = vsel %vm150, %v148, %v149
    %s153 = scalar_lea.vmem [#allocation2], 58
    %154 = vst.msk [vmem:[%s153] ss:$8 sm:$0xf] %vm43, %v151
    %155 = vst.msk [vmem:[%s153] ss:$8 sm:$0x70] %vm43, %v151
    %v156 = vld [vmem:[%s0] sm:$0x7f]
    %158 = vrot.lane.b32.xlu0 %v156, 67
    %v159 = vpop.permute.xlu0 %158
    %v160 = vrot.slane %v159, 1
    %vm161 = vcmask 547840
    %v162 = vsel %vm161, %v159, %v160
    %s164 = scalar_lea.vmem [#allocation2], 59
    %165 = vst.msk [vmem:[%s164] ss:$8 sm:$0xf] %vm43, %v162
    %166 = vst.msk [vmem:[%s164] ss:$8 sm:$0x70] %vm43, %v162
    %v167 = vld [vmem:[%s0] sm:$0x7f]
    %169 = vrot.lane.b32.xlu0 %v167, 66
    %v170 = vpop.permute.xlu0 %169
    %v171 = vrot.slane %v170, 1
    %vm172 = vcmask 539648
    %v173 = vsel %vm172, %v170, %v171
    %s175 = scalar_lea.vmem [#allocation2], 60
    %176 = vst.msk [vmem:[%s175] ss:$8 sm:$0xf] %vm43, %v173
    %177 = vst.msk [vmem:[%s175] ss:$8 sm:$0x70] %vm43, %v173
    %v178 = vld [vmem:[%s0] sm:$0x7f]
    %180 = vrot.lane.b32.xlu0 %v178, 65
    %v181 = vpop.permute.xlu0 %180
    %v182 = vrot.slane %v181, 1
    %vm183 = vcmask 531456
    %v184 = vsel %vm183, %v181, %v182
    %s186 = scalar_lea.vmem [#allocation2], 61
    %187 = vst.msk [vmem:[%s186] ss:$8 sm:$0xf] %vm43, %v184
    %188 = vst.msk [vmem:[%s186] ss:$8 sm:$0x70] %vm43, %v184
    %v189 = vld [vmem:[%s0] sm:$0x7f]
    %191 = vrot.lane.b32.xlu0 %v189, 64
    %v192 = vpop.permute.xlu0 %191
    %v193 = vrot.slane %v192, 1
    %vm194 = vcmask 523264
    %v195 = vsel %vm194, %v192, %v193
    %s197 = scalar_lea.vmem [#allocation2], 62
    %198 = vst.msk [vmem:[%s197] ss:$8 sm:$0xf] %vm43, %v195
    %199 = vst.msk [vmem:[%s197] ss:$8 sm:$0x70] %vm43, %v195
    %v200 = vld [vmem:[%s0] sm:$0x7f]
    %202 = vrot.lane.b32.xlu0 %v200, 38
    %v203 = vpop.permute.xlu0 %202
    %v204 = vrot.slane %v203, 1
    %vm205 = vcmask 310272
    %v206 = vsel %vm205, %v203, %v204
    %s208 = scalar_lea.vmem [#allocation2], 63
    %209 = vst.msk [vmem:[%s208] ss:$8 sm:$0xf] %vm43, %v206
    %210 = vst.msk [vmem:[%s208] ss:$8 sm:$0x70] %vm43, %v206
    %v211 = vld [vmem:[%s0] sm:$0x7f]
    %213 = vrot.lane.b32.xlu0 %v211, 37
    %v214 = vpop.permute.xlu0 %213
    %v215 = vrot.slane %v214, 1
    %vm216 = vcmask 302080
    %v217 = vsel %vm216, %v214, %v215
    %s219 = scalar_lea.vmem [#allocation2], 112
    %220 = vst.msk [vmem:[%s219] ss:$8 sm:$0xf] %vm43, %v217
    %221 = vst.msk [vmem:[%s219] ss:$8 sm:$0x70] %vm43, %v217
    %v222 = vld [vmem:[%s0] sm:$0x7f]
    %224 = vrot.lane.b32.xlu0 %v222, 36
    %v225 = vpop.permute.xlu0 %224
    %v226 = vrot.slane %v225, 1
    %vm227 = vcmask 293888
    %v228 = vsel %vm227, %v225, %v226
    %s230 = scalar_lea.vmem [#allocation2], 113
    %231 = vst.msk [vmem:[%s230] ss:$8 sm:$0xf] %vm43, %v228
    %232 = vst.msk [vmem:[%s230] ss:$8 sm:$0x70] %vm43, %v228
    %v233 = vld [vmem:[%s0] sm:$0x7f]
    %235 = vrot.lane.b32.xlu0 %v233, 35
    %v236 = vpop.permute.xlu0 %235
    %v237 = vrot.slane %v236, 1
    %vm238 = vcmask 285696
    %v239 = vsel %vm238, %v236, %v237
    %s241 = scalar_lea.vmem [#allocation2], 114
    %242 = vst.msk [vmem:[%s241] ss:$8 sm:$0xf] %vm43, %v239
    %243 = vst.msk [vmem:[%s241] ss:$8 sm:$0x70] %vm43, %v239
    %v244 = vld [vmem:[%s0] sm:$0x7f]
    %246 = vrot.lane.b32.xlu0 %v244, 34
    %v247 = vpop.permute.xlu0 %246
    %v248 = vrot.slane %v247, 1
    %vm249 = vcmask 277504
    %v250 = vsel %vm249, %v247, %v248
    %s252 = scalar_lea.vmem [#allocation2], 115
    %253 = vst.msk [vmem:[%s252] ss:$8 sm:$0xf] %vm43, %v250
    %254 = vst.msk [vmem:[%s252] ss:$8 sm:$0x70] %vm43, %v250
    %v255 = vld [vmem:[%s0] sm:$0xff]
    %257 = vrot.lane.b32.xlu0 %v255, 8
    %v258 = vpop.permute.xlu0 %257
    %v259 = vrot.slane %v258, 1
    %vm260 = vcmask 64512
    %v261 = vsel %vm260, %v258, %v259
    %s263 = scalar_lea.vmem [#allocation2], 116
    %264 = vst.msk [vmem:[%s263] ss:$8 sm:$0xf] %vm43, %v261
    %265 = vst.msk [vmem:[%s263] ss:$8 sm:$0x70] %vm43, %v261
    %v266 = vld [vmem:[%s0] sm:$0xff]
    %268 = vrot.lane.b32.xlu0 %v266, 7
    %v269 = vpop.permute.xlu0 %268
    %v270 = vrot.slane %v269, 1
    %vm271 = vcmask 56320
    %v272 = vsel %vm271, %v269, %v270
    %s274 = scalar_lea.vmem [#allocation2], 117
    %275 = vst.msk [vmem:[%s274] ss:$8 sm:$0xf] %vm43, %v272
    %276 = vst.msk [vmem:[%s274] ss:$8 sm:$0x70] %vm43, %v272
    %v277 = vld [vmem:[%s0] sm:$0xff]
    %279 = vrot.lane.b32.xlu0 %v277, 6
    %v280 = vpop.permute.xlu0 %279
    %v281 = vrot.slane %v280, 1
    %vm282 = vcmask 48128
    %v283 = vsel %vm282, %v280, %v281
    %s285 = scalar_lea.vmem [#allocation2], 118
    %286 = vst.msk [vmem:[%s285] ss:$8 sm:$0xf] %vm43, %v283
    %287 = vst.msk [vmem:[%s285] ss:$8 sm:$0x70] %vm43, %v283
    %v288 = vld [vmem:[%s0] sm:$0xff]
    %290 = vrot.lane.b32.xlu0 %v288, 5
    %v291 = vpop.permute.xlu0 %290
    %v292 = vrot.slane %v291, 1
    %vm293 = vcmask 39936
    %v294 = vsel %vm293, %v291, %v292
    %s296 = scalar_lea.vmem [#allocation2], 119
    %297 = vst.msk [vmem:[%s296] ss:$8 sm:$0xf] %vm43, %v294
    %298 = vst.msk [vmem:[%s296] ss:$8 sm:$0x70] %vm43, %v294
    %v299 = vld [vmem:[%s0] sm:$0xff]
    %301 = vrot.lane.b32.xlu0 %v299, 4
    %v302 = vpop.permute.xlu0 %301
    %v303 = vrot.slane %v302, 1
    %vm304 = vcmask 31744
    %v305 = vsel %vm304, %v302, %v303
    %s307 = scalar_lea.vmem [#allocation2], 168
    %308 = vst.msk [vmem:[%s307] ss:$8 sm:$0xf] %vm43, %v305
    %309 = vst.msk [vmem:[%s307] ss:$8 sm:$0x70] %vm43, %v305
    %v310 = vld [vmem:[%s1] sm:$0xff]
    %v311 = vld [vmem:[%s1 + $0x8] sm:$0xff]
    %v312 = vld [vmem:[#allocation2] sm:$0xff]
    %v313 = vld [vmem:[#allocation2 + $0x8] sm:$0xff]
    %v314 = vld [vmem:[#allocation2 + $0x10] sm:$0xff]
    %v315 = vld [vmem:[#allocation2 + $0x18] sm:$0xff]
    %v316 = vld [vmem:[#allocation2 + $0x20] sm:$0xff]
    %v317 = vld [vmem:[#allocation2 + $0x28] sm:$0xff]
    %v318 = vld [vmem:[#allocation2 + $0x30] sm:$0xff]
    %v319 = vld [vmem:[#allocation2 + $0x38] sm:$0xff]
    %v320 = vld [vmem:[#allocation2 + $0x40] sm:$0xff]
    %v321 = vld [vmem:[#allocation2 + $0x48] sm:$0xff]
    %v322 = vld [vmem:[#allocation2 + $0x50] sm:$0xff]
    %v323 = vld [vmem:[#allocation2 + $0x58] sm:$0xff]
    %v324 = vld [vmem:[#allocation2 + $0x60] sm:$0xff]
    %v325 = vld [vmem:[#allocation2 + $0x68] sm:$0xff]
    %v326 = vld [vmem:[#allocation2 + $0x70] sm:$0xff]
    %v327 = vld [vmem:[#allocation2 + $0x78] sm:$0xff]
    %v328 = vld [vmem:[#allocation2 + $0x80] sm:$0xff]
    %v329 = vld [vmem:[#allocation2 + $0x88] sm:$0xff]
    %v330 = vld [vmem:[#allocation2 + $0x90] sm:$0xff]
    %v331 = vld [vmem:[#allocation2 + $0x98] sm:$0xff]
    %v332 = vld [vmem:[#allocation2 + $0xa0] sm:$0xff]
    %v333 = vld [vmem:[#allocation2 + $0xa8] sm:$0x1]
    %v334 = vld [vmem:[#allocation2 + $0xb0] sm:$0x1]
    %v335 = vld [vmem:[#allocation2 + $0xb8] sm:$0x1]
    %v336 = vld [vmem:[#allocation2 + $0xc0] sm:$0x1]
    %v337 = vld [vmem:[#allocation2 + $0xc8] sm:$0x1]
    %v338 = vld [vmem:[#allocation2 + $0xd0] sm:$0x1]
    %v339 = vld [vmem:[#allocation2 + $0xd8] sm:$0x1]
    %v340 = vld [vmem:[%s2] sm:$0xff]
    %v341 = vld [vmem:[%s2 + $0x8] sm:$0xff]
    %343 = vset.pattern.permute.xlu0 0
    %344 = vperm.xlu0 %343, %v340
    %v345 = vpop.permute.xlu0 %344
    %348 = vset.pattern.permute.xlu0 0
    %349 = vperm.xlu0 %348, %v341
    %v350 = vpop.permute.xlu0 %349
    %vm352 = vcmask 203776
    %v354 = vsel %vm352, %v310, 0
    %v357 = vsel %vm352, %v311, 0
    %vm359 = vcmask 1040384
    %v361 = vsel %vm359, %v333, 0
    %v364 = vsel %vm359, %v334, 0
    %v367 = vsel %vm359, %v335, 0
    %v370 = vsel %vm359, %v336, 0
    %v373 = vsel %vm359, %v337, 0
    %v376 = vsel %vm359, %v338, 0
    %v379 = vsel %vm359, %v339, 0
    %381 = vmatprep.subr.mxu0 %v313
    %382 = vmatpush1.msra.mxu0 %v312
    %383 = vmatprep.subr.mxu0 %v320
    %384 = vmatpush1.msra.mxu0 %v319
    %385 = vmatprep.subr.mxu0 %v327
    %386 = vmatpush1.msra.mxu0 %v326
    %387 = vmatprep.subr.mxu0 %v364
    %388 = vmatpush1.msra.mxu0 %v361
    %389 = vmatprep.subr.mxu0 0.0
    %390 = vmatpush1.msra.mxu0 0.0
    %391 = vmatprep.subr.mxu0 0.0
    %392 = vmatpush1.msra.mxu0 0.0
    %393 = vmatprep.subr.mxu0 0.0
    %394 = vmatpush1.msra.mxu0 0.0
    %395 = vmatprep.subr.mxu0 0.0
    %396 = vmatpush1.msra.mxu0 0.0
    %397 = vmatprep.subr.mxu0 0.0
    %398 = vmatpush1.msra.mxu0 0.0
    %399 = vmatprep.subr.mxu0 0.0
    %400 = vmatpush1.msra.mxu0 0.0
    %401 = vmatprep.subr.mxu0 0.0
    %402 = vmatpush1.msra.mxu0 0.0
    %403 = vmatprep.subr.mxu0 0.0
    %404 = vmatpush1.msra.mxu0 0.0
    %405 = vmatprep.subr.mxu0 0.0
    %406 = vmatpush1.msra.mxu0 0.0
    %407 = vmatprep.subr.mxu0 0.0
    %408 = vmatpush1.msra.mxu0 0.0
    %409 = vmatprep.subr.mxu0 0.0
    %410 = vmatpush1.msra.mxu0 0.0
    %411 = vmatprep.subr.mxu0 0.0
    %412 = vmatpush1.msra.mxu0 0.0
    %413 = vmatprep.subr.mxu0 0.0
    %414 = vmatpush1.msra.mxu0 0.0
    %415 = vmatprep.subr.mxu0 0.0
    %416 = vmatpush1.msra.mxu0 0.0
    %417 = vmatprep.subr.mxu0 0.0
    %418 = vmatpush1.msra.mxu0 0.0
    %419 = vmatprep.subr.mxu0 0.0
    %420 = vmatpush1.msra.mxu0 0.0
    %421 = vmatprep.subr.mxu0 0.0
    %422 = vmatpush1.msra.mxu0 0.0
    %423 = vmatprep.subr.mxu0 0.0
    %424 = vmatpush1.msra.mxu0 0.0
    %425 = vmatprep.subr.mxu0 0.0
    %426 = vmatpush1.msra.mxu0 0.0
    %427 = vmatprep.subr.mxu0 0.0
    %428 = vmatpush1.msra.mxu0 0.0
    %429 = vmatprep.subr.mxu0 0.0
    %430 = vmatpush1.msra.mxu0 0.0
    %431 = vmatprep.subr.mxu0 0.0
    %432 = vmatpush1.msra.mxu0 0.0
    %433 = vmatprep.subr.mxu0 0.0
    %434 = vmatpush1.msra.mxu0 0.0
    %435 = vmatprep.subr.mxu0 0.0
    %436 = vmatpush1.msra.mxu0 0.0
    %437 = vmatprep.subr.mxu0 0.0
    %438 = vmatpush1.msra.mxu0 0.0
    %439 = vmatprep.subr.mxu0 0.0
    %440 = vmatpush1.msra.mxu0 0.0
    %441 = vmatprep.subr.mxu0 0.0
    %442 = vmatpush1.msra.mxu0 0.0
    %443 = vmatprep.subr.mxu0 0.0
    %444 = vmatpush1.msra.mxu0 0.0
    %445 = vmatprep.mubr.f32.mxu0 0.0
    %446 = vmatmul.mubr.f32.gmra.mrb[0].mxu0 %v354
    %v447 = vpop.f32.mrb[0].mxu0
    %v448 = vadd.f32 %v345, %v447
    %v449 = vpop.f32.mrb[0].mxu0
    %v450 = vadd.f32 %v345, %v449
    %451 = vmatprep.mubr.f32.mxu0 0.0
    %452 = vmatmul.mubr.f32.gmra.mrb[0].mxu0 %v357
    %v453 = vpop.f32.mrb[0].mxu0
    %v454 = vadd.f32 %v350, %v453
    %v455 = vpop.f32.mrb[0].mxu0
    %v456 = vadd.f32 %v350, %v455
    %457 = vdwg.mxu0
    %458 = vmatprep.subr.mxu0 %v315
    %459 = vmatpush1.msra.mxu0 %v314
    %460 = vmatprep.subr.mxu0 %v322
    %461 = vmatpush1.msra.mxu0 %v321
    %462 = vmatprep.subr.mxu0 %v329
    %463 = vmatpush1.msra.mxu0 %v328
    %464 = vmatprep.subr.mxu0 %v370
    %465 = vmatpush1.msra.mxu0 %v367
    %466 = vmatprep.subr.mxu0 0.0
    %467 = vmatpush1.msra.mxu0 0.0
    %468 = vmatprep.subr.mxu0 0.0
    %469 = vmatpush1.msra.mxu0 0.0
    %470 = vmatprep.subr.mxu0 0.0
    %471 = vmatpush1.msra.mxu0 0.0
    %472 = vmatprep.subr.mxu0 0.0
    %473 = vmatpush1.msra.mxu0 0.0
    %474 = vmatprep.subr.mxu0 0.0
    %475 = vmatpush1.msra.mxu0 0.0
    %476 = vmatprep.subr.mxu0 0.0
    %477 = vmatpush1.msra.mxu0 0.0
    %478 = vmatprep.subr.mxu0 0.0
    %479 = vmatpush1.msra.mxu0 0.0
    %480 = vmatprep.subr.mxu0 0.0
    %481 = vmatpush1.msra.mxu0 0.0
    %482 = vmatprep.subr.mxu0 0.0
    %483 = vmatpush1.msra.mxu0 0.0
    %484 = vmatprep.subr.mxu0 0.0
    %485 = vmatpush1.msra.mxu0 0.0
    %486 = vmatprep.subr.mxu0 0.0
    %487 = vmatpush1.msra.mxu0 0.0
    %488 = vmatprep.subr.mxu0 0.0
    %489 = vmatpush1.msra.mxu0 0.0
    %490 = vmatprep.subr.mxu0 0.0
    %491 = vmatpush1.msra.mxu0 0.0
    %492 = vmatprep.subr.mxu0 0.0
    %493 = vmatpush1.msra.mxu0 0.0
    %494 = vmatprep.subr.mxu0 0.0
    %495 = vmatpush1.msra.mxu0 0.0
    %496 = vmatprep.subr.mxu0 0.0
    %497 = vmatpush1.msra.mxu0 0.0
    %498 = vmatprep.subr.mxu0 0.0
    %499 = vmatpush1.msra.mxu0 0.0
    %500 = vmatprep.subr.mxu0 0.0
    %501 = vmatpush1.msra.mxu0 0.0
    %502 = vmatprep.subr.mxu0 0.0
    %503 = vmatpush1.msra.mxu0 0.0
    %504 = vmatprep.subr.mxu0 0.0
    %505 = vmatpush1.msra.mxu0 0.0
    %506 = vmatprep.subr.mxu0 0.0
    %507 = vmatpush1.msra.mxu0 0.0
    %508 = vmatprep.subr.mxu0 0.0
    %509 = vmatpush1.msra.mxu0 0.0
    %510 = vmatprep.subr.mxu0 0.0
    %511 = vmatpush1.msra.mxu0 0.0
    %512 = vmatprep.subr.mxu0 0.0
    %513 = vmatpush1.msra.mxu0 0.0
    %514 = vmatprep.subr.mxu0 0.0
    %515 = vmatpush1.msra.mxu0 0.0
    %516 = vmatprep.subr.mxu0 0.0
    %517 = vmatpush1.msra.mxu0 0.0
    %518 = vmatprep.subr.mxu0 0.0
    %519 = vmatpush1.msra.mxu0 0.0
    %520 = vmatprep.subr.mxu0 0.0
    %521 = vmatpush1.msra.mxu0 0.0
    %522 = vmatprep.mubr.f32.mxu0 0.0
    %523 = vmatmul.mubr.f32.gmra.mrb[0].mxu0 %v354
    %v524 = vpop.f32.mrb[0].mxu0
    %v525 = vadd.f32 %v345, %v524
    %v526 = vpop.f32.mrb[0].mxu0
    %v527 = vadd.f32 %v345, %v526
    %528 = vmatprep.mubr.f32.mxu0 0.0
    %529 = vmatmul.mubr.f32.gmra.mrb[0].mxu0 %v357
    %v530 = vpop.f32.mrb[0].mxu0
    %v531 = vadd.f32 %v350, %v530
    %v532 = vpop.f32.mrb[0].mxu0
    %v533 = vadd.f32 %v350, %v532
    %534 = vdwg.mxu0
    %535 = vmatprep.subr.mxu0 %v317
    %536 = vmatpush1.msra.mxu0 %v316
    %537 = vmatprep.subr.mxu0 %v324
    %538 = vmatpush1.msra.mxu0 %v323
    %539 = vmatprep.subr.mxu0 %v331
    %540 = vmatpush1.msra.mxu0 %v330
    %541 = vmatprep.subr.mxu0 %v376
    %542 = vmatpush1.msra.mxu0 %v373
    %543 = vmatprep.subr.mxu0 0.0
    %544 = vmatpush1.msra.mxu0 0.0
    %545 = vmatprep.subr.mxu0 0.0
    %546 = vmatpush1.msra.mxu0 0.0
    %547 = vmatprep.subr.mxu0 0.0
    %548 = vmatpush1.msra.mxu0 0.0
    %549 = vmatprep.subr.mxu0 0.0
    %550 = vmatpush1.msra.mxu0 0.0
    %551 = vmatprep.subr.mxu0 0.0
    %552 = vmatpush1.msra.mxu0 0.0
    %553 = vmatprep.subr.mxu0 0.0
    %554 = vmatpush1.msra.mxu0 0.0
    %555 = vmatprep.subr.mxu0 0.0
    %556 = vmatpush1.msra.mxu0 0.0
    %557 = vmatprep.subr.mxu0 0.0
    %558 = vmatpush1.msra.mxu0 0.0
    %559 = vmatprep.subr.mxu0 0.0
    %560 = vmatpush1.msra.mxu0 0.0
    %561 = vmatprep.subr.mxu0 0.0
    %562 = vmatpush1.msra.mxu0 0.0
    %563 = vmatprep.subr.mxu0 0.0
    %564 = vmatpush1.msra.mxu0 0.0
    %565 = vmatprep.subr.mxu0 0.0
    %566 = vmatpush1.msra.mxu0 0.0
    %567 = vmatprep.subr.mxu0 0.0
    %568 = vmatpush1.msra.mxu0 0.0
    %569 = vmatprep.subr.mxu0 0.0
    %570 = vmatpush1.msra.mxu0 0.0
    %571 = vmatprep.subr.mxu0 0.0
    %572 = vmatpush1.msra.mxu0 0.0
    %573 = vmatprep.subr.mxu0 0.0
    %574 = vmatpush1.msra.mxu0 0.0
    %575 = vmatprep.subr.mxu0 0.0
    %576 = vmatpush1.msra.mxu0 0.0
    %577 = vmatprep.subr.mxu0 0.0
    %578 = vmatpush1.msra.mxu0 0.0
    %579 = vmatprep.subr.mxu0 0.0
    %580 = vmatpush1.msra.mxu0 0.0
    %581 = vmatprep.subr.mxu0 0.0
    %582 = vmatpush1.msra.mxu0 0.0
    %583 = vmatprep.subr.mxu0 0.0
    %584 = vmatpush1.msra.mxu0 0.0
    %585 = vmatprep.subr.mxu0 0.0
    %586 = vmatpush1.msra.mxu0 0.0
    %587 = vmatprep.subr.mxu0 0.0
    %588 = vmatpush1.msra.mxu0 0.0
    %589 = vmatprep.subr.mxu0 0.0
    %590 = vmatpush1.msra.mxu0 0.0
    %591 = vmatprep.subr.mxu0 0.0
    %592 = vmatpush1.msra.mxu0 0.0
    %593 = vmatprep.subr.mxu0 0.0
    %594 = vmatpush1.msra.mxu0 0.0
    %595 = vmatprep.subr.mxu0 0.0
    %596 = vmatpush1.msra.mxu0 0.0
    %597 = vmatprep.subr.mxu0 0.0
    %598 = vmatpush1.msra.mxu0 0.0
    %599 = vmatprep.mubr.f32.mxu0 0.0
    %600 = vmatmul.mubr.f32.gmra.mrb[0].mxu0 %v354
    %v601 = vpop.f32.mrb[0].mxu0
    %v602 = vadd.f32 %v345, %v601
    %v603 = vpop.f32.mrb[0].mxu0
    %v604 = vadd.f32 %v345, %v603
    %605 = vmatprep.mubr.f32.mxu0 0.0
    %606 = vmatmul.mubr.f32.gmra.mrb[0].mxu0 %v357
    %v607 = vpop.f32.mrb[0].mxu0
    %v608 = vadd.f32 %v350, %v607
    %v609 = vpop.f32.mrb[0].mxu0
    %v610 = vadd.f32 %v350, %v609
    %611 = vdwg.mxu0
    %612 = vmatprep.subr.mxu0 0.0
    %613 = vmatpush1.msra.mxu0 %v318
    %614 = vmatprep.subr.mxu0 0.0
    %615 = vmatpush1.msra.mxu0 %v325
    %616 = vmatprep.subr.mxu0 0.0
    %617 = vmatpush1.msra.mxu0 %v332
    %618 = vmatprep.subr.mxu0 0.0
    %619 = vmatpush1.msra.mxu0 %v379
    %620 = vmatprep.subr.mxu0 0.0
    %621 = vmatpush1.msra.mxu0 0.0
    %622 = vmatprep.subr.mxu0 0.0
    %623 = vmatpush1.msra.mxu0 0.0
    %624 = vmatprep.subr.mxu0 0.0
    %625 = vmatpush1.msra.mxu0 0.0
    %626 = vmatprep.subr.mxu0 0.0
    %627 = vmatpush1.msra.mxu0 0.0
    %628 = vmatprep.subr.mxu0 0.0
    %629 = vmatpush1.msra.mxu0 0.0
    %630 = vmatprep.subr.mxu0 0.0
    %631 = vmatpush1.msra.mxu0 0.0
    %632 = vmatprep.subr.mxu0 0.0
    %633 = vmatpush1.msra.mxu0 0.0
    %634 = vmatprep.subr.mxu0 0.0
    %635 = vmatpush1.msra.mxu0 0.0
    %636 = vmatprep.subr.mxu0 0.0
    %637 = vmatpush1.msra.mxu0 0.0
    %638 = vmatprep.subr.mxu0 0.0
    %639 = vmatpush1.msra.mxu0 0.0
    %640 = vmatprep.subr.mxu0 0.0
    %641 = vmatpush1.msra.mxu0 0.0
    %642 = vmatprep.subr.mxu0 0.0
    %643 = vmatpush1.msra.mxu0 0.0
    %644 = vmatprep.subr.mxu0 0.0
    %645 = vmatpush1.msra.mxu0 0.0
    %646 = vmatprep.subr.mxu0 0.0
    %647 = vmatpush1.msra.mxu0 0.0
    %648 = vmatprep.subr.mxu0 0.0
    %649 = vmatpush1.msra.mxu0 0.0
    %650 = vmatprep.subr.mxu0 0.0
    %651 = vmatpush1.msra.mxu0 0.0
    %652 = vmatprep.subr.mxu0 0.0
    %653 = vmatpush1.msra.mxu0 0.0
    %654 = vmatprep.subr.mxu0 0.0
    %655 = vmatpush1.msra.mxu0 0.0
    %656 = vmatprep.subr.mxu0 0.0
    %657 = vmatpush1.msra.mxu0 0.0
    %658 = vmatprep.subr.mxu0 0.0
    %659 = vmatpush1.msra.mxu0 0.0
    %660 = vmatprep.subr.mxu0 0.0
    %661 = vmatpush1.msra.mxu0 0.0
    %662 = vmatprep.subr.mxu0 0.0
    %663 = vmatpush1.msra.mxu0 0.0
    %664 = vmatprep.subr.mxu0 0.0
    %665 = vmatpush1.msra.mxu0 0.0
    %666 = vmatprep.subr.mxu0 0.0
    %667 = vmatpush1.msra.mxu0 0.0
    %668 = vmatprep.subr.mxu0 0.0
    %669 = vmatpush1.msra.mxu0 0.0
    %670 = vmatprep.subr.mxu0 0.0
    %671 = vmatpush1.msra.mxu0 0.0
    %672 = vmatprep.subr.mxu0 0.0
    %673 = vmatpush1.msra.mxu0 0.0
    %674 = vmatprep.subr.mxu0 0.0
    %675 = vmatpush1.msra.mxu0 0.0
    %676 = vmatprep.mubr.f32.mxu0 0.0
    %677 = vmatmul.mubr.f32.gmra.mrb[0].mxu0 %v354
    %v678 = vpop.f32.mrb[0].mxu0
    %v679 = vadd.f32 %v345, %v678
    %v680 = vpop.f32.mrb[0].mxu0
    %681 = vmatprep.mubr.f32.mxu0 0.0
    %682 = vmatmul.mubr.f32.gmra.mrb[0].mxu0 %v357
    %v683 = vpop.f32.mrb[0].mxu0
    %v684 = vadd.f32 %v350, %v683
    %v685 = vpop.f32.mrb[0].mxu0
    %686 = vdwg.mxu0
    %v687 = vmax.f32 %v448, 0.0
    %v688 = vmax.f32 %v450, 0.0
    %v689 = vmax.f32 %v525, 0.0
    %v690 = vmax.f32 %v527, 0.0
    %v691 = vmax.f32 %v602, 0.0
    %v692 = vmax.f32 %v604, 0.0
    %v693 = vmax.f32 %v679, 0.0
    %v694 = vmax.f32 %v454, 0.0
    %v695 = vmax.f32 %v456, 0.0
    %v696 = vmax.f32 %v531, 0.0
    %v697 = vmax.f32 %v533, 0.0
    %v698 = vmax.f32 %v608, 0.0
    %v699 = vmax.f32 %v610, 0.0
    %v700 = vmax.f32 %v684, 0.0
    %701 = vst [vmem:[#allocation3] sm:$0xff] %v687
    %702 = vst [vmem:[#allocation3 + $0x8] sm:$0xff] %v688
    %703 = vst [vmem:[#allocation3 + $0x10] sm:$0xff] %v689
    %704 = vst [vmem:[#allocation3 + $0x18] sm:$0xff] %v690
    %705 = vst [vmem:[#allocation3 + $0x20] sm:$0xff] %v691
    %706 = vst [vmem:[#allocation3 + $0x28] sm:$0xff] %v692
    %vm707 = vcmask 97280
    %708 = vst.msk [vmem:[#allocation3 + $0x30] sm:$0xff] %vm707, %v693
    %709 = vst [vmem:[#allocation3 + $0x38] sm:$0xff] %v694
    %710 = vst [vmem:[#allocation3 + $0x40] sm:$0xff] %v695
    %711 = vst [vmem:[#allocation3 + $0x48] sm:$0xff] %v696
    %712 = vst [vmem:[#allocation3 + $0x50] sm:$0xff] %v697
    %713 = vst [vmem:[#allocation3 + $0x58] sm:$0xff] %v698
    %714 = vst [vmem:[#allocation3 + $0x60] sm:$0xff] %v699
    %715 = vst.msk [vmem:[#allocation3 + $0x68] sm:$0xff] %vm707, %v700
    %v716 = vld [vmem:[#allocation3] sm:$0xff]
    %v717 = vld [vmem:[#allocation3 + $0x8] sm:$0xff]
    %v718 = vld [vmem:[#allocation3 + $0x10] sm:$0xff]
    %v719 = vld [vmem:[#allocation3 + $0x18] sm:$0xff]
    %v720 = vld [vmem:[#allocation3 + $0x20] sm:$0xff]
    %v721 = vld [vmem:[#allocation3 + $0x28] sm:$0xff]
    %v722 = vld [vmem:[#allocation3 + $0x38] sm:$0xff]
    %v723 = vld [vmem:[#allocation3 + $0x40] sm:$0xff]
    %v724 = vld [vmem:[#allocation3 + $0x48] sm:$0xff]
    %v725 = vld [vmem:[#allocation3 + $0x50] sm:$0xff]
    %v726 = vld [vmem:[#allocation3 + $0x58] sm:$0xff]
    %v727 = vld [vmem:[#allocation3 + $0x60] sm:$0xff]
    %740 = vrot.lane.b32.xlu0 %v716, 127
    %v741 = vpop.permute.xlu0 %740
    %742 = vrot.lane.b32.xlu0 %v717, 127
    %v743 = vpop.permute.xlu0 %742
    %744 = vrot.lane.b32.xlu0 %v718, 127
    %v745 = vpop.permute.xlu0 %744
    %746 = vrot.lane.b32.xlu0 %v719, 127
    %v747 = vpop.permute.xlu0 %746
    %748 = vrot.lane.b32.xlu0 %v720, 127
    %v749 = vpop.permute.xlu0 %748
    %750 = vrot.lane.b32.xlu0 %v721, 127
    %v751 = vpop.permute.xlu0 %750
    %752 = vrot.lane.b32.xlu0 %v722, 127
    %v753 = vpop.permute.xlu0 %752
    %754 = vrot.lane.b32.xlu0 %v723, 127
    %v755 = vpop.permute.xlu0 %754
    %756 = vrot.lane.b32.xlu0 %v724, 127
    %v757 = vpop.permute.xlu0 %756
    %758 = vrot.lane.b32.xlu0 %v725, 127
    %v759 = vpop.permute.xlu0 %758
    %760 = vrot.lane.b32.xlu0 %v726, 127
    %v761 = vpop.permute.xlu0 %760
    %762 = vrot.lane.b32.xlu0 %v727, 127
    %v763 = vpop.permute.xlu0 %762
    %v764 = vsel %vm51, %v741, %v743
    %v765 = vsel %vm51, %v743, %v745
    %v766 = vsel %vm51, %v745, %v747
    %v767 = vsel %vm51, %v747, %v749
    %v768 = vsel %vm51, %v749, %v751
    %v769 = vsel %vm51, %v753, %v755
    %v770 = vsel %vm51, %v755, %v757
    %v771 = vsel %vm51, %v757, %v759
    %v772 = vsel %vm51, %v759, %v761
    %v773 = vsel %vm51, %v761, %v763
    %v786 = vmax.f32 %v716, %v764
    %v787 = vmax.f32 %v717, %v765
    %v788 = vmax.f32 %v718, %v766
    %v789 = vmax.f32 %v719, %v767
    %v790 = vmax.f32 %v720, %v768
    %v791 = vmax.f32 %v721, %v751
    %v792 = vmax.f32 %v722, %v769
    %v793 = vmax.f32 %v723, %v770
    %v794 = vmax.f32 %v724, %v771
    %v795 = vmax.f32 %v725, %v772
    %v796 = vmax.f32 %v726, %v773
    %v797 = vmax.f32 %v727, %v763
    %v798 = vld [vmem:[#allocation3 + $0x30] sm:$0xff]
    %v799 = vld [vmem:[#allocation3 + $0x68] sm:$0xff]
    %802 = vrot.lane.b32.xlu0 %v798, 127
    %v803 = vpop.permute.xlu0 %802
    %804 = vrot.lane.b32.xlu0 %v799, 127
    %v805 = vpop.permute.xlu0 %804
    %v806 = vsel %vm51, %v751, %v803
    %v807 = vsel %vm51, %v763, %v805
    %v812 = vmax.f32 %v721, %v806
    %v813 = vmax.f32 %v798, %v803
    %v814 = vmax.f32 %v727, %v807
    %v815 = vmax.f32 %v799, %v805
    %830 = vrot.lane.b32.xlu0 %v786, 98
    %v831 = vpop.permute.xlu0 %830
    %832 = vrot.lane.b32.xlu0 %v787, 98
    %v833 = vpop.permute.xlu0 %832
    %834 = vrot.lane.b32.xlu0 %v788, 98
    %v835 = vpop.permute.xlu0 %834
    %836 = vrot.lane.b32.xlu0 %v789, 98
    %v837 = vpop.permute.xlu0 %836
    %838 = vrot.lane.b32.xlu0 %v790, 98
    %v839 = vpop.permute.xlu0 %838
    %840 = vrot.lane.b32.xlu0 %v812, 98
    %v841 = vpop.permute.xlu0 %840
    %842 = vrot.lane.b32.xlu0 %v813, 98
    %v843 = vpop.permute.xlu0 %842
    %844 = vrot.lane.b32.xlu0 %v792, 98
    %v845 = vpop.permute.xlu0 %844
    %846 = vrot.lane.b32.xlu0 %v793, 98
    %v847 = vpop.permute.xlu0 %846
    %848 = vrot.lane.b32.xlu0 %v794, 98
    %v849 = vpop.permute.xlu0 %848
    %850 = vrot.lane.b32.xlu0 %v795, 98
    %v851 = vpop.permute.xlu0 %850
    %852 = vrot.lane.b32.xlu0 %v796, 98
    %v853 = vpop.permute.xlu0 %852
    %854 = vrot.lane.b32.xlu0 %v814, 98
    %v855 = vpop.permute.xlu0 %854
    %856 = vrot.lane.b32.xlu0 %v815, 98
    %v857 = vpop.permute.xlu0 %856
    %v858 = vsel %vm95, %v831, %v833
    %v859 = vsel %vm95, %v833, %v835
    %v860 = vsel %vm95, %v835, %v837
    %v861 = vsel %vm95, %v837, %v839
    %v862 = vsel %vm95, %v839, %v841
    %v863 = vsel %vm95, %v841, %v843
    %v864 = vsel %vm95, %v845, %v847
    %v865 = vsel %vm95, %v847, %v849
    %v866 = vsel %vm95, %v849, %v851
    %v867 = vsel %vm95, %v851, %v853
    %v868 = vsel %vm95, %v853, %v855
    %v869 = vsel %vm95, %v855, %v857
    %v882 = vmax.f32 %v786, %v858
    %v883 = vmax.f32 %v787, %v859
    %v884 = vmax.f32 %v788, %v860
    %v885 = vmax.f32 %v789, %v861
    %v886 = vmax.f32 %v790, %v862
    %v887 = vmax.f32 %v791, %v863
    %v888 = vmax.f32 %v792, %v864
    %v889 = vmax.f32 %v793, %v865
    %v890 = vmax.f32 %v794, %v866
    %v891 = vmax.f32 %v795, %v867
    %v892 = vmax.f32 %v796, %v868
    %v893 = vmax.f32 %v797, %v869
    %v894 = vld [vmem:[%s3] sm:$0xff]
    %v895 = vld [vmem:[%s3 + $0x8] sm:$0xff]
    %v896 = vld [vmem:[%s3 + $0x10] sm:$0xff]
    %v897 = vld [vmem:[%s3 + $0x18] sm:$0xff]
    %v898 = vld [vmem:[%s3 + $0x20] sm:$0xff]
    %v899 = vld [vmem:[%s3 + $0x28] sm:$0xff]
    %v900 = vld [vmem:[%s3 + $0x30] sm:$0xff]
    %v901 = vld [vmem:[%s3 + $0x38] sm:$0xff]
    %v902 = vld [vmem:[%s3 + $0x40] sm:$0xff]
    %v903 = vld [vmem:[%s3 + $0x48] sm:$0xff]
    %v904 = vld [vmem:[%s3 + $0x50] sm:$0xff]
    %v905 = vld [vmem:[%s3 + $0x58] sm:$0xff]
    %v906 = vld [vmem:[%s3 + $0x60] sm:$0xff]
    %v907 = vld [vmem:[%s3 + $0x68] sm:$0xff]
    %v908 = vld [vmem:[%s3 + $0x70] sm:$0xff]
    %v909 = vld [vmem:[%s3 + $0x78] sm:$0xff]
    %v910 = vld [vmem:[%s3 + $0x80] sm:$0xff]
    %v911 = vld [vmem:[%s3 + $0x88] sm:$0xff]
    %v912 = vld [vmem:[%s3 + $0x90] sm:$0xff]
    %v913 = vld [vmem:[%s3 + $0x98] sm:$0xff]
    %v914 = vld [vmem:[%s3 + $0xa0] sm:$0xff]
    %v915 = vld [vmem:[%s3 + $0xa8] sm:$0xff]
    %v916 = vld [vmem:[%s3 + $0xb0] sm:$0xff]
    %v917 = vld [vmem:[%s3 + $0xb8] sm:$0xff]
    %v918 = vld [vmem:[%s3 + $0xc0] sm:$0xff]
    %v919 = vld [vmem:[%s3 + $0xc8] sm:$0xff]
    %v920 = vld [vmem:[%s3 + $0xd0] sm:$0xff]
    %v921 = vld [vmem:[%s3 + $0xd8] sm:$0xff]
    %v922 = vld [vmem:[%s3 + $0xe0] sm:$0xff]
    %v923 = vld [vmem:[%s3 + $0xe8] sm:$0xff]
    %v924 = vld [vmem:[%s3 + $0xf0] sm:$0xff]
    %v925 = vld [vmem:[%s3 + $0xf8] sm:$0xff]
    %v926 = vld [vmem:[%s3 + $0x100] sm:$0xff]
    %v927 = vld [vmem:[%s3 + $0x108] sm:$0xff]
    %v928 = vld [vmem:[%s3 + $0x110] sm:$0xff]
    %v929 = vld [vmem:[%s3 + $0x118] sm:$0xff]
    %v930 = vld [vmem:[%s3 + $0x120] sm:$0xff]
    %v931 = vld [vmem:[%s3 + $0x128] sm:$0xff]
    %v932 = vld [vmem:[%s3 + $0x130] sm:$0xff]
    %v933 = vld [vmem:[%s3 + $0x138] sm:$0xff]
    %v934 = vld [vmem:[%s3 + $0x140] sm:$0xff]
    %v935 = vld [vmem:[%s3 + $0x148] sm:$0xff]
    %v936 = vld [vmem:[%s3 + $0x150] sm:$0xff]
    %v937 = vld [vmem:[%s3 + $0x158] sm:$0xff]
    %v938 = vld [vmem:[%s3 + $0x160] sm:$0xff]
    %v939 = vld [vmem:[%s3 + $0x168] sm:$0xff]
    %v940 = vld [vmem:[%s3 + $0x170] sm:$0xff]
    %v941 = vld [vmem:[%s3 + $0x178] sm:$0xff]
    %v942 = vld [vmem:[%s3 + $0x180] sm:$0xff]
    %v943 = vld [vmem:[%s3 + $0x188] sm:$0xff]
    %v944 = vld [vmem:[%s3 + $0x190] sm:$0xff]
    %v945 = vld [vmem:[%s3 + $0x198] sm:$0xff]
    %v946 = vld [vmem:[%s3 + $0x1a0] sm:$0xff]
    %v947 = vld [vmem:[%s3 + $0x1a8] sm:$0xff]
    %v948 = vld [vmem:[%s3 + $0x1b0] sm:$0xff]
    %v949 = vld [vmem:[%s3 + $0x1b8] sm:$0xff]
    %v950 = vld [vmem:[%s3 + $0x1c0] sm:$0xff]
    %v951 = vld [vmem:[%s3 + $0x1c8] sm:$0xff]
    %v952 = vld [vmem:[%s3 + $0x1d0] sm:$0xff]
    %v953 = vld [vmem:[%s3 + $0x1d8] sm:$0xff]
    %v954 = vld [vmem:[%s3 + $0x1e0] sm:$0xff]
    %v955 = vld [vmem:[%s3 + $0x1e8] sm:$0xff]
    %v956 = vld [vmem:[%s3 + $0x1f0] sm:$0xff]
    %v957 = vld [vmem:[%s3 + $0x1f8] sm:$0xff]
    %v958 = vld [vmem:[%s3 + $0x200] sm:$0xff]
    %v959 = vld [vmem:[%s3 + $0x208] sm:$0xff]
    %v960 = vld [vmem:[%s3 + $0x210] sm:$0xff]
    %v961 = vld [vmem:[%s3 + $0x218] sm:$0xff]
    %v962 = vld [vmem:[%s3 + $0x220] sm:$0xff]
    %v963 = vld [vmem:[%s3 + $0x228] sm:$0xff]
    %v964 = vld [vmem:[%s3 + $0x230] sm:$0xff]
    %v965 = vld [vmem:[%s3 + $0x238] sm:$0xff]
    %v966 = vld [vmem:[%s3 + $0x240] sm:$0xff]
    %v967 = vld [vmem:[%s3 + $0x248] sm:$0xff]
    %v968 = vld [vmem:[%s3 + $0x250] sm:$0xff]
    %v969 = vld [vmem:[%s3 + $0x258] sm:$0xff]
    %v970 = vld [vmem:[%s3 + $0x260] sm:$0xff]
    %v971 = vld [vmem:[%s3 + $0x268] sm:$0xff]
    %v972 = vld [vmem:[%s3 + $0x270] sm:$0xff]
    %v973 = vld [vmem:[%s3 + $0x278] sm:$0xff]
    %v974 = vld [vmem:[%s3 + $0x280] sm:$0xff]
    %v975 = vld [vmem:[%s3 + $0x288] sm:$0xff]
    %v976 = vld [vmem:[%s3 + $0x290] sm:$0xff]
    %v977 = vld [vmem:[%s3 + $0x298] sm:$0xff]
    %v978 = vld [vmem:[%s3 + $0x2a0] sm:$0xff]
    %v979 = vld [vmem:[%s3 + $0x2a8] sm:$0xff]
    %v980 = vld [vmem:[%s3 + $0x2b0] sm:$0xff]
    %v981 = vld [vmem:[%s3 + $0x2b8] sm:$0xff]
    %v982 = vld [vmem:[%s3 + $0x2c0] sm:$0xff]
    %v983 = vld [vmem:[%s3 + $0x2c8] sm:$0xff]
    %v984 = vld [vmem:[%s3 + $0x2d0] sm:$0xff]
    %v985 = vld [vmem:[%s3 + $0x2d8] sm:$0xff]
    %v986 = vld [vmem:[%s3 + $0x2e0] sm:$0xff]
    %v987 = vld [vmem:[%s3 + $0x2e8] sm:$0xff]
    %v988 = vld [vmem:[%s3 + $0x2f0] sm:$0xff]
    %v989 = vld [vmem:[%s3 + $0x2f8] sm:$0xff]
    %v990 = vld [vmem:[%s3 + $0x300] sm:$0xff]
    %v991 = vld [vmem:[%s3 + $0x308] sm:$0xff]
    %v992 = vld [vmem:[%s3 + $0x310] sm:$0xff]
    %v993 = vld [vmem:[%s3 + $0x318] sm:$0xff]
    %v994 = vld [vmem:[%s3 + $0x320] sm:$0xff]
    %v995 = vld [vmem:[%s3 + $0x328] sm:$0xff]
    %v996 = vld [vmem:[%s3 + $0x330] sm:$0xff]
    %v997 = vld [vmem:[%s3 + $0x338] sm:$0xff]
    %v998 = vld [vmem:[%s3 + $0x340] sm:$0xff]
    %v999 = vld [vmem:[%s3 + $0x348] sm:$0xff]
    %v1000 = vld [vmem:[%s3 + $0x350] sm:$0xff]
    %v1001 = vld [vmem:[%s3 + $0x358] sm:$0xff]
    %v1002 = vld [vmem:[%s3 + $0x360] sm:$0xff]
    %v1003 = vld [vmem:[%s3 + $0x368] sm:$0xff]
    %v1004 = vld [vmem:[%s3 + $0x370] sm:$0xff]
    %v1005 = vld [vmem:[%s3 + $0x378] sm:$0xff]
    %v1006 = vld [vmem:[%s3 + $0x380] sm:$0xff]
    %v1007 = vld [vmem:[%s3 + $0x388] sm:$0xff]
    %v1008 = vld [vmem:[%s3 + $0x390] sm:$0xff]
    %v1009 = vld [vmem:[%s3 + $0x398] sm:$0xff]
    %v1010 = vld [vmem:[%s3 + $0x3a0] sm:$0xff]
    %v1011 = vld [vmem:[%s3 + $0x3a8] sm:$0xff]
    %v1012 = vld [vmem:[%s3 + $0x3b0] sm:$0xff]
    %v1013 = vld [vmem:[%s3 + $0x3b8] sm:$0xff]
    %v1014 = vld [vmem:[%s3 + $0x3c0] sm:$0xff]
    %v1015 = vld [vmem:[%s3 + $0x3c8] sm:$0xff]
    %v1016 = vld [vmem:[%s3 + $0x3d0] sm:$0xff]
    %v1017 = vld [vmem:[%s3 + $0x3d8] sm:$0xff]
    %v1018 = vld [vmem:[%s3 + $0x3e0] sm:$0xff]
    %v1019 = vld [vmem:[%s3 + $0x3e8] sm:$0xff]
    %v1020 = vld [vmem:[%s3 + $0x3f0] sm:$0xff]
    %v1021 = vld [vmem:[%s3 + $0x3f8] sm:$0xff]
    %v1022 = vld [vmem:[%s3 + $0x400] sm:$0xff]
    %v1023 = vld [vmem:[%s3 + $0x408] sm:$0xff]
    %v1024 = vld [vmem:[%s3 + $0x410] sm:$0xff]
    %v1025 = vld [vmem:[%s3 + $0x418] sm:$0xff]
    %v1026 = vld [vmem:[%s3 + $0x420] sm:$0xff]
    %v1027 = vld [vmem:[%s3 + $0x428] sm:$0xff]
    %v1028 = vld [vmem:[%s3 + $0x430] sm:$0xff]
    %v1029 = vld [vmem:[%s3 + $0x438] sm:$0xff]
    %v1030 = vld [vmem:[%s3 + $0x440] sm:$0xff]
    %v1031 = vld [vmem:[%s3 + $0x448] sm:$0xff]
    %v1032 = vld [vmem:[%s3 + $0x450] sm:$0xff]
    %v1033 = vld [vmem:[%s3 + $0x458] sm:$0xff]
    %v1034 = vld [vmem:[%s3 + $0x460] sm:$0xff]
    %v1035 = vld [vmem:[%s3 + $0x468] sm:$0xff]
    %v1036 = vld [vmem:[%s3 + $0x470] sm:$0xff]
    %v1037 = vld [vmem:[%s3 + $0x478] sm:$0xff]
    %v1038 = vld [vmem:[%s3 + $0x480] sm:$0xff]
    %v1039 = vld [vmem:[%s3 + $0x488] sm:$0xff]
    %v1040 = vld [vmem:[%s3 + $0x490] sm:$0xff]
    %v1041 = vld [vmem:[%s3 + $0x498] sm:$0xff]
    %v1042 = vld [vmem:[%s3 + $0x4a0] sm:$0xff]
    %v1043 = vld [vmem:[%s3 + $0x4a8] sm:$0xff]
    %v1044 = vld [vmem:[%s3 + $0x4b0] sm:$0xff]
    %v1045 = vld [vmem:[%s3 + $0x4b8] sm:$0xff]
    %v1046 = vld [vmem:[%s3 + $0x4c0] sm:$0xff]
    %v1047 = vld [vmem:[%s3 + $0x4c8] sm:$0xff]
    %v1048 = vld [vmem:[%s3 + $0x4d0] sm:$0xff]
    %v1049 = vld [vmem:[%s3 + $0x4d8] sm:$0xff]
    %v1050 = vld [vmem:[%s3 + $0x4e0] sm:$0xff]
    %v1051 = vld [vmem:[%s3 + $0x4e8] sm:$0xff]
    %v1052 = vld [vmem:[%s3 + $0x4f0] sm:$0xff]
    %v1053 = vld [vmem:[%s3 + $0x4f8] sm:$0xff]
    %v1054 = vld [vmem:[%s3 + $0x500] sm:$0xff]
    %v1055 = vld [vmem:[%s3 + $0x508] sm:$0xff]
    %v1056 = vld [vmem:[%s3 + $0x510] sm:$0xff]
    %v1057 = vld [vmem:[%s3 + $0x518] sm:$0xff]
    %v1058 = vld [vmem:[%s3 + $0x520] sm:$0xff]
    %v1059 = vld [vmem:[%s3 + $0x528] sm:$0xff]
    %v1060 = vld [vmem:[%s3 + $0x530] sm:$0xff]
    %v1061 = vld [vmem:[%s3 + $0x538] sm:$0xff]
    %v1062 = vld [vmem:[%s3 + $0x540] sm:$0xff]
    %v1063 = vld [vmem:[%s3 + $0x548] sm:$0xff]
    %v1064 = vld [vmem:[%s3 + $0x550] sm:$0xff]
    %v1065 = vld [vmem:[%s3 + $0x558] sm:$0xff]
    %v1066 = vld [vmem:[%s3 + $0x560] sm:$0xff]
    %v1067 = vld [vmem:[%s3 + $0x568] sm:$0xff]
    %v1068 = vld [vmem:[%s3 + $0x570] sm:$0xff]
    %v1069 = vld [vmem:[%s3 + $0x578] sm:$0xff]
    %v1070 = vld [vmem:[%s3 + $0x580] sm:$0xff]
    %v1071 = vld [vmem:[%s3 + $0x588] sm:$0xff]
    %v1072 = vld [vmem:[%s3 + $0x590] sm:$0xff]
    %v1073 = vld [vmem:[%s3 + $0x598] sm:$0xff]
    %v1074 = vld [vmem:[%s3 + $0x5a0] sm:$0xff]
    %v1075 = vld [vmem:[%s3 + $0x5a8] sm:$0xff]
    %v1076 = vld [vmem:[%s3 + $0x5b0] sm:$0xff]
    %v1077 = vld [vmem:[%s3 + $0x5b8] sm:$0xff]
    %v1078 = vld [vmem:[%s3 + $0x5c0] sm:$0xff]
    %v1079 = vld [vmem:[%s3 + $0x5c8] sm:$0xff]
    %v1080 = vld [vmem:[%s3 + $0x5d0] sm:$0x1f]
    %v1081 = vld [vmem:[%s3 + $0x5d8] sm:$0x1f]
    %vm1082 = vcmask 891904
    %v1084 = vsel %vm1082, %v887, 0
    %v1087 = vsel %vm1082, %v893, 0
    %vm1089 = vcmask 1044480
    %v1091 = vsel %vm1089, %v1080, 0
    %v1094 = vsel %vm1089, %v1081, 0
    %1096 = vmatprep.subr.mxu0 %v895
    %1097 = vmatpush1.msra.mxu0 %v894
    %1098 = vmatprep.subr.mxu0 %v897
    %1099 = vmatpush1.msra.mxu0 %v896
    %1100 = vmatprep.subr.mxu0 %v899
    %1101 = vmatpush1.msra.mxu0 %v898
    %1102 = vmatprep.subr.mxu0 %v901
    %1103 = vmatpush1.msra.mxu0 %v900
    %1104 = vmatprep.subr.mxu0 %v903
    %1105 = vmatpush1.msra.mxu0 %v902
    %1106 = vmatprep.subr.mxu0 %v905
    %1107 = vmatpush1.msra.mxu0 %v904
    %1108 = vmatprep.subr.mxu0 %v907
    %1109 = vmatpush1.msra.mxu0 %v906
    %1110 = vmatprep.subr.mxu0 %v909
    %1111 = vmatpush1.msra.mxu0 %v908
    %1112 = vmatprep.subr.mxu0 %v911
    %1113 = vmatpush1.msra.mxu0 %v910
    %1114 = vmatprep.subr.mxu0 %v913
    %1115 = vmatpush1.msra.mxu0 %v912
    %1116 = vmatprep.subr.mxu0 %v915
    %1117 = vmatpush1.msra.mxu0 %v914
    %1118 = vmatprep.subr.mxu0 %v917
    %1119 = vmatpush1.msra.mxu0 %v916
    %1120 = vmatprep.subr.mxu0 %v919
    %1121 = vmatpush1.msra.mxu0 %v918
    %1122 = vmatprep.subr.mxu0 %v921
    %1123 = vmatpush1.msra.mxu0 %v920
    %1124 = vmatprep.subr.mxu0 %v923
    %1125 = vmatpush1.msra.mxu0 %v922
    %1126 = vmatprep.subr.mxu0 %v925
    %1127 = vmatpush1.msra.mxu0 %v924
    %1128 = vmatprep.subr.mxu0 %v927
    %1129 = vmatpush1.msra.mxu0 %v926
    %1130 = vmatprep.subr.mxu0 %v929
    %1131 = vmatpush1.msra.mxu0 %v928
    %1132 = vmatprep.subr.mxu0 %v931
    %1133 = vmatpush1.msra.mxu0 %v930
    %1134 = vmatprep.subr.mxu0 %v933
    %1135 = vmatpush1.msra.mxu0 %v932
    %1136 = vmatprep.subr.mxu0 %v935
    %1137 = vmatpush1.msra.mxu0 %v934
    %1138 = vmatprep.subr.mxu0 %v937
    %1139 = vmatpush1.msra.mxu0 %v936
    %1140 = vmatprep.subr.mxu0 %v939
    %1141 = vmatpush1.msra.mxu0 %v938
    %1142 = vmatprep.subr.mxu0 %v941
    %1143 = vmatpush1.msra.mxu0 %v940
    %1144 = vmatprep.subr.mxu0 %v943
    %1145 = vmatpush1.msra.mxu0 %v942
    %1146 = vmatprep.subr.mxu0 %v945
    %1147 = vmatpush1.msra.mxu0 %v944
    %1148 = vmatprep.subr.mxu0 %v947
    %1149 = vmatpush1.msra.mxu0 %v946
    %1150 = vmatprep.subr.mxu0 %v949
    %1151 = vmatpush1.msra.mxu0 %v948
    %1152 = vmatprep.subr.mxu0 %v951
    %1153 = vmatpush1.msra.mxu0 %v950
    %1154 = vmatprep.subr.mxu0 %v953
    %1155 = vmatpush1.msra.mxu0 %v952
    %1156 = vmatprep.subr.mxu0 %v955
    %1157 = vmatpush1.msra.mxu0 %v954
    %1158 = vmatprep.subr.mxu0 %v957
    %1159 = vmatpush1.msra.mxu0 %v956
    %1160 = vmatprep.mubr.f32.mxu0 %v883
    %1161 = vmatmul.mubr.f32.gmra.mrb[0].mxu0 %v882
    %v1162 = vpop.f32.mrb[0].mxu0
    %v1163 = vadd.f32 0.0, %v1162
    %v1164 = vpop.f32.mrb[0].mxu0
    %v1165 = vadd.f32 0.0, %v1164
    %1166 = vmatprep.mubr.f32.mxu0 %v889
    %1167 = vmatmul.mubr.f32.gmra.mrb[0].mxu0 %v888
    %v1168 = vpop.f32.mrb[0].mxu0
    %v1169 = vadd.f32 0.0, %v1168
    %v1170 = vpop.f32.mrb[0].mxu0
    %v1171 = vadd.f32 0.0, %v1170
    %1172 = vdwg.mxu0
    %1173 = vmatprep.subr.mxu0 %v959
    %1174 = vmatpush1.msra.mxu0 %v958
    %1175 = vmatprep.subr.mxu0 %v961
    %1176 = vmatpush1.msra.mxu0 %v960
    %1177 = vmatprep.subr.mxu0 %v963
    %1178 = vmatpush1.msra.mxu0 %v962
    %1179 = vmatprep.subr.mxu0 %v965
    %1180 = vmatpush1.msra.mxu0 %v964
    %1181 = vmatprep.subr.mxu0 %v967
    %1182 = vmatpush1.msra.mxu0 %v966
    %1183 = vmatprep.subr.mxu0 %v969
    %1184 = vmatpush1.msra.mxu0 %v968
    %1185 = vmatprep.subr.mxu0 %v971
    %1186 = vmatpush1.msra.mxu0 %v970
    %1187 = vmatprep.subr.mxu0 %v973
    %1188 = vmatpush1.msra.mxu0 %v972
    %1189 = vmatprep.subr.mxu0 %v975
    %1190 = vmatpush1.msra.mxu0 %v974
    %1191 = vmatprep.subr.mxu0 %v977
    %1192 = vmatpush1.msra.mxu0 %v976
    %1193 = vmatprep.subr.mxu0 %v979
    %1194 = vmatpush1.msra.mxu0 %v978
    %1195 = vmatprep.subr.mxu0 %v981
    %1196 = vmatpush1.msra.mxu0 %v980
    %1197 = vmatprep.subr.mxu0 %v983
    %1198 = vmatpush1.msra.mxu0 %v982
    %1199 = vmatprep.subr.mxu0 %v985
    %1200 = vmatpush1.msra.mxu0 %v984
    %1201 = vmatprep.subr.mxu0 %v987
    %1202 = vmatpush1.msra.mxu0 %v986
    %1203 = vmatprep.subr.mxu0 %v989
    %1204 = vmatpush1.msra.mxu0 %v988
    %1205 = vmatprep.subr.mxu0 %v991
    %1206 = vmatpush1.msra.mxu0 %v990
    %1207 = vmatprep.subr.mxu0 %v993
    %1208 = vmatpush1.msra.mxu0 %v992
    %1209 = vmatprep.subr.mxu0 %v995
    %1210 = vmatpush1.msra.mxu0 %v994
    %1211 = vmatprep.subr.mxu0 %v997
    %1212 = vmatpush1.msra.mxu0 %v996
    %1213 = vmatprep.subr.mxu0 %v999
    %1214 = vmatpush1.msra.mxu0 %v998
    %1215 = vmatprep.subr.mxu0 %v1001
    %1216 = vmatpush1.msra.mxu0 %v1000
    %1217 = vmatprep.subr.mxu0 %v1003
    %1218 = vmatpush1.msra.mxu0 %v1002
    %1219 = vmatprep.subr.mxu0 %v1005
    %1220 = vmatpush1.msra.mxu0 %v1004
    %1221 = vmatprep.subr.mxu0 %v1007
    %1222 = vmatpush1.msra.mxu0 %v1006
    %1223 = vmatprep.subr.mxu0 %v1009
    %1224 = vmatpush1.msra.mxu0 %v1008
    %1225 = vmatprep.subr.mxu0 %v1011
    %1226 = vmatpush1.msra.mxu0 %v1010
    %1227 = vmatprep.subr.mxu0 %v1013
    %1228 = vmatpush1.msra.mxu0 %v1012
    %1229 = vmatprep.subr.mxu0 %v1015
    %1230 = vmatpush1.msra.mxu0 %v1014
    %1231 = vmatprep.subr.mxu0 %v1017
    %1232 = vmatpush1.msra.mxu0 %v1016
    %1233 = vmatprep.subr.mxu0 %v1019
    %1234 = vmatpush1.msra.mxu0 %v1018
    %1235 = vmatprep.subr.mxu0 %v1021
    %1236 = vmatpush1.msra.mxu0 %v1020
    %1237 = vmatprep.mubr.f32.mxu0 %v885
    %1238 = vmatmul.mubr.f32.gmra.mrb[0].mxu0 %v884
    %v1239 = vpop.f32.mrb[0].mxu0
    %v1240 = vadd.f32 %v1163, %v1239
    %v1241 = vpop.f32.mrb[0].mxu0
    %v1242 = vadd.f32 %v1165, %v1241
    %1243 = vmatprep.mubr.f32.mxu0 %v891
    %1244 = vmatmul.mubr.f32.gmra.mrb[0].mxu0 %v890
    %v1245 = vpop.f32.mrb[0].mxu0
    %v1246 = vadd.f32 %v1169, %v1245
    %v1247 = vpop.f32.mrb[0].mxu0
    %v1248 = vadd.f32 %v1171, %v1247
    %1249 = vdwg.mxu0
    %1250 = vmatprep.subr.mxu0 %v1023
    %1251 = vmatpush1.msra.mxu0 %v1022
    %1252 = vmatprep.subr.mxu0 %v1025
    %1253 = vmatpush1.msra.mxu0 %v1024
    %1254 = vmatprep.subr.mxu0 %v1027
    %1255 = vmatpush1.msra.mxu0 %v1026
    %1256 = vmatprep.subr.mxu0 %v1029
    %1257 = vmatpush1.msra.mxu0 %v1028
    %1258 = vmatprep.subr.mxu0 %v1031
    %1259 = vmatpush1.msra.mxu0 %v1030
    %1260 = vmatprep.subr.mxu0 %v1033
    %1261 = vmatpush1.msra.mxu0 %v1032
    %1262 = vmatprep.subr.mxu0 %v1035
    %1263 = vmatpush1.msra.mxu0 %v1034
    %1264 = vmatprep.subr.mxu0 %v1037
    %1265 = vmatpush1.msra.mxu0 %v1036
    %1266 = vmatprep.subr.mxu0 %v1039
    %1267 = vmatpush1.msra.mxu0 %v1038
    %1268 = vmatprep.subr.mxu0 %v1041
    %1269 = vmatpush1.msra.mxu0 %v1040
    %1270 = vmatprep.subr.mxu0 %v1043
    %1271 = vmatpush1.msra.mxu0 %v1042
    %1272 = vmatprep.subr.mxu0 %v1045
    %1273 = vmatpush1.msra.mxu0 %v1044
    %1274 = vmatprep.subr.mxu0 %v1047
    %1275 = vmatpush1.msra.mxu0 %v1046
    %1276 = vmatprep.subr.mxu0 %v1049
    %1277 = vmatpush1.msra.mxu0 %v1048
    %1278 = vmatprep.subr.mxu0 %v1051
    %1279 = vmatpush1.msra.mxu0 %v1050
    %1280 = vmatprep.subr.mxu0 %v1053
    %1281 = vmatpush1.msra.mxu0 %v1052
    %1282 = vmatprep.subr.mxu0 %v1055
    %1283 = vmatpush1.msra.mxu0 %v1054
    %1284 = vmatprep.subr.mxu0 %v1057
    %1285 = vmatpush1.msra.mxu0 %v1056
    %1286 = vmatprep.subr.mxu0 %v1059
    %1287 = vmatpush1.msra.mxu0 %v1058
    %1288 = vmatprep.subr.mxu0 %v1061
    %1289 = vmatpush1.msra.mxu0 %v1060
    %1290 = vmatprep.subr.mxu0 %v1063
    %1291 = vmatpush1.msra.mxu0 %v1062
    %1292 = vmatprep.subr.mxu0 %v1065
    %1293 = vmatpush1.msra.mxu0 %v1064
    %1294 = vmatprep.subr.mxu0 %v1067
    %1295 = vmatpush1.msra.mxu0 %v1066
    %1296 = vmatprep.subr.mxu0 %v1069
    %1297 = vmatpush1.msra.mxu0 %v1068
    %1298 = vmatprep.subr.mxu0 %v1071
    %1299 = vmatpush1.msra.mxu0 %v1070
    %1300 = vmatprep.subr.mxu0 %v1073
    %1301 = vmatpush1.msra.mxu0 %v1072
    %1302 = vmatprep.subr.mxu0 %v1075
    %1303 = vmatpush1.msra.mxu0 %v1074
    %1304 = vmatprep.subr.mxu0 %v1077
    %1305 = vmatpush1.msra.mxu0 %v1076
    %1306 = vmatprep.subr.mxu0 %v1079
    %1307 = vmatpush1.msra.mxu0 %v1078
    %1308 = vmatprep.subr.mxu0 %v1094
    %1309 = vmatpush1.msra.mxu0 %v1091
    %1310 = vmatprep.subr.mxu0 0.0
    %1311 = vmatpush1.msra.mxu0 0.0
    %1312 = vmatprep.subr.mxu0 0.0
    %1313 = vmatpush1.msra.mxu0 0.0
    %1314 = vmatprep.mubr.f32.mxu0 %v1084
    %1315 = vmatmul.mubr.f32.gmra.mrb[0].mxu0 %v886
    %v1316 = vpop.f32.mrb[0].mxu0
    %v1317 = vadd.f32 %v1240, %v1316
    %v1318 = vpop.f32.mrb[0].mxu0
    %v1319 = vadd.f32 %v1242, %v1318
    %1320 = vmatprep.mubr.f32.mxu0 %v1087
    %1321 = vmatmul.mubr.f32.gmra.mrb[0].mxu0 %v892
    %v1322 = vpop.f32.mrb[0].mxu0
    %v1323 = vadd.f32 %v1246, %v1322
    %v1324 = vpop.f32.mrb[0].mxu0
    %v1325 = vadd.f32 %v1248, %v1324
    %1326 = vdwg.mxu0
    %1327 = vst [vmem:[#allocation4] sm:$0xff] %v1317
    %vm1328 = vcmask 850944
    %1329 = vst.msk [vmem:[#allocation4 + $0x8] sm:$0xff] %vm1328, %v1319
    %1330 = vst [vmem:[#allocation4 + $0x10] sm:$0xff] %v1323
    %1331 = vst.msk [vmem:[#allocation4 + $0x18] sm:$0xff] %vm1328, %v1325
    %v1332 = vld [vmem:[#allocation4] sm:$0xff]
    %v1333 = vld [vmem:[#allocation4 + $0x8] sm:$0xff]
    %v1334 = vld [vmem:[#allocation4 + $0x10] sm:$0xff]
    %v1335 = vld [vmem:[#allocation4 + $0x18] sm:$0xff]
    %1336 = vst [vmem:[#allocation5] sm:$0xff] %v1332
    %1337 = vst.msk [vmem:[#allocation5 + $0x8] sm:$0xff] %vm216, %v1333
    %1338 = vst [vmem:[#allocation5 + $0x10] sm:$0xff] %v1334
    %1339 = vst.msk [vmem:[#allocation5 + $0x18] sm:$0xff] %vm216, %v1335
    %v1340 = vld [vmem:[#allocation4] sm:$0xff]
    %v1341 = vld [vmem:[#allocation4 + $0x8] sm:$0xff]
    %v1342 = vld [vmem:[#allocation4 + $0x10] sm:$0xff]
    %v1343 = vld [vmem:[#allocation4 + $0x18] sm:$0xff]
    %1348 = vrot.lane.b32.xlu0 %v1340, 127
    %v1349 = vpop.permute.xlu0 %1348
    %1350 = vrot.lane.b32.xlu0 %v1341, 127
    %v1351 = vpop.permute.xlu0 %1350
    %1352 = vrot.lane.b32.xlu0 %v1342, 127
    %v1353 = vpop.permute.xlu0 %1352
    %1354 = vrot.lane.b32.xlu0 %v1343, 127
    %v1355 = vpop.permute.xlu0 %1354
    %v1356 = vsel %vm51, %v1349, %v1351
    %v1357 = vsel %vm51, %v1353, %v1355
    %1362 = vst [vmem:[#allocation5 + $0x20] sm:$0xff] %v1356
    %1363 = vst.msk [vmem:[#allocation5 + $0x28] sm:$0xff] %vm216, %v1351
    %1364 = vst [vmem:[#allocation5 + $0x30] sm:$0xff] %v1357
    %1365 = vst.msk [vmem:[#allocation5 + $0x38] sm:$0xff] %vm216, %v1355
    %v1366 = vld [vmem:[#allocation4] sm:$0xff]
    %v1367 = vld [vmem:[#allocation4 + $0x8] sm:$0xff]
    %v1368 = vld [vmem:[#allocation4 + $0x10] sm:$0xff]
    %v1369 = vld [vmem:[#allocation4 + $0x18] sm:$0xff]
    %1374 = vrot.lane.b32.xlu0 %v1366, 126
    %v1375 = vpop.permute.xlu0 %1374
    %1376 = vrot.lane.b32.xlu0 %v1367, 126
    %v1377 = vpop.permute.xlu0 %1376
    %1378 = vrot.lane.b32.xlu0 %v1368, 126
    %v1379 = vpop.permute.xlu0 %1378
    %1380 = vrot.lane.b32.xlu0 %v1369, 126
    %v1381 = vpop.permute.xlu0 %1380
    %v1382 = vsel %vm62, %v1375, %v1377
    %v1383 = vsel %vm62, %v1379, %v1381
    %1388 = vst [vmem:[#allocation5 + $0x40] sm:$0xff] %v1382
    %1389 = vst.msk [vmem:[#allocation5 + $0x48] sm:$0xff] %vm216, %v1377
    %1390 = vst [vmem:[#allocation5 + $0x50] sm:$0xff] %v1383
    %1391 = vst.msk [vmem:[#allocation5 + $0x58] sm:$0xff] %vm216, %v1381
    %v1392 = vld [vmem:[#allocation4] sm:$0xff]
    %v1393 = vld [vmem:[#allocation4 + $0x8] sm:$0xff]
    %v1394 = vld [vmem:[#allocation4 + $0x10] sm:$0xff]
    %v1395 = vld [vmem:[#allocation4 + $0x18] sm:$0xff]
    %1400 = vrot.lane.b32.xlu0 %v1392, 125
    %v1401 = vpop.permute.xlu0 %1400
    %1402 = vrot.lane.b32.xlu0 %v1393, 125
    %v1403 = vpop.permute.xlu0 %1402
    %1404 = vrot.lane.b32.xlu0 %v1394, 125
    %v1405 = vpop.permute.xlu0 %1404
    %1406 = vrot.lane.b32.xlu0 %v1395, 125
    %v1407 = vpop.permute.xlu0 %1406
    %v1408 = vsel %vm73, %v1401, %v1403
    %v1409 = vsel %vm73, %v1405, %v1407
    %1414 = vst [vmem:[#allocation5 + $0x60] sm:$0xff] %v1408
    %1415 = vst.msk [vmem:[#allocation5 + $0x68] sm:$0xff] %vm216, %v1403
    %1416 = vst [vmem:[#allocation5 + $0x70] sm:$0xff] %v1409
    %1417 = vst.msk [vmem:[#allocation5 + $0x78] sm:$0xff] %vm216, %v1407
    %v1418 = vld [vmem:[#allocation4] sm:$0xff]
    %v1419 = vld [vmem:[#allocation4 + $0x8] sm:$0xff]
    %v1420 = vld [vmem:[#allocation4 + $0x10] sm:$0xff]
    %v1421 = vld [vmem:[#allocation4 + $0x18] sm:$0xff]
    %1426 = vrot.lane.b32.xlu0 %v1418, 124
    %v1427 = vpop.permute.xlu0 %1426
    %1428 = vrot.lane.b32.xlu0 %v1419, 124
    %v1429 = vpop.permute.xlu0 %1428
    %1430 = vrot.lane.b32.xlu0 %v1420, 124
    %v1431 = vpop.permute.xlu0 %1430
    %1432 = vrot.lane.b32.xlu0 %v1421, 124
    %v1433 = vpop.permute.xlu0 %1432
    %v1434 = vsel %vm84, %v1427, %v1429
    %v1435 = vsel %vm84, %v1431, %v1433
    %1440 = vst [vmem:[#allocation5 + $0x80] sm:$0xff] %v1434
    %1441 = vst.msk [vmem:[#allocation5 + $0x88] sm:$0xff] %vm216, %v1429
    %1442 = vst [vmem:[#allocation5 + $0x90] sm:$0xff] %v1435
    %1443 = vst.msk [vmem:[#allocation5 + $0x98] sm:$0xff] %vm216, %v1433
    %v1444 = vld [vmem:[#allocation4] sm:$0xff]
    %v1445 = vld [vmem:[#allocation4 + $0x8] sm:$0xff]
    %v1446 = vld [vmem:[#allocation4 + $0x10] sm:$0xff]
    %v1447 = vld [vmem:[#allocation4 + $0x18] sm:$0xff]
    %1452 = vrot.lane.b32.xlu0 %v1444, 113
    %v1453 = vpop.permute.xlu0 %1452
    %1454 = vrot.lane.b32.xlu0 %v1445, 113
    %v1455 = vpop.permute.xlu0 %1454
    %1456 = vrot.lane.b32.xlu0 %v1446, 113
    %v1457 = vpop.permute.xlu0 %1456
    %1458 = vrot.lane.b32.xlu0 %v1447, 113
    %v1459 = vpop.permute.xlu0 %1458
    %vm1460 = vcmask 924672
    %v1461 = vsel %vm1460, %v1453, %v1455
    %v1462 = vsel %vm1460, %v1457, %v1459
    %1467 = vst [vmem:[#allocation5 + $0xa0] sm:$0xff] %v1461
    %1468 = vst.msk [vmem:[#allocation5 + $0xa8] sm:$0xff] %vm216, %v1455
    %1469 = vst [vmem:[#allocation5 + $0xb0] sm:$0xff] %v1462
    %1470 = vst.msk [vmem:[#allocation5 + $0xb8] sm:$0xff] %vm216, %v1459
    %v1471 = vld [vmem:[#allocation4] sm:$0xff]
    %v1472 = vld [vmem:[#allocation4 + $0x8] sm:$0xff]
    %v1473 = vld [vmem:[#allocation4 + $0x10] sm:$0xff]
    %v1474 = vld [vmem:[#allocation4 + $0x18] sm:$0xff]
    %1479 = vrot.lane.b32.xlu0 %v1471, 112
    %v1480 = vpop.permute.xlu0 %1479
    %1481 = vrot.lane.b32.xlu0 %v1472, 112
    %v1482 = vpop.permute.xlu0 %1481
    %1483 = vrot.lane.b32.xlu0 %v1473, 112
    %v1484 = vpop.permute.xlu0 %1483
    %1485 = vrot.lane.b32.xlu0 %v1474, 112
    %v1486 = vpop.permute.xlu0 %1485
    %vm1487 = vcmask 916480
    %v1488 = vsel %vm1487, %v1480, %v1482
    %v1489 = vsel %vm1487, %v1484, %v1486
    %1494 = vst [vmem:[#allocation5 + $0xc0] sm:$0xff] %v1488
    %1495 = vst.msk [vmem:[#allocation5 + $0xc8] sm:$0xff] %vm216, %v1482
    %1496 = vst [vmem:[#allocation5 + $0xd0] sm:$0xff] %v1489
    %1497 = vst.msk [vmem:[#allocation5 + $0xd8] sm:$0xff] %vm216, %v1486
    %v1498 = vld [vmem:[#allocation4] sm:$0xff]
    %v1499 = vld [vmem:[#allocation4 + $0x8] sm:$0xff]
    %v1500 = vld [vmem:[#allocation4 + $0x10] sm:$0xff]
    %v1501 = vld [vmem:[#allocation4 + $0x18] sm:$0xff]
    %1506 = vrot.lane.b32.xlu0 %v1498, 111
    %v1507 = vpop.permute.xlu0 %1506
    %1508 = vrot.lane.b32.xlu0 %v1499, 111
    %v1509 = vpop.permute.xlu0 %1508
    %1510 = vrot.lane.b32.xlu0 %v1500, 111
    %v1511 = vpop.permute.xlu0 %1510
    %1512 = vrot.lane.b32.xlu0 %v1501, 111
    %v1513 = vpop.permute.xlu0 %1512
    %vm1514 = vcmask 908288
    %v1515 = vsel %vm1514, %v1507, %v1509
    %v1516 = vsel %vm1514, %v1511, %v1513
    %1521 = vst [vmem:[#allocation5 + $0xe0] sm:$0xff] %v1515
    %1522 = vst.msk [vmem:[#allocation5 + $0xe8] sm:$0xff] %vm216, %v1509
    %1523 = vst [vmem:[#allocation5 + $0xf0] sm:$0xff] %v1516
    %1524 = vst.msk [vmem:[#allocation5 + $0xf8] sm:$0xff] %vm216, %v1513
    %v1525 = vld [vmem:[#allocation4] sm:$0xff]
    %v1526 = vld [vmem:[#allocation4 + $0x8] sm:$0xff]
    %v1527 = vld [vmem:[#allocation4 + $0x10] sm:$0xff]
    %v1528 = vld [vmem:[#allocation4 + $0x18] sm:$0xff]
    %1533 = vrot.lane.b32.xlu0 %v1525, 110
    %v1534 = vpop.permute.xlu0 %1533
    %1535 = vrot.lane.b32.xlu0 %v1526, 110
    %v1536 = vpop.permute.xlu0 %1535
    %1537 = vrot.lane.b32.xlu0 %v1527, 110
    %v1538 = vpop.permute.xlu0 %1537
    %1539 = vrot.lane.b32.xlu0 %v1528, 110
    %v1540 = vpop.permute.xlu0 %1539
    %vm1541 = vcmask 900096
    %v1542 = vsel %vm1541, %v1534, %v1536
    %v1543 = vsel %vm1541, %v1538, %v1540
    %1548 = vst [vmem:[#allocation5 + $0x100] sm:$0xff] %v1542
    %1549 = vst.msk [vmem:[#allocation5 + $0x108] sm:$0xff] %vm216, %v1536
    %1550 = vst [vmem:[#allocation5 + $0x110] sm:$0xff] %v1543
    %1551 = vst.msk [vmem:[#allocation5 + $0x118] sm:$0xff] %vm216, %v1540
    %v1552 = vld [vmem:[#allocation4] sm:$0xff]
    %v1553 = vld [vmem:[#allocation4 + $0x8] sm:$0xff]
    %v1554 = vld [vmem:[#allocation4 + $0x10] sm:$0xff]
    %v1555 = vld [vmem:[#allocation4 + $0x18] sm:$0xff]
    %1560 = vrot.lane.b32.xlu0 %v1552, 109
    %v1561 = vpop.permute.xlu0 %1560
    %1562 = vrot.lane.b32.xlu0 %v1553, 109
    %v1563 = vpop.permute.xlu0 %1562
    %1564 = vrot.lane.b32.xlu0 %v1554, 109
    %v1565 = vpop.permute.xlu0 %1564
    %1566 = vrot.lane.b32.xlu0 %v1555, 109
    %v1567 = vpop.permute.xlu0 %1566
    %v1568 = vsel %vm1082, %v1561, %v1563
    %v1569 = vsel %vm1082, %v1565, %v1567
    %1574 = vst [vmem:[#allocation5 + $0x120] sm:$0xff] %v1568
    %1575 = vst.msk [vmem:[#allocation5 + $0x128] sm:$0xff] %vm216, %v1563
    %1576 = vst [vmem:[#allocation5 + $0x130] sm:$0xff] %v1569
    %1577 = vst.msk [vmem:[#allocation5 + $0x138] sm:$0xff] %vm216, %v1567
    %v1578 = vld [vmem:[#allocation4] sm:$0xff]
    %v1579 = vld [vmem:[#allocation4 + $0x8] sm:$0xff]
    %v1580 = vld [vmem:[#allocation4 + $0x10] sm:$0xff]
    %v1581 = vld [vmem:[#allocation4 + $0x18] sm:$0xff]
    %1586 = vrot.lane.b32.xlu0 %v1578, 98
    %v1587 = vpop.permute.xlu0 %1586
    %1588 = vrot.lane.b32.xlu0 %v1579, 98
    %v1589 = vpop.permute.xlu0 %1588
    %1590 = vrot.lane.b32.xlu0 %v1580, 98
    %v1591 = vpop.permute.xlu0 %1590
    %1592 = vrot.lane.b32.xlu0 %v1581, 98
    %v1593 = vpop.permute.xlu0 %1592
    %v1594 = vsel %vm95, %v1587, %v1589
    %v1595 = vsel %vm95, %v1591, %v1593
    %1600 = vst [vmem:[#allocation5 + $0x140] sm:$0xff] %v1594
    %1601 = vst.msk [vmem:[#allocation5 + $0x148] sm:$0xff] %vm216, %v1589
    %1602 = vst [vmem:[#allocation5 + $0x150] sm:$0xff] %v1595
    %1603 = vst.msk [vmem:[#allocation5 + $0x158] sm:$0xff] %vm216, %v1593
    %v1604 = vld [vmem:[#allocation4] sm:$0xff]
    %v1605 = vld [vmem:[#allocation4 + $0x8] sm:$0xff]
    %v1606 = vld [vmem:[#allocation4 + $0x10] sm:$0xff]
    %v1607 = vld [vmem:[#allocation4 + $0x18] sm:$0xff]
    %1612 = vrot.lane.b32.xlu0 %v1604, 97
    %v1613 = vpop.permute.xlu0 %1612
    %1614 = vrot.lane.b32.xlu0 %v1605, 97
    %v1615 = vpop.permute.xlu0 %1614
    %1616 = vrot.lane.b32.xlu0 %v1606, 97
    %v1617 = vpop.permute.xlu0 %1616
    %1618 = vrot.lane.b32.xlu0 %v1607, 97
    %v1619 = vpop.permute.xlu0 %1618
    %v1620 = vsel %vm106, %v1613, %v1615
    %v1621 = vsel %vm106, %v1617, %v1619
    %1626 = vst [vmem:[#allocation5 + $0x160] sm:$0xff] %v1620
    %1627 = vst.msk [vmem:[#allocation5 + $0x168] sm:$0xff] %vm216, %v1615
    %1628 = vst [vmem:[#allocation5 + $0x170] sm:$0xff] %v1621
    %1629 = vst.msk [vmem:[#allocation5 + $0x178] sm:$0xff] %vm216, %v1619
    %v1630 = vld [vmem:[#allocation4] sm:$0xff]
    %v1631 = vld [vmem:[#allocation4 + $0x8] sm:$0xff]
    %v1632 = vld [vmem:[#allocation4 + $0x10] sm:$0xff]
    %v1633 = vld [vmem:[#allocation4 + $0x18] sm:$0xff]
    %1638 = vrot.lane.b32.xlu0 %v1630, 96
    %v1639 = vpop.permute.xlu0 %1638
    %1640 = vrot.lane.b32.xlu0 %v1631, 96
    %v1641 = vpop.permute.xlu0 %1640
    %1642 = vrot.lane.b32.xlu0 %v1632, 96
    %v1643 = vpop.permute.xlu0 %1642
    %1644 = vrot.lane.b32.xlu0 %v1633, 96
    %v1645 = vpop.permute.xlu0 %1644
    %v1646 = vsel %vm117, %v1639, %v1641
    %v1647 = vsel %vm117, %v1643, %v1645
    %1652 = vst [vmem:[#allocation5 + $0x180] sm:$0xff] %v1646
    %1653 = vst.msk [vmem:[#allocation5 + $0x188] sm:$0xff] %vm216, %v1641
    %1654 = vst [vmem:[#allocation5 + $0x190] sm:$0xff] %v1647
    %1655 = vst.msk [vmem:[#allocation5 + $0x198] sm:$0xff] %vm216, %v1645
    %v1656 = vld [vmem:[#allocation4] sm:$0xff]
    %v1657 = vld [vmem:[#allocation4 + $0x8] sm:$0xff]
    %v1658 = vld [vmem:[#allocation4 + $0x10] sm:$0xff]
    %v1659 = vld [vmem:[#allocation4 + $0x18] sm:$0xff]
    %1664 = vrot.lane.b32.xlu0 %v1656, 95
    %v1665 = vpop.permute.xlu0 %1664
    %1666 = vrot.lane.b32.xlu0 %v1657, 95
    %v1667 = vpop.permute.xlu0 %1666
    %1668 = vrot.lane.b32.xlu0 %v1658, 95
    %v1669 = vpop.permute.xlu0 %1668
    %1670 = vrot.lane.b32.xlu0 %v1659, 95
    %v1671 = vpop.permute.xlu0 %1670
    %v1672 = vsel %vm128, %v1665, %v1667
    %v1673 = vsel %vm128, %v1669, %v1671
    %1678 = vst [vmem:[#allocation5 + $0x1a0] sm:$0xff] %v1672
    %1679 = vst.msk [vmem:[#allocation5 + $0x1a8] sm:$0xff] %vm216, %v1667
    %1680 = vst [vmem:[#allocation5 + $0x1b0] sm:$0xff] %v1673
    %1681 = vst.msk [vmem:[#allocation5 + $0x1b8] sm:$0xff] %vm216, %v1671
    %v1682 = vld [vmem:[#allocation4] sm:$0xff]
    %v1683 = vld [vmem:[#allocation4 + $0x8] sm:$0xff]
    %v1684 = vld [vmem:[#allocation4 + $0x10] sm:$0xff]
    %v1685 = vld [vmem:[#allocation4 + $0x18] sm:$0xff]
    %1690 = vrot.lane.b32.xlu0 %v1682, 94
    %v1691 = vpop.permute.xlu0 %1690
    %1692 = vrot.lane.b32.xlu0 %v1683, 94
    %v1693 = vpop.permute.xlu0 %1692
    %1694 = vrot.lane.b32.xlu0 %v1684, 94
    %v1695 = vpop.permute.xlu0 %1694
    %1696 = vrot.lane.b32.xlu0 %v1685, 94
    %v1697 = vpop.permute.xlu0 %1696
    %v1698 = vsel %vm139, %v1691, %v1693
    %v1699 = vsel %vm139, %v1695, %v1697
    %1704 = vst [vmem:[#allocation5 + $0x1c0] sm:$0xff] %v1698
    %1705 = vst.msk [vmem:[#allocation5 + $0x1c8] sm:$0xff] %vm216, %v1693
    %1706 = vst [vmem:[#allocation5 + $0x1d0] sm:$0xff] %v1699
    %1707 = vst.msk [vmem:[#allocation5 + $0x1d8] sm:$0xff] %vm216, %v1697
    %v1708 = vld [vmem:[#allocation4] sm:$0xff]
    %v1709 = vld [vmem:[#allocation4 + $0x8] sm:$0xff]
    %v1710 = vld [vmem:[#allocation4 + $0x10] sm:$0xff]
    %v1711 = vld [vmem:[#allocation4 + $0x18] sm:$0xff]
    %1716 = vrot.lane.b32.xlu0 %v1708, 83
    %v1717 = vpop.permute.xlu0 %1716
    %1718 = vrot.lane.b32.xlu0 %v1709, 83
    %v1719 = vpop.permute.xlu0 %1718
    %1720 = vrot.lane.b32.xlu0 %v1710, 83
    %v1721 = vpop.permute.xlu0 %1720
    %1722 = vrot.lane.b32.xlu0 %v1711, 83
    %v1723 = vpop.permute.xlu0 %1722
    %vm1724 = vcmask 678912
    %v1725 = vsel %vm1724, %v1717, %v1719
    %v1726 = vsel %vm1724, %v1721, %v1723
    %1731 = vst [vmem:[#allocation5 + $0x1e0] sm:$0xff] %v1725
    %1732 = vst.msk [vmem:[#allocation5 + $0x1e8] sm:$0xff] %vm216, %v1719
    %1733 = vst [vmem:[#allocation5 + $0x1f0] sm:$0xff] %v1726
    %1734 = vst.msk [vmem:[#allocation5 + $0x1f8] sm:$0xff] %vm216, %v1723
    %v1735 = vld [vmem:[#allocation4] sm:$0xff]
    %v1736 = vld [vmem:[#allocation4 + $0x8] sm:$0xff]
    %v1737 = vld [vmem:[#allocation4 + $0x10] sm:$0xff]
    %v1738 = vld [vmem:[#allocation4 + $0x18] sm:$0xff]
    %1743 = vrot.lane.b32.xlu0 %v1735, 82
    %v1744 = vpop.permute.xlu0 %1743
    %1745 = vrot.lane.b32.xlu0 %v1736, 82
    %v1746 = vpop.permute.xlu0 %1745
    %1747 = vrot.lane.b32.xlu0 %v1737, 82
    %v1748 = vpop.permute.xlu0 %1747
    %1749 = vrot.lane.b32.xlu0 %v1738, 82
    %v1750 = vpop.permute.xlu0 %1749
    %vm1751 = vcmask 670720
    %v1752 = vsel %vm1751, %v1744, %v1746
    %v1753 = vsel %vm1751, %v1748, %v1750
    %1758 = vst [vmem:[#allocation5 + $0x200] sm:$0xff] %v1752
    %1759 = vst.msk [vmem:[#allocation5 + $0x208] sm:$0xff] %vm216, %v1746
    %1760 = vst [vmem:[#allocation5 + $0x210] sm:$0xff] %v1753
    %1761 = vst.msk [vmem:[#allocation5 + $0x218] sm:$0xff] %vm216, %v1750
    %v1762 = vld [vmem:[#allocation4] sm:$0xff]
    %v1763 = vld [vmem:[#allocation4 + $0x8] sm:$0xff]
    %v1764 = vld [vmem:[#allocation4 + $0x10] sm:$0xff]
    %v1765 = vld [vmem:[#allocation4 + $0x18] sm:$0xff]
    %1770 = vrot.lane.b32.xlu0 %v1762, 81
    %v1771 = vpop.permute.xlu0 %1770
    %1772 = vrot.lane.b32.xlu0 %v1763, 81
    %v1773 = vpop.permute.xlu0 %1772
    %1774 = vrot.lane.b32.xlu0 %v1764, 81
    %v1775 = vpop.permute.xlu0 %1774
    %1776 = vrot.lane.b32.xlu0 %v1765, 81
    %v1777 = vpop.permute.xlu0 %1776
    %vm1778 = vcmask 662528
    %v1779 = vsel %vm1778, %v1771, %v1773
    %v1780 = vsel %vm1778, %v1775, %v1777
    %1785 = vst [vmem:[#allocation5 + $0x220] sm:$0xff] %v1779
    %1786 = vst.msk [vmem:[#allocation5 + $0x228] sm:$0xff] %vm216, %v1773
    %1787 = vst [vmem:[#allocation5 + $0x230] sm:$0xff] %v1780
    %1788 = vst.msk [vmem:[#allocation5 + $0x238] sm:$0xff] %vm216, %v1777
    %v1789 = vld [vmem:[#allocation4] sm:$0xff]
    %v1790 = vld [vmem:[#allocation4 + $0x8] sm:$0xff]
    %v1791 = vld [vmem:[#allocation4 + $0x10] sm:$0xff]
    %v1792 = vld [vmem:[#allocation4 + $0x18] sm:$0xff]
    %1797 = vrot.lane.b32.xlu0 %v1789, 80
    %v1798 = vpop.permute.xlu0 %1797
    %1799 = vrot.lane.b32.xlu0 %v1790, 80
    %v1800 = vpop.permute.xlu0 %1799
    %1801 = vrot.lane.b32.xlu0 %v1791, 80
    %v1802 = vpop.permute.xlu0 %1801
    %1803 = vrot.lane.b32.xlu0 %v1792, 80
    %v1804 = vpop.permute.xlu0 %1803
    %vm1805 = vcmask 654336
    %v1806 = vsel %vm1805, %v1798, %v1800
    %v1807 = vsel %vm1805, %v1802, %v1804
    %1812 = vst [vmem:[#allocation5 + $0x240] sm:$0xff] %v1806
    %1813 = vst.msk [vmem:[#allocation5 + $0x248] sm:$0xff] %vm216, %v1800
    %1814 = vst [vmem:[#allocation5 + $0x250] sm:$0xff] %v1807
    %1815 = vst.msk [vmem:[#allocation5 + $0x258] sm:$0xff] %vm216, %v1804
    %v1816 = vld [vmem:[#allocation4] sm:$0xff]
    %v1817 = vld [vmem:[#allocation4 + $0x8] sm:$0xff]
    %v1818 = vld [vmem:[#allocation4 + $0x10] sm:$0xff]
    %v1819 = vld [vmem:[#allocation4 + $0x18] sm:$0xff]
    %1824 = vrot.lane.b32.xlu0 %v1816, 79
    %v1825 = vpop.permute.xlu0 %1824
    %1826 = vrot.lane.b32.xlu0 %v1817, 79
    %v1827 = vpop.permute.xlu0 %1826
    %1828 = vrot.lane.b32.xlu0 %v1818, 79
    %v1829 = vpop.permute.xlu0 %1828
    %1830 = vrot.lane.b32.xlu0 %v1819, 79
    %v1831 = vpop.permute.xlu0 %1830
    %vm1832 = vcmask 646144
    %v1833 = vsel %vm1832, %v1825, %v1827
    %v1834 = vsel %vm1832, %v1829, %v1831
    %1839 = vst [vmem:[#allocation5 + $0x260] sm:$0xff] %v1833
    %1840 = vst.msk [vmem:[#allocation5 + $0x268] sm:$0xff] %vm216, %v1827
    %1841 = vst [vmem:[#allocation5 + $0x270] sm:$0xff] %v1834
    %1842 = vst.msk [vmem:[#allocation5 + $0x278] sm:$0xff] %vm216, %v1831
    %v1843 = vld [vmem:[#allocation4] sm:$0xff]
    %v1844 = vld [vmem:[#allocation4 + $0x8] sm:$0xff]
    %v1845 = vld [vmem:[#allocation4 + $0x10] sm:$0xff]
    %v1846 = vld [vmem:[#allocation4 + $0x18] sm:$0xff]
    %1851 = vrot.lane.b32.xlu0 %v1843, 68
    %v1852 = vpop.permute.xlu0 %1851
    %1853 = vrot.lane.b32.xlu0 %v1844, 68
    %v1854 = vpop.permute.xlu0 %1853
    %1855 = vrot.lane.b32.xlu0 %v1845, 68
    %v1856 = vpop.permute.xlu0 %1855
    %1857 = vrot.lane.b32.xlu0 %v1846, 68
    %v1858 = vpop.permute.xlu0 %1857
    %v1859 = vsel %vm150, %v1852, %v1854
    %v1860 = vsel %vm150, %v1856, %v1858
    %1865 = vst [vmem:[#allocation5 + $0x280] sm:$0xff] %v1859
    %1866 = vst.msk [vmem:[#allocation5 + $0x288] sm:$0xff] %vm216, %v1854
    %1867 = vst [vmem:[#allocation5 + $0x290] sm:$0xff] %v1860
    %1868 = vst.msk [vmem:[#allocation5 + $0x298] sm:$0xff] %vm216, %v1858
    %v1869 = vld [vmem:[#allocation4] sm:$0xff]
    %v1870 = vld [vmem:[#allocation4 + $0x8] sm:$0xff]
    %v1871 = vld [vmem:[#allocation4 + $0x10] sm:$0xff]
    %v1872 = vld [vmem:[#allocation4 + $0x18] sm:$0xff]
    %1877 = vrot.lane.b32.xlu0 %v1869, 67
    %v1878 = vpop.permute.xlu0 %1877
    %1879 = vrot.lane.b32.xlu0 %v1870, 67
    %v1880 = vpop.permute.xlu0 %1879
    %1881 = vrot.lane.b32.xlu0 %v1871, 67
    %v1882 = vpop.permute.xlu0 %1881
    %1883 = vrot.lane.b32.xlu0 %v1872, 67
    %v1884 = vpop.permute.xlu0 %1883
    %v1885 = vsel %vm161, %v1878, %v1880
    %v1886 = vsel %vm161, %v1882, %v1884
    %1891 = vst [vmem:[#allocation5 + $0x2a0] sm:$0xff] %v1885
    %1892 = vst.msk [vmem:[#allocation5 + $0x2a8] sm:$0xff] %vm216, %v1880
    %1893 = vst [vmem:[#allocation5 + $0x2b0] sm:$0xff] %v1886
    %1894 = vst.msk [vmem:[#allocation5 + $0x2b8] sm:$0xff] %vm216, %v1884
    %v1895 = vld [vmem:[#allocation4] sm:$0xff]
    %v1896 = vld [vmem:[#allocation4 + $0x8] sm:$0xff]
    %v1897 = vld [vmem:[#allocation4 + $0x10] sm:$0xff]
    %v1898 = vld [vmem:[#allocation4 + $0x18] sm:$0xff]
    %1903 = vrot.lane.b32.xlu0 %v1895, 66
    %v1904 = vpop.permute.xlu0 %1903
    %1905 = vrot.lane.b32.xlu0 %v1896, 66
    %v1906 = vpop.permute.xlu0 %1905
    %1907 = vrot.lane.b32.xlu0 %v1897, 66
    %v1908 = vpop.permute.xlu0 %1907
    %1909 = vrot.lane.b32.xlu0 %v1898, 66
    %v1910 = vpop.permute.xlu0 %1909
    %v1911 = vsel %vm172, %v1904, %v1906
    %v1912 = vsel %vm172, %v1908, %v1910
    %1917 = vst [vmem:[#allocation5 + $0x2c0] sm:$0xff] %v1911
    %1918 = vst.msk [vmem:[#allocation5 + $0x2c8] sm:$0xff] %vm216, %v1906
    %1919 = vst [vmem:[#allocation5 + $0x2d0] sm:$0xff] %v1912
    %1920 = vst.msk [vmem:[#allocation5 + $0x2d8] sm:$0xff] %vm216, %v1910
    %v1921 = vld [vmem:[#allocation4] sm:$0xff]
    %v1922 = vld [vmem:[#allocation4 + $0x8] sm:$0xff]
    %v1923 = vld [vmem:[#allocation4 + $0x10] sm:$0xff]
    %v1924 = vld [vmem:[#allocation4 + $0x18] sm:$0xff]
    %1929 = vrot.lane.b32.xlu0 %v1921, 65
    %v1930 = vpop.permute.xlu0 %1929
    %1931 = vrot.lane.b32.xlu0 %v1922, 65
    %v1932 = vpop.permute.xlu0 %1931
    %1933 = vrot.lane.b32.xlu0 %v1923, 65
    %v1934 = vpop.permute.xlu0 %1933
    %1935 = vrot.lane.b32.xlu0 %v1924, 65
    %v1936 = vpop.permute.xlu0 %1935
    %v1937 = vsel %vm183, %v1930, %v1932
    %v1938 = vsel %vm183, %v1934, %v1936
    %1943 = vst [vmem:[#allocation5 + $0x2e0] sm:$0xff] %v1937
    %1944 = vst.msk [vmem:[#allocation5 + $0x2e8] sm:$0xff] %vm216, %v1932
    %1945 = vst [vmem:[#allocation5 + $0x2f0] sm:$0xff] %v1938
    %1946 = vst.msk [vmem:[#allocation5 + $0x2f8] sm:$0xff] %vm216, %v1936
    %v1947 = vld [vmem:[#allocation4] sm:$0xff]
    %v1948 = vld [vmem:[#allocation4 + $0x8] sm:$0xff]
    %v1949 = vld [vmem:[#allocation4 + $0x10] sm:$0xff]
    %v1950 = vld [vmem:[#allocation4 + $0x18] sm:$0xff]
    %1955 = vrot.lane.b32.xlu0 %v1947, 64
    %v1956 = vpop.permute.xlu0 %1955
    %1957 = vrot.lane.b32.xlu0 %v1948, 64
    %v1958 = vpop.permute.xlu0 %1957
    %1959 = vrot.lane.b32.xlu0 %v1949, 64
    %v1960 = vpop.permute.xlu0 %1959
    %1961 = vrot.lane.b32.xlu0 %v1950, 64
    %v1962 = vpop.permute.xlu0 %1961
    %v1963 = vsel %vm194, %v1956, %v1958
    %v1964 = vsel %vm194, %v1960, %v1962
    %1969 = vst [vmem:[#allocation5 + $0x300] sm:$0xff] %v1963
    %1970 = vst.msk [vmem:[#allocation5 + $0x308] sm:$0xff] %vm216, %v1958
    %1971 = vst [vmem:[#allocation5 + $0x310] sm:$0xff] %v1964
    %1972 = vst.msk [vmem:[#allocation5 + $0x318] sm:$0xff] %vm216, %v1962
    %v1973 = vld [vmem:[%s4] sm:$0xff]
    %v1974 = vld [vmem:[%s4 + $0x8] sm:$0xff]
    %v1975 = vld [vmem:[%s4 + $0x10] sm:$0xff]
    %v1976 = vld [vmem:[%s4 + $0x18] sm:$0xff]
    %v1977 = vld [vmem:[%s4 + $0x20] sm:$0xff]
    %v1978 = vld [vmem:[%s4 + $0x28] sm:$0xff]
    %v1979 = vld [vmem:[%s4 + $0x30] sm:$0xff]
    %v1980 = vld [vmem:[%s4 + $0x38] sm:$0xff]
    %v1981 = vld [vmem:[%s4 + $0x40] sm:$0xff]
    %v1982 = vld [vmem:[%s4 + $0x48] sm:$0xff]
    %v1983 = vld [vmem:[%s4 + $0x50] sm:$0xff]
    %v1984 = vld [vmem:[%s4 + $0x58] sm:$0xff]
    %v1985 = vld [vmem:[%s4 + $0x60] sm:$0xff]
    %v1986 = vld [vmem:[%s4 + $0x68] sm:$0xff]
    %v1987 = vld [vmem:[%s4 + $0x70] sm:$0xff]
    %v1988 = vld [vmem:[%s4 + $0x78] sm:$0xff]
    %v1989 = vld [vmem:[#allocation5] sm:$0xff]
    %v1990 = vld [vmem:[#allocation5 + $0x8] sm:$0xff]
    %v1991 = vld [vmem:[#allocation5 + $0x10] sm:$0xff]
    %v1992 = vld [vmem:[#allocation5 + $0x18] sm:$0xff]
    %v1993 = vld [vmem:[#allocation5 + $0x20] sm:$0xff]
    %v1994 = vld [vmem:[#allocation5 + $0x28] sm:$0xff]
    %v1995 = vld [vmem:[#allocation5 + $0x30] sm:$0xff]
    %v1996 = vld [vmem:[#allocation5 + $0x38] sm:$0xff]
    %v1997 = vld [vmem:[#allocation5 + $0x40] sm:$0xff]
    %v1998 = vld [vmem:[#allocation5 + $0x48] sm:$0xff]
    %v1999 = vld [vmem:[#allocation5 + $0x50] sm:$0xff]
    %v2000 = vld [vmem:[#allocation5 + $0x58] sm:$0xff]
    %v2001 = vld [vmem:[#allocation5 + $0x60] sm:$0xff]
    %v2002 = vld [vmem:[#allocation5 + $0x68] sm:$0xff]
    %v2003 = vld [vmem:[#allocation5 + $0x70] sm:$0xff]
    %v2004 = vld [vmem:[#allocation5 + $0x78] sm:$0xff]
    %v2005 = vld [vmem:[#allocation5 + $0x80] sm:$0xff]
    %v2006 = vld [vmem:[#allocation5 + $0x88] sm:$0xff]
    %v2007 = vld [vmem:[#allocation5 + $0x90] sm:$0xff]
    %v2008 = vld [vmem:[#allocation5 + $0x98] sm:$0xff]
    %v2009 = vld [vmem:[#allocation5 + $0xa0] sm:$0xff]
    %v2010 = vld [vmem:[#allocation5 + $0xa8] sm:$0xff]
    %v2011 = vld [vmem:[#allocation5 + $0xb0] sm:$0xff]
    %v2012 = vld [vmem:[#allocation5 + $0xb8] sm:$0xff]
    %v2013 = vld [vmem:[#allocation5 + $0xc0] sm:$0xff]
    %v2014 = vld [vmem:[#allocation5 + $0xc8] sm:$0xff]
    %v2015 = vld [vmem:[#allocation5 + $0xd0] sm:$0xff]
    %v2016 = vld [vmem:[#allocation5 + $0xd8] sm:$0xff]
    %v2017 = vld [vmem:[#allocation5 + $0xe0] sm:$0xff]
    %v2018 = vld [vmem:[#allocation5 + $0xe8] sm:$0xff]
    %v2019 = vld [vmem:[#allocation5 + $0xf0] sm:$0xff]
    %v2020 = vld [vmem:[#allocation5 + $0xf8] sm:$0xff]
    %v2021 = vld [vmem:[#allocation5 + $0x100] sm:$0xff]
    %v2022 = vld [vmem:[#allocation5 + $0x108] sm:$0xff]
    %v2023 = vld [vmem:[#allocation5 + $0x110] sm:$0xff]
    %v2024 = vld [vmem:[#allocation5 + $0x118] sm:$0xff]
    %v2025 = vld [vmem:[#allocation5 + $0x120] sm:$0xff]
    %v2026 = vld [vmem:[#allocation5 + $0x128] sm:$0xff]
    %v2027 = vld [vmem:[#allocation5 + $0x130] sm:$0xff]
    %v2028 = vld [vmem:[#allocation5 + $0x138] sm:$0xff]
    %v2029 = vld [vmem:[#allocation5 + $0x140] sm:$0xff]
    %v2030 = vld [vmem:[#allocation5 + $0x148] sm:$0xff]
    %v2031 = vld [vmem:[#allocation5 + $0x150] sm:$0xff]
    %v2032 = vld [vmem:[#allocation5 + $0x158] sm:$0xff]
    %v2033 = vld [vmem:[#allocation5 + $0x160] sm:$0xff]
    %v2034 = vld [vmem:[#allocation5 + $0x168] sm:$0xff]
    %v2035 = vld [vmem:[#allocation5 + $0x170] sm:$0xff]
    %v2036 = vld [vmem:[#allocation5 + $0x178] sm:$0xff]
    %v2037 = vld [vmem:[#allocation5 + $0x180] sm:$0xff]
    %v2038 = vld [vmem:[#allocation5 + $0x188] sm:$0xff]
    %v2039 = vld [vmem:[#allocation5 + $0x190] sm:$0xff]
    %v2040 = vld [vmem:[#allocation5 + $0x198] sm:$0xff]
    %v2041 = vld [vmem:[#allocation5 + $0x1a0] sm:$0xff]
    %v2042 = vld [vmem:[#allocation5 + $0x1a8] sm:$0xff]
    %v2043 = vld [vmem:[#allocation5 + $0x1b0] sm:$0xff]
    %v2044 = vld [vmem:[#allocation5 + $0x1b8] sm:$0xff]
    %v2045 = vld [vmem:[#allocation5 + $0x1c0] sm:$0xff]
    %v2046 = vld [vmem:[#allocation5 + $0x1c8] sm:$0xff]
    %v2047 = vld [vmem:[#allocation5 + $0x1d0] sm:$0xff]
    %v2048 = vld [vmem:[#allocation5 + $0x1d8] sm:$0xff]
    %v2049 = vld [vmem:[#allocation5 + $0x1e0] sm:$0xff]
    %v2050 = vld [vmem:[#allocation5 + $0x1e8] sm:$0xff]
    %v2051 = vld [vmem:[#allocation5 + $0x1f0] sm:$0xff]
    %v2052 = vld [vmem:[#allocation5 + $0x1f8] sm:$0xff]
    %v2053 = vld [vmem:[#allocation5 + $0x200] sm:$0xff]
    %v2054 = vld [vmem:[#allocation5 + $0x208] sm:$0xff]
    %v2055 = vld [vmem:[#allocation5 + $0x210] sm:$0xff]
    %v2056 = vld [vmem:[#allocation5 + $0x218] sm:$0xff]
    %v2057 = vld [vmem:[#allocation5 + $0x220] sm:$0xff]
    %v2058 = vld [vmem:[#allocation5 + $0x228] sm:$0xff]
    %v2059 = vld [vmem:[#allocation5 + $0x230] sm:$0xff]
    %v2060 = vld [vmem:[#allocation5 + $0x238] sm:$0xff]
    %v2061 = vld [vmem:[#allocation5 + $0x240] sm:$0xff]
    %v2062 = vld [vmem:[#allocation5 + $0x248] sm:$0xff]
    %v2063 = vld [vmem:[#allocation5 + $0x250] sm:$0xff]
    %v2064 = vld [vmem:[#allocation5 + $0x258] sm:$0xff]
    %v2065 = vld [vmem:[#allocation5 + $0x260] sm:$0xff]
    %v2066 = vld [vmem:[#allocation5 + $0x268] sm:$0xff]
    %v2067 = vld [vmem:[#allocation5 + $0x270] sm:$0xff]
    %v2068 = vld [vmem:[#allocation5 + $0x278] sm:$0xff]
    %v2069 = vld [vmem:[#allocation5 + $0x280] sm:$0xff]
    %v2070 = vld [vmem:[#allocation5 + $0x288] sm:$0xff]
    %v2071 = vld [vmem:[#allocation5 + $0x290] sm:$0xff]
    %v2072 = vld [vmem:[#allocation5 + $0x298] sm:$0xff]
    %v2073 = vld [vmem:[#allocation5 + $0x2a0] sm:$0xff]
    %v2074 = vld [vmem:[#allocation5 + $0x2a8] sm:$0xff]
    %v2075 = vld [vmem:[#allocation5 + $0x2b0] sm:$0xff]
    %v2076 = vld [vmem:[#allocation5 + $0x2b8] sm:$0xff]
    %v2077 = vld [vmem:[#allocation5 + $0x2c0] sm:$0xff]
    %v2078 = vld [vmem:[#allocation5 + $0x2c8] sm:$0xff]
    %v2079 = vld [vmem:[#allocation5 + $0x2d0] sm:$0xff]
    %v2080 = vld [vmem:[#allocation5 + $0x2d8] sm:$0xff]
    %v2081 = vld [vmem:[#allocation5 + $0x2e0] sm:$0xff]
    %v2082 = vld [vmem:[#allocation5 + $0x2e8] sm:$0xff]
    %v2083 = vld [vmem:[#allocation5 + $0x2f0] sm:$0xff]
    %v2084 = vld [vmem:[#allocation5 + $0x2f8] sm:$0xff]
    %v2085 = vld [vmem:[#allocation5 + $0x300] sm:$0xff]
    %v2086 = vld [vmem:[#allocation5 + $0x308] sm:$0xff]
    %v2087 = vld [vmem:[#allocation5 + $0x310] sm:$0xff]
    %v2088 = vld [vmem:[#allocation5 + $0x318] sm:$0xff]
    %v2089 = vld [vmem:[%s5] sm:$0xff]
    %v2090 = vld [vmem:[%s5 + $0x8] sm:$0xff]
    %v2091 = vld [vmem:[%s5 + $0x10] sm:$0xff]
    %v2092 = vld [vmem:[%s5 + $0x18] sm:$0xff]
    %2094 = vset.pattern.permute.xlu0 0
    %2095 = vperm.xlu0 %2094, %v2089
    %v2096 = vpop.permute.xlu0 %2095
    %2099 = vset.pattern.permute.xlu0 0
    %2100 = vperm.xlu0 %2099, %v2090
    %v2101 = vpop.permute.xlu0 %2100
    %2104 = vset.pattern.permute.xlu0 0
    %2105 = vperm.xlu0 %2104, %v2091
    %v2106 = vpop.permute.xlu0 %2105
    %2109 = vset.pattern.permute.xlu0 0
    %2110 = vperm.xlu0 %2109, %v2092
    %v2111 = vpop.permute.xlu0 %2110
    %vm2113 = vcmask 130048
    %v2115 = vsel %vm2113, %v1976, 0
    %v2118 = vsel %vm2113, %v1980, 0
    %v2121 = vsel %vm2113, %v1984, 0
    %v2124 = vsel %vm2113, %v1988, 0
    %2126 = vmatprep.subr.mxu0 %v1990
    %2127 = vmatpush1.msra.mxu0 %v1989
    %2128 = vmatprep.subr.mxu0 %v1992
    %2129 = vmatpush1.msra.mxu0 %v1991
    %2130 = vmatprep.subr.mxu0 %v1994
    %2131 = vmatpush1.msra.mxu0 %v1993
    %2132 = vmatprep.subr.mxu0 %v1996
    %2133 = vmatpush1.msra.mxu0 %v1995
    %2134 = vmatprep.subr.mxu0 %v1998
    %2135 = vmatpush1.msra.mxu0 %v1997
    %2136 = vmatprep.subr.mxu0 %v2000
    %2137 = vmatpush1.msra.mxu0 %v1999
    %2138 = vmatprep.subr.mxu0 %v2002
    %2139 = vmatpush1.msra.mxu0 %v2001
    %2140 = vmatprep.subr.mxu0 %v2004
    %2141 = vmatpush1.msra.mxu0 %v2003
    %2142 = vmatprep.subr.mxu0 %v2006
    %2143 = vmatpush1.msra.mxu0 %v2005
    %2144 = vmatprep.subr.mxu0 %v2008
    %2145 = vmatpush1.msra.mxu0 %v2007
    %2146 = vmatprep.subr.mxu0 %v2010
    %2147 = vmatpush1.msra.mxu0 %v2009
    %2148 = vmatprep.subr.mxu0 %v2012
    %2149 = vmatpush1.msra.mxu0 %v2011
    %2150 = vmatprep.subr.mxu0 %v2014
    %2151 = vmatpush1.msra.mxu0 %v2013
    %2152 = vmatprep.subr.mxu0 %v2016
    %2153 = vmatpush1.msra.mxu0 %v2015
    %2154 = vmatprep.subr.mxu0 %v2018
    %2155 = vmatpush1.msra.mxu0 %v2017
    %2156 = vmatprep.subr.mxu0 %v2020
    %2157 = vmatpush1.msra.mxu0 %v2019
    %2158 = vmatprep.subr.mxu0 %v2022
    %2159 = vmatpush1.msra.mxu0 %v2021
    %2160 = vmatprep.subr.mxu0 %v2024
    %2161 = vmatpush1.msra.mxu0 %v2023
    %2162 = vmatprep.subr.mxu0 %v2026
    %2163 = vmatpush1.msra.mxu0 %v2025
    %2164 = vmatprep.subr.mxu0 %v2028
    %2165 = vmatpush1.msra.mxu0 %v2027
    %2166 = vmatprep.subr.mxu0 %v2030
    %2167 = vmatpush1.msra.mxu0 %v2029
    %2168 = vmatprep.subr.mxu0 %v2032
    %2169 = vmatpush1.msra.mxu0 %v2031
    %2170 = vmatprep.subr.mxu0 %v2034
    %2171 = vmatpush1.msra.mxu0 %v2033
    %2172 = vmatprep.subr.mxu0 %v2036
    %2173 = vmatpush1.msra.mxu0 %v2035
    %2174 = vmatprep.subr.mxu0 %v2038
    %2175 = vmatpush1.msra.mxu0 %v2037
    %2176 = vmatprep.subr.mxu0 %v2040
    %2177 = vmatpush1.msra.mxu0 %v2039
    %2178 = vmatprep.subr.mxu0 %v2042
    %2179 = vmatpush1.msra.mxu0 %v2041
    %2180 = vmatprep.subr.mxu0 %v2044
    %2181 = vmatpush1.msra.mxu0 %v2043
    %2182 = vmatprep.subr.mxu0 %v2046
    %2183 = vmatpush1.msra.mxu0 %v2045
    %2184 = vmatprep.subr.mxu0 %v2048
    %2185 = vmatpush1.msra.mxu0 %v2047
    %2186 = vmatprep.subr.mxu0 %v2050
    %2187 = vmatpush1.msra.mxu0 %v2049
    %2188 = vmatprep.subr.mxu0 %v2052
    %2189 = vmatpush1.msra.mxu0 %v2051
    %2190 = vmatprep.mubr.f32.mxu0 %v1974
    %2191 = vmatmul.mubr.f32.gmra.mrb[0].mxu0 %v1973
    %v2192 = vpop.f32.mrb[0].mxu0
    %v2193 = vadd.f32 %v2096, %v2192
    %v2194 = vpop.f32.mrb[0].mxu0
    %v2195 = vadd.f32 %v2096, %v2194
    %2196 = vmatprep.mubr.f32.mxu0 %v1978
    %2197 = vmatmul.mubr.f32.gmra.mrb[0].mxu0 %v1977
    %v2198 = vpop.f32.mrb[0].mxu0
    %v2199 = vadd.f32 %v2101, %v2198
    %v2200 = vpop.f32.mrb[0].mxu0
    %v2201 = vadd.f32 %v2101, %v2200
    %2202 = vmatprep.mubr.f32.mxu0 %v1982
    %2203 = vmatmul.mubr.f32.gmra.mrb[0].mxu0 %v1981
    %v2204 = vpop.f32.mrb[0].mxu0
    %v2205 = vadd.f32 %v2106, %v2204
    %v2206 = vpop.f32.mrb[0].mxu0
    %v2207 = vadd.f32 %v2106, %v2206
    %2208 = vmatprep.mubr.f32.mxu0 %v1986
    %2209 = vmatmul.mubr.f32.gmra.mrb[0].mxu0 %v1985
    %v2210 = vpop.f32.mrb[0].mxu0
    %v2211 = vadd.f32 %v2111, %v2210
    %v2212 = vpop.f32.mrb[0].mxu0
    %v2213 = vadd.f32 %v2111, %v2212
    %2214 = vdwg.mxu0
    %2215 = vmatprep.subr.mxu0 %v2054
    %2216 = vmatpush1.msra.mxu0 %v2053
    %2217 = vmatprep.subr.mxu0 %v2056
    %2218 = vmatpush1.msra.mxu0 %v2055
    %2219 = vmatprep.subr.mxu0 %v2058
    %2220 = vmatpush1.msra.mxu0 %v2057
    %2221 = vmatprep.subr.mxu0 %v2060
    %2222 = vmatpush1.msra.mxu0 %v2059
    %2223 = vmatprep.subr.mxu0 %v2062
    %2224 = vmatpush1.msra.mxu0 %v2061
    %2225 = vmatprep.subr.mxu0 %v2064
    %2226 = vmatpush1.msra.mxu0 %v2063
    %2227 = vmatprep.subr.mxu0 %v2066
    %2228 = vmatpush1.msra.mxu0 %v2065
    %2229 = vmatprep.subr.mxu0 %v2068
    %2230 = vmatpush1.msra.mxu0 %v2067
    %2231 = vmatprep.subr.mxu0 %v2070
    %2232 = vmatpush1.msra.mxu0 %v2069
    %2233 = vmatprep.subr.mxu0 %v2072
    %2234 = vmatpush1.msra.mxu0 %v2071
    %2235 = vmatprep.subr.mxu0 %v2074
    %2236 = vmatpush1.msra.mxu0 %v2073
    %2237 = vmatprep.subr.mxu0 %v2076
    %2238 = vmatpush1.msra.mxu0 %v2075
    %2239 = vmatprep.subr.mxu0 %v2078
    %2240 = vmatpush1.msra.mxu0 %v2077
    %2241 = vmatprep.subr.mxu0 %v2080
    %2242 = vmatpush1.msra.mxu0 %v2079
    %2243 = vmatprep.subr.mxu0 %v2082
    %2244 = vmatpush1.msra.mxu0 %v2081
    %2245 = vmatprep.subr.mxu0 %v2084
    %2246 = vmatpush1.msra.mxu0 %v2083
    %2247 = vmatprep.subr.mxu0 %v2086
    %2248 = vmatpush1.msra.mxu0 %v2085
    %2249 = vmatprep.subr.mxu0 %v2088
    %2250 = vmatpush1.msra.mxu0 %v2087
    %2251 = vmatprep.subr.mxu0 0.0
    %2252 = vmatpush1.msra.mxu0 0.0
    %2253 = vmatprep.subr.mxu0 0.0
    %2254 = vmatpush1.msra.mxu0 0.0
    %2255 = vmatprep.subr.mxu0 0.0
    %2256 = vmatpush1.msra.mxu0 0.0
    %2257 = vmatprep.subr.mxu0 0.0
    %2258 = vmatpush1.msra.mxu0 0.0
    %2259 = vmatprep.subr.mxu0 0.0
    %2260 = vmatpush1.msra.mxu0 0.0
    %2261 = vmatprep.subr.mxu0 0.0
    %2262 = vmatpush1.msra.mxu0 0.0
    %2263 = vmatprep.subr.mxu0 0.0
    %2264 = vmatpush1.msra.mxu0 0.0
    %2265 = vmatprep.subr.mxu0 0.0
    %2266 = vmatpush1.msra.mxu0 0.0
    %2267 = vmatprep.subr.mxu0 0.0
    %2268 = vmatpush1.msra.mxu0 0.0
    %2269 = vmatprep.subr.mxu0 0.0
    %2270 = vmatpush1.msra.mxu0 0.0
    %2271 = vmatprep.subr.mxu0 0.0
    %2272 = vmatpush1.msra.mxu0 0.0
    %2273 = vmatprep.subr.mxu0 0.0
    %2274 = vmatpush1.msra.mxu0 0.0
    %2275 = vmatprep.subr.mxu0 0.0
    %2276 = vmatpush1.msra.mxu0 0.0
    %2277 = vmatprep.subr.mxu0 0.0
    %2278 = vmatpush1.msra.mxu0 0.0
    %2279 = vmatprep.mubr.f32.mxu0 %v2115
    %2280 = vmatmul.mubr.f32.gmra.mrb[0].mxu0 %v1975
    %v2281 = vpop.f32.mrb[0].mxu0
    %v2282 = vadd.f32 %v2193, %v2281
    %v2283 = vpop.f32.mrb[0].mxu0
    %v2284 = vadd.f32 %v2195, %v2283
    %2285 = vmatprep.mubr.f32.mxu0 %v2118
    %2286 = vmatmul.mubr.f32.gmra.mrb[0].mxu0 %v1979
    %v2287 = vpop.f32.mrb[0].mxu0
    %v2288 = vadd.f32 %v2199, %v2287
    %v2289 = vpop.f32.mrb[0].mxu0
    %v2290 = vadd.f32 %v2201, %v2289
    %2291 = vmatprep.mubr.f32.mxu0 %v2121
    %2292 = vmatmul.mubr.f32.gmra.mrb[0].mxu0 %v1983
    %v2293 = vpop.f32.mrb[0].mxu0
    %v2294 = vadd.f32 %v2205, %v2293
    %v2295 = vpop.f32.mrb[0].mxu0
    %v2296 = vadd.f32 %v2207, %v2295
    %2297 = vmatprep.mubr.f32.mxu0 %v2124
    %2298 = vmatmul.mubr.f32.gmra.mrb[0].mxu0 %v1987
    %v2299 = vpop.f32.mrb[0].mxu0
    %v2300 = vadd.f32 %v2211, %v2299
    %v2301 = vpop.f32.mrb[0].mxu0
    %v2302 = vadd.f32 %v2213, %v2301
    %2303 = vdwg.mxu0
    %v2304 = vmax.f32 %v2282, 0.0
    %v2305 = vmax.f32 %v2284, 0.0
    %v2306 = vmax.f32 %v2288, 0.0
    %v2307 = vmax.f32 %v2290, 0.0
    %v2308 = vmax.f32 %v2294, 0.0
    %v2309 = vmax.f32 %v2296, 0.0
    %v2310 = vmax.f32 %v2300, 0.0
    %v2311 = vmax.f32 %v2302, 0.0
    %2312 = vst [vmem:[#allocation6] sm:$0xff] %v2304
    %2313 = vst.msk [vmem:[#allocation6 + $0x8] sm:$0xff] %vm216, %v2305
    %2314 = vst [vmem:[#allocation6 + $0x10] sm:$0xff] %v2306
    %2315 = vst.msk [vmem:[#allocation6 + $0x18] sm:$0xff] %vm216, %v2307
    %2316 = vst [vmem:[#allocation6 + $0x20] sm:$0xff] %v2308
    %2317 = vst.msk [vmem:[#allocation6 + $0x28] sm:$0xff] %vm216, %v2309
    %2318 = vst [vmem:[#allocation6 + $0x30] sm:$0xff] %v2310
    %2319 = vst.msk [vmem:[#allocation6 + $0x38] sm:$0xff] %vm216, %v2311
    %v2320 = vld [vmem:[#allocation6] sm:$0xff]
    %v2321 = vld [vmem:[#allocation6 + $0x8] sm:$0xff]
    %v2322 = vld [vmem:[#allocation6 + $0x10] sm:$0xff]
    %v2323 = vld [vmem:[#allocation6 + $0x18] sm:$0xff]
    %v2324 = vld [vmem:[#allocation6 + $0x20] sm:$0xff]
    %v2325 = vld [vmem:[#allocation6 + $0x28] sm:$0xff]
    %v2326 = vld [vmem:[#allocation6 + $0x30] sm:$0xff]
    %v2327 = vld [vmem:[#allocation6 + $0x38] sm:$0xff]
    %2336 = vrot.lane.b32.xlu0 %v2320, 127
    %v2337 = vpop.permute.xlu0 %2336
    %2338 = vrot.lane.b32.xlu0 %v2321, 127
    %v2339 = vpop.permute.xlu0 %2338
    %2340 = vrot.lane.b32.xlu0 %v2322, 127
    %v2341 = vpop.permute.xlu0 %2340
    %2342 = vrot.lane.b32.xlu0 %v2323, 127
    %v2343 = vpop.permute.xlu0 %2342
    %2344 = vrot.lane.b32.xlu0 %v2324, 127
    %v2345 = vpop.permute.xlu0 %2344
    %2346 = vrot.lane.b32.xlu0 %v2325, 127
    %v2347 = vpop.permute.xlu0 %2346
    %2348 = vrot.lane.b32.xlu0 %v2326, 127
    %v2349 = vpop.permute.xlu0 %2348
    %2350 = vrot.lane.b32.xlu0 %v2327, 127
    %v2351 = vpop.permute.xlu0 %2350
    %v2352 = vsel %vm51, %v2337, %v2339
    %v2353 = vsel %vm51, %v2341, %v2343
    %v2354 = vsel %vm51, %v2345, %v2347
    %v2355 = vsel %vm51, %v2349, %v2351
    %v2364 = vadd.f32 %v2320, %v2352
    %v2365 = vadd.f32 %v2321, %v2339
    %v2366 = vadd.f32 %v2322, %v2353
    %v2367 = vadd.f32 %v2323, %v2343
    %v2368 = vadd.f32 %v2324, %v2354
    %v2369 = vadd.f32 %v2325, %v2347
    %v2370 = vadd.f32 %v2326, %v2355
    %v2371 = vadd.f32 %v2327, %v2351
    %2372 = vrot.lane.b32.xlu0 %v2320, 113
    %v2373 = vpop.permute.xlu0 %2372
    %2374 = vrot.lane.b32.xlu0 %v2321, 113
    %v2375 = vpop.permute.xlu0 %2374
    %2376 = vrot.lane.b32.xlu0 %v2322, 113
    %v2377 = vpop.permute.xlu0 %2376
    %2378 = vrot.lane.b32.xlu0 %v2323, 113
    %v2379 = vpop.permute.xlu0 %2378
    %2380 = vrot.lane.b32.xlu0 %v2324, 113
    %v2381 = vpop.permute.xlu0 %2380
    %2382 = vrot.lane.b32.xlu0 %v2325, 113
    %v2383 = vpop.permute.xlu0 %2382
    %2384 = vrot.lane.b32.xlu0 %v2326, 113
    %v2385 = vpop.permute.xlu0 %2384
    %2386 = vrot.lane.b32.xlu0 %v2327, 113
    %v2387 = vpop.permute.xlu0 %2386
    %v2388 = vsel %vm1460, %v2373, %v2375
    %v2389 = vsel %vm1460, %v2377, %v2379
    %v2390 = vsel %vm1460, %v2381, %v2383
    %v2391 = vsel %vm1460, %v2385, %v2387
    %v2400 = vadd.f32 %v2364, %v2388
    %v2401 = vadd.f32 %v2365, %v2375
    %v2402 = vadd.f32 %v2366, %v2389
    %v2403 = vadd.f32 %v2367, %v2379
    %v2404 = vadd.f32 %v2368, %v2390
    %v2405 = vadd.f32 %v2369, %v2383
    %v2406 = vadd.f32 %v2370, %v2391
    %v2407 = vadd.f32 %v2371, %v2387
    %2408 = vrot.lane.b32.xlu0 %v2320, 112
    %v2409 = vpop.permute.xlu0 %2408
    %2410 = vrot.lane.b32.xlu0 %v2321, 112
    %v2411 = vpop.permute.xlu0 %2410
    %2412 = vrot.lane.b32.xlu0 %v2322, 112
    %v2413 = vpop.permute.xlu0 %2412
    %2414 = vrot.lane.b32.xlu0 %v2323, 112
    %v2415 = vpop.permute.xlu0 %2414
    %2416 = vrot.lane.b32.xlu0 %v2324, 112
    %v2417 = vpop.permute.xlu0 %2416
    %2418 = vrot.lane.b32.xlu0 %v2325, 112
    %v2419 = vpop.permute.xlu0 %2418
    %2420 = vrot.lane.b32.xlu0 %v2326, 112
    %v2421 = vpop.permute.xlu0 %2420
    %2422 = vrot.lane.b32.xlu0 %v2327, 112
    %v2423 = vpop.permute.xlu0 %2422
    %v2424 = vsel %vm1487, %v2409, %v2411
    %v2425 = vsel %vm1487, %v2413, %v2415
    %v2426 = vsel %vm1487, %v2417, %v2419
    %v2427 = vsel %vm1487, %v2421, %v2423
    %v2436 = vadd.f32 %v2400, %v2424
    %v2437 = vadd.f32 %v2401, %v2411
    %v2438 = vadd.f32 %v2402, %v2425
    %v2439 = vadd.f32 %v2403, %v2415
    %v2440 = vadd.f32 %v2404, %v2426
    %v2441 = vadd.f32 %v2405, %v2419
    %v2442 = vadd.f32 %v2406, %v2427
    %v2443 = vadd.f32 %v2407, %v2423
    %v2444 = vld [vmem:[%s6] sm:$0xff]
    %v2445 = vld [vmem:[%s6 + $0x8] sm:$0xff]
    %v2446 = vld [vmem:[%s6 + $0x10] sm:$0xff]
    %v2447 = vld [vmem:[%s6 + $0x18] sm:$0xff]
    %v2448 = vld [vmem:[%s6 + $0x20] sm:$0xff]
    %v2449 = vld [vmem:[%s6 + $0x28] sm:$0xff]
    %v2450 = vld [vmem:[%s6 + $0x30] sm:$0xff]
    %v2451 = vld [vmem:[%s6 + $0x38] sm:$0xff]
    %v2452 = vld [vmem:[%s6 + $0x40] sm:$0xff]
    %v2453 = vld [vmem:[%s6 + $0x48] sm:$0xff]
    %v2454 = vld [vmem:[%s6 + $0x50] sm:$0xff]
    %v2455 = vld [vmem:[%s6 + $0x58] sm:$0xff]
    %v2456 = vld [vmem:[%s6 + $0x60] sm:$0xff]
    %v2457 = vld [vmem:[%s6 + $0x68] sm:$0xff]
    %v2458 = vld [vmem:[%s6 + $0x70] sm:$0xff]
    %v2459 = vld [vmem:[%s6 + $0x78] sm:$0xff]
    %v2460 = vld [vmem:[%s6 + $0x80] sm:$0xff]
    %v2461 = vld [vmem:[%s6 + $0x88] sm:$0xff]
    %v2462 = vld [vmem:[%s6 + $0x90] sm:$0x1f]
    %vm2463 = vcmask 171008
    %v2465 = vsel %vm2463, %v2437, 0
    %v2468 = vsel %vm2463, %v2439, 0
    %v2471 = vsel %vm2463, %v2441, 0
    %v2474 = vsel %vm2463, %v2443, 0
    %v2477 = vsel %vm1089, %v2462, 0
    %2479 = vmatprep.subr.mxu0 0.0
    %2480 = vmatpush1.msra.mxu0 %v2444
    %2481 = vmatprep.subr.mxu0 0.0
    %2482 = vmatpush1.msra.mxu0 %v2445
    %2483 = vmatprep.subr.mxu0 0.0
    %2484 = vmatpush1.msra.mxu0 %v2446
    %2485 = vmatprep.subr.mxu0 0.0
    %2486 = vmatpush1.msra.mxu0 %v2447
    %2487 = vmatprep.subr.mxu0 0.0
    %2488 = vmatpush1.msra.mxu0 %v2448
    %2489 = vmatprep.subr.mxu0 0.0
    %2490 = vmatpush1.msra.mxu0 %v2449
    %2491 = vmatprep.subr.mxu0 0.0
    %2492 = vmatpush1.msra.mxu0 %v2450
    %2493 = vmatprep.subr.mxu0 0.0
    %2494 = vmatpush1.msra.mxu0 %v2451
    %2495 = vmatprep.subr.mxu0 0.0
    %2496 = vmatpush1.msra.mxu0 %v2452
    %2497 = vmatprep.subr.mxu0 0.0
    %2498 = vmatpush1.msra.mxu0 %v2453
    %2499 = vmatprep.subr.mxu0 0.0
    %2500 = vmatpush1.msra.mxu0 %v2454
    %2501 = vmatprep.subr.mxu0 0.0
    %2502 = vmatpush1.msra.mxu0 %v2455
    %2503 = vmatprep.subr.mxu0 0.0
    %2504 = vmatpush1.msra.mxu0 %v2456
    %2505 = vmatprep.subr.mxu0 0.0
    %2506 = vmatpush1.msra.mxu0 %v2457
    %2507 = vmatprep.subr.mxu0 0.0
    %2508 = vmatpush1.msra.mxu0 %v2458
    %2509 = vmatprep.subr.mxu0 0.0
    %2510 = vmatpush1.msra.mxu0 %v2459
    %2511 = vmatprep.subr.mxu0 0.0
    %2512 = vmatpush1.msra.mxu0 %v2460
    %2513 = vmatprep.subr.mxu0 0.0
    %2514 = vmatpush1.msra.mxu0 %v2461
    %2515 = vmatprep.subr.mxu0 0.0
    %2516 = vmatpush1.msra.mxu0 %v2477
    %2517 = vmatprep.subr.mxu0 0.0
    %2518 = vmatpush1.msra.mxu0 0.0
    %2519 = vmatprep.subr.mxu0 0.0
    %2520 = vmatpush1.msra.mxu0 0.0
    %2521 = vmatprep.subr.mxu0 0.0
    %2522 = vmatpush1.msra.mxu0 0.0
    %2523 = vmatprep.subr.mxu0 0.0
    %2524 = vmatpush1.msra.mxu0 0.0
    %2525 = vmatprep.subr.mxu0 0.0
    %2526 = vmatpush1.msra.mxu0 0.0
    %2527 = vmatprep.subr.mxu0 0.0
    %2528 = vmatpush1.msra.mxu0 0.0
    %2529 = vmatprep.subr.mxu0 0.0
    %2530 = vmatpush1.msra.mxu0 0.0
    %2531 = vmatprep.subr.mxu0 0.0
    %2532 = vmatpush1.msra.mxu0 0.0
    %2533 = vmatprep.subr.mxu0 0.0
    %2534 = vmatpush1.msra.mxu0 0.0
    %2535 = vmatprep.subr.mxu0 0.0
    %2536 = vmatpush1.msra.mxu0 0.0
    %2537 = vmatprep.subr.mxu0 0.0
    %2538 = vmatpush1.msra.mxu0 0.0
    %2539 = vmatprep.subr.mxu0 0.0
    %2540 = vmatpush1.msra.mxu0 0.0
    %2541 = vmatprep.subr.mxu0 0.0
    %2542 = vmatpush1.msra.mxu0 0.0
    %2543 = vmatprep.mubr.f32.mxu0 %v2465
    %2544 = vmatmul.mubr.f32.gmra.mrb[0].mxu0 %v2436
    %v2545 = vpop.f32.mrb[0].mxu0
    %v2546 = vadd.f32 0.0, %v2545
    %v2547 = vpop.f32.mrb[0].mxu0
    %2548 = vmatprep.mubr.f32.mxu0 %v2468
    %2549 = vmatmul.mubr.f32.gmra.mrb[0].mxu0 %v2438
    %v2550 = vpop.f32.mrb[0].mxu0
    %v2551 = vadd.f32 0.0, %v2550
    %v2552 = vpop.f32.mrb[0].mxu0
    %2553 = vmatprep.mubr.f32.mxu0 %v2471
    %2554 = vmatmul.mubr.f32.gmra.mrb[0].mxu0 %v2440
    %v2555 = vpop.f32.mrb[0].mxu0
    %v2556 = vadd.f32 0.0, %v2555
    %v2557 = vpop.f32.mrb[0].mxu0
    %2558 = vmatprep.mubr.f32.mxu0 %v2474
    %2559 = vmatmul.mubr.f32.gmra.mrb[0].mxu0 %v2442
    %v2560 = vpop.f32.mrb[0].mxu0
    %v2561 = vadd.f32 0.0, %v2560
    %v2562 = vpop.f32.mrb[0].mxu0
    %2563 = vdwg.mxu0
    %2564 = vst.msk [vmem:[#allocation7] sm:$0xff] %vm352, %v2546
    %2565 = vst.msk [vmem:[#allocation7 + $0x8] sm:$0xff] %vm352, %v2551
    %2566 = vst.msk [vmem:[#allocation7 + $0x10] sm:$0xff] %vm352, %v2556
    %2567 = vst.msk [vmem:[#allocation7 + $0x18] sm:$0xff] %vm352, %v2561
    %v2568 = vld [vmem:[#allocation7] sm:$0x1]
    %vm2569 = vcmp.lt.s32.totalorder %v40, 25
    %vm2570 = vmand %vm41, %vm2569
    %2571 = vst.msk [vmem:[#allocation8] sm:$0x1] %vm2570, %v2568
    %v2572 = vld [vmem:[#allocation7 + $0x1] sm:$0x1]
    %v2575 = vunpack.c.l.s4 1966171168
    %v2576 = vunpack.c.0.s8 %v2575
    %v2577 = vlaneseq
    %v2578 = vshrl.u32 %v2577, 7
    %v2579 = vsub.s32 %v2576, %v2578
    %v2580 = vrot.slane %v2572, %v2579
    %v2582 = vunpack.c.l.s4 1966171168
    %v2583 = vunpack.c.0.s8 %v2582
    %v2584 = vlaneseq
    %v2585 = vshrl.u32 %v2584, 7
    %v2586 = vsub.s32 %v2583, %v2585
    %v2587 = vrot.slane %v2580, %v2586
    %2588 = vrot.lane.b32.xlu0 %v2587, 25
    %v2589 = vpop.permute.xlu0 %2588
    %vm2591 = vcmp.ge.s32.totalorder %v40, 25
    %vm2592 = vcmp.lt.s32.totalorder %v40, 50
    %vm2593 = vmand %vm2591, %vm2592
    %2594 = vst.msk [vmem:[#allocation8] sm:$0x1] %vm2593, %v2589
    %v2595 = vld [vmem:[#allocation7 + $0x2] sm:$0x1]
    %v2598 = vunpack.c.l.s4 1966171168
    %v2599 = vunpack.c.0.s8 %v2598
    %v2600 = vlaneseq
    %v2601 = vshrl.u32 %v2600, 7
    %v2602 = vsub.s32 %v2599, %v2601
    %v2603 = vrot.slane %v2595, %v2602
    %v2605 = vunpack.c.l.s4 1966171168
    %v2606 = vunpack.c.0.s8 %v2605
    %v2607 = vlaneseq
    %v2608 = vshrl.u32 %v2607, 7
    %v2609 = vsub.s32 %v2606, %v2608
    %v2610 = vrot.slane %v2603, %v2609
    %2611 = vrot.lane.b32.xlu0 %v2610, 50
    %v2612 = vpop.permute.xlu0 %2611
    %vm2614 = vcmp.ge.s32.totalorder %v40, 50
    %vm2615 = vcmp.lt.s32.totalorder %v40, 75
    %vm2616 = vmand %vm2614, %vm2615
    %2617 = vst.msk [vmem:[#allocation8] sm:$0x1] %vm2616, %v2612
    %v2618 = vld [vmem:[#allocation7 + $0x3] sm:$0x1]
    %v2621 = vunpack.c.l.s4 1966171168
    %v2622 = vunpack.c.0.s8 %v2621
    %v2623 = vlaneseq
    %v2624 = vshrl.u32 %v2623, 7
    %v2625 = vsub.s32 %v2622, %v2624
    %v2626 = vrot.slane %v2618, %v2625
    %v2628 = vunpack.c.l.s4 1966171168
    %v2629 = vunpack.c.0.s8 %v2628
    %v2630 = vlaneseq
    %v2631 = vshrl.u32 %v2630, 7
    %v2632 = vsub.s32 %v2629, %v2631
    %v2633 = vrot.slane %v2626, %v2632
    %2634 = vrot.lane.b32.xlu0 %v2633, 75
    %v2635 = vpop.permute.xlu0 %2634
    %vm2637 = vcmp.ge.s32.totalorder %v40, 75
    %vm2638 = vcmp.lt.s32.totalorder %v40, 100
    %vm2639 = vmand %vm2637, %vm2638
    %2640 = vst.msk [vmem:[#allocation8] sm:$0x1] %vm2639, %v2635
    %v2641 = vld [vmem:[#allocation7 + $0x4] sm:$0x1]
    %v2644 = vunpack.c.l.s4 1966171168
    %v2645 = vunpack.c.0.s8 %v2644
    %v2646 = vlaneseq
    %v2647 = vshrl.u32 %v2646, 7
    %v2648 = vsub.s32 %v2645, %v2647
    %v2649 = vrot.slane %v2641, %v2648
    %v2651 = vunpack.c.l.s4 1966171168
    %v2652 = vunpack.c.0.s8 %v2651
    %v2653 = vlaneseq
    %v2654 = vshrl.u32 %v2653, 7
    %v2655 = vsub.s32 %v2652, %v2654
    %v2656 = vrot.slane %v2649, %v2655
    %2657 = vrot.lane.b32.xlu0 %v2656, 100
    %v2658 = vpop.permute.xlu0 %2657
    %vm2660 = vcmp.ge.s32.totalorder %v40, 100
    %vm2661 = vcmp.lt.s32.totalorder %v40, 125
    %vm2662 = vmand %vm2660, %vm2661
    %2663 = vst.msk [vmem:[#allocation8] sm:$0x1] %vm2662, %v2658
    %v2664 = vld [vmem:[#allocation7 + $0x5] sm:$0x1]
    %v2667 = vunpack.c.l.s4 1966171168
    %v2668 = vunpack.c.0.s8 %v2667
    %v2669 = vlaneseq
    %v2670 = vshrl.u32 %v2669, 7
    %v2671 = vsub.s32 %v2668, %v2670
    %v2672 = vrot.slane %v2664, %v2671
    %v2674 = vunpack.c.l.s4 1966171168
    %v2675 = vunpack.c.0.s8 %v2674
    %v2676 = vlaneseq
    %v2677 = vshrl.u32 %v2676, 7
    %v2678 = vsub.s32 %v2675, %v2677
    %v2679 = vrot.slane %v2672, %v2678
    %2680 = vrot.lane.b32.xlu0 %v2679, 125
    %v2681 = vpop.permute.xlu0 %2680
    %v2682 = vrot.slane %v2681, 7
    %v2683 = vsel %vm73, %v2682, %v2681
    %vm2685 = vcmp.ge.s32.totalorder %v40, 125
    %vm2686 = vcmp.lt.s32.totalorder %v40, 150
    %vm2687 = vmand %vm2685, %vm2686
    %2688 = vst.msk [vmem:[#allocation8] sm:$0x3] %vm2687, %v2683
    %v2689 = vld [vmem:[#allocation7 + $0x6] sm:$0x1]
    %v2692 = vunpack.c.l.s4 1966171168
    %v2693 = vunpack.c.0.s8 %v2692
    %v2694 = vlaneseq
    %v2695 = vshrl.u32 %v2694, 7
    %v2696 = vsub.s32 %v2693, %v2695
    %v2697 = vrot.slane %v2689, %v2696
    %v2699 = vunpack.c.l.s4 1966171168
    %v2700 = vunpack.c.0.s8 %v2699
    %v2701 = vlaneseq
    %v2702 = vshrl.u32 %v2701, 7
    %v2703 = vsub.s32 %v2700, %v2702
    %v2704 = vrot.slane %v2697, %v2703
    %2705 = vrot.lane.b32.xlu0 %v2704, 22
    %v2706 = vpop.permute.xlu0 %2705
    %vm2708 = vcmp.ge.s32.totalorder %v40, 22
    %vm2709 = vcmp.lt.s32.totalorder %v40, 47
    %vm2710 = vmand %vm2708, %vm2709
    %2711 = vst.msk [vmem:[#allocation8 + $0x1] sm:$0x1] %vm2710, %v2706
    %v2712 = vld [vmem:[#allocation7 + $0x7] sm:$0x1]
    %v2715 = vunpack.c.l.s4 1966171168
    %v2716 = vunpack.c.0.s8 %v2715
    %v2717 = vlaneseq
    %v2718 = vshrl.u32 %v2717, 7
    %v2719 = vsub.s32 %v2716, %v2718
    %v2720 = vrot.slane %v2712, %v2719
    %v2722 = vunpack.c.l.s4 1966171168
    %v2723 = vunpack.c.0.s8 %v2722
    %v2724 = vlaneseq
    %v2725 = vshrl.u32 %v2724, 7
    %v2726 = vsub.s32 %v2723, %v2725
    %v2727 = vrot.slane %v2720, %v2726
    %2728 = vrot.lane.b32.xlu0 %v2727, 47
    %v2729 = vpop.permute.xlu0 %2728
    %vm2731 = vcmp.ge.s32.totalorder %v40, 47
    %vm2732 = vcmp.lt.s32.totalorder %v40, 72
    %vm2733 = vmand %vm2731, %vm2732
    %2734 = vst.msk [vmem:[#allocation8 + $0x1] sm:$0x1] %vm2733, %v2729
    %v2735 = vld [vmem:[#allocation7 + $0x8] sm:$0x1]
    %v2738 = vunpack.c.l.s4 1966171168
    %v2739 = vunpack.c.0.s8 %v2738
    %v2740 = vlaneseq
    %v2741 = vshrl.u32 %v2740, 7
    %v2742 = vsub.s32 %v2739, %v2741
    %v2743 = vrot.slane %v2735, %v2742
    %v2745 = vunpack.c.l.s4 1966171168
    %v2746 = vunpack.c.0.s8 %v2745
    %v2747 = vlaneseq
    %v2748 = vshrl.u32 %v2747, 7
    %v2749 = vsub.s32 %v2746, %v2748
    %v2750 = vrot.slane %v2743, %v2749
    %2751 = vrot.lane.b32.xlu0 %v2750, 72
    %v2752 = vpop.permute.xlu0 %2751
    %vm2754 = vcmp.ge.s32.totalorder %v40, 72
    %vm2755 = vcmp.lt.s32.totalorder %v40, 97
    %vm2756 = vmand %vm2754, %vm2755
    %2757 = vst.msk [vmem:[#allocation8 + $0x1] sm:$0x1] %vm2756, %v2752
    %v2758 = vld [vmem:[#allocation7 + $0x9] sm:$0x1]
    %v2761 = vunpack.c.l.s4 1966171168
    %v2762 = vunpack.c.0.s8 %v2761
    %v2763 = vlaneseq
    %v2764 = vshrl.u32 %v2763, 7
    %v2765 = vsub.s32 %v2762, %v2764
    %v2766 = vrot.slane %v2758, %v2765
    %v2768 = vunpack.c.l.s4 1966171168
    %v2769 = vunpack.c.0.s8 %v2768
    %v2770 = vlaneseq
    %v2771 = vshrl.u32 %v2770, 7
    %v2772 = vsub.s32 %v2769, %v2771
    %v2773 = vrot.slane %v2766, %v2772
    %2774 = vrot.lane.b32.xlu0 %v2773, 97
    %v2775 = vpop.permute.xlu0 %2774
    %vm2777 = vcmp.ge.s32.totalorder %v40, 97
    %vm2778 = vcmp.lt.s32.totalorder %v40, 122
    %vm2779 = vmand %vm2777, %vm2778
    %2780 = vst.msk [vmem:[#allocation8 + $0x1] sm:$0x1] %vm2779, %v2775
    %v2781 = vld [vmem:[#allocation7 + $0xa] sm:$0x1]
    %v2784 = vunpack.c.l.s4 1966171168
    %v2785 = vunpack.c.0.s8 %v2784
    %v2786 = vlaneseq
    %v2787 = vshrl.u32 %v2786, 7
    %v2788 = vsub.s32 %v2785, %v2787
    %v2789 = vrot.slane %v2781, %v2788
    %v2791 = vunpack.c.l.s4 1966171168
    %v2792 = vunpack.c.0.s8 %v2791
    %v2793 = vlaneseq
    %v2794 = vshrl.u32 %v2793, 7
    %v2795 = vsub.s32 %v2792, %v2794
    %v2796 = vrot.slane %v2789, %v2795
    %2797 = vrot.lane.b32.xlu0 %v2796, 122
    %v2798 = vpop.permute.xlu0 %2797
    %v2799 = vrot.slane %v2798, 7
    %vm2800 = vcmask 998400
    %v2801 = vsel %vm2800, %v2799, %v2798
    %vm2803 = vcmp.ge.s32.totalorder %v40, 122
    %vm2804 = vcmp.lt.s32.totalorder %v40, 147
    %vm2805 = vmand %vm2803, %vm2804
    %2806 = vst.msk [vmem:[#allocation8 + $0x1] sm:$0x3] %vm2805, %v2801
    %v2807 = vld [vmem:[#allocation7 + $0xb] sm:$0x1]
    %v2810 = vunpack.c.l.s4 1966171168
    %v2811 = vunpack.c.0.s8 %v2810
    %v2812 = vlaneseq
    %v2813 = vshrl.u32 %v2812, 7
    %v2814 = vsub.s32 %v2811, %v2813
    %v2815 = vrot.slane %v2807, %v2814
    %v2817 = vunpack.c.l.s4 1966171168
    %v2818 = vunpack.c.0.s8 %v2817
    %v2819 = vlaneseq
    %v2820 = vshrl.u32 %v2819, 7
    %v2821 = vsub.s32 %v2818, %v2820
    %v2822 = vrot.slane %v2815, %v2821
    %2823 = vrot.lane.b32.xlu0 %v2822, 19
    %v2824 = vpop.permute.xlu0 %2823
    %vm2826 = vcmp.ge.s32.totalorder %v40, 19
    %vm2827 = vcmp.lt.s32.totalorder %v40, 44
    %vm2828 = vmand %vm2826, %vm2827
    %2829 = vst.msk [vmem:[#allocation8 + $0x2] sm:$0x1] %vm2828, %v2824
    %v2830 = vld [vmem:[#allocation7 + $0xc] sm:$0x1]
    %v2833 = vunpack.c.l.s4 1966171168
    %v2834 = vunpack.c.0.s8 %v2833
    %v2835 = vlaneseq
    %v2836 = vshrl.u32 %v2835, 7
    %v2837 = vsub.s32 %v2834, %v2836
    %v2838 = vrot.slane %v2830, %v2837
    %v2840 = vunpack.c.l.s4 1966171168
    %v2841 = vunpack.c.0.s8 %v2840
    %v2842 = vlaneseq
    %v2843 = vshrl.u32 %v2842, 7
    %v2844 = vsub.s32 %v2841, %v2843
    %v2845 = vrot.slane %v2838, %v2844
    %2846 = vrot.lane.b32.xlu0 %v2845, 44
    %v2847 = vpop.permute.xlu0 %2846
    %vm2849 = vcmp.ge.s32.totalorder %v40, 44
    %vm2850 = vcmp.lt.s32.totalorder %v40, 69
    %vm2851 = vmand %vm2849, %vm2850
    %2852 = vst.msk [vmem:[#allocation8 + $0x2] sm:$0x1] %vm2851, %v2847
    %v2853 = vld [vmem:[#allocation7 + $0xd] sm:$0x1]
    %v2856 = vunpack.c.l.s4 1966171168
    %v2857 = vunpack.c.0.s8 %v2856
    %v2858 = vlaneseq
    %v2859 = vshrl.u32 %v2858, 7
    %v2860 = vsub.s32 %v2857, %v2859
    %v2861 = vrot.slane %v2853, %v2860
    %v2863 = vunpack.c.l.s4 1966171168
    %v2864 = vunpack.c.0.s8 %v2863
    %v2865 = vlaneseq
    %v2866 = vshrl.u32 %v2865, 7
    %v2867 = vsub.s32 %v2864, %v2866
    %v2868 = vrot.slane %v2861, %v2867
    %2869 = vrot.lane.b32.xlu0 %v2868, 69
    %v2870 = vpop.permute.xlu0 %2869
    %vm2872 = vcmp.ge.s32.totalorder %v40, 69
    %vm2873 = vcmp.lt.s32.totalorder %v40, 94
    %vm2874 = vmand %vm2872, %vm2873
    %2875 = vst.msk [vmem:[#allocation8 + $0x2] sm:$0x1] %vm2874, %v2870
    %v2876 = vld [vmem:[#allocation7 + $0xe] sm:$0x1]
    %v2879 = vunpack.c.l.s4 1966171168
    %v2880 = vunpack.c.0.s8 %v2879
    %v2881 = vlaneseq
    %v2882 = vshrl.u32 %v2881, 7
    %v2883 = vsub.s32 %v2880, %v2882
    %v2884 = vrot.slane %v2876, %v2883
    %v2886 = vunpack.c.l.s4 1966171168
    %v2887 = vunpack.c.0.s8 %v2886
    %v2888 = vlaneseq
    %v2889 = vshrl.u32 %v2888, 7
    %v2890 = vsub.s32 %v2887, %v2889
    %v2891 = vrot.slane %v2884, %v2890
    %2892 = vrot.lane.b32.xlu0 %v2891, 94
    %v2893 = vpop.permute.xlu0 %2892
    %vm2895 = vcmp.ge.s32.totalorder %v40, 94
    %vm2896 = vcmp.lt.s32.totalorder %v40, 119
    %vm2897 = vmand %vm2895, %vm2896
    %2898 = vst.msk [vmem:[#allocation8 + $0x2] sm:$0x1] %vm2897, %v2893
    %v2899 = vld [vmem:[#allocation7 + $0xf] sm:$0x1]
    %v2902 = vunpack.c.l.s4 1966171168
    %v2903 = vunpack.c.0.s8 %v2902
    %v2904 = vlaneseq
    %v2905 = vshrl.u32 %v2904, 7
    %v2906 = vsub.s32 %v2903, %v2905
    %v2907 = vrot.slane %v2899, %v2906
    %v2909 = vunpack.c.l.s4 1966171168
    %v2910 = vunpack.c.0.s8 %v2909
    %v2911 = vlaneseq
    %v2912 = vshrl.u32 %v2911, 7
    %v2913 = vsub.s32 %v2910, %v2912
    %v2914 = vrot.slane %v2907, %v2913
    %2915 = vrot.lane.b32.xlu0 %v2914, 119
    %v2916 = vpop.permute.xlu0 %2915
    %v2917 = vrot.slane %v2916, 7
    %vm2918 = vcmask 973824
    %v2919 = vsel %vm2918, %v2917, %v2916
    %vm2921 = vcmp.ge.s32.totalorder %v40, 119
    %vm2922 = vcmp.lt.s32.totalorder %v40, 144
    %vm2923 = vmand %vm2921, %vm2922
    %2924 = vst.msk [vmem:[#allocation8 + $0x2] sm:$0x3] %vm2923, %v2919
    %v2925 = vld [vmem:[#allocation7 + $0x10] sm:$0x1]
    %v2928 = vunpack.c.l.s4 1966171168
    %v2929 = vunpack.c.0.s8 %v2928
    %v2930 = vlaneseq
    %v2931 = vshrl.u32 %v2930, 7
    %v2932 = vsub.s32 %v2929, %v2931
    %v2933 = vrot.slane %v2925, %v2932
    %v2935 = vunpack.c.l.s4 1966171168
    %v2936 = vunpack.c.0.s8 %v2935
    %v2937 = vlaneseq
    %v2938 = vshrl.u32 %v2937, 7
    %v2939 = vsub.s32 %v2936, %v2938
    %v2940 = vrot.slane %v2933, %v2939
    %2941 = vrot.lane.b32.xlu0 %v2940, 16
    %v2942 = vpop.permute.xlu0 %2941
    %vm2944 = vcmp.ge.s32.totalorder %v40, 16
    %vm2945 = vcmp.lt.s32.totalorder %v40, 41
    %vm2946 = vmand %vm2944, %vm2945
    %2947 = vst.msk [vmem:[#allocation8 + $0x3] sm:$0x1] %vm2946, %v2942
    %v2948 = vld [vmem:[#allocation7 + $0x11] sm:$0x1]
    %v2951 = vunpack.c.l.s4 1966171168
    %v2952 = vunpack.c.0.s8 %v2951
    %v2953 = vlaneseq
    %v2954 = vshrl.u32 %v2953, 7
    %v2955 = vsub.s32 %v2952, %v2954
    %v2956 = vrot.slane %v2948, %v2955
    %v2958 = vunpack.c.l.s4 1966171168
    %v2959 = vunpack.c.0.s8 %v2958
    %v2960 = vlaneseq
    %v2961 = vshrl.u32 %v2960, 7
    %v2962 = vsub.s32 %v2959, %v2961
    %v2963 = vrot.slane %v2956, %v2962
    %2964 = vrot.lane.b32.xlu0 %v2963, 41
    %v2965 = vpop.permute.xlu0 %2964
    %vm2967 = vcmp.ge.s32.totalorder %v40, 41
    %vm2968 = vcmp.lt.s32.totalorder %v40, 66
    %vm2969 = vmand %vm2967, %vm2968
    %2970 = vst.msk [vmem:[#allocation8 + $0x3] sm:$0x1] %vm2969, %v2965
    %v2971 = vld [vmem:[#allocation7 + $0x12] sm:$0x1]
    %v2974 = vunpack.c.l.s4 1966171168
    %v2975 = vunpack.c.0.s8 %v2974
    %v2976 = vlaneseq
    %v2977 = vshrl.u32 %v2976, 7
    %v2978 = vsub.s32 %v2975, %v2977
    %v2979 = vrot.slane %v2971, %v2978
    %v2981 = vunpack.c.l.s4 1966171168
    %v2982 = vunpack.c.0.s8 %v2981
    %v2983 = vlaneseq
    %v2984 = vshrl.u32 %v2983, 7
    %v2985 = vsub.s32 %v2982, %v2984
    %v2986 = vrot.slane %v2979, %v2985
    %2987 = vrot.lane.b32.xlu0 %v2986, 66
    %v2988 = vpop.permute.xlu0 %2987
    %vm2990 = vcmp.ge.s32.totalorder %v40, 66
    %vm2991 = vcmp.lt.s32.totalorder %v40, 91
    %vm2992 = vmand %vm2990, %vm2991
    %2993 = vst.msk [vmem:[#allocation8 + $0x3] sm:$0x1] %vm2992, %v2988
    %v2994 = vld [vmem:[#allocation7 + $0x13] sm:$0x1]
    %v2997 = vunpack.c.l.s4 1966171168
    %v2998 = vunpack.c.0.s8 %v2997
    %v2999 = vlaneseq
    %v3000 = vshrl.u32 %v2999, 7
    %v3001 = vsub.s32 %v2998, %v3000
    %v3002 = vrot.slane %v2994, %v3001
    %v3004 = vunpack.c.l.s4 1966171168
    %v3005 = vunpack.c.0.s8 %v3004
    %v3006 = vlaneseq
    %v3007 = vshrl.u32 %v3006, 7
    %v3008 = vsub.s32 %v3005, %v3007
    %v3009 = vrot.slane %v3002, %v3008
    %3010 = vrot.lane.b32.xlu0 %v3009, 91
    %v3011 = vpop.permute.xlu0 %3010
    %vm3013 = vcmp.ge.s32.totalorder %v40, 91
    %vm3014 = vcmp.lt.s32.totalorder %v40, 116
    %vm3015 = vmand %vm3013, %vm3014
    %3016 = vst.msk [vmem:[#allocation8 + $0x3] sm:$0x1] %vm3015, %v3011
    %v3017 = vld [vmem:[#allocation7 + $0x14] sm:$0x1]
    %v3020 = vunpack.c.l.s4 1966171168
    %v3021 = vunpack.c.0.s8 %v3020
    %v3022 = vlaneseq
    %v3023 = vshrl.u32 %v3022, 7
    %v3024 = vsub.s32 %v3021, %v3023
    %v3025 = vrot.slane %v3017, %v3024
    %v3027 = vunpack.c.l.s4 1966171168
    %v3028 = vunpack.c.0.s8 %v3027
    %v3029 = vlaneseq
    %v3030 = vshrl.u32 %v3029, 7
    %v3031 = vsub.s32 %v3028, %v3030
    %v3032 = vrot.slane %v3025, %v3031
    %3033 = vrot.lane.b32.xlu0 %v3032, 116
    %v3034 = vpop.permute.xlu0 %3033
    %v3035 = vrot.slane %v3034, 7
    %vm3036 = vcmask 949248
    %v3037 = vsel %vm3036, %v3035, %v3034
    %vm3039 = vcmp.ge.s32.totalorder %v40, 116
    %vm3040 = vcmp.lt.s32.totalorder %v40, 141
    %vm3041 = vmand %vm3039, %vm3040
    %3042 = vst.msk [vmem:[#allocation8 + $0x3] sm:$0x3] %vm3041, %v3037
    %v3043 = vld [vmem:[#allocation7 + $0x15] sm:$0x1]
    %v3046 = vunpack.c.l.s4 1966171168
    %v3047 = vunpack.c.0.s8 %v3046
    %v3048 = vlaneseq
    %v3049 = vshrl.u32 %v3048, 7
    %v3050 = vsub.s32 %v3047, %v3049
    %v3051 = vrot.slane %v3043, %v3050
    %v3053 = vunpack.c.l.s4 1966171168
    %v3054 = vunpack.c.0.s8 %v3053
    %v3055 = vlaneseq
    %v3056 = vshrl.u32 %v3055, 7
    %v3057 = vsub.s32 %v3054, %v3056
    %v3058 = vrot.slane %v3051, %v3057
    %3059 = vrot.lane.b32.xlu0 %v3058, 13
    %v3060 = vpop.permute.xlu0 %3059
    %vm3062 = vcmp.ge.s32.totalorder %v40, 13
    %vm3063 = vcmp.lt.s32.totalorder %v40, 38
    %vm3064 = vmand %vm3062, %vm3063
    %3065 = vst.msk [vmem:[#allocation8 + $0x4] sm:$0x1] %vm3064, %v3060
    %v3066 = vld [vmem:[#allocation7 + $0x16] sm:$0x1]
    %v3069 = vunpack.c.l.s4 1966171168
    %v3070 = vunpack.c.0.s8 %v3069
    %v3071 = vlaneseq
    %v3072 = vshrl.u32 %v3071, 7
    %v3073 = vsub.s32 %v3070, %v3072
    %v3074 = vrot.slane %v3066, %v3073
    %v3076 = vunpack.c.l.s4 1966171168
    %v3077 = vunpack.c.0.s8 %v3076
    %v3078 = vlaneseq
    %v3079 = vshrl.u32 %v3078, 7
    %v3080 = vsub.s32 %v3077, %v3079
    %v3081 = vrot.slane %v3074, %v3080
    %3082 = vrot.lane.b32.xlu0 %v3081, 38
    %v3083 = vpop.permute.xlu0 %3082
    %vm3085 = vcmp.ge.s32.totalorder %v40, 38
    %vm3086 = vcmp.lt.s32.totalorder %v40, 63
    %vm3087 = vmand %vm3085, %vm3086
    %3088 = vst.msk [vmem:[#allocation8 + $0x4] sm:$0x1] %vm3087, %v3083
    %v3089 = vld [vmem:[#allocation7 + $0x17] sm:$0x1]
    %v3092 = vunpack.c.l.s4 1966171168
    %v3093 = vunpack.c.0.s8 %v3092
    %v3094 = vlaneseq
    %v3095 = vshrl.u32 %v3094, 7
    %v3096 = vsub.s32 %v3093, %v3095
    %v3097 = vrot.slane %v3089, %v3096
    %v3099 = vunpack.c.l.s4 1966171168
    %v3100 = vunpack.c.0.s8 %v3099
    %v3101 = vlaneseq
    %v3102 = vshrl.u32 %v3101, 7
    %v3103 = vsub.s32 %v3100, %v3102
    %v3104 = vrot.slane %v3097, %v3103
    %3105 = vrot.lane.b32.xlu0 %v3104, 63
    %v3106 = vpop.permute.xlu0 %3105
    %vm3108 = vcmp.ge.s32.totalorder %v40, 63
    %vm3109 = vcmp.lt.s32.totalorder %v40, 88
    %vm3110 = vmand %vm3108, %vm3109
    %3111 = vst.msk [vmem:[#allocation8 + $0x4] sm:$0x1] %vm3110, %v3106
    %v3112 = vld [vmem:[#allocation7 + $0x18] sm:$0x1]
    %v3115 = vunpack.c.l.s4 1966171168
    %v3116 = vunpack.c.0.s8 %v3115
    %v3117 = vlaneseq
    %v3118 = vshrl.u32 %v3117, 7
    %v3119 = vsub.s32 %v3116, %v3118
    %v3120 = vrot.slane %v3112, %v3119
    %v3122 = vunpack.c.l.s4 1966171168
    %v3123 = vunpack.c.0.s8 %v3122
    %v3124 = vlaneseq
    %v3125 = vshrl.u32 %v3124, 7
    %v3126 = vsub.s32 %v3123, %v3125
    %v3127 = vrot.slane %v3120, %v3126
    %3128 = vrot.lane.b32.xlu0 %v3127, 88
    %v3129 = vpop.permute.xlu0 %3128
    %vm3131 = vcmp.ge.s32.totalorder %v40, 88
    %vm3132 = vcmp.lt.s32.totalorder %v40, 113
    %vm3133 = vmand %vm3131, %vm3132
    %3134 = vst.msk [vmem:[#allocation8 + $0x4] sm:$0x1] %vm3133, %v3129
    %v3135 = vld [vmem:[#allocation7 + $0x19] sm:$0x1]
    %v3138 = vunpack.c.l.s4 1966171168
    %v3139 = vunpack.c.0.s8 %v3138
    %v3140 = vlaneseq
    %v3141 = vshrl.u32 %v3140, 7
    %v3142 = vsub.s32 %v3139, %v3141
    %v3143 = vrot.slane %v3135, %v3142
    %v3145 = vunpack.c.l.s4 1966171168
    %v3146 = vunpack.c.0.s8 %v3145
    %v3147 = vlaneseq
    %v3148 = vshrl.u32 %v3147, 7
    %v3149 = vsub.s32 %v3146, %v3148
    %v3150 = vrot.slane %v3143, %v3149
    %3151 = vrot.lane.b32.xlu0 %v3150, 113
    %v3152 = vpop.permute.xlu0 %3151
    %v3153 = vrot.slane %v3152, 7
    %v3154 = vsel %vm1460, %v3153, %v3152
    %vm3156 = vcmp.ge.s32.totalorder %v40, 113
    %vm3157 = vcmp.lt.s32.totalorder %v40, 138
    %vm3158 = vmand %vm3156, %vm3157
    %3159 = vst.msk [vmem:[#allocation8 + $0x4] sm:$0x3] %vm3158, %v3154
    %v3160 = vld [vmem:[#allocation7 + $0x1a] sm:$0x1]
    %v3163 = vunpack.c.l.s4 1966171168
    %v3164 = vunpack.c.0.s8 %v3163
    %v3165 = vlaneseq
    %v3166 = vshrl.u32 %v3165, 7
    %v3167 = vsub.s32 %v3164, %v3166
    %v3168 = vrot.slane %v3160, %v3167
    %v3170 = vunpack.c.l.s4 1966171168
    %v3171 = vunpack.c.0.s8 %v3170
    %v3172 = vlaneseq
    %v3173 = vshrl.u32 %v3172, 7
    %v3174 = vsub.s32 %v3171, %v3173
    %v3175 = vrot.slane %v3168, %v3174
    %3176 = vrot.lane.b32.xlu0 %v3175, 10
    %v3177 = vpop.permute.xlu0 %3176
    %vm3179 = vcmp.ge.s32.totalorder %v40, 10
    %vm3180 = vcmp.lt.s32.totalorder %v40, 35
    %vm3181 = vmand %vm3179, %vm3180
    %3182 = vst.msk [vmem:[#allocation8 + $0x5] sm:$0x1] %vm3181, %v3177
    %v3183 = vld [vmem:[#allocation7 + $0x1b] sm:$0x1]
    %v3186 = vunpack.c.l.s4 1966171168
    %v3187 = vunpack.c.0.s8 %v3186
    %v3188 = vlaneseq
    %v3189 = vshrl.u32 %v3188, 7
    %v3190 = vsub.s32 %v3187, %v3189
    %v3191 = vrot.slane %v3183, %v3190
    %v3193 = vunpack.c.l.s4 1966171168
    %v3194 = vunpack.c.0.s8 %v3193
    %v3195 = vlaneseq
    %v3196 = vshrl.u32 %v3195, 7
    %v3197 = vsub.s32 %v3194, %v3196
    %v3198 = vrot.slane %v3191, %v3197
    %3199 = vrot.lane.b32.xlu0 %v3198, 35
    %v3200 = vpop.permute.xlu0 %3199
    %vm3202 = vcmp.ge.s32.totalorder %v40, 35
    %vm3203 = vcmp.lt.s32.totalorder %v40, 60
    %vm3204 = vmand %vm3202, %vm3203
    %3205 = vst.msk [vmem:[#allocation8 + $0x5] sm:$0x1] %vm3204, %v3200
    %v3206 = vld [vmem:[#allocation7 + $0x1c] sm:$0x1]
    %v3209 = vunpack.c.l.s4 1966171168
    %v3210 = vunpack.c.0.s8 %v3209
    %v3211 = vlaneseq
    %v3212 = vshrl.u32 %v3211, 7
    %v3213 = vsub.s32 %v3210, %v3212
    %v3214 = vrot.slane %v3206, %v3213
    %v3216 = vunpack.c.l.s4 1966171168
    %v3217 = vunpack.c.0.s8 %v3216
    %v3218 = vlaneseq
    %v3219 = vshrl.u32 %v3218, 7
    %v3220 = vsub.s32 %v3217, %v3219
    %v3221 = vrot.slane %v3214, %v3220
    %3222 = vrot.lane.b32.xlu0 %v3221, 60
    %v3223 = vpop.permute.xlu0 %3222
    %vm3225 = vcmp.ge.s32.totalorder %v40, 60
    %vm3226 = vcmp.lt.s32.totalorder %v40, 85
    %vm3227 = vmand %vm3225, %vm3226
    %3228 = vst.msk [vmem:[#allocation8 + $0x5] sm:$0x1] %vm3227, %v3223
    %v3229 = vld [vmem:[#allocation7 + $0x1d] sm:$0x1]
    %v3232 = vunpack.c.l.s4 1966171168
    %v3233 = vunpack.c.0.s8 %v3232
    %v3234 = vlaneseq
    %v3235 = vshrl.u32 %v3234, 7
    %v3236 = vsub.s32 %v3233, %v3235
    %v3237 = vrot.slane %v3229, %v3236
    %v3239 = vunpack.c.l.s4 1966171168
    %v3240 = vunpack.c.0.s8 %v3239
    %v3241 = vlaneseq
    %v3242 = vshrl.u32 %v3241, 7
    %v3243 = vsub.s32 %v3240, %v3242
    %v3244 = vrot.slane %v3237, %v3243
    %3245 = vrot.lane.b32.xlu0 %v3244, 85
    %v3246 = vpop.permute.xlu0 %3245
    %vm3248 = vcmp.ge.s32.totalorder %v40, 85
    %vm3249 = vcmp.lt.s32.totalorder %v40, 110
    %vm3250 = vmand %vm3248, %vm3249
    %3251 = vst.msk [vmem:[#allocation8 + $0x5] sm:$0x1] %vm3250, %v3246
    %v3252 = vld [vmem:[#allocation7 + $0x1e] sm:$0x1]
    %v3255 = vunpack.c.l.s4 1966171168
    %v3256 = vunpack.c.0.s8 %v3255
    %v3257 = vlaneseq
    %v3258 = vshrl.u32 %v3257, 7
    %v3259 = vsub.s32 %v3256, %v3258
    %v3260 = vrot.slane %v3252, %v3259
    %v3262 = vunpack.c.l.s4 1966171168
    %v3263 = vunpack.c.0.s8 %v3262
    %v3264 = vlaneseq
    %v3265 = vshrl.u32 %v3264, 7
    %v3266 = vsub.s32 %v3263, %v3265
    %v3267 = vrot.slane %v3260, %v3266
    %3268 = vrot.lane.b32.xlu0 %v3267, 110
    %v3269 = vpop.permute.xlu0 %3268
    %v3270 = vrot.slane %v3269, 7
    %v3271 = vsel %vm1541, %v3270, %v3269
    %vm3273 = vcmp.ge.s32.totalorder %v40, 110
    %vm3274 = vcmp.lt.s32.totalorder %v40, 135
    %vm3275 = vmand %vm3273, %vm3274
    %3276 = vst.msk [vmem:[#allocation8 + $0x5] sm:$0x3] %vm3275, %v3271
    %v3277 = vld [vmem:[#allocation7 + $0x1f] sm:$0x1]
    %v3280 = vunpack.c.l.s4 1966171168
    %v3281 = vunpack.c.0.s8 %v3280
    %v3282 = vlaneseq
    %v3283 = vshrl.u32 %v3282, 7
    %v3284 = vsub.s32 %v3281, %v3283
    %v3285 = vrot.slane %v3277, %v3284
    %v3287 = vunpack.c.l.s4 1966171168
    %v3288 = vunpack.c.0.s8 %v3287
    %v3289 = vlaneseq
    %v3290 = vshrl.u32 %v3289, 7
    %v3291 = vsub.s32 %v3288, %v3290
    %v3292 = vrot.slane %v3285, %v3291
    %3293 = vrot.lane.b32.xlu0 %v3292, 7
    %v3294 = vpop.permute.xlu0 %3293
    %vm3296 = vcmp.ge.s32.totalorder %v40, 7
    %vm3297 = vcmp.lt.s32.totalorder %v40, 32
    %vm3298 = vmand %vm3296, %vm3297
    %3299 = vst.msk [vmem:[#allocation8 + $0x6] sm:$0x1] %vm3298, %v3294
    %v3300 = vld [vmem:[#allocation8] sm:$0x7f]
    %v3301 = vld [vmem:[%s7] sm:$0xff]
    %v3302 = vld [vmem:[%s7 + $0x8] sm:$0xff]
    %v3303 = vld [vmem:[%s7 + $0x10] sm:$0xff]
    %v3304 = vld [vmem:[%s7 + $0x18] sm:$0xff]
    %v3305 = vld [vmem:[%s7 + $0x20] sm:$0xff]
    %v3306 = vld [vmem:[%s7 + $0x28] sm:$0xff]
    %v3307 = vld [vmem:[%s7 + $0x30] sm:$0xff]
    %v3308 = vld [vmem:[%s7 + $0x38] sm:$0xff]
    %v3309 = vld [vmem:[%s7 + $0x40] sm:$0xff]
    %v3310 = vld [vmem:[%s7 + $0x48] sm:$0xff]
    %v3311 = vld [vmem:[%s7 + $0x50] sm:$0xff]
    %v3312 = vld [vmem:[%s7 + $0x58] sm:$0xff]
    %v3313 = vld [vmem:[%s7 + $0x60] sm:$0xff]
    %v3314 = vld [vmem:[%s7 + $0x68] sm:$0xff]
    %v3315 = vld [vmem:[%s7 + $0x70] sm:$0xff]
    %v3316 = vld [vmem:[%s7 + $0x78] sm:$0xff]
    %v3317 = vld [vmem:[%s7 + $0x80] sm:$0xff]
    %v3318 = vld [vmem:[%s7 + $0x88] sm:$0xff]
    %v3319 = vld [vmem:[%s7 + $0x90] sm:$0xff]
    %v3320 = vld [vmem:[%s7 + $0x98] sm:$0xff]
    %v3321 = vld [vmem:[%s7 + $0xa0] sm:$0xff]
    %v3322 = vld [vmem:[%s7 + $0xa8] sm:$0xff]
    %v3323 = vld [vmem:[%s7 + $0xb0] sm:$0xff]
    %v3324 = vld [vmem:[%s7 + $0xb8] sm:$0xff]
    %v3325 = vld [vmem:[%s7 + $0xc0] sm:$0xff]
    %v3326 = vld [vmem:[%s7 + $0xc8] sm:$0xff]
    %v3327 = vld [vmem:[%s7 + $0xd0] sm:$0xff]
    %v3328 = vld [vmem:[%s7 + $0xd8] sm:$0xff]
    %v3329 = vld [vmem:[%s7 + $0xe0] sm:$0xff]
    %v3330 = vld [vmem:[%s7 + $0xe8] sm:$0xff]
    %v3331 = vld [vmem:[%s7 + $0xf0] sm:$0xff]
    %v3332 = vld [vmem:[%s7 + $0xf8] sm:$0xff]
    %v3333 = vld [vmem:[%s7 + $0x100] sm:$0xff]
    %v3334 = vld [vmem:[%s7 + $0x108] sm:$0xff]
    %v3335 = vld [vmem:[%s7 + $0x110] sm:$0xff]
    %v3336 = vld [vmem:[%s7 + $0x118] sm:$0xff]
    %v3337 = vld [vmem:[%s7 + $0x120] sm:$0xff]
    %v3338 = vld [vmem:[%s7 + $0x128] sm:$0xff]
    %v3339 = vld [vmem:[%s7 + $0x130] sm:$0xff]
    %v3340 = vld [vmem:[%s7 + $0x138] sm:$0xff]
    %v3341 = vld [vmem:[%s7 + $0x140] sm:$0xff]
    %v3342 = vld [vmem:[%s7 + $0x148] sm:$0xff]
    %v3343 = vld [vmem:[%s7 + $0x150] sm:$0xff]
    %v3344 = vld [vmem:[%s7 + $0x158] sm:$0xff]
    %v3345 = vld [vmem:[%s7 + $0x160] sm:$0xff]
    %v3346 = vld [vmem:[%s7 + $0x168] sm:$0xff]
    %v3347 = vld [vmem:[%s7 + $0x170] sm:$0xff]
    %v3348 = vld [vmem:[%s7 + $0x178] sm:$0xff]
    %v3349 = vld [vmem:[%s7 + $0x180] sm:$0xff]
    %v3350 = vld [vmem:[%s7 + $0x188] sm:$0xff]
    %v3351 = vld [vmem:[%s7 + $0x190] sm:$0xff]
    %v3352 = vld [vmem:[%s7 + $0x198] sm:$0xff]
    %v3353 = vld [vmem:[%s7 + $0x1a0] sm:$0xff]
    %v3354 = vld [vmem:[%s7 + $0x1a8] sm:$0xff]
    %v3355 = vld [vmem:[%s7 + $0x1b0] sm:$0xff]
    %v3356 = vld [vmem:[%s7 + $0x1b8] sm:$0xff]
    %v3357 = vld [vmem:[%s7 + $0x1c0] sm:$0xff]
    %v3358 = vld [vmem:[%s7 + $0x1c8] sm:$0xff]
    %v3359 = vld [vmem:[%s7 + $0x1d0] sm:$0xff]
    %v3360 = vld [vmem:[%s7 + $0x1d8] sm:$0xff]
    %v3361 = vld [vmem:[%s7 + $0x1e0] sm:$0xff]
    %v3362 = vld [vmem:[%s7 + $0x1e8] sm:$0xff]
    %v3363 = vld [vmem:[%s7 + $0x1f0] sm:$0xff]
    %v3364 = vld [vmem:[%s7 + $0x1f8] sm:$0xff]
    %v3365 = vld [vmem:[%s7 + $0x200] sm:$0xff]
    %v3366 = vld [vmem:[%s7 + $0x208] sm:$0xff]
    %v3367 = vld [vmem:[%s7 + $0x210] sm:$0xff]
    %v3368 = vld [vmem:[%s7 + $0x218] sm:$0xff]
    %v3369 = vld [vmem:[%s7 + $0x220] sm:$0xff]
    %v3370 = vld [vmem:[%s7 + $0x228] sm:$0xff]
    %v3371 = vld [vmem:[%s7 + $0x230] sm:$0xff]
    %v3372 = vld [vmem:[%s7 + $0x238] sm:$0xff]
    %v3373 = vld [vmem:[%s7 + $0x240] sm:$0xff]
    %v3374 = vld [vmem:[%s7 + $0x248] sm:$0xff]
    %v3375 = vld [vmem:[%s7 + $0x250] sm:$0xff]
    %v3376 = vld [vmem:[%s7 + $0x258] sm:$0xff]
    %v3377 = vld [vmem:[%s7 + $0x260] sm:$0xff]
    %v3378 = vld [vmem:[%s7 + $0x268] sm:$0xff]
    %v3379 = vld [vmem:[%s7 + $0x270] sm:$0xff]
    %v3380 = vld [vmem:[%s7 + $0x278] sm:$0xff]
    %v3381 = vld [vmem:[%s7 + $0x280] sm:$0xff]
    %v3382 = vld [vmem:[%s7 + $0x288] sm:$0xff]
    %v3383 = vld [vmem:[%s7 + $0x290] sm:$0xff]
    %v3384 = vld [vmem:[%s7 + $0x298] sm:$0xff]
    %v3385 = vld [vmem:[%s7 + $0x2a0] sm:$0xff]
    %v3386 = vld [vmem:[%s7 + $0x2a8] sm:$0xff]
    %v3387 = vld [vmem:[%s7 + $0x2b0] sm:$0xff]
    %v3388 = vld [vmem:[%s7 + $0x2b8] sm:$0xff]
    %v3389 = vld [vmem:[%s7 + $0x2c0] sm:$0xff]
    %v3390 = vld [vmem:[%s7 + $0x2c8] sm:$0xff]
    %v3391 = vld [vmem:[%s7 + $0x2d0] sm:$0xff]
    %v3392 = vld [vmem:[%s7 + $0x2d8] sm:$0xff]
    %v3393 = vld [vmem:[%s7 + $0x2e0] sm:$0xff]
    %v3394 = vld [vmem:[%s7 + $0x2e8] sm:$0xff]
    %v3395 = vld [vmem:[%s7 + $0x2f0] sm:$0xff]
    %v3396 = vld [vmem:[%s7 + $0x2f8] sm:$0xff]
    %v3397 = vld [vmem:[%s7 + $0x300] sm:$0xff]
    %v3398 = vld [vmem:[%s7 + $0x308] sm:$0xff]
    %v3399 = vld [vmem:[%s7 + $0x310] sm:$0xff]
    %v3400 = vld [vmem:[%s7 + $0x318] sm:$0xff]
    %v3401 = vld [vmem:[%s8] sm:$0x1]
    %v3403 = vlaneseq
    %v3404 = vshrl.u32 %v3403, 7
    %v3405 = vsub.s32 0, %v3404
    %v3406 = vrot.slane %v3300, %v3405
    %v3407 = vlaneseq
    %v3408 = vshrl.u32 %v3407, 7
    %v3409 = vsub.s32 1, %v3408
    %v3410 = vrot.slane %v3300, %v3409
    %v3411 = vlaneseq
    %v3412 = vshrl.u32 %v3411, 7
    %v3413 = vsub.s32 2, %v3412
    %v3414 = vrot.slane %v3300, %v3413
    %v3415 = vlaneseq
    %v3416 = vshrl.u32 %v3415, 7
    %v3417 = vsub.s32 3, %v3416
    %v3418 = vrot.slane %v3300, %v3417
    %v3419 = vlaneseq
    %v3420 = vshrl.u32 %v3419, 7
    %v3421 = vsub.s32 4, %v3420
    %v3422 = vrot.slane %v3300, %v3421
    %v3423 = vlaneseq
    %v3424 = vshrl.u32 %v3423, 7
    %v3425 = vsub.s32 5, %v3424
    %v3426 = vrot.slane %v3300, %v3425
    %v3427 = vlaneseq
    %v3428 = vshrl.u32 %v3427, 7
    %v3429 = vsub.s32 6, %v3428
    %v3430 = vrot.slane %v3300, %v3429
    %vm3437 = vcmask 261120
    %v3438 = vsel %vm3437, %v3430, 0
    %3440 = vmatprep.subr.mxu0 0.0
    %3441 = vmatpush1.msra.mxu0 %v3301
    %3442 = vmatprep.subr.mxu0 0.0
    %3443 = vmatpush1.msra.mxu0 %v3302
    %3444 = vmatprep.subr.mxu0 0.0
    %3445 = vmatpush1.msra.mxu0 %v3303
    %3446 = vmatprep.subr.mxu0 0.0
    %3447 = vmatpush1.msra.mxu0 %v3304
    %3448 = vmatprep.subr.mxu0 0.0
    %3449 = vmatpush1.msra.mxu0 %v3305
    %3450 = vmatprep.subr.mxu0 0.0
    %3451 = vmatpush1.msra.mxu0 %v3306
    %3452 = vmatprep.subr.mxu0 0.0
    %3453 = vmatpush1.msra.mxu0 %v3307
    %3454 = vmatprep.subr.mxu0 0.0
    %3455 = vmatpush1.msra.mxu0 %v3308
    %3456 = vmatprep.subr.mxu0 0.0
    %3457 = vmatpush1.msra.mxu0 %v3309
    %3458 = vmatprep.subr.mxu0 0.0
    %3459 = vmatpush1.msra.mxu0 %v3310
    %3460 = vmatprep.subr.mxu0 0.0
    %3461 = vmatpush1.msra.mxu0 %v3311
    %3462 = vmatprep.subr.mxu0 0.0
    %3463 = vmatpush1.msra.mxu0 %v3312
    %3464 = vmatprep.subr.mxu0 0.0
    %3465 = vmatpush1.msra.mxu0 %v3313
    %3466 = vmatprep.subr.mxu0 0.0
    %3467 = vmatpush1.msra.mxu0 %v3314
    %3468 = vmatprep.subr.mxu0 0.0
    %3469 = vmatpush1.msra.mxu0 %v3315
    %3470 = vmatprep.subr.mxu0 0.0
    %3471 = vmatpush1.msra.mxu0 %v3316
    %3472 = vmatprep.subr.mxu0 0.0
    %3473 = vmatpush1.msra.mxu0 %v3317
    %3474 = vmatprep.subr.mxu0 0.0
    %3475 = vmatpush1.msra.mxu0 %v3318
    %3476 = vmatprep.subr.mxu0 0.0
    %3477 = vmatpush1.msra.mxu0 %v3319
    %3478 = vmatprep.subr.mxu0 0.0
    %3479 = vmatpush1.msra.mxu0 %v3320
    %3480 = vmatprep.subr.mxu0 0.0
    %3481 = vmatpush1.msra.mxu0 %v3321
    %3482 = vmatprep.subr.mxu0 0.0
    %3483 = vmatpush1.msra.mxu0 %v3322
    %3484 = vmatprep.subr.mxu0 0.0
    %3485 = vmatpush1.msra.mxu0 %v3323
    %3486 = vmatprep.subr.mxu0 0.0
    %3487 = vmatpush1.msra.mxu0 %v3324
    %3488 = vmatprep.subr.mxu0 0.0
    %3489 = vmatpush1.msra.mxu0 %v3325
    %3490 = vmatprep.subr.mxu0 0.0
    %3491 = vmatpush1.msra.mxu0 %v3326
    %3492 = vmatprep.subr.mxu0 0.0
    %3493 = vmatpush1.msra.mxu0 %v3327
    %3494 = vmatprep.subr.mxu0 0.0
    %3495 = vmatpush1.msra.mxu0 %v3328
    %3496 = vmatprep.subr.mxu0 0.0
    %3497 = vmatpush1.msra.mxu0 %v3329
    %3498 = vmatprep.subr.mxu0 0.0
    %3499 = vmatpush1.msra.mxu0 %v3330
    %3500 = vmatprep.subr.mxu0 0.0
    %3501 = vmatpush1.msra.mxu0 %v3331
    %3502 = vmatprep.subr.mxu0 0.0
    %3503 = vmatpush1.msra.mxu0 %v3332
    %3504 = vmatprep.mubr.f32.mxu0 %v3410
    %3505 = vmatmul.mubr.f32.gmra.mrb[0].mxu0 %v3406
    %v3506 = vpop.f32.mrb[0].mxu0
    %v3507 = vadd.f32 %v3401, %v3506
    %v3508 = vpop.f32.mrb[0].mxu0
    %3509 = vdwg.mxu0
    %3510 = vmatprep.subr.mxu0 0.0
    %3511 = vmatpush1.msra.mxu0 %v3333
    %3512 = vmatprep.subr.mxu0 0.0
    %3513 = vmatpush1.msra.mxu0 %v3334
    %3514 = vmatprep.subr.mxu0 0.0
    %3515 = vmatpush1.msra.mxu0 %v3335
    %3516 = vmatprep.subr.mxu0 0.0
    %3517 = vmatpush1.msra.mxu0 %v3336
    %3518 = vmatprep.subr.mxu0 0.0
    %3519 = vmatpush1.msra.mxu0 %v3337
    %3520 = vmatprep.subr.mxu0 0.0
    %3521 = vmatpush1.msra.mxu0 %v3338
    %3522 = vmatprep.subr.mxu0 0.0
    %3523 = vmatpush1.msra.mxu0 %v3339
    %3524 = vmatprep.subr.mxu0 0.0
    %3525 = vmatpush1.msra.mxu0 %v3340
    %3526 = vmatprep.subr.mxu0 0.0
    %3527 = vmatpush1.msra.mxu0 %v3341
    %3528 = vmatprep.subr.mxu0 0.0
    %3529 = vmatpush1.msra.mxu0 %v3342
    %3530 = vmatprep.subr.mxu0 0.0
    %3531 = vmatpush1.msra.mxu0 %v3343
    %3532 = vmatprep.subr.mxu0 0.0
    %3533 = vmatpush1.msra.mxu0 %v3344
    %3534 = vmatprep.subr.mxu0 0.0
    %3535 = vmatpush1.msra.mxu0 %v3345
    %3536 = vmatprep.subr.mxu0 0.0
    %3537 = vmatpush1.msra.mxu0 %v3346
    %3538 = vmatprep.subr.mxu0 0.0
    %3539 = vmatpush1.msra.mxu0 %v3347
    %3540 = vmatprep.subr.mxu0 0.0
    %3541 = vmatpush1.msra.mxu0 %v3348
    %3542 = vmatprep.subr.mxu0 0.0
    %3543 = vmatpush1.msra.mxu0 %v3349
    %3544 = vmatprep.subr.mxu0 0.0
    %3545 = vmatpush1.msra.mxu0 %v3350
    %3546 = vmatprep.subr.mxu0 0.0
    %3547 = vmatpush1.msra.mxu0 %v3351
    %3548 = vmatprep.subr.mxu0 0.0
    %3549 = vmatpush1.msra.mxu0 %v3352
    %3550 = vmatprep.subr.mxu0 0.0
    %3551 = vmatpush1.msra.mxu0 %v3353
    %3552 = vmatprep.subr.mxu0 0.0
    %3553 = vmatpush1.msra.mxu0 %v3354
    %3554 = vmatprep.subr.mxu0 0.0
    %3555 = vmatpush1.msra.mxu0 %v3355
    %3556 = vmatprep.subr.mxu0 0.0
    %3557 = vmatpush1.msra.mxu0 %v3356
    %3558 = vmatprep.subr.mxu0 0.0
    %3559 = vmatpush1.msra.mxu0 %v3357
    %3560 = vmatprep.subr.mxu0 0.0
    %3561 = vmatpush1.msra.mxu0 %v3358
    %3562 = vmatprep.subr.mxu0 0.0
    %3563 = vmatpush1.msra.mxu0 %v3359
    %3564 = vmatprep.subr.mxu0 0.0
    %3565 = vmatpush1.msra.mxu0 %v3360
    %3566 = vmatprep.subr.mxu0 0.0
    %3567 = vmatpush1.msra.mxu0 %v3361
    %3568 = vmatprep.subr.mxu0 0.0
    %3569 = vmatpush1.msra.mxu0 %v3362
    %3570 = vmatprep.subr.mxu0 0.0
    %3571 = vmatpush1.msra.mxu0 %v3363
    %3572 = vmatprep.subr.mxu0 0.0
    %3573 = vmatpush1.msra.mxu0 %v3364
    %3574 = vmatprep.mubr.f32.mxu0 %v3418
    %3575 = vmatmul.mubr.f32.gmra.mrb[0].mxu0 %v3414
    %v3576 = vpop.f32.mrb[0].mxu0
    %v3577 = vadd.f32 %v3507, %v3576
    %v3578 = vpop.f32.mrb[0].mxu0
    %3579 = vdwg.mxu0
    %3580 = vmatprep.subr.mxu0 0.0
    %3581 = vmatpush1.msra.mxu0 %v3365
    %3582 = vmatprep.subr.mxu0 0.0
    %3583 = vmatpush1.msra.mxu0 %v3366
    %3584 = vmatprep.subr.mxu0 0.0
    %3585 = vmatpush1.msra.mxu0 %v3367
    %3586 = vmatprep.subr.mxu0 0.0
    %3587 = vmatpush1.msra.mxu0 %v3368
    %3588 = vmatprep.subr.mxu0 0.0
    %3589 = vmatpush1.msra.mxu0 %v3369
    %3590 = vmatprep.subr.mxu0 0.0
    %3591 = vmatpush1.msra.mxu0 %v3370
    %3592 = vmatprep.subr.mxu0 0.0
    %3593 = vmatpush1.msra.mxu0 %v3371
    %3594 = vmatprep.subr.mxu0 0.0
    %3595 = vmatpush1.msra.mxu0 %v3372
    %3596 = vmatprep.subr.mxu0 0.0
    %3597 = vmatpush1.msra.mxu0 %v3373
    %3598 = vmatprep.subr.mxu0 0.0
    %3599 = vmatpush1.msra.mxu0 %v3374
    %3600 = vmatprep.subr.mxu0 0.0
    %3601 = vmatpush1.msra.mxu0 %v3375
    %3602 = vmatprep.subr.mxu0 0.0
    %3603 = vmatpush1.msra.mxu0 %v3376
    %3604 = vmatprep.subr.mxu0 0.0
    %3605 = vmatpush1.msra.mxu0 %v3377
    %3606 = vmatprep.subr.mxu0 0.0
    %3607 = vmatpush1.msra.mxu0 %v3378
    %3608 = vmatprep.subr.mxu0 0.0
    %3609 = vmatpush1.msra.mxu0 %v3379
    %3610 = vmatprep.subr.mxu0 0.0
    %3611 = vmatpush1.msra.mxu0 %v3380
    %3612 = vmatprep.subr.mxu0 0.0
    %3613 = vmatpush1.msra.mxu0 %v3381
    %3614 = vmatprep.subr.mxu0 0.0
    %3615 = vmatpush1.msra.mxu0 %v3382
    %3616 = vmatprep.subr.mxu0 0.0
    %3617 = vmatpush1.msra.mxu0 %v3383
    %3618 = vmatprep.subr.mxu0 0.0
    %3619 = vmatpush1.msra.mxu0 %v3384
    %3620 = vmatprep.subr.mxu0 0.0
    %3621 = vmatpush1.msra.mxu0 %v3385
    %3622 = vmatprep.subr.mxu0 0.0
    %3623 = vmatpush1.msra.mxu0 %v3386
    %3624 = vmatprep.subr.mxu0 0.0
    %3625 = vmatpush1.msra.mxu0 %v3387
    %3626 = vmatprep.subr.mxu0 0.0
    %3627 = vmatpush1.msra.mxu0 %v3388
    %3628 = vmatprep.subr.mxu0 0.0
    %3629 = vmatpush1.msra.mxu0 %v3389
    %3630 = vmatprep.subr.mxu0 0.0
    %3631 = vmatpush1.msra.mxu0 %v3390
    %3632 = vmatprep.subr.mxu0 0.0
    %3633 = vmatpush1.msra.mxu0 %v3391
    %3634 = vmatprep.subr.mxu0 0.0
    %3635 = vmatpush1.msra.mxu0 %v3392
    %3636 = vmatprep.subr.mxu0 0.0
    %3637 = vmatpush1.msra.mxu0 %v3393
    %3638 = vmatprep.subr.mxu0 0.0
    %3639 = vmatpush1.msra.mxu0 %v3394
    %3640 = vmatprep.subr.mxu0 0.0
    %3641 = vmatpush1.msra.mxu0 %v3395
    %3642 = vmatprep.subr.mxu0 0.0
    %3643 = vmatpush1.msra.mxu0 %v3396
    %3644 = vmatprep.mubr.f32.mxu0 %v3426
    %3645 = vmatmul.mubr.f32.gmra.mrb[0].mxu0 %v3422
    %v3646 = vpop.f32.mrb[0].mxu0
    %v3647 = vadd.f32 %v3577, %v3646
    %v3648 = vpop.f32.mrb[0].mxu0
    %3649 = vdwg.mxu0
    %3650 = vmatprep.subr.mxu0 0.0
    %3651 = vmatpush1.msra.mxu0 %v3397
    %3652 = vmatprep.subr.mxu0 0.0
    %3653 = vmatpush1.msra.mxu0 %v3398
    %3654 = vmatprep.subr.mxu0 0.0
    %3655 = vmatpush1.msra.mxu0 %v3399
    %3656 = vmatprep.subr.mxu0 0.0
    %3657 = vmatpush1.msra.mxu0 %v3400
    %3658 = vmatprep.subr.mxu0 0.0
    %3659 = vmatpush1.msra.mxu0 0.0
    %3660 = vmatprep.subr.mxu0 0.0
    %3661 = vmatpush1.msra.mxu0 0.0
    %3662 = vmatprep.subr.mxu0 0.0
    %3663 = vmatpush1.msra.mxu0 0.0
    %3664 = vmatprep.subr.mxu0 0.0
    %3665 = vmatpush1.msra.mxu0 0.0
    %3666 = vmatprep.subr.mxu0 0.0
    %3667 = vmatpush1.msra.mxu0 0.0
    %3668 = vmatprep.subr.mxu0 0.0
    %3669 = vmatpush1.msra.mxu0 0.0
    %3670 = vmatprep.subr.mxu0 0.0
    %3671 = vmatpush1.msra.mxu0 0.0
    %3672 = vmatprep.subr.mxu0 0.0
    %3673 = vmatpush1.msra.mxu0 0.0
    %3674 = vmatprep.subr.mxu0 0.0
    %3675 = vmatpush1.msra.mxu0 0.0
    %3676 = vmatprep.subr.mxu0 0.0
    %3677 = vmatpush1.msra.mxu0 0.0
    %3678 = vmatprep.subr.mxu0 0.0
    %3679 = vmatpush1.msra.mxu0 0.0
    %3680 = vmatprep.subr.mxu0 0.0
    %3681 = vmatpush1.msra.mxu0 0.0
    %3682 = vmatprep.subr.mxu0 0.0
    %3683 = vmatpush1.msra.mxu0 0.0
    %3684 = vmatprep.subr.mxu0 0.0
    %3685 = vmatpush1.msra.mxu0 0.0
    %3686 = vmatprep.subr.mxu0 0.0
    %3687 = vmatpush1.msra.mxu0 0.0
    %3688 = vmatprep.subr.mxu0 0.0
    %3689 = vmatpush1.msra.mxu0 0.0
    %3690 = vmatprep.subr.mxu0 0.0
    %3691 = vmatpush1.msra.mxu0 0.0
    %3692 = vmatprep.subr.mxu0 0.0
    %3693 = vmatpush1.msra.mxu0 0.0
    %3694 = vmatprep.subr.mxu0 0.0
    %3695 = vmatpush1.msra.mxu0 0.0
    %3696 = vmatprep.subr.mxu0 0.0
    %3697 = vmatpush1.msra.mxu0 0.0
    %3698 = vmatprep.subr.mxu0 0.0
    %3699 = vmatpush1.msra.mxu0 0.0
    %3700 = vmatprep.subr.mxu0 0.0
    %3701 = vmatpush1.msra.mxu0 0.0
    %3702 = vmatprep.subr.mxu0 0.0
    %3703 = vmatpush1.msra.mxu0 0.0
    %3704 = vmatprep.subr.mxu0 0.0
    %3705 = vmatpush1.msra.mxu0 0.0
    %3706 = vmatprep.subr.mxu0 0.0
    %3707 = vmatpush1.msra.mxu0 0.0
    %3708 = vmatprep.subr.mxu0 0.0
    %3709 = vmatpush1.msra.mxu0 0.0
    %3710 = vmatprep.subr.mxu0 0.0
    %3711 = vmatpush1.msra.mxu0 0.0
    %3712 = vmatprep.subr.mxu0 0.0
    %3713 = vmatpush1.msra.mxu0 0.0
    %3714 = vmatprep.mubr.f32.mxu0 0.0
    %3715 = vmatmul.mubr.f32.gmra.mrb[0].mxu0 %v3438
    %v3716 = vpop.f32.mrb[0].mxu0
    %v3717 = vadd.f32 %v3647, %v3716
    %v3718 = vpop.f32.mrb[0].mxu0
    %3719 = vdwg.mxu0
    %v3720 = vmax.f32 %v3717, 0.0
    %v3721 = vld [vmem:[%s9] sm:$0xff]
    %v3722 = vld [vmem:[%s9 + $0x8] sm:$0xff]
    %v3723 = vld [vmem:[%s9 + $0x10] sm:$0xff]
    %v3724 = vld [vmem:[%s9 + $0x18] sm:$0xff]
    %v3725 = vld [vmem:[%s9 + $0x20] sm:$0xff]
    %v3726 = vld [vmem:[%s9 + $0x28] sm:$0xff]
    %v3727 = vld [vmem:[%s9 + $0x30] sm:$0xff]
    %v3728 = vld [vmem:[%s9 + $0x38] sm:$0xff]
    %v3729 = vld [vmem:[%s10] sm:$0x1]
    %v3731 = vsel %vm194, %v3720, 0
    %3733 = vmatprep.subr.mxu0 0.0
    %3734 = vmatpush1.msra.mxu0 %v3721
    %3735 = vmatprep.subr.mxu0 0.0
    %3736 = vmatpush1.msra.mxu0 %v3722
    %3737 = vmatprep.subr.mxu0 0.0
    %3738 = vmatpush1.msra.mxu0 %v3723
    %3739 = vmatprep.subr.mxu0 0.0
    %3740 = vmatpush1.msra.mxu0 %v3724
    %3741 = vmatprep.subr.mxu0 0.0
    %3742 = vmatpush1.msra.mxu0 %v3725
    %3743 = vmatprep.subr.mxu0 0.0
    %3744 = vmatpush1.msra.mxu0 %v3726
    %3745 = vmatprep.subr.mxu0 0.0
    %3746 = vmatpush1.msra.mxu0 %v3727
    %3747 = vmatprep.subr.mxu0 0.0
    %3748 = vmatpush1.msra.mxu0 %v3728
    %3749 = vmatprep.subr.mxu0 0.0
    %3750 = vmatpush1.msra.mxu0 0.0
    %3751 = vmatprep.subr.mxu0 0.0
    %3752 = vmatpush1.msra.mxu0 0.0
    %3753 = vmatprep.subr.mxu0 0.0
    %3754 = vmatpush1.msra.mxu0 0.0
    %3755 = vmatprep.subr.mxu0 0.0
    %3756 = vmatpush1.msra.mxu0 0.0
    %3757 = vmatprep.subr.mxu0 0.0
    %3758 = vmatpush1.msra.mxu0 0.0
    %3759 = vmatprep.subr.mxu0 0.0
    %3760 = vmatpush1.msra.mxu0 0.0
    %3761 = vmatprep.subr.mxu0 0.0
    %3762 = vmatpush1.msra.mxu0 0.0
    %3763 = vmatprep.subr.mxu0 0.0
    %3764 = vmatpush1.msra.mxu0 0.0
    %3765 = vmatprep.subr.mxu0 0.0
    %3766 = vmatpush1.msra.mxu0 0.0
    %3767 = vmatprep.subr.mxu0 0.0
    %3768 = vmatpush1.msra.mxu0 0.0
    %3769 = vmatprep.subr.mxu0 0.0
    %3770 = vmatpush1.msra.mxu0 0.0
    %3771 = vmatprep.subr.mxu0 0.0
    %3772 = vmatpush1.msra.mxu0 0.0
    %3773 = vmatprep.subr.mxu0 0.0
    %3774 = vmatpush1.msra.mxu0 0.0
    %3775 = vmatprep.subr.mxu0 0.0
    %3776 = vmatpush1.msra.mxu0 0.0
    %3777 = vmatprep.subr.mxu0 0.0
    %3778 = vmatpush1.msra.mxu0 0.0
    %3779 = vmatprep.subr.mxu0 0.0
    %3780 = vmatpush1.msra.mxu0 0.0
    %3781 = vmatprep.subr.mxu0 0.0
    %3782 = vmatpush1.msra.mxu0 0.0
    %3783 = vmatprep.subr.mxu0 0.0
    %3784 = vmatpush1.msra.mxu0 0.0
    %3785 = vmatprep.subr.mxu0 0.0
    %3786 = vmatpush1.msra.mxu0 0.0
    %3787 = vmatprep.subr.mxu0 0.0
    %3788 = vmatpush1.msra.mxu0 0.0
    %3789 = vmatprep.subr.mxu0 0.0
    %3790 = vmatpush1.msra.mxu0 0.0
    %3791 = vmatprep.subr.mxu0 0.0
    %3792 = vmatpush1.msra.mxu0 0.0
    %3793 = vmatprep.subr.mxu0 0.0
    %3794 = vmatpush1.msra.mxu0 0.0
    %3795 = vmatprep.subr.mxu0 0.0
    %3796 = vmatpush1.msra.mxu0 0.0
    %3797 = vmatprep.mubr.f32.mxu0 0.0
    %3798 = vmatmul.mubr.f32.gmra.mrb[0].mxu0 %v3731
    %v3799 = vpop.f32.mrb[0].mxu0
    %v3800 = vadd.f32 %v3729, %v3799
    %v3801 = vpop.f32.mrb[0].mxu0
    %3802 = vdwg.mxu0
    %vm3803 = vcmask 73728
    %3804 = vst.msk [vmem:[#allocation9] sm:$0x1] %vm3803, %v3800
    %s3805 = scalar_lea.vmem %s0, 8
    %v3806 = vld [vmem:[%s3805] sm:$0x7f]
    %3807 = vst.msk [vmem:[#allocation2] ss:$8 sm:$0xf] %vm43, %v3806
    %3808 = vst.msk [vmem:[#allocation2] ss:$8 sm:$0x70] %vm43, %v3806
    %v3809 = vld [vmem:[%s3805] sm:$0x7f]
    %3811 = vrot.lane.b32.xlu0 %v3809, 127
    %v3812 = vpop.permute.xlu0 %3811
    %v3813 = vrot.slane %v3812, 1
    %v3814 = vsel %vm51, %v3812, %v3813
    %3816 = vst.msk [vmem:[%s54] ss:$8 sm:$0xf] %vm43, %v3814
    %3817 = vst.msk [vmem:[%s54] ss:$8 sm:$0x70] %vm43, %v3814
    %v3818 = vld [vmem:[%s3805] sm:$0x7f]
    %3820 = vrot.lane.b32.xlu0 %v3818, 126
    %v3821 = vpop.permute.xlu0 %3820
    %v3822 = vrot.slane %v3821, 1
    %v3823 = vsel %vm62, %v3821, %v3822
    %3825 = vst.msk [vmem:[%s65] ss:$8 sm:$0xf] %vm43, %v3823
    %3826 = vst.msk [vmem:[%s65] ss:$8 sm:$0x70] %vm43, %v3823
    %v3827 = vld [vmem:[%s3805] sm:$0x7f]
    %3829 = vrot.lane.b32.xlu0 %v3827, 125
    %v3830 = vpop.permute.xlu0 %3829
    %v3831 = vrot.slane %v3830, 1
    %v3832 = vsel %vm73, %v3830, %v3831
    %3834 = vst.msk [vmem:[%s76] ss:$8 sm:$0xf] %vm43, %v3832
    %3835 = vst.msk [vmem:[%s76] ss:$8 sm:$0x70] %vm43, %v3832
    %v3836 = vld [vmem:[%s3805] sm:$0x7f]
    %3838 = vrot.lane.b32.xlu0 %v3836, 124
    %v3839 = vpop.permute.xlu0 %3838
    %v3840 = vrot.slane %v3839, 1
    %v3841 = vsel %vm84, %v3839, %v3840
    %3843 = vst.msk [vmem:[%s87] ss:$8 sm:$0xf] %vm43, %v3841
    %3844 = vst.msk [vmem:[%s87] ss:$8 sm:$0x70] %vm43, %v3841
    %v3845 = vld [vmem:[%s3805] sm:$0x7f]
    %3847 = vrot.lane.b32.xlu0 %v3845, 98
    %v3848 = vpop.permute.xlu0 %3847
    %v3849 = vrot.slane %v3848, 1
    %v3850 = vsel %vm95, %v3848, %v3849
    %3852 = vst.msk [vmem:[%s98] ss:$8 sm:$0xf] %vm43, %v3850
    %3853 = vst.msk [vmem:[%s98] ss:$8 sm:$0x70] %vm43, %v3850
    %v3854 = vld [vmem:[%s3805] sm:$0x7f]
    %3856 = vrot.lane.b32.xlu0 %v3854, 97
    %v3857 = vpop.permute.xlu0 %3856
    %v3858 = vrot.slane %v3857, 1
    %v3859 = vsel %vm106, %v3857, %v3858
    %3861 = vst.msk [vmem:[%s109] ss:$8 sm:$0xf] %vm43, %v3859
    %3862 = vst.msk [vmem:[%s109] ss:$8 sm:$0x70] %vm43, %v3859
    %v3863 = vld [vmem:[%s3805] sm:$0x7f]
    %3865 = vrot.lane.b32.xlu0 %v3863, 96
    %v3866 = vpop.permute.xlu0 %3865
    %v3867 = vrot.slane %v3866, 1
    %v3868 = vsel %vm117, %v3866, %v3867
    %3870 = vst.msk [vmem:[%s120] ss:$8 sm:$0xf] %vm43, %v3868
    %3871 = vst.msk [vmem:[%s120] ss:$8 sm:$0x70] %vm43, %v3868
    %v3872 = vld [vmem:[%s3805] sm:$0x7f]
    %3874 = vrot.lane.b32.xlu0 %v3872, 95
    %v3875 = vpop.permute.xlu0 %3874
    %v3876 = vrot.slane %v3875, 1
    %v3877 = vsel %vm128, %v3875, %v3876
    %3879 = vst.msk [vmem:[%s131] ss:$8 sm:$0xf] %vm43, %v3877
    %3880 = vst.msk [vmem:[%s131] ss:$8 sm:$0x70] %vm43, %v3877
    %v3881 = vld [vmem:[%s3805] sm:$0x7f]
    %3883 = vrot.lane.b32.xlu0 %v3881, 94
    %v3884 = vpop.permute.xlu0 %3883
    %v3885 = vrot.slane %v3884, 1
    %v3886 = vsel %vm139, %v3884, %v3885
    %3888 = vst.msk [vmem:[%s142] ss:$8 sm:$0xf] %vm43, %v3886
    %3889 = vst.msk [vmem:[%s142] ss:$8 sm:$0x70] %vm43, %v3886
    %v3890 = vld [vmem:[%s3805] sm:$0x7f]
    %3892 = vrot.lane.b32.xlu0 %v3890, 68
    %v3893 = vpop.permute.xlu0 %3892
    %v3894 = vrot.slane %v3893, 1
    %v3895 = vsel %vm150, %v3893, %v3894
    %3897 = vst.msk [vmem:[%s153] ss:$8 sm:$0xf] %vm43, %v3895
    %3898 = vst.msk [vmem:[%s153] ss:$8 sm:$0x70] %vm43, %v3895
    %v3899 = vld [vmem:[%s3805] sm:$0x7f]
    %3901 = vrot.lane.b32.xlu0 %v3899, 67
    %v3902 = vpop.permute.xlu0 %3901
    %v3903 = vrot.slane %v3902, 1
    %v3904 = vsel %vm161, %v3902, %v3903
    %3906 = vst.msk [vmem:[%s164] ss:$8 sm:$0xf] %vm43, %v3904
    %3907 = vst.msk [vmem:[%s164] ss:$8 sm:$0x70] %vm43, %v3904
    %v3908 = vld [vmem:[%s3805] sm:$0x7f]
    %3910 = vrot.lane.b32.xlu0 %v3908, 66
    %v3911 = vpop.permute.xlu0 %3910
    %v3912 = vrot.slane %v3911, 1
    %v3913 = vsel %vm172, %v3911, %v3912
    %3915 = vst.msk [vmem:[%s175] ss:$8 sm:$0xf] %vm43, %v3913
    %3916 = vst.msk [vmem:[%s175] ss:$8 sm:$0x70] %vm43, %v3913
    %v3917 = vld [vmem:[%s3805] sm:$0x7f]
    %3919 = vrot.lane.b32.xlu0 %v3917, 65
    %v3920 = vpop.permute.xlu0 %3919
    %v3921 = vrot.slane %v3920, 1
    %v3922 = vsel %vm183, %v3920, %v3921
    %3924 = vst.msk [vmem:[%s186] ss:$8 sm:$0xf] %vm43, %v3922
    %3925 = vst.msk [vmem:[%s186] ss:$8 sm:$0x70] %vm43, %v3922
    %v3926 = vld [vmem:[%s3805] sm:$0x7f]
    %3928 = vrot.lane.b32.xlu0 %v3926, 64
    %v3929 = vpop.permute.xlu0 %3928
    %v3930 = vrot.slane %v3929, 1
    %v3931 = vsel %vm194, %v3929, %v3930
    %3933 = vst.msk [vmem:[%s197] ss:$8 sm:$0xf] %vm43, %v3931
    %3934 = vst.msk [vmem:[%s197] ss:$8 sm:$0x70] %vm43, %v3931
    %v3935 = vld [vmem:[%s3805] sm:$0x7f]
    %3937 = vrot.lane.b32.xlu0 %v3935, 38
    %v3938 = vpop.permute.xlu0 %3937
    %v3939 = vrot.slane %v3938, 1
    %v3940 = vsel %vm205, %v3938, %v3939
    %3942 = vst.msk [vmem:[%s208] ss:$8 sm:$0xf] %vm43, %v3940
    %3943 = vst.msk [vmem:[%s208] ss:$8 sm:$0x70] %vm43, %v3940
    %v3944 = vld [vmem:[%s3805] sm:$0x7f]
    %3946 = vrot.lane.b32.xlu0 %v3944, 37
    %v3947 = vpop.permute.xlu0 %3946
    %v3948 = vrot.slane %v3947, 1
    %v3949 = vsel %vm216, %v3947, %v3948
    %3951 = vst.msk [vmem:[%s219] ss:$8 sm:$0xf] %vm43, %v3949
    %3952 = vst.msk [vmem:[%s219] ss:$8 sm:$0x70] %vm43, %v3949
    %v3953 = vld [vmem:[%s3805] sm:$0x7f]
    %3955 = vrot.lane.b32.xlu0 %v3953, 36
    %v3956 = vpop.permute.xlu0 %3955
    %v3957 = vrot.slane %v3956, 1
    %v3958 = vsel %vm227, %v3956, %v3957
    %3960 = vst.msk [vmem:[%s230] ss:$8 sm:$0xf] %vm43, %v3958
    %3961 = vst.msk [vmem:[%s230] ss:$8 sm:$0x70] %vm43, %v3958
    %v3962 = vld [vmem:[%s3805] sm:$0x7f]
    %3964 = vrot.lane.b32.xlu0 %v3962, 35
    %v3965 = vpop.permute.xlu0 %3964
    %v3966 = vrot.slane %v3965, 1
    %v3967 = vsel %vm238, %v3965, %v3966
    %3969 = vst.msk [vmem:[%s241] ss:$8 sm:$0xf] %vm43, %v3967
    %3970 = vst.msk [vmem:[%s241] ss:$8 sm:$0x70] %vm43, %v3967
    %v3971 = vld [vmem:[%s3805] sm:$0x7f]
    %3973 = vrot.lane.b32.xlu0 %v3971, 34
    %v3974 = vpop.permute.xlu0 %3973
    %v3975 = vrot.slane %v3974, 1
    %v3976 = vsel %vm249, %v3974, %v3975
    %3978 = vst.msk [vmem:[%s252] ss:$8 sm:$0xf] %vm43, %v3976
    %3979 = vst.msk [vmem:[%s252] ss:$8 sm:$0x70] %vm43, %v3976
    %v3980 = vld [vmem:[%s3805] sm:$0xff]
    %3982 = vrot.lane.b32.xlu0 %v3980, 8
    %v3983 = vpop.permute.xlu0 %3982
    %v3984 = vrot.slane %v3983, 1
    %v3985 = vsel %vm260, %v3983, %v3984
    %3987 = vst.msk [vmem:[%s263] ss:$8 sm:$0xf] %vm43, %v3985
    %3988 = vst.msk [vmem:[%s263] ss:$8 sm:$0x70] %vm43, %v3985
    %v3989 = vld [vmem:[%s3805] sm:$0xff]
    %3991 = vrot.lane.b32.xlu0 %v3989, 7
    %v3992 = vpop.permute.xlu0 %3991
    %v3993 = vrot.slane %v3992, 1
    %v3994 = vsel %vm271, %v3992, %v3993
    %3996 = vst.msk [vmem:[%s274] ss:$8 sm:$0xf] %vm43, %v3994
    %3997 = vst.msk [vmem:[%s274] ss:$8 sm:$0x70] %vm43, %v3994
    %v3998 = vld [vmem:[%s3805] sm:$0xff]
    %4000 = vrot.lane.b32.xlu0 %v3998, 6
    %v4001 = vpop.permute.xlu0 %4000
    %v4002 = vrot.slane %v4001, 1
    %v4003 = vsel %vm282, %v4001, %v4002
    %4005 = vst.msk [vmem:[%s285] ss:$8 sm:$0xf] %vm43, %v4003
    %4006 = vst.msk [vmem:[%s285] ss:$8 sm:$0x70] %vm43, %v4003
    %v4007 = vld [vmem:[%s3805] sm:$0xff]
    %4009 = vrot.lane.b32.xlu0 %v4007, 5
    %v4010 = vpop.permute.xlu0 %4009
    %v4011 = vrot.slane %v4010, 1
    %v4012 = vsel %vm293, %v4010, %v4011
    %4014 = vst.msk [vmem:[%s296] ss:$8 sm:$0xf] %vm43, %v4012
    %4015 = vst.msk [vmem:[%s296] ss:$8 sm:$0x70] %vm43, %v4012
    %v4016 = vld [vmem:[%s3805] sm:$0xff]
    %4018 = vrot.lane.b32.xlu0 %v4016, 4
    %v4019 = vpop.permute.xlu0 %4018
    %v4020 = vrot.slane %v4019, 1
    %v4021 = vsel %vm304, %v4019, %v4020
    %4023 = vst.msk [vmem:[%s307] ss:$8 sm:$0xf] %vm43, %v4021
    %4024 = vst.msk [vmem:[%s307] ss:$8 sm:$0x70] %vm43, %v4021
    %v4025 = vld [vmem:[%s1] sm:$0xff]
    %v4026 = vld [vmem:[%s1 + $0x8] sm:$0xff]
    %v4027 = vld [vmem:[#allocation2] sm:$0xff]
    %v4028 = vld [vmem:[#allocation2 + $0x8] sm:$0xff]
    %v4029 = vld [vmem:[#allocation2 + $0x10] sm:$0xff]
    %v4030 = vld [vmem:[#allocation2 + $0x18] sm:$0xff]
    %v4031 = vld [vmem:[#allocation2 + $0x20] sm:$0xff]
    %v4032 = vld [vmem:[#allocation2 + $0x28] sm:$0xff]
    %v4033 = vld [vmem:[#allocation2 + $0x30] sm:$0xff]
    %v4034 = vld [vmem:[#allocation2 + $0x38] sm:$0xff]
    %v4035 = vld [vmem:[#allocation2 + $0x40] sm:$0xff]
    %v4036 = vld [vmem:[#allocation2 + $0x48] sm:$0xff]
    %v4037 = vld [vmem:[#allocation2 + $0x50] sm:$0xff]
    %v4038 = vld [vmem:[#allocation2 + $0x58] sm:$0xff]
    %v4039 = vld [vmem:[#allocation2 + $0x60] sm:$0xff]
    %v4040 = vld [vmem:[#allocation2 + $0x68] sm:$0xff]
    %v4041 = vld [vmem:[#allocation2 + $0x70] sm:$0xff]
    %v4042 = vld [vmem:[#allocation2 + $0x78] sm:$0xff]
    %v4043 = vld [vmem:[#allocation2 + $0x80] sm:$0xff]
    %v4044 = vld [vmem:[#allocation2 + $0x88] sm:$0xff]
    %v4045 = vld [vmem:[#allocation2 + $0x90] sm:$0xff]
    %v4046 = vld [vmem:[#allocation2 + $0x98] sm:$0xff]
    %v4047 = vld [vmem:[#allocation2 + $0xa0] sm:$0xff]
    %v4048 = vld [vmem:[#allocation2 + $0xa8] sm:$0x1]
    %v4049 = vld [vmem:[#allocation2 + $0xb0] sm:$0x1]
    %v4050 = vld [vmem:[#allocation2 + $0xb8] sm:$0x1]
    %v4051 = vld [vmem:[#allocation2 + $0xc0] sm:$0x1]
    %v4052 = vld [vmem:[#allocation2 + $0xc8] sm:$0x1]
    %v4053 = vld [vmem:[#allocation2 + $0xd0] sm:$0x1]
    %v4054 = vld [vmem:[#allocation2 + $0xd8] sm:$0x1]
    %v4055 = vld [vmem:[%s2] sm:$0xff]
    %v4056 = vld [vmem:[%s2 + $0x8] sm:$0xff]
    %4058 = vset.pattern.permute.xlu0 0
    %4059 = vperm.xlu0 %4058, %v4055
    %v4060 = vpop.permute.xlu0 %4059
    %4063 = vset.pattern.permute.xlu0 0
    %4064 = vperm.xlu0 %4063, %v4056
    %v4065 = vpop.permute.xlu0 %4064
    %v4068 = vsel %vm352, %v4025, 0
    %v4071 = vsel %vm352, %v4026, 0
    %v4074 = vsel %vm359, %v4048, 0
    %v4077 = vsel %vm359, %v4049, 0
    %v4080 = vsel %vm359, %v4050, 0
    %v4083 = vsel %vm359, %v4051, 0
    %v4086 = vsel %vm359, %v4052, 0
    %v4089 = vsel %vm359, %v4053, 0
    %v4092 = vsel %vm359, %v4054, 0
    %4094 = vmatprep.subr.mxu0 %v4028
    %4095 = vmatpush1.msra.mxu0 %v4027
    %4096 = vmatprep.subr.mxu0 %v4035
    %4097 = vmatpush1.msra.mxu0 %v4034
    %4098 = vmatprep.subr.mxu0 %v4042
    %4099 = vmatpush1.msra.mxu0 %v4041
    %4100 = vmatprep.subr.mxu0 %v4077
    %4101 = vmatpush1.msra.mxu0 %v4074
    %4102 = vmatprep.subr.mxu0 0.0
    %4103 = vmatpush1.msra.mxu0 0.0
    %4104 = vmatprep.subr.mxu0 0.0
    %4105 = vmatpush1.msra.mxu0 0.0
    %4106 = vmatprep.subr.mxu0 0.0
    %4107 = vmatpush1.msra.mxu0 0.0
    %4108 = vmatprep.subr.mxu0 0.0
    %4109 = vmatpush1.msra.mxu0 0.0
    %4110 = vmatprep.subr.mxu0 0.0
    %4111 = vmatpush1.msra.mxu0 0.0
    %4112 = vmatprep.subr.mxu0 0.0
    %4113 = vmatpush1.msra.mxu0 0.0
    %4114 = vmatprep.subr.mxu0 0.0
    %4115 = vmatpush1.msra.mxu0 0.0
    %4116 = vmatprep.subr.mxu0 0.0
    %4117 = vmatpush1.msra.mxu0 0.0
    %4118 = vmatprep.subr.mxu0 0.0
    %4119 = vmatpush1.msra.mxu0 0.0
    %4120 = vmatprep.subr.mxu0 0.0
    %4121 = vmatpush1.msra.mxu0 0.0
    %4122 = vmatprep.subr.mxu0 0.0
    %4123 = vmatpush1.msra.mxu0 0.0
    %4124 = vmatprep.subr.mxu0 0.0
    %4125 = vmatpush1.msra.mxu0 0.0
    %4126 = vmatprep.subr.mxu0 0.0
    %4127 = vmatpush1.msra.mxu0 0.0
    %4128 = vmatprep.subr.mxu0 0.0
    %4129 = vmatpush1.msra.mxu0 0.0
    %4130 = vmatprep.subr.mxu0 0.0
    %4131 = vmatpush1.msra.mxu0 0.0
    %4132 = vmatprep.subr.mxu0 0.0
    %4133 = vmatpush1.msra.mxu0 0.0
    %4134 = vmatprep.subr.mxu0 0.0
    %4135 = vmatpush1.msra.mxu0 0.0
    %4136 = vmatprep.subr.mxu0 0.0
    %4137 = vmatpush1.msra.mxu0 0.0
    %4138 = vmatprep.subr.mxu0 0.0
    %4139 = vmatpush1.msra.mxu0 0.0
    %4140 = vmatprep.subr.mxu0 0.0
    %4141 = vmatpush1.msra.mxu0 0.0
    %4142 = vmatprep.subr.mxu0 0.0
    %4143 = vmatpush1.msra.mxu0 0.0
    %4144 = vmatprep.subr.mxu0 0.0
    %4145 = vmatpush1.msra.mxu0 0.0
    %4146 = vmatprep.subr.mxu0 0.0
    %4147 = vmatpush1.msra.mxu0 0.0
    %4148 = vmatprep.subr.mxu0 0.0
    %4149 = vmatpush1.msra.mxu0 0.0
    %4150 = vmatprep.subr.mxu0 0.0
    %4151 = vmatpush1.msra.mxu0 0.0
    %4152 = vmatprep.subr.mxu0 0.0
    %4153 = vmatpush1.msra.mxu0 0.0
    %4154 = vmatprep.subr.mxu0 0.0
    %4155 = vmatpush1.msra.mxu0 0.0
    %4156 = vmatprep.subr.mxu0 0.0
    %4157 = vmatpush1.msra.mxu0 0.0
    %4158 = vmatprep.mubr.f32.mxu0 0.0
    %4159 = vmatmul.mubr.f32.gmra.mrb[0].mxu0 %v4068
    %v4160 = vpop.f32.mrb[0].mxu0
    %v4161 = vadd.f32 %v4060, %v4160
    %v4162 = vpop.f32.mrb[0].mxu0
    %v4163 = vadd.f32 %v4060, %v4162
    %4164 = vmatprep.mubr.f32.mxu0 0.0
    %4165 = vmatmul.mubr.f32.gmra.mrb[0].mxu0 %v4071
    %v4166 = vpop.f32.mrb[0].mxu0
    %v4167 = vadd.f32 %v4065, %v4166
    %v4168 = vpop.f32.mrb[0].mxu0
    %v4169 = vadd.f32 %v4065, %v4168
    %4170 = vdwg.mxu0
    %4171 = vmatprep.subr.mxu0 %v4030
    %4172 = vmatpush1.msra.mxu0 %v4029
    %4173 = vmatprep.subr.mxu0 %v4037
    %4174 = vmatpush1.msra.mxu0 %v4036
    %4175 = vmatprep.subr.mxu0 %v4044
    %4176 = vmatpush1.msra.mxu0 %v4043
    %4177 = vmatprep.subr.mxu0 %v4083
    %4178 = vmatpush1.msra.mxu0 %v4080
    %4179 = vmatprep.subr.mxu0 0.0
    %4180 = vmatpush1.msra.mxu0 0.0
    %4181 = vmatprep.subr.mxu0 0.0
    %4182 = vmatpush1.msra.mxu0 0.0
    %4183 = vmatprep.subr.mxu0 0.0
    %4184 = vmatpush1.msra.mxu0 0.0
    %4185 = vmatprep.subr.mxu0 0.0
    %4186 = vmatpush1.msra.mxu0 0.0
    %4187 = vmatprep.subr.mxu0 0.0
    %4188 = vmatpush1.msra.mxu0 0.0
    %4189 = vmatprep.subr.mxu0 0.0
    %4190 = vmatpush1.msra.mxu0 0.0
    %4191 = vmatprep.subr.mxu0 0.0
    %4192 = vmatpush1.msra.mxu0 0.0
    %4193 = vmatprep.subr.mxu0 0.0
    %4194 = vmatpush1.msra.mxu0 0.0
    %4195 = vmatprep.subr.mxu0 0.0
    %4196 = vmatpush1.msra.mxu0 0.0
    %4197 = vmatprep.subr.mxu0 0.0
    %4198 = vmatpush1.msra.mxu0 0.0
    %4199 = vmatprep.subr.mxu0 0.0
    %4200 = vmatpush1.msra.mxu0 0.0
    %4201 = vmatprep.subr.mxu0 0.0
    %4202 = vmatpush1.msra.mxu0 0.0
    %4203 = vmatprep.subr.mxu0 0.0
    %4204 = vmatpush1.msra.mxu0 0.0
    %4205 = vmatprep.subr.mxu0 0.0
    %4206 = vmatpush1.msra.mxu0 0.0
    %4207 = vmatprep.subr.mxu0 0.0
    %4208 = vmatpush1.msra.mxu0 0.0
    %4209 = vmatprep.subr.mxu0 0.0
    %4210 = vmatpush1.msra.mxu0 0.0
    %4211 = vmatprep.subr.mxu0 0.0
    %4212 = vmatpush1.msra.mxu0 0.0
    %4213 = vmatprep.subr.mxu0 0.0
    %4214 = vmatpush1.msra.mxu0 0.0
    %4215 = vmatprep.subr.mxu0 0.0
    %4216 = vmatpush1.msra.mxu0 0.0
    %4217 = vmatprep.subr.mxu0 0.0
    %4218 = vmatpush1.msra.mxu0 0.0
    %4219 = vmatprep.subr.mxu0 0.0
    %4220 = vmatpush1.msra.mxu0 0.0
    %4221 = vmatprep.subr.mxu0 0.0
    %4222 = vmatpush1.msra.mxu0 0.0
    %4223 = vmatprep.subr.mxu0 0.0
    %4224 = vmatpush1.msra.mxu0 0.0
    %4225 = vmatprep.subr.mxu0 0.0
    %4226 = vmatpush1.msra.mxu0 0.0
    %4227 = vmatprep.subr.mxu0 0.0
    %4228 = vmatpush1.msra.mxu0 0.0
    %4229 = vmatprep.subr.mxu0 0.0
    %4230 = vmatpush1.msra.mxu0 0.0
    %4231 = vmatprep.subr.mxu0 0.0
    %4232 = vmatpush1.msra.mxu0 0.0
    %4233 = vmatprep.subr.mxu0 0.0
    %4234 = vmatpush1.msra.mxu0 0.0
    %4235 = vmatprep.mubr.f32.mxu0 0.0
    %4236 = vmatmul.mubr.f32.gmra.mrb[0].mxu0 %v4068
    %v4237 = vpop.f32.mrb[0].mxu0
    %v4238 = vadd.f32 %v4060, %v4237
    %v4239 = vpop.f32.mrb[0].mxu0
    %v4240 = vadd.f32 %v4060, %v4239
    %4241 = vmatprep.mubr.f32.mxu0 0.0
    %4242 = vmatmul.mubr.f32.gmra.mrb[0].mxu0 %v4071
    %v4243 = vpop.f32.mrb[0].mxu0
    %v4244 = vadd.f32 %v4065, %v4243
    %v4245 = vpop.f32.mrb[0].mxu0
    %v4246 = vadd.f32 %v4065, %v4245
    %4247 = vdwg.mxu0
    %4248 = vmatprep.subr.mxu0 %v4032
    %4249 = vmatpush1.msra.mxu0 %v4031
    %4250 = vmatprep.subr.mxu0 %v4039
    %4251 = vmatpush1.msra.mxu0 %v4038
    %4252 = vmatprep.subr.mxu0 %v4046
    %4253 = vmatpush1.msra.mxu0 %v4045
    %4254 = vmatprep.subr.mxu0 %v4089
    %4255 = vmatpush1.msra.mxu0 %v4086
    %4256 = vmatprep.subr.mxu0 0.0
    %4257 = vmatpush1.msra.mxu0 0.0
    %4258 = vmatprep.subr.mxu0 0.0
    %4259 = vmatpush1.msra.mxu0 0.0
    %4260 = vmatprep.subr.mxu0 0.0
    %4261 = vmatpush1.msra.mxu0 0.0
    %4262 = vmatprep.subr.mxu0 0.0
    %4263 = vmatpush1.msra.mxu0 0.0
    %4264 = vmatprep.subr.mxu0 0.0
    %4265 = vmatpush1.msra.mxu0 0.0
    %4266 = vmatprep.subr.mxu0 0.0
    %4267 = vmatpush1.msra.mxu0 0.0
    %4268 = vmatprep.subr.mxu0 0.0
    %4269 = vmatpush1.msra.mxu0 0.0
    %4270 = vmatprep.subr.mxu0 0.0
    %4271 = vmatpush1.msra.mxu0 0.0
    %4272 = vmatprep.subr.mxu0 0.0
    %4273 = vmatpush1.msra.mxu0 0.0
    %4274 = vmatprep.subr.mxu0 0.0
    %4275 = vmatpush1.msra.mxu0 0.0
    %4276 = vmatprep.subr.mxu0 0.0
    %4277 = vmatpush1.msra.mxu0 0.0
    %4278 = vmatprep.subr.mxu0 0.0
    %4279 = vmatpush1.msra.mxu0 0.0
    %4280 = vmatprep.subr.mxu0 0.0
    %4281 = vmatpush1.msra.mxu0 0.0
    %4282 = vmatprep.subr.mxu0 0.0
    %4283 = vmatpush1.msra.mxu0 0.0
    %4284 = vmatprep.subr.mxu0 0.0
    %4285 = vmatpush1.msra.mxu0 0.0
    %4286 = vmatprep.subr.mxu0 0.0
    %4287 = vmatpush1.msra.mxu0 0.0
    %4288 = vmatprep.subr.mxu0 0.0
    %4289 = vmatpush1.msra.mxu0 0.0
    %4290 = vmatprep.subr.mxu0 0.0
    %4291 = vmatpush1.msra.mxu0 0.0
    %4292 = vmatprep.subr.mxu0 0.0
    %4293 = vmatpush1.msra.mxu0 0.0
    %4294 = vmatprep.subr.mxu0 0.0
    %4295 = vmatpush1.msra.mxu0 0.0
    %4296 = vmatprep.subr.mxu0 0.0
    %4297 = vmatpush1.msra.mxu0 0.0
    %4298 = vmatprep.subr.mxu0 0.0
    %4299 = vmatpush1.msra.mxu0 0.0
    %4300 = vmatprep.subr.mxu0 0.0
    %4301 = vmatpush1.msra.mxu0 0.0
    %4302 = vmatprep.subr.mxu0 0.0
    %4303 = vmatpush1.msra.mxu0 0.0
    %4304 = vmatprep.subr.mxu0 0.0
    %4305 = vmatpush1.msra.mxu0 0.0
    %4306 = vmatprep.subr.mxu0 0.0
    %4307 = vmatpush1.msra.mxu0 0.0
    %4308 = vmatprep.subr.mxu0 0.0
    %4309 = vmatpush1.msra.mxu0 0.0
    %4310 = vmatprep.subr.mxu0 0.0
    %4311 = vmatpush1.msra.mxu0 0.0
    %4312 = vmatprep.mubr.f32.mxu0 0.0
    %4313 = vmatmul.mubr.f32.gmra.mrb[0].mxu0 %v4068
    %v4314 = vpop.f32.mrb[0].mxu0
    %v4315 = vadd.f32 %v4060, %v4314
    %v4316 = vpop.f32.mrb[0].mxu0
    %v4317 = vadd.f32 %v4060, %v4316
    %4318 = vmatprep.mubr.f32.mxu0 0.0
    %4319 = vmatmul.mubr.f32.gmra.mrb[0].mxu0 %v4071
    %v4320 = vpop.f32.mrb[0].mxu0
    %v4321 = vadd.f32 %v4065, %v4320
    %v4322 = vpop.f32.mrb[0].mxu0
    %v4323 = vadd.f32 %v4065, %v4322
    %4324 = vdwg.mxu0
    %4325 = vmatprep.subr.mxu0 0.0
    %4326 = vmatpush1.msra.mxu0 %v4033
    %4327 = vmatprep.subr.mxu0 0.0
    %4328 = vmatpush1.msra.mxu0 %v4040
    %4329 = vmatprep.subr.mxu0 0.0
    %4330 = vmatpush1.msra.mxu0 %v4047
    %4331 = vmatprep.subr.mxu0 0.0
    %4332 = vmatpush1.msra.mxu0 %v4092
    %4333 = vmatprep.subr.mxu0 0.0
    %4334 = vmatpush1.msra.mxu0 0.0
    %4335 = vmatprep.subr.mxu0 0.0
    %4336 = vmatpush1.msra.mxu0 0.0
    %4337 = vmatprep.subr.mxu0 0.0
    %4338 = vmatpush1.msra.mxu0 0.0
    %4339 = vmatprep.subr.mxu0 0.0
    %4340 = vmatpush1.msra.mxu0 0.0
    %4341 = vmatprep.subr.mxu0 0.0
    %4342 = vmatpush1.msra.mxu0 0.0
    %4343 = vmatprep.subr.mxu0 0.0
    %4344 = vmatpush1.msra.mxu0 0.0
    %4345 = vmatprep.subr.mxu0 0.0
    %4346 = vmatpush1.msra.mxu0 0.0
    %4347 = vmatprep.subr.mxu0 0.0
    %4348 = vmatpush1.msra.mxu0 0.0
    %4349 = vmatprep.subr.mxu0 0.0
    %4350 = vmatpush1.msra.mxu0 0.0
    %4351 = vmatprep.subr.mxu0 0.0
    %4352 = vmatpush1.msra.mxu0 0.0
    %4353 = vmatprep.subr.mxu0 0.0
    %4354 = vmatpush1.msra.mxu0 0.0
    %4355 = vmatprep.subr.mxu0 0.0
    %4356 = vmatpush1.msra.mxu0 0.0
    %4357 = vmatprep.subr.mxu0 0.0
    %4358 = vmatpush1.msra.mxu0 0.0
    %4359 = vmatprep.subr.mxu0 0.0
    %4360 = vmatpush1.msra.mxu0 0.0
    %4361 = vmatprep.subr.mxu0 0.0
    %4362 = vmatpush1.msra.mxu0 0.0
    %4363 = vmatprep.subr.mxu0 0.0
    %4364 = vmatpush1.msra.mxu0 0.0
    %4365 = vmatprep.subr.mxu0 0.0
    %4366 = vmatpush1.msra.mxu0 0.0
    %4367 = vmatprep.subr.mxu0 0.0
    %4368 = vmatpush1.msra.mxu0 0.0
    %4369 = vmatprep.subr.mxu0 0.0
    %4370 = vmatpush1.msra.mxu0 0.0
    %4371 = vmatprep.subr.mxu0 0.0
    %4372 = vmatpush1.msra.mxu0 0.0
    %4373 = vmatprep.subr.mxu0 0.0
    %4374 = vmatpush1.msra.mxu0 0.0
    %4375 = vmatprep.subr.mxu0 0.0
    %4376 = vmatpush1.msra.mxu0 0.0
    %4377 = vmatprep.subr.mxu0 0.0
    %4378 = vmatpush1.msra.mxu0 0.0
    %4379 = vmatprep.subr.mxu0 0.0
    %4380 = vmatpush1.msra.mxu0 0.0
    %4381 = vmatprep.subr.mxu0 0.0
    %4382 = vmatpush1.msra.mxu0 0.0
    %4383 = vmatprep.subr.mxu0 0.0
    %4384 = vmatpush1.msra.mxu0 0.0
    %4385 = vmatprep.subr.mxu0 0.0
    %4386 = vmatpush1.msra.mxu0 0.0
    %4387 = vmatprep.subr.mxu0 0.0
    %4388 = vmatpush1.msra.mxu0 0.0
    %4389 = vmatprep.mubr.f32.mxu0 0.0
    %4390 = vmatmul.mubr.f32.gmra.mrb[0].mxu0 %v4068
    %v4391 = vpop.f32.mrb[0].mxu0
    %v4392 = vadd.f32 %v4060, %v4391
    %v4393 = vpop.f32.mrb[0].mxu0
    %4394 = vmatprep.mubr.f32.mxu0 0.0
    %4395 = vmatmul.mubr.f32.gmra.mrb[0].mxu0 %v4071
    %v4396 = vpop.f32.mrb[0].mxu0
    %v4397 = vadd.f32 %v4065, %v4396
    %v4398 = vpop.f32.mrb[0].mxu0
    %4399 = vdwg.mxu0
    %v4400 = vmax.f32 %v4161, 0.0
    %v4401 = vmax.f32 %v4163, 0.0
    %v4402 = vmax.f32 %v4238, 0.0
    %v4403 = vmax.f32 %v4240, 0.0
    %v4404 = vmax.f32 %v4315, 0.0
    %v4405 = vmax.f32 %v4317, 0.0
    %v4406 = vmax.f32 %v4392, 0.0
    %v4407 = vmax.f32 %v4167, 0.0
    %v4408 = vmax.f32 %v4169, 0.0
    %v4409 = vmax.f32 %v4244, 0.0
    %v4410 = vmax.f32 %v4246, 0.0
    %v4411 = vmax.f32 %v4321, 0.0
    %v4412 = vmax.f32 %v4323, 0.0
    %v4413 = vmax.f32 %v4397, 0.0
    %4414 = vst [vmem:[#allocation3] sm:$0xff] %v4400
    %4415 = vst [vmem:[#allocation3 + $0x8] sm:$0xff] %v4401
    %4416 = vst [vmem:[#allocation3 + $0x10] sm:$0xff] %v4402
    %4417 = vst [vmem:[#allocation3 + $0x18] sm:$0xff] %v4403
    %4418 = vst [vmem:[#allocation3 + $0x20] sm:$0xff] %v4404
    %4419 = vst [vmem:[#allocation3 + $0x28] sm:$0xff] %v4405
    %4420 = vst.msk [vmem:[#allocation3 + $0x30] sm:$0xff] %vm707, %v4406
    %4421 = vst [vmem:[#allocation3 + $0x38] sm:$0xff] %v4407
    %4422 = vst [vmem:[#allocation3 + $0x40] sm:$0xff] %v4408
    %4423 = vst [vmem:[#allocation3 + $0x48] sm:$0xff] %v4409
    %4424 = vst [vmem:[#allocation3 + $0x50] sm:$0xff] %v4410
    %4425 = vst [vmem:[#allocation3 + $0x58] sm:$0xff] %v4411
    %4426 = vst [vmem:[#allocation3 + $0x60] sm:$0xff] %v4412
    %4427 = vst.msk [vmem:[#allocation3 + $0x68] sm:$0xff] %vm707, %v4413
    %v4428 = vld [vmem:[#allocation3] sm:$0xff]
    %v4429 = vld [vmem:[#allocation3 + $0x8] sm:$0xff]
    %v4430 = vld [vmem:[#allocation3 + $0x10] sm:$0xff]
    %v4431 = vld [vmem:[#allocation3 + $0x18] sm:$0xff]
    %v4432 = vld [vmem:[#allocation3 + $0x20] sm:$0xff]
    %v4433 = vld [vmem:[#allocation3 + $0x28] sm:$0xff]
    %v4434 = vld [vmem:[#allocation3 + $0x38] sm:$0xff]
    %v4435 = vld [vmem:[#allocation3 + $0x40] sm:$0xff]
    %v4436 = vld [vmem:[#allocation3 + $0x48] sm:$0xff]
    %v4437 = vld [vmem:[#allocation3 + $0x50] sm:$0xff]
    %v4438 = vld [vmem:[#allocation3 + $0x58] sm:$0xff]
    %v4439 = vld [vmem:[#allocation3 + $0x60] sm:$0xff]
    %4452 = vrot.lane.b32.xlu0 %v4428, 127
    %v4453 = vpop.permute.xlu0 %4452
    %4454 = vrot.lane.b32.xlu0 %v4429, 127
    %v4455 = vpop.permute.xlu0 %4454
    %4456 = vrot.lane.b32.xlu0 %v4430, 127
    %v4457 = vpop.permute.xlu0 %4456
    %4458 = vrot.lane.b32.xlu0 %v4431, 127
    %v4459 = vpop.permute.xlu0 %4458
    %4460 = vrot.lane.b32.xlu0 %v4432, 127
    %v4461 = vpop.permute.xlu0 %4460
    %4462 = vrot.lane.b32.xlu0 %v4433, 127
    %v4463 = vpop.permute.xlu0 %4462
    %4464 = vrot.lane.b32.xlu0 %v4434, 127
    %v4465 = vpop.permute.xlu0 %4464
    %4466 = vrot.lane.b32.xlu0 %v4435, 127
    %v4467 = vpop.permute.xlu0 %4466
    %4468 = vrot.lane.b32.xlu0 %v4436, 127
    %v4469 = vpop.permute.xlu0 %4468
    %4470 = vrot.lane.b32.xlu0 %v4437, 127
    %v4471 = vpop.permute.xlu0 %4470
    %4472 = vrot.lane.b32.xlu0 %v4438, 127
    %v4473 = vpop.permute.xlu0 %4472
    %4474 = vrot.lane.b32.xlu0 %v4439, 127
    %v4475 = vpop.permute.xlu0 %4474
    %v4476 = vsel %vm51, %v4453, %v4455
    %v4477 = vsel %vm51, %v4455, %v4457
    %v4478 = vsel %vm51, %v4457, %v4459
    %v4479 = vsel %vm51, %v4459, %v4461
    %v4480 = vsel %vm51, %v4461, %v4463
    %v4481 = vsel %vm51, %v4465, %v4467
    %v4482 = vsel %vm51, %v4467, %v4469
    %v4483 = vsel %vm51, %v4469, %v4471
    %v4484 = vsel %vm51, %v4471, %v4473
    %v4485 = vsel %vm51, %v4473, %v4475
    %v4498 = vmax.f32 %v4428, %v4476
    %v4499 = vmax.f32 %v4429, %v4477
    %v4500 = vmax.f32 %v4430, %v4478
    %v4501 = vmax.f32 %v4431, %v4479
    %v4502 = vmax.f32 %v4432, %v4480
    %v4503 = vmax.f32 %v4433, %v4463
    %v4504 = vmax.f32 %v4434, %v4481
    %v4505 = vmax.f32 %v4435, %v4482
    %v4506 = vmax.f32 %v4436, %v4483
    %v4507 = vmax.f32 %v4437, %v4484
    %v4508 = vmax.f32 %v4438, %v4485
    %v4509 = vmax.f32 %v4439, %v4475
    %v4510 = vld [vmem:[#allocation3 + $0x30] sm:$0xff]
    %v4511 = vld [vmem:[#allocation3 + $0x68] sm:$0xff]
    %4514 = vrot.lane.b32.xlu0 %v4510, 127
    %v4515 = vpop.permute.xlu0 %4514
    %4516 = vrot.lane.b32.xlu0 %v4511, 127
    %v4517 = vpop.permute.xlu0 %4516
    %v4518 = vsel %vm51, %v4463, %v4515
    %v4519 = vsel %vm51, %v4475, %v4517
    %v4524 = vmax.f32 %v4433, %v4518
    %v4525 = vmax.f32 %v4510, %v4515
    %v4526 = vmax.f32 %v4439, %v4519
    %v4527 = vmax.f32 %v4511, %v4517
    %4542 = vrot.lane.b32.xlu0 %v4498, 98
    %v4543 = vpop.permute.xlu0 %4542
    %4544 = vrot.lane.b32.xlu0 %v4499, 98
    %v4545 = vpop.permute.xlu0 %4544
    %4546 = vrot.lane.b32.xlu0 %v4500, 98
    %v4547 = vpop.permute.xlu0 %4546
    %4548 = vrot.lane.b32.xlu0 %v4501, 98
    %v4549 = vpop.permute.xlu0 %4548
    %4550 = vrot.lane.b32.xlu0 %v4502, 98
    %v4551 = vpop.permute.xlu0 %4550
    %4552 = vrot.lane.b32.xlu0 %v4524, 98
    %v4553 = vpop.permute.xlu0 %4552
    %4554 = vrot.lane.b32.xlu0 %v4525, 98
    %v4555 = vpop.permute.xlu0 %4554
    %4556 = vrot.lane.b32.xlu0 %v4504, 98
    %v4557 = vpop.permute.xlu0 %4556
    %4558 = vrot.lane.b32.xlu0 %v4505, 98
    %v4559 = vpop.permute.xlu0 %4558
    %4560 = vrot.lane.b32.xlu0 %v4506, 98
    %v4561 = vpop.permute.xlu0 %4560
    %4562 = vrot.lane.b32.xlu0 %v4507, 98
    %v4563 = vpop.permute.xlu0 %4562
    %4564 = vrot.lane.b32.xlu0 %v4508, 98
    %v4565 = vpop.permute.xlu0 %4564
    %4566 = vrot.lane.b32.xlu0 %v4526, 98
    %v4567 = vpop.permute.xlu0 %4566
    %4568 = vrot.lane.b32.xlu0 %v4527, 98
    %v4569 = vpop.permute.xlu0 %4568
    %v4570 = vsel %vm95, %v4543, %v4545
    %v4571 = vsel %vm95, %v4545, %v4547
    %v4572 = vsel %vm95, %v4547, %v4549
    %v4573 = vsel %vm95, %v4549, %v4551
    %v4574 = vsel %vm95, %v4551, %v4553
    %v4575 = vsel %vm95, %v4553, %v4555
    %v4576 = vsel %vm95, %v4557, %v4559
    %v4577 = vsel %vm95, %v4559, %v4561
    %v4578 = vsel %vm95, %v4561, %v4563
    %v4579 = vsel %vm95, %v4563, %v4565
    %v4580 = vsel %vm95, %v4565, %v4567
    %v4581 = vsel %vm95, %v4567, %v4569
    %v4594 = vmax.f32 %v4498, %v4570
    %v4595 = vmax.f32 %v4499, %v4571
    %v4596 = vmax.f32 %v4500, %v4572
    %v4597 = vmax.f32 %v4501, %v4573
    %v4598 = vmax.f32 %v4502, %v4574
    %v4599 = vmax.f32 %v4503, %v4575
    %v4600 = vmax.f32 %v4504, %v4576
    %v4601 = vmax.f32 %v4505, %v4577
    %v4602 = vmax.f32 %v4506, %v4578
    %v4603 = vmax.f32 %v4507, %v4579
    %v4604 = vmax.f32 %v4508, %v4580
    %v4605 = vmax.f32 %v4509, %v4581
    %v4606 = vld [vmem:[%s3] sm:$0xff]
    %v4607 = vld [vmem:[%s3 + $0x8] sm:$0xff]
    %v4608 = vld [vmem:[%s3 + $0x10] sm:$0xff]
    %v4609 = vld [vmem:[%s3 + $0x18] sm:$0xff]
    %v4610 = vld [vmem:[%s3 + $0x20] sm:$0xff]
    %v4611 = vld [vmem:[%s3 + $0x28] sm:$0xff]
    %v4612 = vld [vmem:[%s3 + $0x30] sm:$0xff]
    %v4613 = vld [vmem:[%s3 + $0x38] sm:$0xff]
    %v4614 = vld [vmem:[%s3 + $0x40] sm:$0xff]
    %v4615 = vld [vmem:[%s3 + $0x48] sm:$0xff]
    %v4616 = vld [vmem:[%s3 + $0x50] sm:$0xff]
    %v4617 = vld [vmem:[%s3 + $0x58] sm:$0xff]
    %v4618 = vld [vmem:[%s3 + $0x60] sm:$0xff]
    %v4619 = vld [vmem:[%s3 + $0x68] sm:$0xff]
    %v4620 = vld [vmem:[%s3 + $0x70] sm:$0xff]
    %v4621 = vld [vmem:[%s3 + $0x78] sm:$0xff]
    %v4622 = vld [vmem:[%s3 + $0x80] sm:$0xff]
    %v4623 = vld [vmem:[%s3 + $0x88] sm:$0xff]
    %v4624 = vld [vmem:[%s3 + $0x90] sm:$0xff]
    %v4625 = vld [vmem:[%s3 + $0x98] sm:$0xff]
    %v4626 = vld [vmem:[%s3 + $0xa0] sm:$0xff]
    %v4627 = vld [vmem:[%s3 + $0xa8] sm:$0xff]
    %v4628 = vld [vmem:[%s3 + $0xb0] sm:$0xff]
    %v4629 = vld [vmem:[%s3 + $0xb8] sm:$0xff]
    %v4630 = vld [vmem:[%s3 + $0xc0] sm:$0xff]
    %v4631 = vld [vmem:[%s3 + $0xc8] sm:$0xff]
    %v4632 = vld [vmem:[%s3 + $0xd0] sm:$0xff]
    %v4633 = vld [vmem:[%s3 + $0xd8] sm:$0xff]
    %v4634 = vld [vmem:[%s3 + $0xe0] sm:$0xff]
    %v4635 = vld [vmem:[%s3 + $0xe8] sm:$0xff]
    %v4636 = vld [vmem:[%s3 + $0xf0] sm:$0xff]
    %v4637 = vld [vmem:[%s3 + $0xf8] sm:$0xff]
    %v4638 = vld [vmem:[%s3 + $0x100] sm:$0xff]
    %v4639 = vld [vmem:[%s3 + $0x108] sm:$0xff]
    %v4640 = vld [vmem:[%s3 + $0x110] sm:$0xff]
    %v4641 = vld [vmem:[%s3 + $0x118] sm:$0xff]
    %v4642 = vld [vmem:[%s3 + $0x120] sm:$0xff]
    %v4643 = vld [vmem:[%s3 + $0x128] sm:$0xff]
    %v4644 = vld [vmem:[%s3 + $0x130] sm:$0xff]
    %v4645 = vld [vmem:[%s3 + $0x138] sm:$0xff]
    %v4646 = vld [vmem:[%s3 + $0x140] sm:$0xff]
    %v4647 = vld [vmem:[%s3 + $0x148] sm:$0xff]
    %v4648 = vld [vmem:[%s3 + $0x150] sm:$0xff]
    %v4649 = vld [vmem:[%s3 + $0x158] sm:$0xff]
    %v4650 = vld [vmem:[%s3 + $0x160] sm:$0xff]
    %v4651 = vld [vmem:[%s3 + $0x168] sm:$0xff]
    %v4652 = vld [vmem:[%s3 + $0x170] sm:$0xff]
    %v4653 = vld [vmem:[%s3 + $0x178] sm:$0xff]
    %v4654 = vld [vmem:[%s3 + $0x180] sm:$0xff]
    %v4655 = vld [vmem:[%s3 + $0x188] sm:$0xff]
    %v4656 = vld [vmem:[%s3 + $0x190] sm:$0xff]
    %v4657 = vld [vmem:[%s3 + $0x198] sm:$0xff]
    %v4658 = vld [vmem:[%s3 + $0x1a0] sm:$0xff]
    %v4659 = vld [vmem:[%s3 + $0x1a8] sm:$0xff]
    %v4660 = vld [vmem:[%s3 + $0x1b0] sm:$0xff]
    %v4661 = vld [vmem:[%s3 + $0x1b8] sm:$0xff]
    %v4662 = vld [vmem:[%s3 + $0x1c0] sm:$0xff]
    %v4663 = vld [vmem:[%s3 + $0x1c8] sm:$0xff]
    %v4664 = vld [vmem:[%s3 + $0x1d0] sm:$0xff]
    %v4665 = vld [vmem:[%s3 + $0x1d8] sm:$0xff]
    %v4666 = vld [vmem:[%s3 + $0x1e0] sm:$0xff]
    %v4667 = vld [vmem:[%s3 + $0x1e8] sm:$0xff]
    %v4668 = vld [vmem:[%s3 + $0x1f0] sm:$0xff]
    %v4669 = vld [vmem:[%s3 + $0x1f8] sm:$0xff]
    %v4670 = vld [vmem:[%s3 + $0x200] sm:$0xff]
    %v4671 = vld [vmem:[%s3 + $0x208] sm:$0xff]
    %v4672 = vld [vmem:[%s3 + $0x210] sm:$0xff]
    %v4673 = vld [vmem:[%s3 + $0x218] sm:$0xff]
    %v4674 = vld [vmem:[%s3 + $0x220] sm:$0xff]
    %v4675 = vld [vmem:[%s3 + $0x228] sm:$0xff]
    %v4676 = vld [vmem:[%s3 + $0x230] sm:$0xff]
    %v4677 = vld [vmem:[%s3 + $0x238] sm:$0xff]
    %v4678 = vld [vmem:[%s3 + $0x240] sm:$0xff]
    %v4679 = vld [vmem:[%s3 + $0x248] sm:$0xff]
    %v4680 = vld [vmem:[%s3 + $0x250] sm:$0xff]
    %v4681 = vld [vmem:[%s3 + $0x258] sm:$0xff]
    %v4682 = vld [vmem:[%s3 + $0x260] sm:$0xff]
    %v4683 = vld [vmem:[%s3 + $0x268] sm:$0xff]
    %v4684 = vld [vmem:[%s3 + $0x270] sm:$0xff]
    %v4685 = vld [vmem:[%s3 + $0x278] sm:$0xff]
    %v4686 = vld [vmem:[%s3 + $0x280] sm:$0xff]
    %v4687 = vld [vmem:[%s3 + $0x288] sm:$0xff]
    %v4688 = vld [vmem:[%s3 + $0x290] sm:$0xff]
    %v4689 = vld [vmem:[%s3 + $0x298] sm:$0xff]
    %v4690 = vld [vmem:[%s3 + $0x2a0] sm:$0xff]
    %v4691 = vld [vmem:[%s3 + $0x2a8] sm:$0xff]
    %v4692 = vld [vmem:[%s3 + $0x2b0] sm:$0xff]
    %v4693 = vld [vmem:[%s3 + $0x2b8] sm:$0xff]
    %v4694 = vld [vmem:[%s3 + $0x2c0] sm:$0xff]
    %v4695 = vld [vmem:[%s3 + $0x2c8] sm:$0xff]
    %v4696 = vld [vmem:[%s3 + $0x2d0] sm:$0xff]
    %v4697 = vld [vmem:[%s3 + $0x2d8] sm:$0xff]
    %v4698 = vld [vmem:[%s3 + $0x2e0] sm:$0xff]
    %v4699 = vld [vmem:[%s3 + $0x2e8] sm:$0xff]
    %v4700 = vld [vmem:[%s3 + $0x2f0] sm:$0xff]
    %v4701 = vld [vmem:[%s3 + $0x2f8] sm:$0xff]
    %v4702 = vld [vmem:[%s3 + $0x300] sm:$0xff]
    %v4703 = vld [vmem:[%s3 + $0x308] sm:$0xff]
    %v4704 = vld [vmem:[%s3 + $0x310] sm:$0xff]
    %v4705 = vld [vmem:[%s3 + $0x318] sm:$0xff]
    %v4706 = vld [vmem:[%s3 + $0x320] sm:$0xff]
    %v4707 = vld [vmem:[%s3 + $0x328] sm:$0xff]
    %v4708 = vld [vmem:[%s3 + $0x330] sm:$0xff]
    %v4709 = vld [vmem:[%s3 + $0x338] sm:$0xff]
    %v4710 = vld [vmem:[%s3 + $0x340] sm:$0xff]
    %v4711 = vld [vmem:[%s3 + $0x348] sm:$0xff]
    %v4712 = vld [vmem:[%s3 + $0x350] sm:$0xff]
    %v4713 = vld [vmem:[%s3 + $0x358] sm:$0xff]
    %v4714 = vld [vmem:[%s3 + $0x360] sm:$0xff]
    %v4715 = vld [vmem:[%s3 + $0x368] sm:$0xff]
    %v4716 = vld [vmem:[%s3 + $0x370] sm:$0xff]
    %v4717 = vld [vmem:[%s3 + $0x378] sm:$0xff]
    %v4718 = vld [vmem:[%s3 + $0x380] sm:$0xff]
    %v4719 = vld [vmem:[%s3 + $0x388] sm:$0xff]
    %v4720 = vld [vmem:[%s3 + $0x390] sm:$0xff]
    %v4721 = vld [vmem:[%s3 + $0x398] sm:$0xff]
    %v4722 = vld [vmem:[%s3 + $0x3a0] sm:$0xff]
    %v4723 = vld [vmem:[%s3 + $0x3a8] sm:$0xff]
    %v4724 = vld [vmem:[%s3 + $0x3b0] sm:$0xff]
    %v4725 = vld [vmem:[%s3 + $0x3b8] sm:$0xff]
    %v4726 = vld [vmem:[%s3 + $0x3c0] sm:$0xff]
    %v4727 = vld [vmem:[%s3 + $0x3c8] sm:$0xff]
    %v4728 = vld [vmem:[%s3 + $0x3d0] sm:$0xff]
    %v4729 = vld [vmem:[%s3 + $0x3d8] sm:$0xff]
    %v4730 = vld [vmem:[%s3 + $0x3e0] sm:$0xff]
    %v4731 = vld [vmem:[%s3 + $0x3e8] sm:$0xff]
    %v4732 = vld [vmem:[%s3 + $0x3f0] sm:$0xff]
    %v4733 = vld [vmem:[%s3 + $0x3f8] sm:$0xff]
    %v4734 = vld [vmem:[%s3 + $0x400] sm:$0xff]
    %v4735 = vld [vmem:[%s3 + $0x408] sm:$0xff]
    %v4736 = vld [vmem:[%s3 + $0x410] sm:$0xff]
    %v4737 = vld [vmem:[%s3 + $0x418] sm:$0xff]
    %v4738 = vld [vmem:[%s3 + $0x420] sm:$0xff]
    %v4739 = vld [vmem:[%s3 + $0x428] sm:$0xff]
    %v4740 = vld [vmem:[%s3 + $0x430] sm:$0xff]
    %v4741 = vld [vmem:[%s3 + $0x438] sm:$0xff]
    %v4742 = vld [vmem:[%s3 + $0x440] sm:$0xff]
    %v4743 = vld [vmem:[%s3 + $0x448] sm:$0xff]
    %v4744 = vld [vmem:[%s3 + $0x450] sm:$0xff]
    %v4745 = vld [vmem:[%s3 + $0x458] sm:$0xff]
    %v4746 = vld [vmem:[%s3 + $0x460] sm:$0xff]
    %v4747 = vld [vmem:[%s3 + $0x468] sm:$0xff]
    %v4748 = vld [vmem:[%s3 + $0x470] sm:$0xff]
    %v4749 = vld [vmem:[%s3 + $0x478] sm:$0xff]
    %v4750 = vld [vmem:[%s3 + $0x480] sm:$0xff]
    %v4751 = vld [vmem:[%s3 + $0x488] sm:$0xff]
    %v4752 = vld [vmem:[%s3 + $0x490] sm:$0xff]
    %v4753 = vld [vmem:[%s3 + $0x498] sm:$0xff]
    %v4754 = vld [vmem:[%s3 + $0x4a0] sm:$0xff]
    %v4755 = vld [vmem:[%s3 + $0x4a8] sm:$0xff]
    %v4756 = vld [vmem:[%s3 + $0x4b0] sm:$0xff]
    %v4757 = vld [vmem:[%s3 + $0x4b8] sm:$0xff]
    %v4758 = vld [vmem:[%s3 + $0x4c0] sm:$0xff]
    %v4759 = vld [vmem:[%s3 + $0x4c8] sm:$0xff]
    %v4760 = vld [vmem:[%s3 + $0x4d0] sm:$0xff]
    %v4761 = vld [vmem:[%s3 + $0x4d8] sm:$0xff]
    %v4762 = vld [vmem:[%s3 + $0x4e0] sm:$0xff]
    %v4763 = vld [vmem:[%s3 + $0x4e8] sm:$0xff]
    %v4764 = vld [vmem:[%s3 + $0x4f0] sm:$0xff]
    %v4765 = vld [vmem:[%s3 + $0x4f8] sm:$0xff]
    %v4766 = vld [vmem:[%s3 + $0x500] sm:$0xff]
    %v4767 = vld [vmem:[%s3 + $0x508] sm:$0xff]
    %v4768 = vld [vmem:[%s3 + $0x510] sm:$0xff]
    %v4769 = vld [vmem:[%s3 + $0x518] sm:$0xff]
    %v4770 = vld [vmem:[%s3 + $0x520] sm:$0xff]
    %v4771 = vld [vmem:[%s3 + $0x528] sm:$0xff]
    %v4772 = vld [vmem:[%s3 + $0x530] sm:$0xff]
    %v4773 = vld [vmem:[%s3 + $0x538] sm:$0xff]
    %v4774 = vld [vmem:[%s3 + $0x540] sm:$0xff]
    %v4775 = vld [vmem:[%s3 + $0x548] sm:$0xff]
    %v4776 = vld [vmem:[%s3 + $0x550] sm:$0xff]
    %v4777 = vld [vmem:[%s3 + $0x558] sm:$0xff]
    %v4778 = vld [vmem:[%s3 + $0x560] sm:$0xff]
    %v4779 = vld [vmem:[%s3 + $0x568] sm:$0xff]
    %v4780 = vld [vmem:[%s3 + $0x570] sm:$0xff]
    %v4781 = vld [vmem:[%s3 + $0x578] sm:$0xff]
    %v4782 = vld [vmem:[%s3 + $0x580] sm:$0xff]
    %v4783 = vld [vmem:[%s3 + $0x588] sm:$0xff]
    %v4784 = vld [vmem:[%s3 + $0x590] sm:$0xff]
    %v4785 = vld [vmem:[%s3 + $0x598] sm:$0xff]
    %v4786 = vld [vmem:[%s3 + $0x5a0] sm:$0xff]
    %v4787 = vld [vmem:[%s3 + $0x5a8] sm:$0xff]
    %v4788 = vld [vmem:[%s3 + $0x5b0] sm:$0xff]
    %v4789 = vld [vmem:[%s3 + $0x5b8] sm:$0xff]
    %v4790 = vld [vmem:[%s3 + $0x5c0] sm:$0xff]
    %v4791 = vld [vmem:[%s3 + $0x5c8] sm:$0xff]
    %v4792 = vld [vmem:[%s3 + $0x5d0] sm:$0x1f]
    %v4793 = vld [vmem:[%s3 + $0x5d8] sm:$0x1f]
    %v4795 = vsel %vm1082, %v4599, 0
    %v4798 = vsel %vm1082, %v4605, 0
    %v4801 = vsel %vm1089, %v4792, 0
    %v4804 = vsel %vm1089, %v4793, 0
    %4806 = vmatprep.subr.mxu0 %v4607
    %4807 = vmatpush1.msra.mxu0 %v4606
    %4808 = vmatprep.subr.mxu0 %v4609
    %4809 = vmatpush1.msra.mxu0 %v4608
    %4810 = vmatprep.subr.mxu0 %v4611
    %4811 = vmatpush1.msra.mxu0 %v4610
    %4812 = vmatprep.subr.mxu0 %v4613
    %4813 = vmatpush1.msra.mxu0 %v4612
    %4814 = vmatprep.subr.mxu0 %v4615
    %4815 = vmatpush1.msra.mxu0 %v4614
    %4816 = vmatprep.subr.mxu0 %v4617
    %4817 = vmatpush1.msra.mxu0 %v4616
    %4818 = vmatprep.subr.mxu0 %v4619
    %4819 = vmatpush1.msra.mxu0 %v4618
    %4820 = vmatprep.subr.mxu0 %v4621
    %4821 = vmatpush1.msra.mxu0 %v4620
    %4822 = vmatprep.subr.mxu0 %v4623
    %4823 = vmatpush1.msra.mxu0 %v4622
    %4824 = vmatprep.subr.mxu0 %v4625
    %4825 = vmatpush1.msra.mxu0 %v4624
    %4826 = vmatprep.subr.mxu0 %v4627
    %4827 = vmatpush1.msra.mxu0 %v4626
    %4828 = vmatprep.subr.mxu0 %v4629
    %4829 = vmatpush1.msra.mxu0 %v4628
    %4830 = vmatprep.subr.mxu0 %v4631
    %4831 = vmatpush1.msra.mxu0 %v4630
    %4832 = vmatprep.subr.mxu0 %v4633
    %4833 = vmatpush1.msra.mxu0 %v4632
    %4834 = vmatprep.subr.mxu0 %v4635
    %4835 = vmatpush1.msra.mxu0 %v4634
    %4836 = vmatprep.subr.mxu0 %v4637
    %4837 = vmatpush1.msra.mxu0 %v4636
    %4838 = vmatprep.subr.mxu0 %v4639
    %4839 = vmatpush1.msra.mxu0 %v4638
    %4840 = vmatprep.subr.mxu0 %v4641
    %4841 = vmatpush1.msra.mxu0 %v4640
    %4842 = vmatprep.subr.mxu0 %v4643
    %4843 = vmatpush1.msra.mxu0 %v4642
    %4844 = vmatprep.subr.mxu0 %v4645
    %4845 = vmatpush1.msra.mxu0 %v4644
    %4846 = vmatprep.subr.mxu0 %v4647
    %4847 = vmatpush1.msra.mxu0 %v4646
    %4848 = vmatprep.subr.mxu0 %v4649
    %4849 = vmatpush1.msra.mxu0 %v4648
    %4850 = vmatprep.subr.mxu0 %v4651
    %4851 = vmatpush1.msra.mxu0 %v4650
    %4852 = vmatprep.subr.mxu0 %v4653
    %4853 = vmatpush1.msra.mxu0 %v4652
    %4854 = vmatprep.subr.mxu0 %v4655
    %4855 = vmatpush1.msra.mxu0 %v4654
    %4856 = vmatprep.subr.mxu0 %v4657
    %4857 = vmatpush1.msra.mxu0 %v4656
    %4858 = vmatprep.subr.mxu0 %v4659
    %4859 = vmatpush1.msra.mxu0 %v4658
    %4860 = vmatprep.subr.mxu0 %v4661
    %4861 = vmatpush1.msra.mxu0 %v4660
    %4862 = vmatprep.subr.mxu0 %v4663
    %4863 = vmatpush1.msra.mxu0 %v4662
    %4864 = vmatprep.subr.mxu0 %v4665
    %4865 = vmatpush1.msra.mxu0 %v4664
    %4866 = vmatprep.subr.mxu0 %v4667
    %4867 = vmatpush1.msra.mxu0 %v4666
    %4868 = vmatprep.subr.mxu0 %v4669
    %4869 = vmatpush1.msra.mxu0 %v4668
    %4870 = vmatprep.mubr.f32.mxu0 %v4595
    %4871 = vmatmul.mubr.f32.gmra.mrb[0].mxu0 %v4594
    %v4872 = vpop.f32.mrb[0].mxu0
    %v4873 = vadd.f32 0.0, %v4872
    %v4874 = vpop.f32.mrb[0].mxu0
    %v4875 = vadd.f32 0.0, %v4874
    %4876 = vmatprep.mubr.f32.mxu0 %v4601
    %4877 = vmatmul.mubr.f32.gmra.mrb[0].mxu0 %v4600
    %v4878 = vpop.f32.mrb[0].mxu0
    %v4879 = vadd.f32 0.0, %v4878
    %v4880 = vpop.f32.mrb[0].mxu0
    %v4881 = vadd.f32 0.0, %v4880
    %4882 = vdwg.mxu0
    %4883 = vmatprep.subr.mxu0 %v4671
    %4884 = vmatpush1.msra.mxu0 %v4670
    %4885 = vmatprep.subr.mxu0 %v4673
    %4886 = vmatpush1.msra.mxu0 %v4672
    %4887 = vmatprep.subr.mxu0 %v4675
    %4888 = vmatpush1.msra.mxu0 %v4674
    %4889 = vmatprep.subr.mxu0 %v4677
    %4890 = vmatpush1.msra.mxu0 %v4676
    %4891 = vmatprep.subr.mxu0 %v4679
    %4892 = vmatpush1.msra.mxu0 %v4678
    %4893 = vmatprep.subr.mxu0 %v4681
    %4894 = vmatpush1.msra.mxu0 %v4680
    %4895 = vmatprep.subr.mxu0 %v4683
    %4896 = vmatpush1.msra.mxu0 %v4682
    %4897 = vmatprep.subr.mxu0 %v4685
    %4898 = vmatpush1.msra.mxu0 %v4684
    %4899 = vmatprep.subr.mxu0 %v4687
    %4900 = vmatpush1.msra.mxu0 %v4686
    %4901 = vmatprep.subr.mxu0 %v4689
    %4902 = vmatpush1.msra.mxu0 %v4688
    %4903 = vmatprep.subr.mxu0 %v4691
    %4904 = vmatpush1.msra.mxu0 %v4690
    %4905 = vmatprep.subr.mxu0 %v4693
    %4906 = vmatpush1.msra.mxu0 %v4692
    %4907 = vmatprep.subr.mxu0 %v4695
    %4908 = vmatpush1.msra.mxu0 %v4694
    %4909 = vmatprep.subr.mxu0 %v4697
    %4910 = vmatpush1.msra.mxu0 %v4696
    %4911 = vmatprep.subr.mxu0 %v4699
    %4912 = vmatpush1.msra.mxu0 %v4698
    %4913 = vmatprep.subr.mxu0 %v4701
    %4914 = vmatpush1.msra.mxu0 %v4700
    %4915 = vmatprep.subr.mxu0 %v4703
    %4916 = vmatpush1.msra.mxu0 %v4702
    %4917 = vmatprep.subr.mxu0 %v4705
    %4918 = vmatpush1.msra.mxu0 %v4704
    %4919 = vmatprep.subr.mxu0 %v4707
    %4920 = vmatpush1.msra.mxu0 %v4706
    %4921 = vmatprep.subr.mxu0 %v4709
    %4922 = vmatpush1.msra.mxu0 %v4708
    %4923 = vmatprep.subr.mxu0 %v4711
    %4924 = vmatpush1.msra.mxu0 %v4710
    %4925 = vmatprep.subr.mxu0 %v4713
    %4926 = vmatpush1.msra.mxu0 %v4712
    %4927 = vmatprep.subr.mxu0 %v4715
    %4928 = vmatpush1.msra.mxu0 %v4714
    %4929 = vmatprep.subr.mxu0 %v4717
    %4930 = vmatpush1.msra.mxu0 %v4716
    %4931 = vmatprep.subr.mxu0 %v4719
    %4932 = vmatpush1.msra.mxu0 %v4718
    %4933 = vmatprep.subr.mxu0 %v4721
    %4934 = vmatpush1.msra.mxu0 %v4720
    %4935 = vmatprep.subr.mxu0 %v4723
    %4936 = vmatpush1.msra.mxu0 %v4722
    %4937 = vmatprep.subr.mxu0 %v4725
    %4938 = vmatpush1.msra.mxu0 %v4724
    %4939 = vmatprep.subr.mxu0 %v4727
    %4940 = vmatpush1.msra.mxu0 %v4726
    %4941 = vmatprep.subr.mxu0 %v4729
    %4942 = vmatpush1.msra.mxu0 %v4728
    %4943 = vmatprep.subr.mxu0 %v4731
    %4944 = vmatpush1.msra.mxu0 %v4730
    %4945 = vmatprep.subr.mxu0 %v4733
    %4946 = vmatpush1.msra.mxu0 %v4732
    %4947 = vmatprep.mubr.f32.mxu0 %v4597
    %4948 = vmatmul.mubr.f32.gmra.mrb[0].mxu0 %v4596
    %v4949 = vpop.f32.mrb[0].mxu0
    %v4950 = vadd.f32 %v4873, %v4949
    %v4951 = vpop.f32.mrb[0].mxu0
    %v4952 = vadd.f32 %v4875, %v4951
    %4953 = vmatprep.mubr.f32.mxu0 %v4603
    %4954 = vmatmul.mubr.f32.gmra.mrb[0].mxu0 %v4602
    %v4955 = vpop.f32.mrb[0].mxu0
    %v4956 = vadd.f32 %v4879, %v4955
    %v4957 = vpop.f32.mrb[0].mxu0
    %v4958 = vadd.f32 %v4881, %v4957
    %4959 = vdwg.mxu0
    %4960 = vmatprep.subr.mxu0 %v4735
    %4961 = vmatpush1.msra.mxu0 %v4734
    %4962 = vmatprep.subr.mxu0 %v4737
    %4963 = vmatpush1.msra.mxu0 %v4736
    %4964 = vmatprep.subr.mxu0 %v4739
    %4965 = vmatpush1.msra.mxu0 %v4738
    %4966 = vmatprep.subr.mxu0 %v4741
    %4967 = vmatpush1.msra.mxu0 %v4740
    %4968 = vmatprep.subr.mxu0 %v4743
    %4969 = vmatpush1.msra.mxu0 %v4742
    %4970 = vmatprep.subr.mxu0 %v4745
    %4971 = vmatpush1.msra.mxu0 %v4744
    %4972 = vmatprep.subr.mxu0 %v4747
    %4973 = vmatpush1.msra.mxu0 %v4746
    %4974 = vmatprep.subr.mxu0 %v4749
    %4975 = vmatpush1.msra.mxu0 %v4748
    %4976 = vmatprep.subr.mxu0 %v4751
    %4977 = vmatpush1.msra.mxu0 %v4750
    %4978 = vmatprep.subr.mxu0 %v4753
    %4979 = vmatpush1.msra.mxu0 %v4752
    %4980 = vmatprep.subr.mxu0 %v4755
    %4981 = vmatpush1.msra.mxu0 %v4754
    %4982 = vmatprep.subr.mxu0 %v4757
    %4983 = vmatpush1.msra.mxu0 %v4756
    %4984 = vmatprep.subr.mxu0 %v4759
    %4985 = vmatpush1.msra.mxu0 %v4758
    %4986 = vmatprep.subr.mxu0 %v4761
    %4987 = vmatpush1.msra.mxu0 %v4760
    %4988 = vmatprep.subr.mxu0 %v4763
    %4989 = vmatpush1.msra.mxu0 %v4762
    %4990 = vmatprep.subr.mxu0 %v4765
    %4991 = vmatpush1.msra.mxu0 %v4764
    %4992 = vmatprep.subr.mxu0 %v4767
    %4993 = vmatpush1.msra.mxu0 %v4766
    %4994 = vmatprep.subr.mxu0 %v4769
    %4995 = vmatpush1.msra.mxu0 %v4768
    %4996 = vmatprep.subr.mxu0 %v4771
    %4997 = vmatpush1.msra.mxu0 %v4770
    %4998 = vmatprep.subr.mxu0 %v4773
    %4999 = vmatpush1.msra.mxu0 %v4772
    %5000 = vmatprep.subr.mxu0 %v4775
    %5001 = vmatpush1.msra.mxu0 %v4774
    %5002 = vmatprep.subr.mxu0 %v4777
    %5003 = vmatpush1.msra.mxu0 %v4776
    %5004 = vmatprep.subr.mxu0 %v4779
    %5005 = vmatpush1.msra.mxu0 %v4778
    %5006 = vmatprep.subr.mxu0 %v4781
    %5007 = vmatpush1.msra.mxu0 %v4780
    %5008 = vmatprep.subr.mxu0 %v4783
    %5009 = vmatpush1.msra.mxu0 %v4782
    %5010 = vmatprep.subr.mxu0 %v4785
    %5011 = vmatpush1.msra.mxu0 %v4784
    %5012 = vmatprep.subr.mxu0 %v4787
    %5013 = vmatpush1.msra.mxu0 %v4786
    %5014 = vmatprep.subr.mxu0 %v4789
    %5015 = vmatpush1.msra.mxu0 %v4788
    %5016 = vmatprep.subr.mxu0 %v4791
    %5017 = vmatpush1.msra.mxu0 %v4790
    %5018 = vmatprep.subr.mxu0 %v4804
    %5019 = vmatpush1.msra.mxu0 %v4801
    %5020 = vmatprep.subr.mxu0 0.0
    %5021 = vmatpush1.msra.mxu0 0.0
    %5022 = vmatprep.subr.mxu0 0.0
    %5023 = vmatpush1.msra.mxu0 0.0
    %5024 = vmatprep.mubr.f32.mxu0 %v4795
    %5025 = vmatmul.mubr.f32.gmra.mrb[0].mxu0 %v4598
    %v5026 = vpop.f32.mrb[0].mxu0
    %v5027 = vadd.f32 %v4950, %v5026
    %v5028 = vpop.f32.mrb[0].mxu0
    %v5029 = vadd.f32 %v4952, %v5028
    %5030 = vmatprep.mubr.f32.mxu0 %v4798
    %5031 = vmatmul.mubr.f32.gmra.mrb[0].mxu0 %v4604
    %v5032 = vpop.f32.mrb[0].mxu0
    %v5033 = vadd.f32 %v4956, %v5032
    %v5034 = vpop.f32.mrb[0].mxu0
    %v5035 = vadd.f32 %v4958, %v5034
    %5036 = vdwg.mxu0
    %5037 = vst [vmem:[#allocation4] sm:$0xff] %v5027
    %5038 = vst.msk [vmem:[#allocation4 + $0x8] sm:$0xff] %vm1328, %v5029
    %5039 = vst [vmem:[#allocation4 + $0x10] sm:$0xff] %v5033
    %5040 = vst.msk [vmem:[#allocation4 + $0x18] sm:$0xff] %vm1328, %v5035
    %v5041 = vld [vmem:[#allocation4] sm:$0xff]
    %v5042 = vld [vmem:[#allocation4 + $0x8] sm:$0xff]
    %v5043 = vld [vmem:[#allocation4 + $0x10] sm:$0xff]
    %v5044 = vld [vmem:[#allocation4 + $0x18] sm:$0xff]
    %5045 = vst [vmem:[#allocation5] sm:$0xff] %v5041
    %5046 = vst.msk [vmem:[#allocation5 + $0x8] sm:$0xff] %vm216, %v5042
    %5047 = vst [vmem:[#allocation5 + $0x10] sm:$0xff] %v5043
    %5048 = vst.msk [vmem:[#allocation5 + $0x18] sm:$0xff] %vm216, %v5044
    %v5049 = vld [vmem:[#allocation4] sm:$0xff]
    %v5050 = vld [vmem:[#allocation4 + $0x8] sm:$0xff]
    %v5051 = vld [vmem:[#allocation4 + $0x10] sm:$0xff]
    %v5052 = vld [vmem:[#allocation4 + $0x18] sm:$0xff]
    %5057 = vrot.lane.b32.xlu0 %v5049, 127
    %v5058 = vpop.permute.xlu0 %5057
    %5059 = vrot.lane.b32.xlu0 %v5050, 127
    %v5060 = vpop.permute.xlu0 %5059
    %5061 = vrot.lane.b32.xlu0 %v5051, 127
    %v5062 = vpop.permute.xlu0 %5061
    %5063 = vrot.lane.b32.xlu0 %v5052, 127
    %v5064 = vpop.permute.xlu0 %5063
    %v5065 = vsel %vm51, %v5058, %v5060
    %v5066 = vsel %vm51, %v5062, %v5064
    %5071 = vst [vmem:[#allocation5 + $0x20] sm:$0xff] %v5065
    %5072 = vst.msk [vmem:[#allocation5 + $0x28] sm:$0xff] %vm216, %v5060
    %5073 = vst [vmem:[#allocation5 + $0x30] sm:$0xff] %v5066
    %5074 = vst.msk [vmem:[#allocation5 + $0x38] sm:$0xff] %vm216, %v5064
    %v5075 = vld [vmem:[#allocation4] sm:$0xff]
    %v5076 = vld [vmem:[#allocation4 + $0x8] sm:$0xff]
    %v5077 = vld [vmem:[#allocation4 + $0x10] sm:$0xff]
    %v5078 = vld [vmem:[#allocation4 + $0x18] sm:$0xff]
    %5083 = vrot.lane.b32.xlu0 %v5075, 126
    %v5084 = vpop.permute.xlu0 %5083
    %5085 = vrot.lane.b32.xlu0 %v5076, 126
    %v5086 = vpop.permute.xlu0 %5085
    %5087 = vrot.lane.b32.xlu0 %v5077, 126
    %v5088 = vpop.permute.xlu0 %5087
    %5089 = vrot.lane.b32.xlu0 %v5078, 126
    %v5090 = vpop.permute.xlu0 %5089
    %v5091 = vsel %vm62, %v5084, %v5086
    %v5092 = vsel %vm62, %v5088, %v5090
    %5097 = vst [vmem:[#allocation5 + $0x40] sm:$0xff] %v5091
    %5098 = vst.msk [vmem:[#allocation5 + $0x48] sm:$0xff] %vm216, %v5086
    %5099 = vst [vmem:[#allocation5 + $0x50] sm:$0xff] %v5092
    %5100 = vst.msk [vmem:[#allocation5 + $0x58] sm:$0xff] %vm216, %v5090
    %v5101 = vld [vmem:[#allocation4] sm:$0xff]
    %v5102 = vld [vmem:[#allocation4 + $0x8] sm:$0xff]
    %v5103 = vld [vmem:[#allocation4 + $0x10] sm:$0xff]
    %v5104 = vld [vmem:[#allocation4 + $0x18] sm:$0xff]
    %5109 = vrot.lane.b32.xlu0 %v5101, 125
    %v5110 = vpop.permute.xlu0 %5109
    %5111 = vrot.lane.b32.xlu0 %v5102, 125
    %v5112 = vpop.permute.xlu0 %5111
    %5113 = vrot.lane.b32.xlu0 %v5103, 125
    %v5114 = vpop.permute.xlu0 %5113
    %5115 = vrot.lane.b32.xlu0 %v5104, 125
    %v5116 = vpop.permute.xlu0 %5115
    %v5117 = vsel %vm73, %v5110, %v5112
    %v5118 = vsel %vm73, %v5114, %v5116
    %5123 = vst [vmem:[#allocation5 + $0x60] sm:$0xff] %v5117
    %5124 = vst.msk [vmem:[#allocation5 + $0x68] sm:$0xff] %vm216, %v5112
    %5125 = vst [vmem:[#allocation5 + $0x70] sm:$0xff] %v5118
    %5126 = vst.msk [vmem:[#allocation5 + $0x78] sm:$0xff] %vm216, %v5116
    %v5127 = vld [vmem:[#allocation4] sm:$0xff]
    %v5128 = vld [vmem:[#allocation4 + $0x8] sm:$0xff]
    %v5129 = vld [vmem:[#allocation4 + $0x10] sm:$0xff]
    %v5130 = vld [vmem:[#allocation4 + $0x18] sm:$0xff]
    %5135 = vrot.lane.b32.xlu0 %v5127, 124
    %v5136 = vpop.permute.xlu0 %5135
    %5137 = vrot.lane.b32.xlu0 %v5128, 124
    %v5138 = vpop.permute.xlu0 %5137
    %5139 = vrot.lane.b32.xlu0 %v5129, 124
    %v5140 = vpop.permute.xlu0 %5139
    %5141 = vrot.lane.b32.xlu0 %v5130, 124
    %v5142 = vpop.permute.xlu0 %5141
    %v5143 = vsel %vm84, %v5136, %v5138
    %v5144 = vsel %vm84, %v5140, %v5142
    %5149 = vst [vmem:[#allocation5 + $0x80] sm:$0xff] %v5143
    %5150 = vst.msk [vmem:[#allocation5 + $0x88] sm:$0xff] %vm216, %v5138
    %5151 = vst [vmem:[#allocation5 + $0x90] sm:$0xff] %v5144
    %5152 = vst.msk [vmem:[#allocation5 + $0x98] sm:$0xff] %vm216, %v5142
    %v5153 = vld [vmem:[#allocation4] sm:$0xff]
    %v5154 = vld [vmem:[#allocation4 + $0x8] sm:$0xff]
    %v5155 = vld [vmem:[#allocation4 + $0x10] sm:$0xff]
    %v5156 = vld [vmem:[#allocation4 + $0x18] sm:$0xff]
    %5161 = vrot.lane.b32.xlu0 %v5153, 113
    %v5162 = vpop.permute.xlu0 %5161
    %5163 = vrot.lane.b32.xlu0 %v5154, 113
    %v5164 = vpop.permute.xlu0 %5163
    %5165 = vrot.lane.b32.xlu0 %v5155, 113
    %v5166 = vpop.permute.xlu0 %5165
    %5167 = vrot.lane.b32.xlu0 %v5156, 113
    %v5168 = vpop.permute.xlu0 %5167
    %v5169 = vsel %vm1460, %v5162, %v5164
    %v5170 = vsel %vm1460, %v5166, %v5168
    %5175 = vst [vmem:[#allocation5 + $0xa0] sm:$0xff] %v5169
    %5176 = vst.msk [vmem:[#allocation5 + $0xa8] sm:$0xff] %vm216, %v5164
    %5177 = vst [vmem:[#allocation5 + $0xb0] sm:$0xff] %v5170
    %5178 = vst.msk [vmem:[#allocation5 + $0xb8] sm:$0xff] %vm216, %v5168
    %v5179 = vld [vmem:[#allocation4] sm:$0xff]
    %v5180 = vld [vmem:[#allocation4 + $0x8] sm:$0xff]
    %v5181 = vld [vmem:[#allocation4 + $0x10] sm:$0xff]
    %v5182 = vld [vmem:[#allocation4 + $0x18] sm:$0xff]
    %5187 = vrot.lane.b32.xlu0 %v5179, 112
    %v5188 = vpop.permute.xlu0 %5187
    %5189 = vrot.lane.b32.xlu0 %v5180, 112
    %v5190 = vpop.permute.xlu0 %5189
    %5191 = vrot.lane.b32.xlu0 %v5181, 112
    %v5192 = vpop.permute.xlu0 %5191
    %5193 = vrot.lane.b32.xlu0 %v5182, 112
    %v5194 = vpop.permute.xlu0 %5193
    %v5195 = vsel %vm1487, %v5188, %v5190
    %v5196 = vsel %vm1487, %v5192, %v5194
    %5201 = vst [vmem:[#allocation5 + $0xc0] sm:$0xff] %v5195
    %5202 = vst.msk [vmem:[#allocation5 + $0xc8] sm:$0xff] %vm216, %v5190
    %5203 = vst [vmem:[#allocation5 + $0xd0] sm:$0xff] %v5196
    %5204 = vst.msk [vmem:[#allocation5 + $0xd8] sm:$0xff] %vm216, %v5194
    %v5205 = vld [vmem:[#allocation4] sm:$0xff]
    %v5206 = vld [vmem:[#allocation4 + $0x8] sm:$0xff]
    %v5207 = vld [vmem:[#allocation4 + $0x10] sm:$0xff]
    %v5208 = vld [vmem:[#allocation4 + $0x18] sm:$0xff]
    %5213 = vrot.lane.b32.xlu0 %v5205, 111
    %v5214 = vpop.permute.xlu0 %5213
    %5215 = vrot.lane.b32.xlu0 %v5206, 111
    %v5216 = vpop.permute.xlu0 %5215
    %5217 = vrot.lane.b32.xlu0 %v5207, 111
    %v5218 = vpop.permute.xlu0 %5217
    %5219 = vrot.lane.b32.xlu0 %v5208, 111
    %v5220 = vpop.permute.xlu0 %5219
    %v5221 = vsel %vm1514, %v5214, %v5216
    %v5222 = vsel %vm1514, %v5218, %v5220
    %5227 = vst [vmem:[#allocation5 + $0xe0] sm:$0xff] %v5221
    %5228 = vst.msk [vmem:[#allocation5 + $0xe8] sm:$0xff] %vm216, %v5216
    %5229 = vst [vmem:[#allocation5 + $0xf0] sm:$0xff] %v5222
    %5230 = vst.msk [vmem:[#allocation5 + $0xf8] sm:$0xff] %vm216, %v5220
    %v5231 = vld [vmem:[#allocation4] sm:$0xff]
    %v5232 = vld [vmem:[#allocation4 + $0x8] sm:$0xff]
    %v5233 = vld [vmem:[#allocation4 + $0x10] sm:$0xff]
    %v5234 = vld [vmem:[#allocation4 + $0x18] sm:$0xff]
    %5239 = vrot.lane.b32.xlu0 %v5231, 110
    %v5240 = vpop.permute.xlu0 %5239
    %5241 = vrot.lane.b32.xlu0 %v5232, 110
    %v5242 = vpop.permute.xlu0 %5241
    %5243 = vrot.lane.b32.xlu0 %v5233, 110
    %v5244 = vpop.permute.xlu0 %5243
    %5245 = vrot.lane.b32.xlu0 %v5234, 110
    %v5246 = vpop.permute.xlu0 %5245
    %v5247 = vsel %vm1541, %v5240, %v5242
    %v5248 = vsel %vm1541, %v5244, %v5246
    %5253 = vst [vmem:[#allocation5 + $0x100] sm:$0xff] %v5247
    %5254 = vst.msk [vmem:[#allocation5 + $0x108] sm:$0xff] %vm216, %v5242
    %5255 = vst [vmem:[#allocation5 + $0x110] sm:$0xff] %v5248
    %5256 = vst.msk [vmem:[#allocation5 + $0x118] sm:$0xff] %vm216, %v5246
    %v5257 = vld [vmem:[#allocation4] sm:$0xff]
    %v5258 = vld [vmem:[#allocation4 + $0x8] sm:$0xff]
    %v5259 = vld [vmem:[#allocation4 + $0x10] sm:$0xff]
    %v5260 = vld [vmem:[#allocation4 + $0x18] sm:$0xff]
    %5265 = vrot.lane.b32.xlu0 %v5257, 109
    %v5266 = vpop.permute.xlu0 %5265
    %5267 = vrot.lane.b32.xlu0 %v5258, 109
    %v5268 = vpop.permute.xlu0 %5267
    %5269 = vrot.lane.b32.xlu0 %v5259, 109
    %v5270 = vpop.permute.xlu0 %5269
    %5271 = vrot.lane.b32.xlu0 %v5260, 109
    %v5272 = vpop.permute.xlu0 %5271
    %v5273 = vsel %vm1082, %v5266, %v5268
    %v5274 = vsel %vm1082, %v5270, %v5272
    %5279 = vst [vmem:[#allocation5 + $0x120] sm:$0xff] %v5273
    %5280 = vst.msk [vmem:[#allocation5 + $0x128] sm:$0xff] %vm216, %v5268
    %5281 = vst [vmem:[#allocation5 + $0x130] sm:$0xff] %v5274
    %5282 = vst.msk [vmem:[#allocation5 + $0x138] sm:$0xff] %vm216, %v5272
    %v5283 = vld [vmem:[#allocation4] sm:$0xff]
    %v5284 = vld [vmem:[#allocation4 + $0x8] sm:$0xff]
    %v5285 = vld [vmem:[#allocation4 + $0x10] sm:$0xff]
    %v5286 = vld [vmem:[#allocation4 + $0x18] sm:$0xff]
    %5291 = vrot.lane.b32.xlu0 %v5283, 98
    %v5292 = vpop.permute.xlu0 %5291
    %5293 = vrot.lane.b32.xlu0 %v5284, 98
    %v5294 = vpop.permute.xlu0 %5293
    %5295 = vrot.lane.b32.xlu0 %v5285, 98
    %v5296 = vpop.permute.xlu0 %5295
    %5297 = vrot.lane.b32.xlu0 %v5286, 98
    %v5298 = vpop.permute.xlu0 %5297
    %v5299 = vsel %vm95, %v5292, %v5294
    %v5300 = vsel %vm95, %v5296, %v5298
    %5305 = vst [vmem:[#allocation5 + $0x140] sm:$0xff] %v5299
    %5306 = vst.msk [vmem:[#allocation5 + $0x148] sm:$0xff] %vm216, %v5294
    %5307 = vst [vmem:[#allocation5 + $0x150] sm:$0xff] %v5300
    %5308 = vst.msk [vmem:[#allocation5 + $0x158] sm:$0xff] %vm216, %v5298
    %v5309 = vld [vmem:[#allocation4] sm:$0xff]
    %v5310 = vld [vmem:[#allocation4 + $0x8] sm:$0xff]
    %v5311 = vld [vmem:[#allocation4 + $0x10] sm:$0xff]
    %v5312 = vld [vmem:[#allocation4 + $0x18] sm:$0xff]
    %5317 = vrot.lane.b32.xlu0 %v5309, 97
    %v5318 = vpop.permute.xlu0 %5317
    %5319 = vrot.lane.b32.xlu0 %v5310, 97
    %v5320 = vpop.permute.xlu0 %5319
    %5321 = vrot.lane.b32.xlu0 %v5311, 97
    %v5322 = vpop.permute.xlu0 %5321
    %5323 = vrot.lane.b32.xlu0 %v5312, 97
    %v5324 = vpop.permute.xlu0 %5323
    %v5325 = vsel %vm106, %v5318, %v5320
    %v5326 = vsel %vm106, %v5322, %v5324
    %5331 = vst [vmem:[#allocation5 + $0x160] sm:$0xff] %v5325
    %5332 = vst.msk [vmem:[#allocation5 + $0x168] sm:$0xff] %vm216, %v5320
    %5333 = vst [vmem:[#allocation5 + $0x170] sm:$0xff] %v5326
    %5334 = vst.msk [vmem:[#allocation5 + $0x178] sm:$0xff] %vm216, %v5324
    %v5335 = vld [vmem:[#allocation4] sm:$0xff]
    %v5336 = vld [vmem:[#allocation4 + $0x8] sm:$0xff]
    %v5337 = vld [vmem:[#allocation4 + $0x10] sm:$0xff]
    %v5338 = vld [vmem:[#allocation4 + $0x18] sm:$0xff]
    %5343 = vrot.lane.b32.xlu0 %v5335, 96
    %v5344 = vpop.permute.xlu0 %5343
    %5345 = vrot.lane.b32.xlu0 %v5336, 96
    %v5346 = vpop.permute.xlu0 %5345
    %5347 = vrot.lane.b32.xlu0 %v5337, 96
    %v5348 = vpop.permute.xlu0 %5347
    %5349 = vrot.lane.b32.xlu0 %v5338, 96
    %v5350 = vpop.permute.xlu0 %5349
    %v5351 = vsel %vm117, %v5344, %v5346
    %v5352 = vsel %vm117, %v5348, %v5350
    %5357 = vst [vmem:[#allocation5 + $0x180] sm:$0xff] %v5351
    %5358 = vst.msk [vmem:[#allocation5 + $0x188] sm:$0xff] %vm216, %v5346
    %5359 = vst [vmem:[#allocation5 + $0x190] sm:$0xff] %v5352
    %5360 = vst.msk [vmem:[#allocation5 + $0x198] sm:$0xff] %vm216, %v5350
    %v5361 = vld [vmem:[#allocation4] sm:$0xff]
    %v5362 = vld [vmem:[#allocation4 + $0x8] sm:$0xff]
    %v5363 = vld [vmem:[#allocation4 + $0x10] sm:$0xff]
    %v5364 = vld [vmem:[#allocation4 + $0x18] sm:$0xff]
    %5369 = vrot.lane.b32.xlu0 %v5361, 95
    %v5370 = vpop.permute.xlu0 %5369
    %5371 = vrot.lane.b32.xlu0 %v5362, 95
    %v5372 = vpop.permute.xlu0 %5371
    %5373 = vrot.lane.b32.xlu0 %v5363, 95
    %v5374 = vpop.permute.xlu0 %5373
    %5375 = vrot.lane.b32.xlu0 %v5364, 95
    %v5376 = vpop.permute.xlu0 %5375
    %v5377 = vsel %vm128, %v5370, %v5372
    %v5378 = vsel %vm128, %v5374, %v5376
    %5383 = vst [vmem:[#allocation5 + $0x1a0] sm:$0xff] %v5377
    %5384 = vst.msk [vmem:[#allocation5 + $0x1a8] sm:$0xff] %vm216, %v5372
    %5385 = vst [vmem:[#allocation5 + $0x1b0] sm:$0xff] %v5378
    %5386 = vst.msk [vmem:[#allocation5 + $0x1b8] sm:$0xff] %vm216, %v5376
    %v5387 = vld [vmem:[#allocation4] sm:$0xff]
    %v5388 = vld [vmem:[#allocation4 + $0x8] sm:$0xff]
    %v5389 = vld [vmem:[#allocation4 + $0x10] sm:$0xff]
    %v5390 = vld [vmem:[#allocation4 + $0x18] sm:$0xff]
    %5395 = vrot.lane.b32.xlu0 %v5387, 94
    %v5396 = vpop.permute.xlu0 %5395
    %5397 = vrot.lane.b32.xlu0 %v5388, 94
    %v5398 = vpop.permute.xlu0 %5397
    %5399 = vrot.lane.b32.xlu0 %v5389, 94
    %v5400 = vpop.permute.xlu0 %5399
    %5401 = vrot.lane.b32.xlu0 %v5390, 94
    %v5402 = vpop.permute.xlu0 %5401
    %v5403 = vsel %vm139, %v5396, %v5398
    %v5404 = vsel %vm139, %v5400, %v5402
    %5409 = vst [vmem:[#allocation5 + $0x1c0] sm:$0xff] %v5403
    %5410 = vst.msk [vmem:[#allocation5 + $0x1c8] sm:$0xff] %vm216, %v5398
    %5411 = vst [vmem:[#allocation5 + $0x1d0] sm:$0xff] %v5404
    %5412 = vst.msk [vmem:[#allocation5 + $0x1d8] sm:$0xff] %vm216, %v5402
    %v5413 = vld [vmem:[#allocation4] sm:$0xff]
    %v5414 = vld [vmem:[#allocation4 + $0x8] sm:$0xff]
    %v5415 = vld [vmem:[#allocation4 + $0x10] sm:$0xff]
    %v5416 = vld [vmem:[#allocation4 + $0x18] sm:$0xff]
    %5421 = vrot.lane.b32.xlu0 %v5413, 83
    %v5422 = vpop.permute.xlu0 %5421
    %5423 = vrot.lane.b32.xlu0 %v5414, 83
    %v5424 = vpop.permute.xlu0 %5423
    %5425 = vrot.lane.b32.xlu0 %v5415, 83
    %v5426 = vpop.permute.xlu0 %5425
    %5427 = vrot.lane.b32.xlu0 %v5416, 83
    %v5428 = vpop.permute.xlu0 %5427
    %v5429 = vsel %vm1724, %v5422, %v5424
    %v5430 = vsel %vm1724, %v5426, %v5428
    %5435 = vst [vmem:[#allocation5 + $0x1e0] sm:$0xff] %v5429
    %5436 = vst.msk [vmem:[#allocation5 + $0x1e8] sm:$0xff] %vm216, %v5424
    %5437 = vst [vmem:[#allocation5 + $0x1f0] sm:$0xff] %v5430
    %5438 = vst.msk [vmem:[#allocation5 + $0x1f8] sm:$0xff] %vm216, %v5428
    %v5439 = vld [vmem:[#allocation4] sm:$0xff]
    %v5440 = vld [vmem:[#allocation4 + $0x8] sm:$0xff]
    %v5441 = vld [vmem:[#allocation4 + $0x10] sm:$0xff]
    %v5442 = vld [vmem:[#allocation4 + $0x18] sm:$0xff]
    %5447 = vrot.lane.b32.xlu0 %v5439, 82
    %v5448 = vpop.permute.xlu0 %5447
    %5449 = vrot.lane.b32.xlu0 %v5440, 82
    %v5450 = vpop.permute.xlu0 %5449
    %5451 = vrot.lane.b32.xlu0 %v5441, 82
    %v5452 = vpop.permute.xlu0 %5451
    %5453 = vrot.lane.b32.xlu0 %v5442, 82
    %v5454 = vpop.permute.xlu0 %5453
    %v5455 = vsel %vm1751, %v5448, %v5450
    %v5456 = vsel %vm1751, %v5452, %v5454
    %5461 = vst [vmem:[#allocation5 + $0x200] sm:$0xff] %v5455
    %5462 = vst.msk [vmem:[#allocation5 + $0x208] sm:$0xff] %vm216, %v5450
    %5463 = vst [vmem:[#allocation5 + $0x210] sm:$0xff] %v5456
    %5464 = vst.msk [vmem:[#allocation5 + $0x218] sm:$0xff] %vm216, %v5454
    %v5465 = vld [vmem:[#allocation4] sm:$0xff]
    %v5466 = vld [vmem:[#allocation4 + $0x8] sm:$0xff]
    %v5467 = vld [vmem:[#allocation4 + $0x10] sm:$0xff]
    %v5468 = vld [vmem:[#allocation4 + $0x18] sm:$0xff]
    %5473 = vrot.lane.b32.xlu0 %v5465, 81
    %v5474 = vpop.permute.xlu0 %5473
    %5475 = vrot.lane.b32.xlu0 %v5466, 81
    %v5476 = vpop.permute.xlu0 %5475
    %5477 = vrot.lane.b32.xlu0 %v5467, 81
    %v5478 = vpop.permute.xlu0 %5477
    %5479 = vrot.lane.b32.xlu0 %v5468, 81
    %v5480 = vpop.permute.xlu0 %5479
    %v5481 = vsel %vm1778, %v5474, %v5476
    %v5482 = vsel %vm1778, %v5478, %v5480
    %5487 = vst [vmem:[#allocation5 + $0x220] sm:$0xff] %v5481
    %5488 = vst.msk [vmem:[#allocation5 + $0x228] sm:$0xff] %vm216, %v5476
    %5489 = vst [vmem:[#allocation5 + $0x230] sm:$0xff] %v5482
    %5490 = vst.msk [vmem:[#allocation5 + $0x238] sm:$0xff] %vm216, %v5480
    %v5491 = vld [vmem:[#allocation4] sm:$0xff]
    %v5492 = vld [vmem:[#allocation4 + $0x8] sm:$0xff]
    %v5493 = vld [vmem:[#allocation4 + $0x10] sm:$0xff]
    %v5494 = vld [vmem:[#allocation4 + $0x18] sm:$0xff]
    %5499 = vrot.lane.b32.xlu0 %v5491, 80
    %v5500 = vpop.permute.xlu0 %5499
    %5501 = vrot.lane.b32.xlu0 %v5492, 80
    %v5502 = vpop.permute.xlu0 %5501
    %5503 = vrot.lane.b32.xlu0 %v5493, 80
    %v5504 = vpop.permute.xlu0 %5503
    %5505 = vrot.lane.b32.xlu0 %v5494, 80
    %v5506 = vpop.permute.xlu0 %5505
    %v5507 = vsel %vm1805, %v5500, %v5502
    %v5508 = vsel %vm1805, %v5504, %v5506
    %5513 = vst [vmem:[#allocation5 + $0x240] sm:$0xff] %v5507
    %5514 = vst.msk [vmem:[#allocation5 + $0x248] sm:$0xff] %vm216, %v5502
    %5515 = vst [vmem:[#allocation5 + $0x250] sm:$0xff] %v5508
    %5516 = vst.msk [vmem:[#allocation5 + $0x258] sm:$0xff] %vm216, %v5506
    %v5517 = vld [vmem:[#allocation4] sm:$0xff]
    %v5518 = vld [vmem:[#allocation4 + $0x8] sm:$0xff]
    %v5519 = vld [vmem:[#allocation4 + $0x10] sm:$0xff]
    %v5520 = vld [vmem:[#allocation4 + $0x18] sm:$0xff]
    %5525 = vrot.lane.b32.xlu0 %v5517, 79
    %v5526 = vpop.permute.xlu0 %5525
    %5527 = vrot.lane.b32.xlu0 %v5518, 79
    %v5528 = vpop.permute.xlu0 %5527
    %5529 = vrot.lane.b32.xlu0 %v5519, 79
    %v5530 = vpop.permute.xlu0 %5529
    %5531 = vrot.lane.b32.xlu0 %v5520, 79
    %v5532 = vpop.permute.xlu0 %5531
    %v5533 = vsel %vm1832, %v5526, %v5528
    %v5534 = vsel %vm1832, %v5530, %v5532
    %5539 = vst [vmem:[#allocation5 + $0x260] sm:$0xff] %v5533
    %5540 = vst.msk [vmem:[#allocation5 + $0x268] sm:$0xff] %vm216, %v5528
    %5541 = vst [vmem:[#allocation5 + $0x270] sm:$0xff] %v5534
    %5542 = vst.msk [vmem:[#allocation5 + $0x278] sm:$0xff] %vm216, %v5532
    %v5543 = vld [vmem:[#allocation4] sm:$0xff]
    %v5544 = vld [vmem:[#allocation4 + $0x8] sm:$0xff]
    %v5545 = vld [vmem:[#allocation4 + $0x10] sm:$0xff]
    %v5546 = vld [vmem:[#allocation4 + $0x18] sm:$0xff]
    %5551 = vrot.lane.b32.xlu0 %v5543, 68
    %v5552 = vpop.permute.xlu0 %5551
    %5553 = vrot.lane.b32.xlu0 %v5544, 68
    %v5554 = vpop.permute.xlu0 %5553
    %5555 = vrot.lane.b32.xlu0 %v5545, 68
    %v5556 = vpop.permute.xlu0 %5555
    %5557 = vrot.lane.b32.xlu0 %v5546, 68
    %v5558 = vpop.permute.xlu0 %5557
    %v5559 = vsel %vm150, %v5552, %v5554
    %v5560 = vsel %vm150, %v5556, %v5558
    %5565 = vst [vmem:[#allocation5 + $0x280] sm:$0xff] %v5559
    %5566 = vst.msk [vmem:[#allocation5 + $0x288] sm:$0xff] %vm216, %v5554
    %5567 = vst [vmem:[#allocation5 + $0x290] sm:$0xff] %v5560
    %5568 = vst.msk [vmem:[#allocation5 + $0x298] sm:$0xff] %vm216, %v5558
    %v5569 = vld [vmem:[#allocation4] sm:$0xff]
    %v5570 = vld [vmem:[#allocation4 + $0x8] sm:$0xff]
    %v5571 = vld [vmem:[#allocation4 + $0x10] sm:$0xff]
    %v5572 = vld [vmem:[#allocation4 + $0x18] sm:$0xff]
    %5577 = vrot.lane.b32.xlu0 %v5569, 67
    %v5578 = vpop.permute.xlu0 %5577
    %5579 = vrot.lane.b32.xlu0 %v5570, 67
    %v5580 = vpop.permute.xlu0 %5579
    %5581 = vrot.lane.b32.xlu0 %v5571, 67
    %v5582 = vpop.permute.xlu0 %5581
    %5583 = vrot.lane.b32.xlu0 %v5572, 67
    %v5584 = vpop.permute.xlu0 %5583
    %v5585 = vsel %vm161, %v5578, %v5580
    %v5586 = vsel %vm161, %v5582, %v5584
    %5591 = vst [vmem:[#allocation5 + $0x2a0] sm:$0xff] %v5585
    %5592 = vst.msk [vmem:[#allocation5 + $0x2a8] sm:$0xff] %vm216, %v5580
    %5593 = vst [vmem:[#allocation5 + $0x2b0] sm:$0xff] %v5586
    %5594 = vst.msk [vmem:[#allocation5 + $0x2b8] sm:$0xff] %vm216, %v5584
    %v5595 = vld [vmem:[#allocation4] sm:$0xff]
    %v5596 = vld [vmem:[#allocation4 + $0x8] sm:$0xff]
    %v5597 = vld [vmem:[#allocation4 + $0x10] sm:$0xff]
    %v5598 = vld [vmem:[#allocation4 + $0x18] sm:$0xff]
    %5603 = vrot.lane.b32.xlu0 %v5595, 66
    %v5604 = vpop.permute.xlu0 %5603
    %5605 = vrot.lane.b32.xlu0 %v5596, 66
    %v5606 = vpop.permute.xlu0 %5605
    %5607 = vrot.lane.b32.xlu0 %v5597, 66
    %v5608 = vpop.permute.xlu0 %5607
    %5609 = vrot.lane.b32.xlu0 %v5598, 66
    %v5610 = vpop.permute.xlu0 %5609
    %v5611 = vsel %vm172, %v5604, %v5606
    %v5612 = vsel %vm172, %v5608, %v5610
    %5617 = vst [vmem:[#allocation5 + $0x2c0] sm:$0xff] %v5611
    %5618 = vst.msk [vmem:[#allocation5 + $0x2c8] sm:$0xff] %vm216, %v5606
    %5619 = vst [vmem:[#allocation5 + $0x2d0] sm:$0xff] %v5612
    %5620 = vst.msk [vmem:[#allocation5 + $0x2d8] sm:$0xff] %vm216, %v5610
    %v5621 = vld [vmem:[#allocation4] sm:$0xff]
    %v5622 = vld [vmem:[#allocation4 + $0x8] sm:$0xff]
    %v5623 = vld [vmem:[#allocation4 + $0x10] sm:$0xff]
    %v5624 = vld [vmem:[#allocation4 + $0x18] sm:$0xff]
    %5629 = vrot.lane.b32.xlu0 %v5621, 65
    %v5630 = vpop.permute.xlu0 %5629
    %5631 = vrot.lane.b32.xlu0 %v5622, 65
    %v5632 = vpop.permute.xlu0 %5631
    %5633 = vrot.lane.b32.xlu0 %v5623, 65
    %v5634 = vpop.permute.xlu0 %5633
    %5635 = vrot.lane.b32.xlu0 %v5624, 65
    %v5636 = vpop.permute.xlu0 %5635
    %v5637 = vsel %vm183, %v5630, %v5632
    %v5638 = vsel %vm183, %v5634, %v5636
    %5643 = vst [vmem:[#allocation5 + $0x2e0] sm:$0xff] %v5637
    %5644 = vst.msk [vmem:[#allocation5 + $0x2e8] sm:$0xff] %vm216, %v5632
    %5645 = vst [vmem:[#allocation5 + $0x2f0] sm:$0xff] %v5638
    %5646 = vst.msk [vmem:[#allocation5 + $0x2f8] sm:$0xff] %vm216, %v5636
    %v5647 = vld [vmem:[#allocation4] sm:$0xff]
    %v5648 = vld [vmem:[#allocation4 + $0x8] sm:$0xff]
    %v5649 = vld [vmem:[#allocation4 + $0x10] sm:$0xff]
    %v5650 = vld [vmem:[#allocation4 + $0x18] sm:$0xff]
    %5655 = vrot.lane.b32.xlu0 %v5647, 64
    %v5656 = vpop.permute.xlu0 %5655
    %5657 = vrot.lane.b32.xlu0 %v5648, 64
    %v5658 = vpop.permute.xlu0 %5657
    %5659 = vrot.lane.b32.xlu0 %v5649, 64
    %v5660 = vpop.permute.xlu0 %5659
    %5661 = vrot.lane.b32.xlu0 %v5650, 64
    %v5662 = vpop.permute.xlu0 %5661
    %v5663 = vsel %vm194, %v5656, %v5658
    %v5664 = vsel %vm194, %v5660, %v5662
    %5669 = vst [vmem:[#allocation5 + $0x300] sm:$0xff] %v5663
    %5670 = vst.msk [vmem:[#allocation5 + $0x308] sm:$0xff] %vm216, %v5658
    %5671 = vst [vmem:[#allocation5 + $0x310] sm:$0xff] %v5664
    %5672 = vst.msk [vmem:[#allocation5 + $0x318] sm:$0xff] %vm216, %v5662
    %v5673 = vld [vmem:[%s4] sm:$0xff]
    %v5674 = vld [vmem:[%s4 + $0x8] sm:$0xff]
    %v5675 = vld [vmem:[%s4 + $0x10] sm:$0xff]
    %v5676 = vld [vmem:[%s4 + $0x18] sm:$0xff]
    %v5677 = vld [vmem:[%s4 + $0x20] sm:$0xff]
    %v5678 = vld [vmem:[%s4 + $0x28] sm:$0xff]
    %v5679 = vld [vmem:[%s4 + $0x30] sm:$0xff]
    %v5680 = vld [vmem:[%s4 + $0x38] sm:$0xff]
    %v5681 = vld [vmem:[%s4 + $0x40] sm:$0xff]
    %v5682 = vld [vmem:[%s4 + $0x48] sm:$0xff]
    %v5683 = vld [vmem:[%s4 + $0x50] sm:$0xff]
    %v5684 = vld [vmem:[%s4 + $0x58] sm:$0xff]
    %v5685 = vld [vmem:[%s4 + $0x60] sm:$0xff]
    %v5686 = vld [vmem:[%s4 + $0x68] sm:$0xff]
    %v5687 = vld [vmem:[%s4 + $0x70] sm:$0xff]
    %v5688 = vld [vmem:[%s4 + $0x78] sm:$0xff]
    %v5689 = vld [vmem:[#allocation5] sm:$0xff]
    %v5690 = vld [vmem:[#allocation5 + $0x8] sm:$0xff]
    %v5691 = vld [vmem:[#allocation5 + $0x10] sm:$0xff]
    %v5692 = vld [vmem:[#allocation5 + $0x18] sm:$0xff]
    %v5693 = vld [vmem:[#allocation5 + $0x20] sm:$0xff]
    %v5694 = vld [vmem:[#allocation5 + $0x28] sm:$0xff]
    %v5695 = vld [vmem:[#allocation5 + $0x30] sm:$0xff]
    %v5696 = vld [vmem:[#allocation5 + $0x38] sm:$0xff]
    %v5697 = vld [vmem:[#allocation5 + $0x40] sm:$0xff]
    %v5698 = vld [vmem:[#allocation5 + $0x48] sm:$0xff]
    %v5699 = vld [vmem:[#allocation5 + $0x50] sm:$0xff]
    %v5700 = vld [vmem:[#allocation5 + $0x58] sm:$0xff]
    %v5701 = vld [vmem:[#allocation5 + $0x60] sm:$0xff]
    %v5702 = vld [vmem:[#allocation5 + $0x68] sm:$0xff]
    %v5703 = vld [vmem:[#allocation5 + $0x70] sm:$0xff]
    %v5704 = vld [vmem:[#allocation5 + $0x78] sm:$0xff]
    %v5705 = vld [vmem:[#allocation5 + $0x80] sm:$0xff]
    %v5706 = vld [vmem:[#allocation5 + $0x88] sm:$0xff]
    %v5707 = vld [vmem:[#allocation5 + $0x90] sm:$0xff]
    %v5708 = vld [vmem:[#allocation5 + $0x98] sm:$0xff]
    %v5709 = vld [vmem:[#allocation5 + $0xa0] sm:$0xff]
    %v5710 = vld [vmem:[#allocation5 + $0xa8] sm:$0xff]
    %v5711 = vld [vmem:[#allocation5 + $0xb0] sm:$0xff]
    %v5712 = vld [vmem:[#allocation5 + $0xb8] sm:$0xff]
    %v5713 = vld [vmem:[#allocation5 + $0xc0] sm:$0xff]
    %v5714 = vld [vmem:[#allocation5 + $0xc8] sm:$0xff]
    %v5715 = vld [vmem:[#allocation5 + $0xd0] sm:$0xff]
    %v5716 = vld [vmem:[#allocation5 + $0xd8] sm:$0xff]
    %v5717 = vld [vmem:[#allocation5 + $0xe0] sm:$0xff]
    %v5718 = vld [vmem:[#allocation5 + $0xe8] sm:$0xff]
    %v5719 = vld [vmem:[#allocation5 + $0xf0] sm:$0xff]
    %v5720 = vld [vmem:[#allocation5 + $0xf8] sm:$0xff]
    %v5721 = vld [vmem:[#allocation5 + $0x100] sm:$0xff]
    %v5722 = vld [vmem:[#allocation5 + $0x108] sm:$0xff]
    %v5723 = vld [vmem:[#allocation5 + $0x110] sm:$0xff]
    %v5724 = vld [vmem:[#allocation5 + $0x118] sm:$0xff]
    %v5725 = vld [vmem:[#allocation5 + $0x120] sm:$0xff]
    %v5726 = vld [vmem:[#allocation5 + $0x128] sm:$0xff]
    %v5727 = vld [vmem:[#allocation5 + $0x130] sm:$0xff]
    %v5728 = vld [vmem:[#allocation5 + $0x138] sm:$0xff]
    %v5729 = vld [vmem:[#allocation5 + $0x140] sm:$0xff]
    %v5730 = vld [vmem:[#allocation5 + $0x148] sm:$0xff]
    %v5731 = vld [vmem:[#allocation5 + $0x150] sm:$0xff]
    %v5732 = vld [vmem:[#allocation5 + $0x158] sm:$0xff]
    %v5733 = vld [vmem:[#allocation5 + $0x160] sm:$0xff]
    %v5734 = vld [vmem:[#allocation5 + $0x168] sm:$0xff]
    %v5735 = vld [vmem:[#allocation5 + $0x170] sm:$0xff]
    %v5736 = vld [vmem:[#allocation5 + $0x178] sm:$0xff]
    %v5737 = vld [vmem:[#allocation5 + $0x180] sm:$0xff]
    %v5738 = vld [vmem:[#allocation5 + $0x188] sm:$0xff]
    %v5739 = vld [vmem:[#allocation5 + $0x190] sm:$0xff]
    %v5740 = vld [vmem:[#allocation5 + $0x198] sm:$0xff]
    %v5741 = vld [vmem:[#allocation5 + $0x1a0] sm:$0xff]
    %v5742 = vld [vmem:[#allocation5 + $0x1a8] sm:$0xff]
    %v5743 = vld [vmem:[#allocation5 + $0x1b0] sm:$0xff]
    %v5744 = vld [vmem:[#allocation5 + $0x1b8] sm:$0xff]
    %v5745 = vld [vmem:[#allocation5 + $0x1c0] sm:$0xff]
    %v5746 = vld [vmem:[#allocation5 + $0x1c8] sm:$0xff]
    %v5747 = vld [vmem:[#allocation5 + $0x1d0] sm:$0xff]
    %v5748 = vld [vmem:[#allocation5 + $0x1d8] sm:$0xff]
    %v5749 = vld [vmem:[#allocation5 + $0x1e0] sm:$0xff]
    %v5750 = vld [vmem:[#allocation5 + $0x1e8] sm:$0xff]
    %v5751 = vld [vmem:[#allocation5 + $0x1f0] sm:$0xff]
    %v5752 = vld [vmem:[#allocation5 + $0x1f8] sm:$0xff]
    %v5753 = vld [vmem:[#allocation5 + $0x200] sm:$0xff]
    %v5754 = vld [vmem:[#allocation5 + $0x208] sm:$0xff]
    %v5755 = vld [vmem:[#allocation5 + $0x210] sm:$0xff]
    %v5756 = vld [vmem:[#allocation5 + $0x218] sm:$0xff]
    %v5757 = vld [vmem:[#allocation5 + $0x220] sm:$0xff]
    %v5758 = vld [vmem:[#allocation5 + $0x228] sm:$0xff]
    %v5759 = vld [vmem:[#allocation5 + $0x230] sm:$0xff]
    %v5760 = vld [vmem:[#allocation5 + $0x238] sm:$0xff]
    %v5761 = vld [vmem:[#allocation5 + $0x240] sm:$0xff]
    %v5762 = vld [vmem:[#allocation5 + $0x248] sm:$0xff]
    %v5763 = vld [vmem:[#allocation5 + $0x250] sm:$0xff]
    %v5764 = vld [vmem:[#allocation5 + $0x258] sm:$0xff]
    %v5765 = vld [vmem:[#allocation5 + $0x260] sm:$0xff]
    %v5766 = vld [vmem:[#allocation5 + $0x268] sm:$0xff]
    %v5767 = vld [vmem:[#allocation5 + $0x270] sm:$0xff]
    %v5768 = vld [vmem:[#allocation5 + $0x278] sm:$0xff]
    %v5769 = vld [vmem:[#allocation5 + $0x280] sm:$0xff]
    %v5770 = vld [vmem:[#allocation5 + $0x288] sm:$0xff]
    %v5771 = vld [vmem:[#allocation5 + $0x290] sm:$0xff]
    %v5772 = vld [vmem:[#allocation5 + $0x298] sm:$0xff]
    %v5773 = vld [vmem:[#allocation5 + $0x2a0] sm:$0xff]
    %v5774 = vld [vmem:[#allocation5 + $0x2a8] sm:$0xff]
    %v5775 = vld [vmem:[#allocation5 + $0x2b0] sm:$0xff]
    %v5776 = vld [vmem:[#allocation5 + $0x2b8] sm:$0xff]
    %v5777 = vld [vmem:[#allocation5 + $0x2c0] sm:$0xff]
    %v5778 = vld [vmem:[#allocation5 + $0x2c8] sm:$0xff]
    %v5779 = vld [vmem:[#allocation5 + $0x2d0] sm:$0xff]
    %v5780 = vld [vmem:[#allocation5 + $0x2d8] sm:$0xff]
    %v5781 = vld [vmem:[#allocation5 + $0x2e0] sm:$0xff]
    %v5782 = vld [vmem:[#allocation5 + $0x2e8] sm:$0xff]
    %v5783 = vld [vmem:[#allocation5 + $0x2f0] sm:$0xff]
    %v5784 = vld [vmem:[#allocation5 + $0x2f8] sm:$0xff]
    %v5785 = vld [vmem:[#allocation5 + $0x300] sm:$0xff]
    %v5786 = vld [vmem:[#allocation5 + $0x308] sm:$0xff]
    %v5787 = vld [vmem:[#allocation5 + $0x310] sm:$0xff]
    %v5788 = vld [vmem:[#allocation5 + $0x318] sm:$0xff]
    %v5789 = vld [vmem:[%s5] sm:$0xff]
    %v5790 = vld [vmem:[%s5 + $0x8] sm:$0xff]
    %v5791 = vld [vmem:[%s5 + $0x10] sm:$0xff]
    %v5792 = vld [vmem:[%s5 + $0x18] sm:$0xff]
    %5794 = vset.pattern.permute.xlu0 0
    %5795 = vperm.xlu0 %5794, %v5789
    %v5796 = vpop.permute.xlu0 %5795
    %5799 = vset.pattern.permute.xlu0 0
    %5800 = vperm.xlu0 %5799, %v5790
    %v5801 = vpop.permute.xlu0 %5800
    %5804 = vset.pattern.permute.xlu0 0
    %5805 = vperm.xlu0 %5804, %v5791
    %v5806 = vpop.permute.xlu0 %5805
    %5809 = vset.pattern.permute.xlu0 0
    %5810 = vperm.xlu0 %5809, %v5792
    %v5811 = vpop.permute.xlu0 %5810
    %v5814 = vsel %vm2113, %v5676, 0
    %v5817 = vsel %vm2113, %v5680, 0
    %v5820 = vsel %vm2113, %v5684, 0
    %v5823 = vsel %vm2113, %v5688, 0
    %5825 = vmatprep.subr.mxu0 %v5690
    %5826 = vmatpush1.msra.mxu0 %v5689
    %5827 = vmatprep.subr.mxu0 %v5692
    %5828 = vmatpush1.msra.mxu0 %v5691
    %5829 = vmatprep.subr.mxu0 %v5694
    %5830 = vmatpush1.msra.mxu0 %v5693
    %5831 = vmatprep.subr.mxu0 %v5696
    %5832 = vmatpush1.msra.mxu0 %v5695
    %5833 = vmatprep.subr.mxu0 %v5698
    %5834 = vmatpush1.msra.mxu0 %v5697
    %5835 = vmatprep.subr.mxu0 %v5700
    %5836 = vmatpush1.msra.mxu0 %v5699
    %5837 = vmatprep.subr.mxu0 %v5702
    %5838 = vmatpush1.msra.mxu0 %v5701
    %5839 = vmatprep.subr.mxu0 %v5704
    %5840 = vmatpush1.msra.mxu0 %v5703
    %5841 = vmatprep.subr.mxu0 %v5706
    %5842 = vmatpush1.msra.mxu0 %v5705
    %5843 = vmatprep.subr.mxu0 %v5708
    %5844 = vmatpush1.msra.mxu0 %v5707
    %5845 = vmatprep.subr.mxu0 %v5710
    %5846 = vmatpush1.msra.mxu0 %v5709
    %5847 = vmatprep.subr.mxu0 %v5712
    %5848 = vmatpush1.msra.mxu0 %v5711
    %5849 = vmatprep.subr.mxu0 %v5714
    %5850 = vmatpush1.msra.mxu0 %v5713
    %5851 = vmatprep.subr.mxu0 %v5716
    %5852 = vmatpush1.msra.mxu0 %v5715
    %5853 = vmatprep.subr.mxu0 %v5718
    %5854 = vmatpush1.msra.mxu0 %v5717
    %5855 = vmatprep.subr.mxu0 %v5720
    %5856 = vmatpush1.msra.mxu0 %v5719
    %5857 = vmatprep.subr.mxu0 %v5722
    %5858 = vmatpush1.msra.mxu0 %v5721
    %5859 = vmatprep.subr.mxu0 %v5724
    %5860 = vmatpush1.msra.mxu0 %v5723
    %5861 = vmatprep.subr.mxu0 %v5726
    %5862 = vmatpush1.msra.mxu0 %v5725
    %5863 = vmatprep.subr.mxu0 %v5728
    %5864 = vmatpush1.msra.mxu0 %v5727
    %5865 = vmatprep.subr.mxu0 %v5730
    %5866 = vmatpush1.msra.mxu0 %v5729
    %5867 = vmatprep.subr.mxu0 %v5732
    %5868 = vmatpush1.msra.mxu0 %v5731
    %5869 = vmatprep.subr.mxu0 %v5734
    %5870 = vmatpush1.msra.mxu0 %v5733
    %5871 = vmatprep.subr.mxu0 %v5736
    %5872 = vmatpush1.msra.mxu0 %v5735
    %5873 = vmatprep.subr.mxu0 %v5738
    %5874 = vmatpush1.msra.mxu0 %v5737
    %5875 = vmatprep.subr.mxu0 %v5740
    %5876 = vmatpush1.msra.mxu0 %v5739
    %5877 = vmatprep.subr.mxu0 %v5742
    %5878 = vmatpush1.msra.mxu0 %v5741
    %5879 = vmatprep.subr.mxu0 %v5744
    %5880 = vmatpush1.msra.mxu0 %v5743
    %5881 = vmatprep.subr.mxu0 %v5746
    %5882 = vmatpush1.msra.mxu0 %v5745
    %5883 = vmatprep.subr.mxu0 %v5748
    %5884 = vmatpush1.msra.mxu0 %v5747
    %5885 = vmatprep.subr.mxu0 %v5750
    %5886 = vmatpush1.msra.mxu0 %v5749
    %5887 = vmatprep.subr.mxu0 %v5752
    %5888 = vmatpush1.msra.mxu0 %v5751
    %5889 = vmatprep.mubr.f32.mxu0 %v5674
    %5890 = vmatmul.mubr.f32.gmra.mrb[0].mxu0 %v5673
    %v5891 = vpop.f32.mrb[0].mxu0
    %v5892 = vadd.f32 %v5796, %v5891
    %v5893 = vpop.f32.mrb[0].mxu0
    %v5894 = vadd.f32 %v5796, %v5893
    %5895 = vmatprep.mubr.f32.mxu0 %v5678
    %5896 = vmatmul.mubr.f32.gmra.mrb[0].mxu0 %v5677
    %v5897 = vpop.f32.mrb[0].mxu0
    %v5898 = vadd.f32 %v5801, %v5897
    %v5899 = vpop.f32.mrb[0].mxu0
    %v5900 = vadd.f32 %v5801, %v5899
    %5901 = vmatprep.mubr.f32.mxu0 %v5682
    %5902 = vmatmul.mubr.f32.gmra.mrb[0].mxu0 %v5681
    %v5903 = vpop.f32.mrb[0].mxu0
    %v5904 = vadd.f32 %v5806, %v5903
    %v5905 = vpop.f32.mrb[0].mxu0
    %v5906 = vadd.f32 %v5806, %v5905
    %5907 = vmatprep.mubr.f32.mxu0 %v5686
    %5908 = vmatmul.mubr.f32.gmra.mrb[0].mxu0 %v5685
    %v5909 = vpop.f32.mrb[0].mxu0
    %v5910 = vadd.f32 %v5811, %v5909
    %v5911 = vpop.f32.mrb[0].mxu0
    %v5912 = vadd.f32 %v5811, %v5911
    %5913 = vdwg.mxu0
    %5914 = vmatprep.subr.mxu0 %v5754
    %5915 = vmatpush1.msra.mxu0 %v5753
    %5916 = vmatprep.subr.mxu0 %v5756
    %5917 = vmatpush1.msra.mxu0 %v5755
    %5918 = vmatprep.subr.mxu0 %v5758
    %5919 = vmatpush1.msra.mxu0 %v5757
    %5920 = vmatprep.subr.mxu0 %v5760
    %5921 = vmatpush1.msra.mxu0 %v5759
    %5922 = vmatprep.subr.mxu0 %v5762
    %5923 = vmatpush1.msra.mxu0 %v5761
    %5924 = vmatprep.subr.mxu0 %v5764
    %5925 = vmatpush1.msra.mxu0 %v5763
    %5926 = vmatprep.subr.mxu0 %v5766
    %5927 = vmatpush1.msra.mxu0 %v5765
    %5928 = vmatprep.subr.mxu0 %v5768
    %5929 = vmatpush1.msra.mxu0 %v5767
    %5930 = vmatprep.subr.mxu0 %v5770
    %5931 = vmatpush1.msra.mxu0 %v5769
    %5932 = vmatprep.subr.mxu0 %v5772
    %5933 = vmatpush1.msra.mxu0 %v5771
    %5934 = vmatprep.subr.mxu0 %v5774
    %5935 = vmatpush1.msra.mxu0 %v5773
    %5936 = vmatprep.subr.mxu0 %v5776
    %5937 = vmatpush1.msra.mxu0 %v5775
    %5938 = vmatprep.subr.mxu0 %v5778
    %5939 = vmatpush1.msra.mxu0 %v5777
    %5940 = vmatprep.subr.mxu0 %v5780
    %5941 = vmatpush1.msra.mxu0 %v5779
    %5942 = vmatprep.subr.mxu0 %v5782
    %5943 = vmatpush1.msra.mxu0 %v5781
    %5944 = vmatprep.subr.mxu0 %v5784
    %5945 = vmatpush1.msra.mxu0 %v5783
    %5946 = vmatprep.subr.mxu0 %v5786
    %5947 = vmatpush1.msra.mxu0 %v5785
    %5948 = vmatprep.subr.mxu0 %v5788
    %5949 = vmatpush1.msra.mxu0 %v5787
    %5950 = vmatprep.subr.mxu0 0.0
    %5951 = vmatpush1.msra.mxu0 0.0
    %5952 = vmatprep.subr.mxu0 0.0
    %5953 = vmatpush1.msra.mxu0 0.0
    %5954 = vmatprep.subr.mxu0 0.0
    %5955 = vmatpush1.msra.mxu0 0.0
    %5956 = vmatprep.subr.mxu0 0.0
    %5957 = vmatpush1.msra.mxu0 0.0
    %5958 = vmatprep.subr.mxu0 0.0
    %5959 = vmatpush1.msra.mxu0 0.0
    %5960 = vmatprep.subr.mxu0 0.0
    %5961 = vmatpush1.msra.mxu0 0.0
    %5962 = vmatprep.subr.mxu0 0.0
    %5963 = vmatpush1.msra.mxu0 0.0
    %5964 = vmatprep.subr.mxu0 0.0
    %5965 = vmatpush1.msra.mxu0 0.0
    %5966 = vmatprep.subr.mxu0 0.0
    %5967 = vmatpush1.msra.mxu0 0.0
    %5968 = vmatprep.subr.mxu0 0.0
    %5969 = vmatpush1.msra.mxu0 0.0
    %5970 = vmatprep.subr.mxu0 0.0
    %5971 = vmatpush1.msra.mxu0 0.0
    %5972 = vmatprep.subr.mxu0 0.0
    %5973 = vmatpush1.msra.mxu0 0.0
    %5974 = vmatprep.subr.mxu0 0.0
    %5975 = vmatpush1.msra.mxu0 0.0
    %5976 = vmatprep.subr.mxu0 0.0
    %5977 = vmatpush1.msra.mxu0 0.0
    %5978 = vmatprep.mubr.f32.mxu0 %v5814
    %5979 = vmatmul.mubr.f32.gmra.mrb[0].mxu0 %v5675
    %v5980 = vpop.f32.mrb[0].mxu0
    %v5981 = vadd.f32 %v5892, %v5980
    %v5982 = vpop.f32.mrb[0].mxu0
    %v5983 = vadd.f32 %v5894, %v5982
    %5984 = vmatprep.mubr.f32.mxu0 %v5817
    %5985 = vmatmul.mubr.f32.gmra.mrb[0].mxu0 %v5679
    %v5986 = vpop.f32.mrb[0].mxu0
    %v5987 = vadd.f32 %v5898, %v5986
    %v5988 = vpop.f32.mrb[0].mxu0
    %v5989 = vadd.f32 %v5900, %v5988
    %5990 = vmatprep.mubr.f32.mxu0 %v5820
    %5991 = vmatmul.mubr.f32.gmra.mrb[0].mxu0 %v5683
    %v5992 = vpop.f32.mrb[0].mxu0
    %v5993 = vadd.f32 %v5904, %v5992
    %v5994 = vpop.f32.mrb[0].mxu0
    %v5995 = vadd.f32 %v5906, %v5994
    %5996 = vmatprep.mubr.f32.mxu0 %v5823
    %5997 = vmatmul.mubr.f32.gmra.mrb[0].mxu0 %v5687
    %v5998 = vpop.f32.mrb[0].mxu0
    %v5999 = vadd.f32 %v5910, %v5998
    %v6000 = vpop.f32.mrb[0].mxu0
    %v6001 = vadd.f32 %v5912, %v6000
    %6002 = vdwg.mxu0
    %v6003 = vmax.f32 %v5981, 0.0
    %v6004 = vmax.f32 %v5983, 0.0
    %v6005 = vmax.f32 %v5987, 0.0
    %v6006 = vmax.f32 %v5989, 0.0
    %v6007 = vmax.f32 %v5993, 0.0
    %v6008 = vmax.f32 %v5995, 0.0
    %v6009 = vmax.f32 %v5999, 0.0
    %v6010 = vmax.f32 %v6001, 0.0
    %6011 = vst [vmem:[#allocation6] sm:$0xff] %v6003
    %6012 = vst.msk [vmem:[#allocation6 + $0x8] sm:$0xff] %vm216, %v6004
    %6013 = vst [vmem:[#allocation6 + $0x10] sm:$0xff] %v6005
    %6014 = vst.msk [vmem:[#allocation6 + $0x18] sm:$0xff] %vm216, %v6006
    %6015 = vst [vmem:[#allocation6 + $0x20] sm:$0xff] %v6007
    %6016 = vst.msk [vmem:[#allocation6 + $0x28] sm:$0xff] %vm216, %v6008
    %6017 = vst [vmem:[#allocation6 + $0x30] sm:$0xff] %v6009
    %6018 = vst.msk [vmem:[#allocation6 + $0x38] sm:$0xff] %vm216, %v6010
    %v6019 = vld [vmem:[#allocation6] sm:$0xff]
    %v6020 = vld [vmem:[#allocation6 + $0x8] sm:$0xff]
    %v6021 = vld [vmem:[#allocation6 + $0x10] sm:$0xff]
    %v6022 = vld [vmem:[#allocation6 + $0x18] sm:$0xff]
    %v6023 = vld [vmem:[#allocation6 + $0x20] sm:$0xff]
    %v6024 = vld [vmem:[#allocation6 + $0x28] sm:$0xff]
    %v6025 = vld [vmem:[#allocation6 + $0x30] sm:$0xff]
    %v6026 = vld [vmem:[#allocation6 + $0x38] sm:$0xff]
    %6035 = vrot.lane.b32.xlu0 %v6019, 127
    %v6036 = vpop.permute.xlu0 %6035
    %6037 = vrot.lane.b32.xlu0 %v6020, 127
    %v6038 = vpop.permute.xlu0 %6037
    %6039 = vrot.lane.b32.xlu0 %v6021, 127
    %v6040 = vpop.permute.xlu0 %6039
    %6041 = vrot.lane.b32.xlu0 %v6022, 127
    %v6042 = vpop.permute.xlu0 %6041
    %6043 = vrot.lane.b32.xlu0 %v6023, 127
    %v6044 = vpop.permute.xlu0 %6043
    %6045 = vrot.lane.b32.xlu0 %v6024, 127
    %v6046 = vpop.permute.xlu0 %6045
    %6047 = vrot.lane.b32.xlu0 %v6025, 127
    %v6048 = vpop.permute.xlu0 %6047
    %6049 = vrot.lane.b32.xlu0 %v6026, 127
    %v6050 = vpop.permute.xlu0 %6049
    %v6051 = vsel %vm51, %v6036, %v6038
    %v6052 = vsel %vm51, %v6040, %v6042
    %v6053 = vsel %vm51, %v6044, %v6046
    %v6054 = vsel %vm51, %v6048, %v6050
    %v6063 = vadd.f32 %v6019, %v6051
    %v6064 = vadd.f32 %v6020, %v6038
    %v6065 = vadd.f32 %v6021, %v6052
    %v6066 = vadd.f32 %v6022, %v6042
    %v6067 = vadd.f32 %v6023, %v6053
    %v6068 = vadd.f32 %v6024, %v6046
    %v6069 = vadd.f32 %v6025, %v6054
    %v6070 = vadd.f32 %v6026, %v6050
    %6071 = vrot.lane.b32.xlu0 %v6019, 113
    %v6072 = vpop.permute.xlu0 %6071
    %6073 = vrot.lane.b32.xlu0 %v6020, 113
    %v6074 = vpop.permute.xlu0 %6073
    %6075 = vrot.lane.b32.xlu0 %v6021, 113
    %v6076 = vpop.permute.xlu0 %6075
    %6077 = vrot.lane.b32.xlu0 %v6022, 113
    %v6078 = vpop.permute.xlu0 %6077
    %6079 = vrot.lane.b32.xlu0 %v6023, 113
    %v6080 = vpop.permute.xlu0 %6079
    %6081 = vrot.lane.b32.xlu0 %v6024, 113
    %v6082 = vpop.permute.xlu0 %6081
    %6083 = vrot.lane.b32.xlu0 %v6025, 113
    %v6084 = vpop.permute.xlu0 %6083
    %6085 = vrot.lane.b32.xlu0 %v6026, 113
    %v6086 = vpop.permute.xlu0 %6085
    %v6087 = vsel %vm1460, %v6072, %v6074
    %v6088 = vsel %vm1460, %v6076, %v6078
    %v6089 = vsel %vm1460, %v6080, %v6082
    %v6090 = vsel %vm1460, %v6084, %v6086
    %v6099 = vadd.f32 %v6063, %v6087
    %v6100 = vadd.f32 %v6064, %v6074
    %v6101 = vadd.f32 %v6065, %v6088
    %v6102 = vadd.f32 %v6066, %v6078
    %v6103 = vadd.f32 %v6067, %v6089
    %v6104 = vadd.f32 %v6068, %v6082
    %v6105 = vadd.f32 %v6069, %v6090
    %v6106 = vadd.f32 %v6070, %v6086
    %6107 = vrot.lane.b32.xlu0 %v6019, 112
    %v6108 = vpop.permute.xlu0 %6107
    %6109 = vrot.lane.b32.xlu0 %v6020, 112
    %v6110 = vpop.permute.xlu0 %6109
    %6111 = vrot.lane.b32.xlu0 %v6021, 112
    %v6112 = vpop.permute.xlu0 %6111
    %6113 = vrot.lane.b32.xlu0 %v6022, 112
    %v6114 = vpop.permute.xlu0 %6113
    %6115 = vrot.lane.b32.xlu0 %v6023, 112
    %v6116 = vpop.permute.xlu0 %6115
    %6117 = vrot.lane.b32.xlu0 %v6024, 112
    %v6118 = vpop.permute.xlu0 %6117
    %6119 = vrot.lane.b32.xlu0 %v6025, 112
    %v6120 = vpop.permute.xlu0 %6119
    %6121 = vrot.lane.b32.xlu0 %v6026, 112
    %v6122 = vpop.permute.xlu0 %6121
    %v6123 = vsel %vm1487, %v6108, %v6110
    %v6124 = vsel %vm1487, %v6112, %v6114
    %v6125 = vsel %vm1487, %v6116, %v6118
    %v6126 = vsel %vm1487, %v6120, %v6122
    %v6135 = vadd.f32 %v6099, %v6123
    %v6136 = vadd.f32 %v6100, %v6110
    %v6137 = vadd.f32 %v6101, %v6124
    %v6138 = vadd.f32 %v6102, %v6114
    %v6139 = vadd.f32 %v6103, %v6125
    %v6140 = vadd.f32 %v6104, %v6118
    %v6141 = vadd.f32 %v6105, %v6126
    %v6142 = vadd.f32 %v6106, %v6122
    %v6143 = vld [vmem:[%s6] sm:$0xff]
    %v6144 = vld [vmem:[%s6 + $0x8] sm:$0xff]
    %v6145 = vld [vmem:[%s6 + $0x10] sm:$0xff]
    %v6146 = vld [vmem:[%s6 + $0x18] sm:$0xff]
    %v6147 = vld [vmem:[%s6 + $0x20] sm:$0xff]
    %v6148 = vld [vmem:[%s6 + $0x28] sm:$0xff]
    %v6149 = vld [vmem:[%s6 + $0x30] sm:$0xff]
    %v6150 = vld [vmem:[%s6 + $0x38] sm:$0xff]
    %v6151 = vld [vmem:[%s6 + $0x40] sm:$0xff]
    %v6152 = vld [vmem:[%s6 + $0x48] sm:$0xff]
    %v6153 = vld [vmem:[%s6 + $0x50] sm:$0xff]
    %v6154 = vld [vmem:[%s6 + $0x58] sm:$0xff]
    %v6155 = vld [vmem:[%s6 + $0x60] sm:$0xff]
    %v6156 = vld [vmem:[%s6 + $0x68] sm:$0xff]
    %v6157 = vld [vmem:[%s6 + $0x70] sm:$0xff]
    %v6158 = vld [vmem:[%s6 + $0x78] sm:$0xff]
    %v6159 = vld [vmem:[%s6 + $0x80] sm:$0xff]
    %v6160 = vld [vmem:[%s6 + $0x88] sm:$0xff]
    %v6161 = vld [vmem:[%s6 + $0x90] sm:$0x1f]
    %v6163 = vsel %vm2463, %v6136, 0
    %v6166 = vsel %vm2463, %v6138, 0
    %v6169 = vsel %vm2463, %v6140, 0
    %v6172 = vsel %vm2463, %v6142, 0
    %v6175 = vsel %vm1089, %v6161, 0
    %6177 = vmatprep.subr.mxu0 0.0
    %6178 = vmatpush1.msra.mxu0 %v6143
    %6179 = vmatprep.subr.mxu0 0.0
    %6180 = vmatpush1.msra.mxu0 %v6144
    %6181 = vmatprep.subr.mxu0 0.0
    %6182 = vmatpush1.msra.mxu0 %v6145
    %6183 = vmatprep.subr.mxu0 0.0
    %6184 = vmatpush1.msra.mxu0 %v6146
    %6185 = vmatprep.subr.mxu0 0.0
    %6186 = vmatpush1.msra.mxu0 %v6147
    %6187 = vmatprep.subr.mxu0 0.0
    %6188 = vmatpush1.msra.mxu0 %v6148
    %6189 = vmatprep.subr.mxu0 0.0
    %6190 = vmatpush1.msra.mxu0 %v6149
    %6191 = vmatprep.subr.mxu0 0.0
    %6192 = vmatpush1.msra.mxu0 %v6150
    %6193 = vmatprep.subr.mxu0 0.0
    %6194 = vmatpush1.msra.mxu0 %v6151
    %6195 = vmatprep.subr.mxu0 0.0
    %6196 = vmatpush1.msra.mxu0 %v6152
    %6197 = vmatprep.subr.mxu0 0.0
    %6198 = vmatpush1.msra.mxu0 %v6153
    %6199 = vmatprep.subr.mxu0 0.0
    %6200 = vmatpush1.msra.mxu0 %v6154
    %6201 = vmatprep.subr.mxu0 0.0
    %6202 = vmatpush1.msra.mxu0 %v6155
    %6203 = vmatprep.subr.mxu0 0.0
    %6204 = vmatpush1.msra.mxu0 %v6156
    %6205 = vmatprep.subr.mxu0 0.0
    %6206 = vmatpush1.msra.mxu0 %v6157
    %6207 = vmatprep.subr.mxu0 0.0
    %6208 = vmatpush1.msra.mxu0 %v6158
    %6209 = vmatprep.subr.mxu0 0.0
    %6210 = vmatpush1.msra.mxu0 %v6159
    %6211 = vmatprep.subr.mxu0 0.0
    %6212 = vmatpush1.msra.mxu0 %v6160
    %6213 = vmatprep.subr.mxu0 0.0
    %6214 = vmatpush1.msra.mxu0 %v6175
    %6215 = vmatprep.subr.mxu0 0.0
    %6216 = vmatpush1.msra.mxu0 0.0
    %6217 = vmatprep.subr.mxu0 0.0
    %6218 = vmatpush1.msra.mxu0 0.0
    %6219 = vmatprep.subr.mxu0 0.0
    %6220 = vmatpush1.msra.mxu0 0.0
    %6221 = vmatprep.subr.mxu0 0.0
    %6222 = vmatpush1.msra.mxu0 0.0
    %6223 = vmatprep.subr.mxu0 0.0
    %6224 = vmatpush1.msra.mxu0 0.0
    %6225 = vmatprep.subr.mxu0 0.0
    %6226 = vmatpush1.msra.mxu0 0.0
    %6227 = vmatprep.subr.mxu0 0.0
    %6228 = vmatpush1.msra.mxu0 0.0
    %6229 = vmatprep.subr.mxu0 0.0
    %6230 = vmatpush1.msra.mxu0 0.0
    %6231 = vmatprep.subr.mxu0 0.0
    %6232 = vmatpush1.msra.mxu0 0.0
    %6233 = vmatprep.subr.mxu0 0.0
    %6234 = vmatpush1.msra.mxu0 0.0
    %6235 = vmatprep.subr.mxu0 0.0
    %6236 = vmatpush1.msra.mxu0 0.0
    %6237 = vmatprep.subr.mxu0 0.0
    %6238 = vmatpush1.msra.mxu0 0.0
    %6239 = vmatprep.subr.mxu0 0.0
    %6240 = vmatpush1.msra.mxu0 0.0
    %6241 = vmatprep.mubr.f32.mxu0 %v6163
    %6242 = vmatmul.mubr.f32.gmra.mrb[0].mxu0 %v6135
    %v6243 = vpop.f32.mrb[0].mxu0
    %v6244 = vadd.f32 0.0, %v6243
    %v6245 = vpop.f32.mrb[0].mxu0
    %6246 = vmatprep.mubr.f32.mxu0 %v6166
    %6247 = vmatmul.mubr.f32.gmra.mrb[0].mxu0 %v6137
    %v6248 = vpop.f32.mrb[0].mxu0
    %v6249 = vadd.f32 0.0, %v6248
    %v6250 = vpop.f32.mrb[0].mxu0
    %6251 = vmatprep.mubr.f32.mxu0 %v6169
    %6252 = vmatmul.mubr.f32.gmra.mrb[0].mxu0 %v6139
    %v6253 = vpop.f32.mrb[0].mxu0
    %v6254 = vadd.f32 0.0, %v6253
    %v6255 = vpop.f32.mrb[0].mxu0
    %6256 = vmatprep.mubr.f32.mxu0 %v6172
    %6257 = vmatmul.mubr.f32.gmra.mrb[0].mxu0 %v6141
    %v6258 = vpop.f32.mrb[0].mxu0
    %v6259 = vadd.f32 0.0, %v6258
    %v6260 = vpop.f32.mrb[0].mxu0
    %6261 = vdwg.mxu0
    %6262 = vst.msk [vmem:[#allocation7] sm:$0xff] %vm352, %v6244
    %6263 = vst.msk [vmem:[#allocation7 + $0x8] sm:$0xff] %vm352, %v6249
    %6264 = vst.msk [vmem:[#allocation7 + $0x10] sm:$0xff] %vm352, %v6254
    %6265 = vst.msk [vmem:[#allocation7 + $0x18] sm:$0xff] %vm352, %v6259
    %v6266 = vld [vmem:[#allocation7] sm:$0x1]
    %6267 = vst.msk [vmem:[#allocation8] sm:$0x1] %vm2570, %v6266
    %v6268 = vld [vmem:[#allocation7 + $0x1] sm:$0x1]
    %v6271 = vunpack.c.l.s4 1966171168
    %v6272 = vunpack.c.0.s8 %v6271
    %v6273 = vlaneseq
    %v6274 = vshrl.u32 %v6273, 7
    %v6275 = vsub.s32 %v6272, %v6274
    %v6276 = vrot.slane %v6268, %v6275
    %v6278 = vunpack.c.l.s4 1966171168
    %v6279 = vunpack.c.0.s8 %v6278
    %v6280 = vlaneseq
    %v6281 = vshrl.u32 %v6280, 7
    %v6282 = vsub.s32 %v6279, %v6281
    %v6283 = vrot.slane %v6276, %v6282
    %6284 = vrot.lane.b32.xlu0 %v6283, 25
    %v6285 = vpop.permute.xlu0 %6284
    %6287 = vst.msk [vmem:[#allocation8] sm:$0x1] %vm2593, %v6285
    %v6288 = vld [vmem:[#allocation7 + $0x2] sm:$0x1]
    %v6291 = vunpack.c.l.s4 1966171168
    %v6292 = vunpack.c.0.s8 %v6291
    %v6293 = vlaneseq
    %v6294 = vshrl.u32 %v6293, 7
    %v6295 = vsub.s32 %v6292, %v6294
    %v6296 = vrot.slane %v6288, %v6295
    %v6298 = vunpack.c.l.s4 1966171168
    %v6299 = vunpack.c.0.s8 %v6298
    %v6300 = vlaneseq
    %v6301 = vshrl.u32 %v6300, 7
    %v6302 = vsub.s32 %v6299, %v6301
    %v6303 = vrot.slane %v6296, %v6302
    %6304 = vrot.lane.b32.xlu0 %v6303, 50
    %v6305 = vpop.permute.xlu0 %6304
    %6307 = vst.msk [vmem:[#allocation8] sm:$0x1] %vm2616, %v6305
    %v6308 = vld [vmem:[#allocation7 + $0x3] sm:$0x1]
    %v6311 = vunpack.c.l.s4 1966171168
    %v6312 = vunpack.c.0.s8 %v6311
    %v6313 = vlaneseq
    %v6314 = vshrl.u32 %v6313, 7
    %v6315 = vsub.s32 %v6312, %v6314
    %v6316 = vrot.slane %v6308, %v6315
    %v6318 = vunpack.c.l.s4 1966171168
    %v6319 = vunpack.c.0.s8 %v6318
    %v6320 = vlaneseq
    %v6321 = vshrl.u32 %v6320, 7
    %v6322 = vsub.s32 %v6319, %v6321
    %v6323 = vrot.slane %v6316, %v6322
    %6324 = vrot.lane.b32.xlu0 %v6323, 75
    %v6325 = vpop.permute.xlu0 %6324
    %6327 = vst.msk [vmem:[#allocation8] sm:$0x1] %vm2639, %v6325
    %v6328 = vld [vmem:[#allocation7 + $0x4] sm:$0x1]
    %v6331 = vunpack.c.l.s4 1966171168
    %v6332 = vunpack.c.0.s8 %v6331
    %v6333 = vlaneseq
    %v6334 = vshrl.u32 %v6333, 7
    %v6335 = vsub.s32 %v6332, %v6334
    %v6336 = vrot.slane %v6328, %v6335
    %v6338 = vunpack.c.l.s4 1966171168
    %v6339 = vunpack.c.0.s8 %v6338
    %v6340 = vlaneseq
    %v6341 = vshrl.u32 %v6340, 7
    %v6342 = vsub.s32 %v6339, %v6341
    %v6343 = vrot.slane %v6336, %v6342
    %6344 = vrot.lane.b32.xlu0 %v6343, 100
    %v6345 = vpop.permute.xlu0 %6344
    %6347 = vst.msk [vmem:[#allocation8] sm:$0x1] %vm2662, %v6345
    %v6348 = vld [vmem:[#allocation7 + $0x5] sm:$0x1]
    %v6351 = vunpack.c.l.s4 1966171168
    %v6352 = vunpack.c.0.s8 %v6351
    %v6353 = vlaneseq
    %v6354 = vshrl.u32 %v6353, 7
    %v6355 = vsub.s32 %v6352, %v6354
    %v6356 = vrot.slane %v6348, %v6355
    %v6358 = vunpack.c.l.s4 1966171168
    %v6359 = vunpack.c.0.s8 %v6358
    %v6360 = vlaneseq
    %v6361 = vshrl.u32 %v6360, 7
    %v6362 = vsub.s32 %v6359, %v6361
    %v6363 = vrot.slane %v6356, %v6362
    %6364 = vrot.lane.b32.xlu0 %v6363, 125
    %v6365 = vpop.permute.xlu0 %6364
    %v6366 = vrot.slane %v6365, 7
    %v6367 = vsel %vm73, %v6366, %v6365
    %6369 = vst.msk [vmem:[#allocation8] sm:$0x3] %vm2687, %v6367
    %v6370 = vld [vmem:[#allocation7 + $0x6] sm:$0x1]
    %v6373 = vunpack.c.l.s4 1966171168
    %v6374 = vunpack.c.0.s8 %v6373
    %v6375 = vlaneseq
    %v6376 = vshrl.u32 %v6375, 7
    %v6377 = vsub.s32 %v6374, %v6376
    %v6378 = vrot.slane %v6370, %v6377
    %v6380 = vunpack.c.l.s4 1966171168
    %v6381 = vunpack.c.0.s8 %v6380
    %v6382 = vlaneseq
    %v6383 = vshrl.u32 %v6382, 7
    %v6384 = vsub.s32 %v6381, %v6383
    %v6385 = vrot.slane %v6378, %v6384
    %6386 = vrot.lane.b32.xlu0 %v6385, 22
    %v6387 = vpop.permute.xlu0 %6386
    %6389 = vst.msk [vmem:[#allocation8 + $0x1] sm:$0x1] %vm2710, %v6387
    %v6390 = vld [vmem:[#allocation7 + $0x7] sm:$0x1]
    %v6393 = vunpack.c.l.s4 1966171168
    %v6394 = vunpack.c.0.s8 %v6393
    %v6395 = vlaneseq
    %v6396 = vshrl.u32 %v6395, 7
    %v6397 = vsub.s32 %v6394, %v6396
    %v6398 = vrot.slane %v6390, %v6397
    %v6400 = vunpack.c.l.s4 1966171168
    %v6401 = vunpack.c.0.s8 %v6400
    %v6402 = vlaneseq
    %v6403 = vshrl.u32 %v6402, 7
    %v6404 = vsub.s32 %v6401, %v6403
    %v6405 = vrot.slane %v6398, %v6404
    %6406 = vrot.lane.b32.xlu0 %v6405, 47
    %v6407 = vpop.permute.xlu0 %6406
    %6409 = vst.msk [vmem:[#allocation8 + $0x1] sm:$0x1] %vm2733, %v6407
    %v6410 = vld [vmem:[#allocation7 + $0x8] sm:$0x1]
    %v6413 = vunpack.c.l.s4 1966171168
    %v6414 = vunpack.c.0.s8 %v6413
    %v6415 = vlaneseq
    %v6416 = vshrl.u32 %v6415, 7
    %v6417 = vsub.s32 %v6414, %v6416
    %v6418 = vrot.slane %v6410, %v6417
    %v6420 = vunpack.c.l.s4 1966171168
    %v6421 = vunpack.c.0.s8 %v6420
    %v6422 = vlaneseq
    %v6423 = vshrl.u32 %v6422, 7
    %v6424 = vsub.s32 %v6421, %v6423
    %v6425 = vrot.slane %v6418, %v6424
    %6426 = vrot.lane.b32.xlu0 %v6425, 72
    %v6427 = vpop.permute.xlu0 %6426
    %6429 = vst.msk [vmem:[#allocation8 + $0x1] sm:$0x1] %vm2756, %v6427
    %v6430 = vld [vmem:[#allocation7 + $0x9] sm:$0x1]
    %v6433 = vunpack.c.l.s4 1966171168
    %v6434 = vunpack.c.0.s8 %v6433
    %v6435 = vlaneseq
    %v6436 = vshrl.u32 %v6435, 7
    %v6437 = vsub.s32 %v6434, %v6436
    %v6438 = vrot.slane %v6430, %v6437
    %v6440 = vunpack.c.l.s4 1966171168
    %v6441 = vunpack.c.0.s8 %v6440
    %v6442 = vlaneseq
    %v6443 = vshrl.u32 %v6442, 7
    %v6444 = vsub.s32 %v6441, %v6443
    %v6445 = vrot.slane %v6438, %v6444
    %6446 = vrot.lane.b32.xlu0 %v6445, 97
    %v6447 = vpop.permute.xlu0 %6446
    %6449 = vst.msk [vmem:[#allocation8 + $0x1] sm:$0x1] %vm2779, %v6447
    %v6450 = vld [vmem:[#allocation7 + $0xa] sm:$0x1]
    %v6453 = vunpack.c.l.s4 1966171168
    %v6454 = vunpack.c.0.s8 %v6453
    %v6455 = vlaneseq
    %v6456 = vshrl.u32 %v6455, 7
    %v6457 = vsub.s32 %v6454, %v6456
    %v6458 = vrot.slane %v6450, %v6457
    %v6460 = vunpack.c.l.s4 1966171168
    %v6461 = vunpack.c.0.s8 %v6460
    %v6462 = vlaneseq
    %v6463 = vshrl.u32 %v6462, 7
    %v6464 = vsub.s32 %v6461, %v6463
    %v6465 = vrot.slane %v6458, %v6464
    %6466 = vrot.lane.b32.xlu0 %v6465, 122
    %v6467 = vpop.permute.xlu0 %6466
    %v6468 = vrot.slane %v6467, 7
    %v6469 = vsel %vm2800, %v6468, %v6467
    %6471 = vst.msk [vmem:[#allocation8 + $0x1] sm:$0x3] %vm2805, %v6469
    %v6472 = vld [vmem:[#allocation7 + $0xb] sm:$0x1]
    %v6475 = vunpack.c.l.s4 1966171168
    %v6476 = vunpack.c.0.s8 %v6475
    %v6477 = vlaneseq
    %v6478 = vshrl.u32 %v6477, 7
    %v6479 = vsub.s32 %v6476, %v6478
    %v6480 = vrot.slane %v6472, %v6479
    %v6482 = vunpack.c.l.s4 1966171168
    %v6483 = vunpack.c.0.s8 %v6482
    %v6484 = vlaneseq
    %v6485 = vshrl.u32 %v6484, 7
    %v6486 = vsub.s32 %v6483, %v6485
    %v6487 = vrot.slane %v6480, %v6486
    %6488 = vrot.lane.b32.xlu0 %v6487, 19
    %v6489 = vpop.permute.xlu0 %6488
    %6491 = vst.msk [vmem:[#allocation8 + $0x2] sm:$0x1] %vm2828, %v6489
    %v6492 = vld [vmem:[#allocation7 + $0xc] sm:$0x1]
    %v6495 = vunpack.c.l.s4 1966171168
    %v6496 = vunpack.c.0.s8 %v6495
    %v6497 = vlaneseq
    %v6498 = vshrl.u32 %v6497, 7
    %v6499 = vsub.s32 %v6496, %v6498
    %v6500 = vrot.slane %v6492, %v6499
    %v6502 = vunpack.c.l.s4 1966171168
    %v6503 = vunpack.c.0.s8 %v6502
    %v6504 = vlaneseq
    %v6505 = vshrl.u32 %v6504, 7
    %v6506 = vsub.s32 %v6503, %v6505
    %v6507 = vrot.slane %v6500, %v6506
    %6508 = vrot.lane.b32.xlu0 %v6507, 44
    %v6509 = vpop.permute.xlu0 %6508
    %6511 = vst.msk [vmem:[#allocation8 + $0x2] sm:$0x1] %vm2851, %v6509
    %v6512 = vld [vmem:[#allocation7 + $0xd] sm:$0x1]
    %v6515 = vunpack.c.l.s4 1966171168
    %v6516 = vunpack.c.0.s8 %v6515
    %v6517 = vlaneseq
    %v6518 = vshrl.u32 %v6517, 7
    %v6519 = vsub.s32 %v6516, %v6518
    %v6520 = vrot.slane %v6512, %v6519
    %v6522 = vunpack.c.l.s4 1966171168
    %v6523 = vunpack.c.0.s8 %v6522
    %v6524 = vlaneseq
    %v6525 = vshrl.u32 %v6524, 7
    %v6526 = vsub.s32 %v6523, %v6525
    %v6527 = vrot.slane %v6520, %v6526
    %6528 = vrot.lane.b32.xlu0 %v6527, 69
    %v6529 = vpop.permute.xlu0 %6528
    %6531 = vst.msk [vmem:[#allocation8 + $0x2] sm:$0x1] %vm2874, %v6529
    %v6532 = vld [vmem:[#allocation7 + $0xe] sm:$0x1]
    %v6535 = vunpack.c.l.s4 1966171168
    %v6536 = vunpack.c.0.s8 %v6535
    %v6537 = vlaneseq
    %v6538 = vshrl.u32 %v6537, 7
    %v6539 = vsub.s32 %v6536, %v6538
    %v6540 = vrot.slane %v6532, %v6539
    %v6542 = vunpack.c.l.s4 1966171168
    %v6543 = vunpack.c.0.s8 %v6542
    %v6544 = vlaneseq
    %v6545 = vshrl.u32 %v6544, 7
    %v6546 = vsub.s32 %v6543, %v6545
    %v6547 = vrot.slane %v6540, %v6546
    %6548 = vrot.lane.b32.xlu0 %v6547, 94
    %v6549 = vpop.permute.xlu0 %6548
    %6551 = vst.msk [vmem:[#allocation8 + $0x2] sm:$0x1] %vm2897, %v6549
    %v6552 = vld [vmem:[#allocation7 + $0xf] sm:$0x1]
    %v6555 = vunpack.c.l.s4 1966171168
    %v6556 = vunpack.c.0.s8 %v6555
    %v6557 = vlaneseq
    %v6558 = vshrl.u32 %v6557, 7
    %v6559 = vsub.s32 %v6556, %v6558
    %v6560 = vrot.slane %v6552, %v6559
    %v6562 = vunpack.c.l.s4 1966171168
    %v6563 = vunpack.c.0.s8 %v6562
    %v6564 = vlaneseq
    %v6565 = vshrl.u32 %v6564, 7
    %v6566 = vsub.s32 %v6563, %v6565
    %v6567 = vrot.slane %v6560, %v6566
    %6568 = vrot.lane.b32.xlu0 %v6567, 119
    %v6569 = vpop.permute.xlu0 %6568
    %v6570 = vrot.slane %v6569, 7
    %v6571 = vsel %vm2918, %v6570, %v6569
    %6573 = vst.msk [vmem:[#allocation8 + $0x2] sm:$0x3] %vm2923, %v6571
    %v6574 = vld [vmem:[#allocation7 + $0x10] sm:$0x1]
    %v6577 = vunpack.c.l.s4 1966171168
    %v6578 = vunpack.c.0.s8 %v6577
    %v6579 = vlaneseq
    %v6580 = vshrl.u32 %v6579, 7
    %v6581 = vsub.s32 %v6578, %v6580
    %v6582 = vrot.slane %v6574, %v6581
    %v6584 = vunpack.c.l.s4 1966171168
    %v6585 = vunpack.c.0.s8 %v6584
    %v6586 = vlaneseq
    %v6587 = vshrl.u32 %v6586, 7
    %v6588 = vsub.s32 %v6585, %v6587
    %v6589 = vrot.slane %v6582, %v6588
    %6590 = vrot.lane.b32.xlu0 %v6589, 16
    %v6591 = vpop.permute.xlu0 %6590
    %6593 = vst.msk [vmem:[#allocation8 + $0x3] sm:$0x1] %vm2946, %v6591
    %v6594 = vld [vmem:[#allocation7 + $0x11] sm:$0x1]
    %v6597 = vunpack.c.l.s4 1966171168
    %v6598 = vunpack.c.0.s8 %v6597
    %v6599 = vlaneseq
    %v6600 = vshrl.u32 %v6599, 7
    %v6601 = vsub.s32 %v6598, %v6600
    %v6602 = vrot.slane %v6594, %v6601
    %v6604 = vunpack.c.l.s4 1966171168
    %v6605 = vunpack.c.0.s8 %v6604
    %v6606 = vlaneseq
    %v6607 = vshrl.u32 %v6606, 7
    %v6608 = vsub.s32 %v6605, %v6607
    %v6609 = vrot.slane %v6602, %v6608
    %6610 = vrot.lane.b32.xlu0 %v6609, 41
    %v6611 = vpop.permute.xlu0 %6610
    %6613 = vst.msk [vmem:[#allocation8 + $0x3] sm:$0x1] %vm2969, %v6611
    %v6614 = vld [vmem:[#allocation7 + $0x12] sm:$0x1]
    %v6617 = vunpack.c.l.s4 1966171168
    %v6618 = vunpack.c.0.s8 %v6617
    %v6619 = vlaneseq
    %v6620 = vshrl.u32 %v6619, 7
    %v6621 = vsub.s32 %v6618, %v6620
    %v6622 = vrot.slane %v6614, %v6621
    %v6624 = vunpack.c.l.s4 1966171168
    %v6625 = vunpack.c.0.s8 %v6624
    %v6626 = vlaneseq
    %v6627 = vshrl.u32 %v6626, 7
    %v6628 = vsub.s32 %v6625, %v6627
    %v6629 = vrot.slane %v6622, %v6628
    %6630 = vrot.lane.b32.xlu0 %v6629, 66
    %v6631 = vpop.permute.xlu0 %6630
    %6633 = vst.msk [vmem:[#allocation8 + $0x3] sm:$0x1] %vm2992, %v6631
    %v6634 = vld [vmem:[#allocation7 + $0x13] sm:$0x1]
    %v6637 = vunpack.c.l.s4 1966171168
    %v6638 = vunpack.c.0.s8 %v6637
    %v6639 = vlaneseq
    %v6640 = vshrl.u32 %v6639, 7
    %v6641 = vsub.s32 %v6638, %v6640
    %v6642 = vrot.slane %v6634, %v6641
    %v6644 = vunpack.c.l.s4 1966171168
    %v6645 = vunpack.c.0.s8 %v6644
    %v6646 = vlaneseq
    %v6647 = vshrl.u32 %v6646, 7
    %v6648 = vsub.s32 %v6645, %v6647
    %v6649 = vrot.slane %v6642, %v6648
    %6650 = vrot.lane.b32.xlu0 %v6649, 91
    %v6651 = vpop.permute.xlu0 %6650
    %6653 = vst.msk [vmem:[#allocation8 + $0x3] sm:$0x1] %vm3015, %v6651
    %v6654 = vld [vmem:[#allocation7 + $0x14] sm:$0x1]
    %v6657 = vunpack.c.l.s4 1966171168
    %v6658 = vunpack.c.0.s8 %v6657
    %v6659 = vlaneseq
    %v6660 = vshrl.u32 %v6659, 7
    %v6661 = vsub.s32 %v6658, %v6660
    %v6662 = vrot.slane %v6654, %v6661
    %v6664 = vunpack.c.l.s4 1966171168
    %v6665 = vunpack.c.0.s8 %v6664
    %v6666 = vlaneseq
    %v6667 = vshrl.u32 %v6666, 7
    %v6668 = vsub.s32 %v6665, %v6667
    %v6669 = vrot.slane %v6662, %v6668
    %6670 = vrot.lane.b32.xlu0 %v6669, 116
    %v6671 = vpop.permute.xlu0 %6670
    %v6672 = vrot.slane %v6671, 7
    %v6673 = vsel %vm3036, %v6672, %v6671
    %6675 = vst.msk [vmem:[#allocation8 + $0x3] sm:$0x3] %vm3041, %v6673
    %v6676 = vld [vmem:[#allocation7 + $0x15] sm:$0x1]
    %v6679 = vunpack.c.l.s4 1966171168
    %v6680 = vunpack.c.0.s8 %v6679
    %v6681 = vlaneseq
    %v6682 = vshrl.u32 %v6681, 7
    %v6683 = vsub.s32 %v6680, %v6682
    %v6684 = vrot.slane %v6676, %v6683
    %v6686 = vunpack.c.l.s4 1966171168
    %v6687 = vunpack.c.0.s8 %v6686
    %v6688 = vlaneseq
    %v6689 = vshrl.u32 %v6688, 7
    %v6690 = vsub.s32 %v6687, %v6689
    %v6691 = vrot.slane %v6684, %v6690
    %6692 = vrot.lane.b32.xlu0 %v6691, 13
    %v6693 = vpop.permute.xlu0 %6692
    %6695 = vst.msk [vmem:[#allocation8 + $0x4] sm:$0x1] %vm3064, %v6693
    %v6696 = vld [vmem:[#allocation7 + $0x16] sm:$0x1]
    %v6699 = vunpack.c.l.s4 1966171168
    %v6700 = vunpack.c.0.s8 %v6699
    %v6701 = vlaneseq
    %v6702 = vshrl.u32 %v6701, 7
    %v6703 = vsub.s32 %v6700, %v6702
    %v6704 = vrot.slane %v6696, %v6703
    %v6706 = vunpack.c.l.s4 1966171168
    %v6707 = vunpack.c.0.s8 %v6706
    %v6708 = vlaneseq
    %v6709 = vshrl.u32 %v6708, 7
    %v6710 = vsub.s32 %v6707, %v6709
    %v6711 = vrot.slane %v6704, %v6710
    %6712 = vrot.lane.b32.xlu0 %v6711, 38
    %v6713 = vpop.permute.xlu0 %6712
    %6715 = vst.msk [vmem:[#allocation8 + $0x4] sm:$0x1] %vm3087, %v6713
    %v6716 = vld [vmem:[#allocation7 + $0x17] sm:$0x1]
    %v6719 = vunpack.c.l.s4 1966171168
    %v6720 = vunpack.c.0.s8 %v6719
    %v6721 = vlaneseq
    %v6722 = vshrl.u32 %v6721, 7
    %v6723 = vsub.s32 %v6720, %v6722
    %v6724 = vrot.slane %v6716, %v6723
    %v6726 = vunpack.c.l.s4 1966171168
    %v6727 = vunpack.c.0.s8 %v6726
    %v6728 = vlaneseq
    %v6729 = vshrl.u32 %v6728, 7
    %v6730 = vsub.s32 %v6727, %v6729
    %v6731 = vrot.slane %v6724, %v6730
    %6732 = vrot.lane.b32.xlu0 %v6731, 63
    %v6733 = vpop.permute.xlu0 %6732
    %6735 = vst.msk [vmem:[#allocation8 + $0x4] sm:$0x1] %vm3110, %v6733
    %v6736 = vld [vmem:[#allocation7 + $0x18] sm:$0x1]
    %v6739 = vunpack.c.l.s4 1966171168
    %v6740 = vunpack.c.0.s8 %v6739
    %v6741 = vlaneseq
    %v6742 = vshrl.u32 %v6741, 7
    %v6743 = vsub.s32 %v6740, %v6742
    %v6744 = vrot.slane %v6736, %v6743
    %v6746 = vunpack.c.l.s4 1966171168
    %v6747 = vunpack.c.0.s8 %v6746
    %v6748 = vlaneseq
    %v6749 = vshrl.u32 %v6748, 7
    %v6750 = vsub.s32 %v6747, %v6749
    %v6751 = vrot.slane %v6744, %v6750
    %6752 = vrot.lane.b32.xlu0 %v6751, 88
    %v6753 = vpop.permute.xlu0 %6752
    %6755 = vst.msk [vmem:[#allocation8 + $0x4] sm:$0x1] %vm3133, %v6753
    %v6756 = vld [vmem:[#allocation7 + $0x19] sm:$0x1]
    %v6759 = vunpack.c.l.s4 1966171168
    %v6760 = vunpack.c.0.s8 %v6759
    %v6761 = vlaneseq
    %v6762 = vshrl.u32 %v6761, 7
    %v6763 = vsub.s32 %v6760, %v6762
    %v6764 = vrot.slane %v6756, %v6763
    %v6766 = vunpack.c.l.s4 1966171168
    %v6767 = vunpack.c.0.s8 %v6766
    %v6768 = vlaneseq
    %v6769 = vshrl.u32 %v6768, 7
    %v6770 = vsub.s32 %v6767, %v6769
    %v6771 = vrot.slane %v6764, %v6770
    %6772 = vrot.lane.b32.xlu0 %v6771, 113
    %v6773 = vpop.permute.xlu0 %6772
    %v6774 = vrot.slane %v6773, 7
    %v6775 = vsel %vm1460, %v6774, %v6773
    %6777 = vst.msk [vmem:[#allocation8 + $0x4] sm:$0x3] %vm3158, %v6775
    %v6778 = vld [vmem:[#allocation7 + $0x1a] sm:$0x1]
    %v6781 = vunpack.c.l.s4 1966171168
    %v6782 = vunpack.c.0.s8 %v6781
    %v6783 = vlaneseq
    %v6784 = vshrl.u32 %v6783, 7
    %v6785 = vsub.s32 %v6782, %v6784
    %v6786 = vrot.slane %v6778, %v6785
    %v6788 = vunpack.c.l.s4 1966171168
    %v6789 = vunpack.c.0.s8 %v6788
    %v6790 = vlaneseq
    %v6791 = vshrl.u32 %v6790, 7
    %v6792 = vsub.s32 %v6789, %v6791
    %v6793 = vrot.slane %v6786, %v6792
    %6794 = vrot.lane.b32.xlu0 %v6793, 10
    %v6795 = vpop.permute.xlu0 %6794
    %6797 = vst.msk [vmem:[#allocation8 + $0x5] sm:$0x1] %vm3181, %v6795
    %v6798 = vld [vmem:[#allocation7 + $0x1b] sm:$0x1]
    %v6801 = vunpack.c.l.s4 1966171168
    %v6802 = vunpack.c.0.s8 %v6801
    %v6803 = vlaneseq
    %v6804 = vshrl.u32 %v6803, 7
    %v6805 = vsub.s32 %v6802, %v6804
    %v6806 = vrot.slane %v6798, %v6805
    %v6808 = vunpack.c.l.s4 1966171168
    %v6809 = vunpack.c.0.s8 %v6808
    %v6810 = vlaneseq
    %v6811 = vshrl.u32 %v6810, 7
    %v6812 = vsub.s32 %v6809, %v6811
    %v6813 = vrot.slane %v6806, %v6812
    %6814 = vrot.lane.b32.xlu0 %v6813, 35
    %v6815 = vpop.permute.xlu0 %6814
    %6817 = vst.msk [vmem:[#allocation8 + $0x5] sm:$0x1] %vm3204, %v6815
    %v6818 = vld [vmem:[#allocation7 + $0x1c] sm:$0x1]
    %v6821 = vunpack.c.l.s4 1966171168
    %v6822 = vunpack.c.0.s8 %v6821
    %v6823 = vlaneseq
    %v6824 = vshrl.u32 %v6823, 7
    %v6825 = vsub.s32 %v6822, %v6824
    %v6826 = vrot.slane %v6818, %v6825
    %v6828 = vunpack.c.l.s4 1966171168
    %v6829 = vunpack.c.0.s8 %v6828
    %v6830 = vlaneseq
    %v6831 = vshrl.u32 %v6830, 7
    %v6832 = vsub.s32 %v6829, %v6831
    %v6833 = vrot.slane %v6826, %v6832
    %6834 = vrot.lane.b32.xlu0 %v6833, 60
    %v6835 = vpop.permute.xlu0 %6834
    %6837 = vst.msk [vmem:[#allocation8 + $0x5] sm:$0x1] %vm3227, %v6835
    %v6838 = vld [vmem:[#allocation7 + $0x1d] sm:$0x1]
    %v6841 = vunpack.c.l.s4 1966171168
    %v6842 = vunpack.c.0.s8 %v6841
    %v6843 = vlaneseq
    %v6844 = vshrl.u32 %v6843, 7
    %v6845 = vsub.s32 %v6842, %v6844
    %v6846 = vrot.slane %v6838, %v6845
    %v6848 = vunpack.c.l.s4 1966171168
    %v6849 = vunpack.c.0.s8 %v6848
    %v6850 = vlaneseq
    %v6851 = vshrl.u32 %v6850, 7
    %v6852 = vsub.s32 %v6849, %v6851
    %v6853 = vrot.slane %v6846, %v6852
    %6854 = vrot.lane.b32.xlu0 %v6853, 85
    %v6855 = vpop.permute.xlu0 %6854
    %6857 = vst.msk [vmem:[#allocation8 + $0x5] sm:$0x1] %vm3250, %v6855
    %v6858 = vld [vmem:[#allocation7 + $0x1e] sm:$0x1]
    %v6861 = vunpack.c.l.s4 1966171168
    %v6862 = vunpack.c.0.s8 %v6861
    %v6863 = vlaneseq
    %v6864 = vshrl.u32 %v6863, 7
    %v6865 = vsub.s32 %v6862, %v6864
    %v6866 = vrot.slane %v6858, %v6865
    %v6868 = vunpack.c.l.s4 1966171168
    %v6869 = vunpack.c.0.s8 %v6868
    %v6870 = vlaneseq
    %v6871 = vshrl.u32 %v6870, 7
    %v6872 = vsub.s32 %v6869, %v6871
    %v6873 = vrot.slane %v6866, %v6872
    %6874 = vrot.lane.b32.xlu0 %v6873, 110
    %v6875 = vpop.permute.xlu0 %6874
    %v6876 = vrot.slane %v6875, 7
    %v6877 = vsel %vm1541, %v6876, %v6875
    %6879 = vst.msk [vmem:[#allocation8 + $0x5] sm:$0x3] %vm3275, %v6877
    %v6880 = vld [vmem:[#allocation7 + $0x1f] sm:$0x1]
    %v6883 = vunpack.c.l.s4 1966171168
    %v6884 = vunpack.c.0.s8 %v6883
    %v6885 = vlaneseq
    %v6886 = vshrl.u32 %v6885, 7
    %v6887 = vsub.s32 %v6884, %v6886
    %v6888 = vrot.slane %v6880, %v6887
    %v6890 = vunpack.c.l.s4 1966171168
    %v6891 = vunpack.c.0.s8 %v6890
    %v6892 = vlaneseq
    %v6893 = vshrl.u32 %v6892, 7
    %v6894 = vsub.s32 %v6891, %v6893
    %v6895 = vrot.slane %v6888, %v6894
    %6896 = vrot.lane.b32.xlu0 %v6895, 7
    %v6897 = vpop.permute.xlu0 %6896
    %6899 = vst.msk [vmem:[#allocation8 + $0x6] sm:$0x1] %vm3298, %v6897
    %v6900 = vld [vmem:[#allocation8] sm:$0x7f]
    %v6901 = vld [vmem:[%s7] sm:$0xff]
    %v6902 = vld [vmem:[%s7 + $0x8] sm:$0xff]
    %v6903 = vld [vmem:[%s7 + $0x10] sm:$0xff]
    %v6904 = vld [vmem:[%s7 + $0x18] sm:$0xff]
    %v6905 = vld [vmem:[%s7 + $0x20] sm:$0xff]
    %v6906 = vld [vmem:[%s7 + $0x28] sm:$0xff]
    %v6907 = vld [vmem:[%s7 + $0x30] sm:$0xff]
    %v6908 = vld [vmem:[%s7 + $0x38] sm:$0xff]
    %v6909 = vld [vmem:[%s7 + $0x40] sm:$0xff]
    %v6910 = vld [vmem:[%s7 + $0x48] sm:$0xff]
    %v6911 = vld [vmem:[%s7 + $0x50] sm:$0xff]
    %v6912 = vld [vmem:[%s7 + $0x58] sm:$0xff]
    %v6913 = vld [vmem:[%s7 + $0x60] sm:$0xff]
    %v6914 = vld [vmem:[%s7 + $0x68] sm:$0xff]
    %v6915 = vld [vmem:[%s7 + $0x70] sm:$0xff]
    %v6916 = vld [vmem:[%s7 + $0x78] sm:$0xff]
    %v6917 = vld [vmem:[%s7 + $0x80] sm:$0xff]
    %v6918 = vld [vmem:[%s7 + $0x88] sm:$0xff]
    %v6919 = vld [vmem:[%s7 + $0x90] sm:$0xff]
    %v6920 = vld [vmem:[%s7 + $0x98] sm:$0xff]
    %v6921 = vld [vmem:[%s7 + $0xa0] sm:$0xff]
    %v6922 = vld [vmem:[%s7 + $0xa8] sm:$0xff]
    %v6923 = vld [vmem:[%s7 + $0xb0] sm:$0xff]
    %v6924 = vld [vmem:[%s7 + $0xb8] sm:$0xff]
    %v6925 = vld [vmem:[%s7 + $0xc0] sm:$0xff]
    %v6926 = vld [vmem:[%s7 + $0xc8] sm:$0xff]
    %v6927 = vld [vmem:[%s7 + $0xd0] sm:$0xff]
    %v6928 = vld [vmem:[%s7 + $0xd8] sm:$0xff]
    %v6929 = vld [vmem:[%s7 + $0xe0] sm:$0xff]
    %v6930 = vld [vmem:[%s7 + $0xe8] sm:$0xff]
    %v6931 = vld [vmem:[%s7 + $0xf0] sm:$0xff]
    %v6932 = vld [vmem:[%s7 + $0xf8] sm:$0xff]
    %v6933 = vld [vmem:[%s7 + $0x100] sm:$0xff]
    %v6934 = vld [vmem:[%s7 + $0x108] sm:$0xff]
    %v6935 = vld [vmem:[%s7 + $0x110] sm:$0xff]
    %v6936 = vld [vmem:[%s7 + $0x118] sm:$0xff]
    %v6937 = vld [vmem:[%s7 + $0x120] sm:$0xff]
    %v6938 = vld [vmem:[%s7 + $0x128] sm:$0xff]
    %v6939 = vld [vmem:[%s7 + $0x130] sm:$0xff]
    %v6940 = vld [vmem:[%s7 + $0x138] sm:$0xff]
    %v6941 = vld [vmem:[%s7 + $0x140] sm:$0xff]
    %v6942 = vld [vmem:[%s7 + $0x148] sm:$0xff]
    %v6943 = vld [vmem:[%s7 + $0x150] sm:$0xff]
    %v6944 = vld [vmem:[%s7 + $0x158] sm:$0xff]
    %v6945 = vld [vmem:[%s7 + $0x160] sm:$0xff]
    %v6946 = vld [vmem:[%s7 + $0x168] sm:$0xff]
    %v6947 = vld [vmem:[%s7 + $0x170] sm:$0xff]
    %v6948 = vld [vmem:[%s7 + $0x178] sm:$0xff]
    %v6949 = vld [vmem:[%s7 + $0x180] sm:$0xff]
    %v6950 = vld [vmem:[%s7 + $0x188] sm:$0xff]
    %v6951 = vld [vmem:[%s7 + $0x190] sm:$0xff]
    %v6952 = vld [vmem:[%s7 + $0x198] sm:$0xff]
    %v6953 = vld [vmem:[%s7 + $0x1a0] sm:$0xff]
    %v6954 = vld [vmem:[%s7 + $0x1a8] sm:$0xff]
    %v6955 = vld [vmem:[%s7 + $0x1b0] sm:$0xff]
    %v6956 = vld [vmem:[%s7 + $0x1b8] sm:$0xff]
    %v6957 = vld [vmem:[%s7 + $0x1c0] sm:$0xff]
    %v6958 = vld [vmem:[%s7 + $0x1c8] sm:$0xff]
    %v6959 = vld [vmem:[%s7 + $0x1d0] sm:$0xff]
    %v6960 = vld [vmem:[%s7 + $0x1d8] sm:$0xff]
    %v6961 = vld [vmem:[%s7 + $0x1e0] sm:$0xff]
    %v6962 = vld [vmem:[%s7 + $0x1e8] sm:$0xff]
    %v6963 = vld [vmem:[%s7 + $0x1f0] sm:$0xff]
    %v6964 = vld [vmem:[%s7 + $0x1f8] sm:$0xff]
    %v6965 = vld [vmem:[%s7 + $0x200] sm:$0xff]
    %v6966 = vld [vmem:[%s7 + $0x208] sm:$0xff]
    %v6967 = vld [vmem:[%s7 + $0x210] sm:$0xff]
    %v6968 = vld [vmem:[%s7 + $0x218] sm:$0xff]
    %v6969 = vld [vmem:[%s7 + $0x220] sm:$0xff]
    %v6970 = vld [vmem:[%s7 + $0x228] sm:$0xff]
    %v6971 = vld [vmem:[%s7 + $0x230] sm:$0xff]
    %v6972 = vld [vmem:[%s7 + $0x238] sm:$0xff]
    %v6973 = vld [vmem:[%s7 + $0x240] sm:$0xff]
    %v6974 = vld [vmem:[%s7 + $0x248] sm:$0xff]
    %v6975 = vld [vmem:[%s7 + $0x250] sm:$0xff]
    %v6976 = vld [vmem:[%s7 + $0x258] sm:$0xff]
    %v6977 = vld [vmem:[%s7 + $0x260] sm:$0xff]
    %v6978 = vld [vmem:[%s7 + $0x268] sm:$0xff]
    %v6979 = vld [vmem:[%s7 + $0x270] sm:$0xff]
    %v6980 = vld [vmem:[%s7 + $0x278] sm:$0xff]
    %v6981 = vld [vmem:[%s7 + $0x280] sm:$0xff]
    %v6982 = vld [vmem:[%s7 + $0x288] sm:$0xff]
    %v6983 = vld [vmem:[%s7 + $0x290] sm:$0xff]
    %v6984 = vld [vmem:[%s7 + $0x298] sm:$0xff]
    %v6985 = vld [vmem:[%s7 + $0x2a0] sm:$0xff]
    %v6986 = vld [vmem:[%s7 + $0x2a8] sm:$0xff]
    %v6987 = vld [vmem:[%s7 + $0x2b0] sm:$0xff]
    %v6988 = vld [vmem:[%s7 + $0x2b8] sm:$0xff]
    %v6989 = vld [vmem:[%s7 + $0x2c0] sm:$0xff]
    %v6990 = vld [vmem:[%s7 + $0x2c8] sm:$0xff]
    %v6991 = vld [vmem:[%s7 + $0x2d0] sm:$0xff]
    %v6992 = vld [vmem:[%s7 + $0x2d8] sm:$0xff]
    %v6993 = vld [vmem:[%s7 + $0x2e0] sm:$0xff]
    %v6994 = vld [vmem:[%s7 + $0x2e8] sm:$0xff]
    %v6995 = vld [vmem:[%s7 + $0x2f0] sm:$0xff]
    %v6996 = vld [vmem:[%s7 + $0x2f8] sm:$0xff]
    %v6997 = vld [vmem:[%s7 + $0x300] sm:$0xff]
    %v6998 = vld [vmem:[%s7 + $0x308] sm:$0xff]
    %v6999 = vld [vmem:[%s7 + $0x310] sm:$0xff]
    %v7000 = vld [vmem:[%s7 + $0x318] sm:$0xff]
    %v7001 = vld [vmem:[%s8] sm:$0x1]
    %v7003 = vlaneseq
    %v7004 = vshrl.u32 %v7003, 7
    %v7005 = vsub.s32 0, %v7004
    %v7006 = vrot.slane %v6900, %v7005
    %v7007 = vlaneseq
    %v7008 = vshrl.u32 %v7007, 7
    %v7009 = vsub.s32 1, %v7008
    %v7010 = vrot.slane %v6900, %v7009
    %v7011 = vlaneseq
    %v7012 = vshrl.u32 %v7011, 7
    %v7013 = vsub.s32 2, %v7012
    %v7014 = vrot.slane %v6900, %v7013
    %v7015 = vlaneseq
    %v7016 = vshrl.u32 %v7015, 7
    %v7017 = vsub.s32 3, %v7016
    %v7018 = vrot.slane %v6900, %v7017
    %v7019 = vlaneseq
    %v7020 = vshrl.u32 %v7019, 7
    %v7021 = vsub.s32 4, %v7020
    %v7022 = vrot.slane %v6900, %v7021
    %v7023 = vlaneseq
    %v7024 = vshrl.u32 %v7023, 7
    %v7025 = vsub.s32 5, %v7024
    %v7026 = vrot.slane %v6900, %v7025
    %v7027 = vlaneseq
    %v7028 = vshrl.u32 %v7027, 7
    %v7029 = vsub.s32 6, %v7028
    %v7030 = vrot.slane %v6900, %v7029
    %v7037 = vsel %vm3437, %v7030, 0
    %7039 = vmatprep.subr.mxu0 0.0
    %7040 = vmatpush1.msra.mxu0 %v6901
    %7041 = vmatprep.subr.mxu0 0.0
    %7042 = vmatpush1.msra.mxu0 %v6902
    %7043 = vmatprep.subr.mxu0 0.0
    %7044 = vmatpush1.msra.mxu0 %v6903
    %7045 = vmatprep.subr.mxu0 0.0
    %7046 = vmatpush1.msra.mxu0 %v6904
    %7047 = vmatprep.subr.mxu0 0.0
    %7048 = vmatpush1.msra.mxu0 %v6905
    %7049 = vmatprep.subr.mxu0 0.0
    %7050 = vmatpush1.msra.mxu0 %v6906
    %7051 = vmatprep.subr.mxu0 0.0
    %7052 = vmatpush1.msra.mxu0 %v6907
    %7053 = vmatprep.subr.mxu0 0.0
    %7054 = vmatpush1.msra.mxu0 %v6908
    %7055 = vmatprep.subr.mxu0 0.0
    %7056 = vmatpush1.msra.mxu0 %v6909
    %7057 = vmatprep.subr.mxu0 0.0
    %7058 = vmatpush1.msra.mxu0 %v6910
    %7059 = vmatprep.subr.mxu0 0.0
    %7060 = vmatpush1.msra.mxu0 %v6911
    %7061 = vmatprep.subr.mxu0 0.0
    %7062 = vmatpush1.msra.mxu0 %v6912
    %7063 = vmatprep.subr.mxu0 0.0
    %7064 = vmatpush1.msra.mxu0 %v6913
    %7065 = vmatprep.subr.mxu0 0.0
    %7066 = vmatpush1.msra.mxu0 %v6914
    %7067 = vmatprep.subr.mxu0 0.0
    %7068 = vmatpush1.msra.mxu0 %v6915
    %7069 = vmatprep.subr.mxu0 0.0
    %7070 = vmatpush1.msra.mxu0 %v6916
    %7071 = vmatprep.subr.mxu0 0.0
    %7072 = vmatpush1.msra.mxu0 %v6917
    %7073 = vmatprep.subr.mxu0 0.0
    %7074 = vmatpush1.msra.mxu0 %v6918
    %7075 = vmatprep.subr.mxu0 0.0
    %7076 = vmatpush1.msra.mxu0 %v6919
    %7077 = vmatprep.subr.mxu0 0.0
    %7078 = vmatpush1.msra.mxu0 %v6920
    %7079 = vmatprep.subr.mxu0 0.0
    %7080 = vmatpush1.msra.mxu0 %v6921
    %7081 = vmatprep.subr.mxu0 0.0
    %7082 = vmatpush1.msra.mxu0 %v6922
    %7083 = vmatprep.subr.mxu0 0.0
    %7084 = vmatpush1.msra.mxu0 %v6923
    %7085 = vmatprep.subr.mxu0 0.0
    %7086 = vmatpush1.msra.mxu0 %v6924
    %7087 = vmatprep.subr.mxu0 0.0
    %7088 = vmatpush1.msra.mxu0 %v6925
    %7089 = vmatprep.subr.mxu0 0.0
    %7090 = vmatpush1.msra.mxu0 %v6926
    %7091 = vmatprep.subr.mxu0 0.0
    %7092 = vmatpush1.msra.mxu0 %v6927
    %7093 = vmatprep.subr.mxu0 0.0
    %7094 = vmatpush1.msra.mxu0 %v6928
    %7095 = vmatprep.subr.mxu0 0.0
    %7096 = vmatpush1.msra.mxu0 %v6929
    %7097 = vmatprep.subr.mxu0 0.0
    %7098 = vmatpush1.msra.mxu0 %v6930
    %7099 = vmatprep.subr.mxu0 0.0
    %7100 = vmatpush1.msra.mxu0 %v6931
    %7101 = vmatprep.subr.mxu0 0.0
    %7102 = vmatpush1.msra.mxu0 %v6932
    %7103 = vmatprep.mubr.f32.mxu0 %v7010
    %7104 = vmatmul.mubr.f32.gmra.mrb[0].mxu0 %v7006
    %v7105 = vpop.f32.mrb[0].mxu0
    %v7106 = vadd.f32 %v7001, %v7105
    %v7107 = vpop.f32.mrb[0].mxu0
    %7108 = vdwg.mxu0
    %7109 = vmatprep.subr.mxu0 0.0
    %7110 = vmatpush1.msra.mxu0 %v6933
    %7111 = vmatprep.subr.mxu0 0.0
    %7112 = vmatpush1.msra.mxu0 %v6934
    %7113 = vmatprep.subr.mxu0 0.0
    %7114 = vmatpush1.msra.mxu0 %v6935
    %7115 = vmatprep.subr.mxu0 0.0
    %7116 = vmatpush1.msra.mxu0 %v6936
    %7117 = vmatprep.subr.mxu0 0.0
    %7118 = vmatpush1.msra.mxu0 %v6937
    %7119 = vmatprep.subr.mxu0 0.0
    %7120 = vmatpush1.msra.mxu0 %v6938
    %7121 = vmatprep.subr.mxu0 0.0
    %7122 = vmatpush1.msra.mxu0 %v6939
    %7123 = vmatprep.subr.mxu0 0.0
    %7124 = vmatpush1.msra.mxu0 %v6940
    %7125 = vmatprep.subr.mxu0 0.0
    %7126 = vmatpush1.msra.mxu0 %v6941
    %7127 = vmatprep.subr.mxu0 0.0
    %7128 = vmatpush1.msra.mxu0 %v6942
    %7129 = vmatprep.subr.mxu0 0.0
    %7130 = vmatpush1.msra.mxu0 %v6943
    %7131 = vmatprep.subr.mxu0 0.0
    %7132 = vmatpush1.msra.mxu0 %v6944
    %7133 = vmatprep.subr.mxu0 0.0
    %7134 = vmatpush1.msra.mxu0 %v6945
    %7135 = vmatprep.subr.mxu0 0.0
    %7136 = vmatpush1.msra.mxu0 %v6946
    %7137 = vmatprep.subr.mxu0 0.0
    %7138 = vmatpush1.msra.mxu0 %v6947
    %7139 = vmatprep.subr.mxu0 0.0
    %7140 = vmatpush1.msra.mxu0 %v6948
    %7141 = vmatprep.subr.mxu0 0.0
    %7142 = vmatpush1.msra.mxu0 %v6949
    %7143 = vmatprep.subr.mxu0 0.0
    %7144 = vmatpush1.msra.mxu0 %v6950
    %7145 = vmatprep.subr.mxu0 0.0
    %7146 = vmatpush1.msra.mxu0 %v6951
    %7147 = vmatprep.subr.mxu0 0.0
    %7148 = vmatpush1.msra.mxu0 %v6952
    %7149 = vmatprep.subr.mxu0 0.0
    %7150 = vmatpush1.msra.mxu0 %v6953
    %7151 = vmatprep.subr.mxu0 0.0
    %7152 = vmatpush1.msra.mxu0 %v6954
    %7153 = vmatprep.subr.mxu0 0.0
    %7154 = vmatpush1.msra.mxu0 %v6955
    %7155 = vmatprep.subr.mxu0 0.0
    %7156 = vmatpush1.msra.mxu0 %v6956
    %7157 = vmatprep.subr.mxu0 0.0
    %7158 = vmatpush1.msra.mxu0 %v6957
    %7159 = vmatprep.subr.mxu0 0.0
    %7160 = vmatpush1.msra.mxu0 %v6958
    %7161 = vmatprep.subr.mxu0 0.0
    %7162 = vmatpush1.msra.mxu0 %v6959
    %7163 = vmatprep.subr.mxu0 0.0
    %7164 = vmatpush1.msra.mxu0 %v6960
    %7165 = vmatprep.subr.mxu0 0.0
    %7166 = vmatpush1.msra.mxu0 %v6961
    %7167 = vmatprep.subr.mxu0 0.0
    %7168 = vmatpush1.msra.mxu0 %v6962
    %7169 = vmatprep.subr.mxu0 0.0
    %7170 = vmatpush1.msra.mxu0 %v6963
    %7171 = vmatprep.subr.mxu0 0.0
    %7172 = vmatpush1.msra.mxu0 %v6964
    %7173 = vmatprep.mubr.f32.mxu0 %v7018
    %7174 = vmatmul.mubr.f32.gmra.mrb[0].mxu0 %v7014
    %v7175 = vpop.f32.mrb[0].mxu0
    %v7176 = vadd.f32 %v7106, %v7175
    %v7177 = vpop.f32.mrb[0].mxu0
    %7178 = vdwg.mxu0
    %7179 = vmatprep.subr.mxu0 0.0
    %7180 = vmatpush1.msra.mxu0 %v6965
    %7181 = vmatprep.subr.mxu0 0.0
    %7182 = vmatpush1.msra.mxu0 %v6966
    %7183 = vmatprep.subr.mxu0 0.0
    %7184 = vmatpush1.msra.mxu0 %v6967
    %7185 = vmatprep.subr.mxu0 0.0
    %7186 = vmatpush1.msra.mxu0 %v6968
    %7187 = vmatprep.subr.mxu0 0.0
    %7188 = vmatpush1.msra.mxu0 %v6969
    %7189 = vmatprep.subr.mxu0 0.0
    %7190 = vmatpush1.msra.mxu0 %v6970
    %7191 = vmatprep.subr.mxu0 0.0
    %7192 = vmatpush1.msra.mxu0 %v6971
    %7193 = vmatprep.subr.mxu0 0.0
    %7194 = vmatpush1.msra.mxu0 %v6972
    %7195 = vmatprep.subr.mxu0 0.0
    %7196 = vmatpush1.msra.mxu0 %v6973
    %7197 = vmatprep.subr.mxu0 0.0
    %7198 = vmatpush1.msra.mxu0 %v6974
    %7199 = vmatprep.subr.mxu0 0.0
    %7200 = vmatpush1.msra.mxu0 %v6975
    %7201 = vmatprep.subr.mxu0 0.0
    %7202 = vmatpush1.msra.mxu0 %v6976
    %7203 = vmatprep.subr.mxu0 0.0
    %7204 = vmatpush1.msra.mxu0 %v6977
    %7205 = vmatprep.subr.mxu0 0.0
    %7206 = vmatpush1.msra.mxu0 %v6978
    %7207 = vmatprep.subr.mxu0 0.0
    %7208 = vmatpush1.msra.mxu0 %v6979
    %7209 = vmatprep.subr.mxu0 0.0
    %7210 = vmatpush1.msra.mxu0 %v6980
    %7211 = vmatprep.subr.mxu0 0.0
    %7212 = vmatpush1.msra.mxu0 %v6981
    %7213 = vmatprep.subr.mxu0 0.0
    %7214 = vmatpush1.msra.mxu0 %v6982
    %7215 = vmatprep.subr.mxu0 0.0
    %7216 = vmatpush1.msra.mxu0 %v6983
    %7217 = vmatprep.subr.mxu0 0.0
    %7218 = vmatpush1.msra.mxu0 %v6984
    %7219 = vmatprep.subr.mxu0 0.0
    %7220 = vmatpush1.msra.mxu0 %v6985
    %7221 = vmatprep.subr.mxu0 0.0
    %7222 = vmatpush1.msra.mxu0 %v6986
    %7223 = vmatprep.subr.mxu0 0.0
    %7224 = vmatpush1.msra.mxu0 %v6987
    %7225 = vmatprep.subr.mxu0 0.0
    %7226 = vmatpush1.msra.mxu0 %v6988
    %7227 = vmatprep.subr.mxu0 0.0
    %7228 = vmatpush1.msra.mxu0 %v6989
    %7229 = vmatprep.subr.mxu0 0.0
    %7230 = vmatpush1.msra.mxu0 %v6990
    %7231 = vmatprep.subr.mxu0 0.0
    %7232 = vmatpush1.msra.mxu0 %v6991
    %7233 = vmatprep.subr.mxu0 0.0
    %7234 = vmatpush1.msra.mxu0 %v6992
    %7235 = vmatprep.subr.mxu0 0.0
    %7236 = vmatpush1.msra.mxu0 %v6993
    %7237 = vmatprep.subr.mxu0 0.0
    %7238 = vmatpush1.msra.mxu0 %v6994
    %7239 = vmatprep.subr.mxu0 0.0
    %7240 = vmatpush1.msra.mxu0 %v6995
    %7241 = vmatprep.subr.mxu0 0.0
    %7242 = vmatpush1.msra.mxu0 %v6996
    %7243 = vmatprep.mubr.f32.mxu0 %v7026
    %7244 = vmatmul.mubr.f32.gmra.mrb[0].mxu0 %v7022
    %v7245 = vpop.f32.mrb[0].mxu0
    %v7246 = vadd.f32 %v7176, %v7245
    %v7247 = vpop.f32.mrb[0].mxu0
    %7248 = vdwg.mxu0
    %7249 = vmatprep.subr.mxu0 0.0
    %7250 = vmatpush1.msra.mxu0 %v6997
    %7251 = vmatprep.subr.mxu0 0.0
    %7252 = vmatpush1.msra.mxu0 %v6998
    %7253 = vmatprep.subr.mxu0 0.0
    %7254 = vmatpush1.msra.mxu0 %v6999
    %7255 = vmatprep.subr.mxu0 0.0
    %7256 = vmatpush1.msra.mxu0 %v7000
    %7257 = vmatprep.subr.mxu0 0.0
    %7258 = vmatpush1.msra.mxu0 0.0
    %7259 = vmatprep.subr.mxu0 0.0
    %7260 = vmatpush1.msra.mxu0 0.0
    %7261 = vmatprep.subr.mxu0 0.0
    %7262 = vmatpush1.msra.mxu0 0.0
    %7263 = vmatprep.subr.mxu0 0.0
    %7264 = vmatpush1.msra.mxu0 0.0
    %7265 = vmatprep.subr.mxu0 0.0
    %7266 = vmatpush1.msra.mxu0 0.0
    %7267 = vmatprep.subr.mxu0 0.0
    %7268 = vmatpush1.msra.mxu0 0.0
    %7269 = vmatprep.subr.mxu0 0.0
    %7270 = vmatpush1.msra.mxu0 0.0
    %7271 = vmatprep.subr.mxu0 0.0
    %7272 = vmatpush1.msra.mxu0 0.0
    %7273 = vmatprep.subr.mxu0 0.0
    %7274 = vmatpush1.msra.mxu0 0.0
    %7275 = vmatprep.subr.mxu0 0.0
    %7276 = vmatpush1.msra.mxu0 0.0
    %7277 = vmatprep.subr.mxu0 0.0
    %7278 = vmatpush1.msra.mxu0 0.0
    %7279 = vmatprep.subr.mxu0 0.0
    %7280 = vmatpush1.msra.mxu0 0.0
    %7281 = vmatprep.subr.mxu0 0.0
    %7282 = vmatpush1.msra.mxu0 0.0
    %7283 = vmatprep.subr.mxu0 0.0
    %7284 = vmatpush1.msra.mxu0 0.0
    %7285 = vmatprep.subr.mxu0 0.0
    %7286 = vmatpush1.msra.mxu0 0.0
    %7287 = vmatprep.subr.mxu0 0.0
    %7288 = vmatpush1.msra.mxu0 0.0
    %7289 = vmatprep.subr.mxu0 0.0
    %7290 = vmatpush1.msra.mxu0 0.0
    %7291 = vmatprep.subr.mxu0 0.0
    %7292 = vmatpush1.msra.mxu0 0.0
    %7293 = vmatprep.subr.mxu0 0.0
    %7294 = vmatpush1.msra.mxu0 0.0
    %7295 = vmatprep.subr.mxu0 0.0
    %7296 = vmatpush1.msra.mxu0 0.0
    %7297 = vmatprep.subr.mxu0 0.0
    %7298 = vmatpush1.msra.mxu0 0.0
    %7299 = vmatprep.subr.mxu0 0.0
    %7300 = vmatpush1.msra.mxu0 0.0
    %7301 = vmatprep.subr.mxu0 0.0
    %7302 = vmatpush1.msra.mxu0 0.0
    %7303 = vmatprep.subr.mxu0 0.0
    %7304 = vmatpush1.msra.mxu0 0.0
    %7305 = vmatprep.subr.mxu0 0.0
    %7306 = vmatpush1.msra.mxu0 0.0
    %7307 = vmatprep.subr.mxu0 0.0
    %7308 = vmatpush1.msra.mxu0 0.0
    %7309 = vmatprep.subr.mxu0 0.0
    %7310 = vmatpush1.msra.mxu0 0.0
    %7311 = vmatprep.subr.mxu0 0.0
    %7312 = vmatpush1.msra.mxu0 0.0
    %7313 = vmatprep.mubr.f32.mxu0 0.0
    %7314 = vmatmul.mubr.f32.gmra.mrb[0].mxu0 %v7037
    %v7315 = vpop.f32.mrb[0].mxu0
    %v7316 = vadd.f32 %v7246, %v7315
    %v7317 = vpop.f32.mrb[0].mxu0
    %7318 = vdwg.mxu0
    %v7319 = vmax.f32 %v7316, 0.0
    %v7320 = vld [vmem:[%s9] sm:$0xff]
    %v7321 = vld [vmem:[%s9 + $0x8] sm:$0xff]
    %v7322 = vld [vmem:[%s9 + $0x10] sm:$0xff]
    %v7323 = vld [vmem:[%s9 + $0x18] sm:$0xff]
    %v7324 = vld [vmem:[%s9 + $0x20] sm:$0xff]
    %v7325 = vld [vmem:[%s9 + $0x28] sm:$0xff]
    %v7326 = vld [vmem:[%s9 + $0x30] sm:$0xff]
    %v7327 = vld [vmem:[%s9 + $0x38] sm:$0xff]
    %v7328 = vld [vmem:[%s10] sm:$0x1]
    %v7330 = vsel %vm194, %v7319, 0
    %7332 = vmatprep.subr.mxu0 0.0
    %7333 = vmatpush1.msra.mxu0 %v7320
    %7334 = vmatprep.subr.mxu0 0.0
    %7335 = vmatpush1.msra.mxu0 %v7321
    %7336 = vmatprep.subr.mxu0 0.0
    %7337 = vmatpush1.msra.mxu0 %v7322
    %7338 = vmatprep.subr.mxu0 0.0
    %7339 = vmatpush1.msra.mxu0 %v7323
    %7340 = vmatprep.subr.mxu0 0.0
    %7341 = vmatpush1.msra.mxu0 %v7324
    %7342 = vmatprep.subr.mxu0 0.0
    %7343 = vmatpush1.msra.mxu0 %v7325
    %7344 = vmatprep.subr.mxu0 0.0
    %7345 = vmatpush1.msra.mxu0 %v7326
    %7346 = vmatprep.subr.mxu0 0.0
    %7347 = vmatpush1.msra.mxu0 %v7327
    %7348 = vmatprep.subr.mxu0 0.0
    %7349 = vmatpush1.msra.mxu0 0.0
    %7350 = vmatprep.subr.mxu0 0.0
    %7351 = vmatpush1.msra.mxu0 0.0
    %7352 = vmatprep.subr.mxu0 0.0
    %7353 = vmatpush1.msra.mxu0 0.0
    %7354 = vmatprep.subr.mxu0 0.0
    %7355 = vmatpush1.msra.mxu0 0.0
    %7356 = vmatprep.subr.mxu0 0.0
    %7357 = vmatpush1.msra.mxu0 0.0
    %7358 = vmatprep.subr.mxu0 0.0
    %7359 = vmatpush1.msra.mxu0 0.0
    %7360 = vmatprep.subr.mxu0 0.0
    %7361 = vmatpush1.msra.mxu0 0.0
    %7362 = vmatprep.subr.mxu0 0.0
    %7363 = vmatpush1.msra.mxu0 0.0
    %7364 = vmatprep.subr.mxu0 0.0
    %7365 = vmatpush1.msra.mxu0 0.0
    %7366 = vmatprep.subr.mxu0 0.0
    %7367 = vmatpush1.msra.mxu0 0.0
    %7368 = vmatprep.subr.mxu0 0.0
    %7369 = vmatpush1.msra.mxu0 0.0
    %7370 = vmatprep.subr.mxu0 0.0
    %7371 = vmatpush1.msra.mxu0 0.0
    %7372 = vmatprep.subr.mxu0 0.0
    %7373 = vmatpush1.msra.mxu0 0.0
    %7374 = vmatprep.subr.mxu0 0.0
    %7375 = vmatpush1.msra.mxu0 0.0
    %7376 = vmatprep.subr.mxu0 0.0
    %7377 = vmatpush1.msra.mxu0 0.0
    %7378 = vmatprep.subr.mxu0 0.0
    %7379 = vmatpush1.msra.mxu0 0.0
    %7380 = vmatprep.subr.mxu0 0.0
    %7381 = vmatpush1.msra.mxu0 0.0
    %7382 = vmatprep.subr.mxu0 0.0
    %7383 = vmatpush1.msra.mxu0 0.0
    %7384 = vmatprep.subr.mxu0 0.0
    %7385 = vmatpush1.msra.mxu0 0.0
    %7386 = vmatprep.subr.mxu0 0.0
    %7387 = vmatpush1.msra.mxu0 0.0
    %7388 = vmatprep.subr.mxu0 0.0
    %7389 = vmatpush1.msra.mxu0 0.0
    %7390 = vmatprep.subr.mxu0 0.0
    %7391 = vmatpush1.msra.mxu0 0.0
    %7392 = vmatprep.subr.mxu0 0.0
    %7393 = vmatpush1.msra.mxu0 0.0
    %7394 = vmatprep.subr.mxu0 0.0
    %7395 = vmatpush1.msra.mxu0 0.0
    %7396 = vmatprep.mubr.f32.mxu0 0.0
    %7397 = vmatmul.mubr.f32.gmra.mrb[0].mxu0 %v7330
    %v7398 = vpop.f32.mrb[0].mxu0
    %v7399 = vadd.f32 %v7328, %v7398
    %v7400 = vpop.f32.mrb[0].mxu0
    %7401 = vdwg.mxu0
    %s7402 = scalar_lea.vmem [#allocation9], 1
    %7403 = vst.msk [vmem:[%s7402] sm:$0x1] %vm3803, %v7399
    // Predicated region
    $region46: #{forward_pallas.1} parent=1 // pred_check
      _
    $region47: #{forward_pallas.1} parent=1 // pred_check_branch
      %7405 = sbr.rel (0) target = $region49
    $region48: #{forward_pallas.1} parent=1 // pred_region
      %s7407 = ssub.s32 32, 32
      %7408 = vsyncadd [#allocation10], %s7407
      %s7409 = sshll.u32 [#allocation9], 4
      %s7410 = int_to_ptr.vmem [resolvable:$true] %s7409
      %7415 = dma.vmem_to_hbm [thread:$0]  %s7410, 32, %s11, [#allocation10], 16, 16, 1
    $region49: #{forward_pallas.1} parent=1 // pred_fallthru
      _
    // Predicated region
    $region50: #{forward_pallas.1} parent=1 // pred_check
      _
    $region51: #{forward_pallas.1} parent=1 // pred_check_branch
      %7417 = sbr.rel (0) target = $region53
    $region52: #{forward_pallas.1} parent=1 // pred_region
      %7418 = dma.done [#allocation10], 32
    $region53: #{forward_pallas.1} parent=1 // pred_fallthru
      _
    %7419 = vsyncpa [#allocation10], 1

</llo_original>
